<compile_context>
chip_gen: v7x
topology: tpu7x:2x2x1
jax: 0.10.0
libtpu: 0.0.40
codegen_flags: <defaults>
</compile_context>

<pallas_src>
import functools

import numpy as np
import jax
import jax.numpy as jnp
from jax.experimental import pallas as pl
from jax.experimental.pallas import tpu as pltpu


def _vmem_spec():
    return pl.BlockSpec(memory_space=pltpu.MemorySpace.VMEM)


# ------------------------------ fused generator kernel ------------------------------
def _generator_kernel(
    z_ref, l1w_ref, l1b_ref,
    g0_ref, b0_ref,
    c1w_ref, c1b_ref, g1_ref, b1_ref,
    c2w_ref, c2b_ref, g2_ref, b2_ref,
    c3w_ref, c3b_ref,
    o_ref,
    *, batch, init_size,
):
    f32 = jnp.float32
    bf16 = jnp.bfloat16
    C = 128                      # feature width (stage-2 output zero-padded 64 -> 128)

    def batchnorm(x, gamma, beta, eps):
        # Training-mode batch stats, centered two-pass (stable even for eps=1e-5),
        # biased variance (matches torch BatchNorm2d normalization).  All f32.
        cnt = x.shape[0] * x.shape[1] * x.shape[2]
        mean = jnp.sum(x, axis=(0, 1, 2), keepdims=True) * (1.0 / cnt)
        d = x - mean
        var = jnp.sum(d * d, axis=(0, 1, 2), keepdims=True) * (1.0 / cnt)
        scale = gamma * jax.lax.rsqrt(var + eps)          # rsqrt -> EUP slot
        return d * scale + beta

    def leaky_relu(x):
        return jnp.where(x > 0, x, 0.2 * x)

    def pad_hw(x):
        # zero-pad H and W by 1 (VMEM only, applied to the LOW-RES tensor)
        n, h, w, c = x.shape
        zr = jnp.zeros((n, 1, w, c), f32)
        xp = jnp.concatenate([zr, x, zr], axis=1)
        zc = jnp.zeros((n, h + 2, 1, c), f32)
        return jnp.concatenate([zc, xp, zc], axis=2)

    def tap_views(x):
        # 9 shifted views of the padded tensor, flattened to (B*h*w, C) and cast
        # to bf16 for the MXU.  No 9x im2col buffer, no lane concatenation.
        n, h, w, c = x.shape
        xp = pad_hw(x)
        return {
            (r, s): xp[:, 1 + r:1 + r + h, 1 + s:1 + s + w, :]
                    .reshape(n * h * w, c).astype(bf16)
            for r in (-1, 0, 1) for s in (-1, 0, 1)
        }

    def up_conv(x, w_ref, b_ref):
        # Fused nearest-2x-upsample + 3x3 conv (padding=1).
        # Decomposed into 4 output phases; each phase is a 2x2 conv on the
        # LOW-RES tensor with weights pre-combined offline.  Taps are
        # accumulated (f32 acc) -> no im2col, no upsampled-input tensor.
        n, h, w, c = x.shape
        m = n * h * w
        views = tap_views(x)
        off = ((-1, 0), (0, 1))            # [phase parity][tap] -> low-res offset
        cout = w_ref.shape[1]
        phases = []
        for pi in (0, 1):
            for pj in (0, 1):
                acc = jnp.zeros((m, cout), f32)
                for tr in (0, 1):
                    for tc in (0, 1):
                        blk = (2 * pi + pj) * 4 + 2 * tr + tc
                        acc = acc + jnp.dot(
                            views[(off[pi][tr], off[pj][tc])],
                            w_ref[blk * c:(blk + 1) * c, :],      # (C, Cout) bf16
                            preferred_element_type=f32)
                phases.append((acc + b_ref[...]).reshape(n, h, w, cout))
        p00, p01, p10, p11 = phases
        # Interleave the phase outputs back to high-res layout (one pass, on the
        # conv OUTPUT; same concat+reshape trick as a nearest upsample).
        top = jnp.concatenate([p00, p01], axis=3).reshape(n, h, 2 * w, cout)
        bot = jnp.concatenate([p10, p11], axis=3).reshape(n, h, 2 * w, cout)
        return jnp.concatenate([top, bot], axis=2).reshape(n, 2 * h, 2 * w, cout)

    # ---- Linear: bf16 x bf16 -> f32 acc; columns pre-permuted offline so the
    #      reshape of the output is already channels-last (no NCHW->NHWC transpose).
    out = jnp.dot(z_ref[...].astype(bf16), l1w_ref[...],
                  preferred_element_type=f32) + l1b_ref[...]
    x = out.reshape(batch, init_size, init_size, C)               # (B, s, s, 128)

    # ---- BatchNorm2d(128), eps=1e-5 ----
    x = batchnorm(x, g0_ref[...], b0_ref[...], 1e-5)

    # ---- [Upsample x2 + Conv(128->128)] fused -> BN(eps=0.8) -> LeakyReLU ----
    x = up_conv(x, c1w_ref, c1b_ref)
    x = leaky_relu(batchnorm(x, g1_ref[...], b1_ref[...], 0.8))

    # ---- [Upsample x2 + Conv(128->64, Cout zero-padded to 128)] -> BN -> LeakyReLU
    x = up_conv(x, c2w_ref, c2b_ref)
    x = leaky_relu(batchnorm(x, g2_ref[...], b2_ref[...], 0.8))

    # ---- Final Conv(64->c_img, padded to 8 x 128): 9 tap-accumulated matmuls
    #      emitting (Cout_pad, B*H*W) directly -> B*H*W on the lane axis, full
    #      8-sublane unmasked store.
    n, h, w, _ = x.shape
    m = n * h * w
    views = tap_views(x)
    acc = jnp.zeros((o_ref.shape[0], m), f32)
    for ky in range(3):
        for kx in range(3):
            acc = acc + jax.lax.dot_general(
                c3w_ref[3 * ky + kx].astype(bf16),                # (8, 128)
                views[(ky - 1, kx - 1)],                          # (M, 128)
                dimension_numbers=(((1,), (1,)), ((), ())),
                preferred_element_type=f32)                       # (8, M)
    o_ref[...] = acc + c3b_ref[...]


# --------------------------------- wrapper ---------------------------------
def generator_forward(z, kparams, img_shape):
    """z: (B, latent); kparams: output of prepare_params(); returns (B, C, H, W)."""
    c_img, h_img, w_img = img_shape
    init = h_img // 4
    batch = z.shape[0]
    cout_pad = kparams["c3_b"].shape[0]

    kern = functools.partial(_generator_kernel, batch=batch, init_size=init)

    flat = pl.pallas_call(
        kern,
        out_shape=jax.ShapeDtypeStruct((cout_pad, batch * h_img * w_img), jnp.float32),
        in_specs=[_vmem_spec()] * 15,
        out_specs=_vmem_spec(),
        compiler_params=pltpu.CompilerParams(vmem_limit_bytes=32 * 1024 * 1024),
        # Advisory cost so XLA schedules surrounding ops around this tiny,
        # latency-bound kernel instead of serializing on it.
        cost_estimate=pl.CostEstimate(flops=100_000_000, transcendentals=512,
                                      bytes_accessed=1_400_000),
        # NOTE: gridless on purpose -- at these sizes full VMEM residency beats
        # tiling.  For production sizes add a "parallel" grid over output
        # channels / image rows (not batch: BN needs cross-batch stats) for the
        # v7x second TensorCore, with per-TC tiles sized for 64 MiB VMEM.
    )(z,
      kparams["l1_w"], kparams["l1_b"],
      kparams["bn0_g"], kparams["bn0_b"],
      kparams["c1_w"], kparams["c1_b"], kparams["bn1_g"], kparams["bn1_b"],
      kparams["c2_w"], kparams["c2_b"], kparams["bn2_g"], kparams["bn2_b"],
      kparams["c3_w"], kparams["c3_b"])

    # (Cout_pad, B*H*W) -> slice real channels -> (B, C, H, W); layout-only glue.
    return flat[:c_img].reshape(c_img, batch, h_img, w_img).transpose(1, 0, 2, 3)


# -------------------------- parameter construction --------------------------
def init_params(key, latent_dim, img_shape):
    """Parameters in PyTorch-native layouts (Linear (out,in); Conv (out,in,kh,kw))."""
    c_img, h_img, _ = img_shape
    init = h_img // 4
    d_out = 128 * init * init
    ks = jax.random.split(key, 4)
    s = 0.05
    return {
        "l1_w": jax.random.normal(ks[0], (d_out, latent_dim), jnp.float32) * s,
        "l1_b": jnp.zeros((d_out,), jnp.float32),
        "bn0_g": jnp.ones((128,), jnp.float32), "bn0_b": jnp.zeros((128,), jnp.float32),
        "c1_w": jax.random.normal(ks[1], (128, 128, 3, 3), jnp.float32) * s,
        "c1_b": jnp.zeros((128,), jnp.float32),
        "bn1_g": jnp.ones((128,), jnp.float32), "bn1_b": jnp.zeros((128,), jnp.float32),
        "c2_w": jax.random.normal(ks[2], (64, 128, 3, 3), jnp.float32) * s,
        "c2_b": jnp.zeros((64,), jnp.float32),
        "bn2_g": jnp.ones((64,), jnp.float32), "bn2_b": jnp.zeros((64,), jnp.float32),
        "c3_w": jax.random.normal(ks[3], (c_img, 64, 3, 3), jnp.float32) * s,
        "c3_b": jnp.zeros((c_img,), jnp.float32),
    }


def prepare_params(p, init_size, c_img, c_pad=128, cout_pad=8):
    """One-time offline weight preprocessing into kernel-friendly layouts."""
    f32, bf16 = jnp.float32, jnp.bfloat16

    # Column permutation so the Linear output reshapes directly to NHWC (B, s, s, 128).
    perm = np.arange(128 * init_size * init_size).reshape(128, init_size, init_size)
    perm = jnp.asarray(perm.transpose(1, 2, 0).reshape(-1))

    def phase_conv_w(w, cout_to):
        # (Cout, Cin, 3, 3) torch conv weight -> (16*Cin, cout_to) bf16.
        # For fused nearest-2x-upsample + 3x3 conv: 4 output phases, each a 2x2
        # conv on the low-res grid; tap (ky,kx) weights that land on the same
        # low-res offset are summed offline.  Block order = [phase pi,pj][tap tr,tc].
        cout = w.shape[0]
        comb = (((0,), (1, 2)), ((0, 1), (2,)))   # [parity][tap] -> source ky/kx set
        blocks = []
        for pi in (0, 1):
            for pj in (0, 1):
                for tr in (0, 1):
                    for tc in (0, 1):
                        m = sum(w[:, :, ky, kx]
                                for ky in comb[pi][tr] for kx in comb[pj][tc])
                        blocks.append(jnp.transpose(m))           # (Cin, Cout)
        wmat = jnp.concatenate(blocks, axis=0)                    # (16*Cin, Cout)
        if cout_to > cout:
            wmat = jnp.pad(wmat, ((0, 0), (0, cout_to - cout)))
        return wmat.astype(bf16)

    def pad_vec(v, n):
        return jnp.pad(v, (0, n - v.shape[0])).reshape(1, n).astype(f32)

    # Final conv: per-tap (cout_pad, c_pad) matrices; stored f32 ((8,128) = one
    # aligned tile per tap), cast to bf16 in-kernel right before the dot.
    taps = []
    for ky in range(3):
        for kx in range(3):
            m = p["c3_w"][:, :, ky, kx]                           # (c_img, 64)
            m = jnp.pad(m, ((0, cout_pad - m.shape[0]), (0, c_pad - m.shape[1])))
            taps.append(m)
    c3_w = jnp.stack(taps, axis=0).astype(f32)                    # (9, 8, 128)
    c3_b = jnp.pad(p["c3_b"], (0, cout_pad - c_img)).reshape(cout_pad, 1).astype(f32)

    return {
        "l1_w": jnp.transpose(p["l1_w"])[:, perm].astype(bf16),   # (Din, Dout) bf16
        "l1_b": p["l1_b"][perm].reshape(1, -1).astype(f32),
        "bn0_g": p["bn0_g"].reshape(1, -1), "bn0_b": p["bn0_b"].reshape(1, -1),
        "c1_w": phase_conv_w(p["c1_w"], c_pad), "c1_b": pad_vec(p["c1_b"], c_pad),
        "bn1_g": pad_vec(p["bn1_g"], c_pad), "bn1_b": pad_vec(p["bn1_b"], c_pad),
        "c2_w": phase_conv_w(p["c2_w"], c_pad), "c2_b": pad_vec(p["c2_b"], c_pad),
        "bn2_g": pad_vec(p["bn2_g"], c_pad), "bn2_b": pad_vec(p["bn2_b"], c_pad),
        "c3_w": c3_w, "c3_b": c3_b,
    }


# ---------------------- pure-JAX reference (f32, NCHW) ----------------------
def _reference_forward(z, p, img_shape):
    """Faithful replica of the PyTorch module in train() mode (batch-stat BN)."""
    c_img, h_img, _ = img_shape
    init = h_img // 4
    b = z.shape[0]

    def bn(x, g, be, eps):
        mean = jnp.mean(x, axis=(0, 2, 3), keepdims=True)
        var = jnp.mean((x - mean) ** 2, axis=(0, 2, 3), keepdims=True)   # biased
        return (x - mean) * jax.lax.rsqrt(var + eps) * g.reshape(1, -1, 1, 1) \
            + be.reshape(1, -1, 1, 1)

    def conv(x, w, bias):
        y = jax.lax.conv_general_dilated(
            x, w, window_strides=(1, 1), padding=((1, 1), (1, 1)),
            dimension_numbers=("NCHW", "OIHW", "NCHW"))
        return y + bias.reshape(1, -1, 1, 1)

    def up(x):
        return jnp.repeat(jnp.repeat(x, 2, axis=2), 2, axis=3)

    def lrelu(x):
        return jnp.where(x > 0, x, 0.2 * x)

    x = (z @ p["l1_w"].T + p["l1_b"]).reshape(b, 128, init, init)
    x = bn(x, p["bn0_g"], p["bn0_b"], 1e-5)
    x = lrelu(bn(conv(up(x), p["c1_w"], p["c1_b"]), p["bn1_g"], p["bn1_b"], 0.8))
    x = lrelu(bn(conv(up(x), p["c2_w"], p["c2_b"]), p["bn2_g"], p["bn2_b"], 0.8))
    return conv(x, p["c3_w"], p["c3_b"])


if __name__ == "__main__":
    latent_dim = 32
    img_shape = (3, 16, 16)     # (C, H, W) -> init_size = 4
    batch = 2

    key = jax.random.PRNGKey(0)
    kp, kz = jax.random.split(key)
    params = init_params(kp, latent_dim, img_shape)
    kparams = prepare_params(params, img_shape[1] // 4, img_shape[0])  # offline prep
    z = jax.random.normal(kz, (batch, latent_dim), jnp.float32)

    img = generator_forward(z, kparams, img_shape)
    jax.block_until_ready(img)

    assert img.shape == (batch, img_shape[0], img_shape[1], img_shape[2]), img.shape
    assert img.dtype == jnp.float32
    assert bool(jnp.all(jnp.isfinite(img)))

    # Numerics check vs. the f32 reference (bf16 MXU operands => loosened tolerance).
    ref = _reference_forward(z, params, img_shape)
    np.testing.assert_allclose(np.asarray(img), np.asarray(ref), rtol=6e-2, atol=6e-2)

    print("KERNEL_OK")
</pallas_src>

<mosaic_0001>
module attributes {stable_mosaic.version = 11 : i64} {
  func.func @_generator_kernel(%arg0: memref<2x32xf32, #tpu.memory_space<vmem>>, %arg1: memref<32x2048xbf16, #tpu.memory_space<vmem>>, %arg2: memref<1x2048xf32, #tpu.memory_space<vmem>>, %arg3: memref<1x128xf32, #tpu.memory_space<vmem>>, %arg4: memref<1x128xf32, #tpu.memory_space<vmem>>, %arg5: memref<2048x128xbf16, #tpu.memory_space<vmem>>, %arg6: memref<1x128xf32, #tpu.memory_space<vmem>>, %arg7: memref<1x128xf32, #tpu.memory_space<vmem>>, %arg8: memref<1x128xf32, #tpu.memory_space<vmem>>, %arg9: memref<2048x128xbf16, #tpu.memory_space<vmem>>, %arg10: memref<1x128xf32, #tpu.memory_space<vmem>>, %arg11: memref<1x128xf32, #tpu.memory_space<vmem>>, %arg12: memref<1x128xf32, #tpu.memory_space<vmem>>, %arg13: memref<9x8x128xf32, #tpu.memory_space<vmem>>, %arg14: memref<8x1xf32, #tpu.memory_space<vmem>>, %arg15: memref<8x512xf32, #tpu.memory_space<vmem>>) attributes {dimension_semantics = [], scalar_prefetch = 0 : i64, scratch_operands = 0 : i64, tpu.core_type = #tpu.core_type<tc>} {
    %c0 = arith.constant 0 : index
    %c0_0 = arith.constant 0 : index
    %0 = vector.load %arg0[%c0, %c0_0] : memref<2x32xf32, #tpu.memory_space<vmem>>, vector<2x32xf32>
    %1 = arith.truncf %0 : vector<2x32xf32> to vector<2x32xbf16>
    %c0_1 = arith.constant 0 : index
    %c0_2 = arith.constant 0 : index
    %2 = vector.load %arg1[%c0_1, %c0_2] : memref<32x2048xbf16, #tpu.memory_space<vmem>>, vector<32x2048xbf16>
    %cst = arith.constant dense<0.000000e+00> : vector<2x2048xf32>
    %3 = tpu.matmul %1, %2, %cst {dimension_numbers = #tpu.dot_dimension_numbers<[1], [0], [0], [1], [0, 0, 1, 1], [], []>} : vector<2x32xbf16>, vector<32x2048xbf16>, vector<2x2048xf32> -> vector<2x2048xf32>
    %c0_3 = arith.constant 0 : index
    %c0_4 = arith.constant 0 : index
    %4 = vector.load %arg2[%c0_3, %c0_4] : memref<1x2048xf32, #tpu.memory_space<vmem>>, vector<1x2048xf32>
    %5 = vector.broadcast %4 : vector<1x2048xf32> to vector<2x2048xf32>
    %6 = arith.addf %3, %5 : vector<2x2048xf32>
    %7 = vector.shape_cast %6 : vector<2x2048xf32> to vector<2x4x4x128xf32>
    %c0_5 = arith.constant 0 : index
    %c0_6 = arith.constant 0 : index
    %8 = vector.load %arg3[%c0_5, %c0_6] : memref<1x128xf32, #tpu.memory_space<vmem>>, vector<1x128xf32>
    %c0_7 = arith.constant 0 : index
    %c0_8 = arith.constant 0 : index
    %9 = vector.load %arg4[%c0_7, %c0_8] : memref<1x128xf32, #tpu.memory_space<vmem>>, vector<1x128xf32>
    %cst_9 = arith.constant dense<0.000000e+00> : vector<128xf32>
    %10 = vector.multi_reduction <add>, %7, %cst_9 [0, 1, 2] : vector<2x4x4x128xf32> to vector<128xf32>
    %11 = vector.shape_cast %10 : vector<128xf32> to vector<1x1x1x128xf32>
    %cst_10 = arith.constant 3.125000e-02 : f32
    %12 = vector.broadcast %cst_10 : f32 to vector<1x1x1x128xf32>
    %13 = arith.mulf %11, %12 : vector<1x1x1x128xf32>
    %14 = vector.broadcast %13 : vector<1x1x1x128xf32> to vector<2x4x4x128xf32>
    %15 = arith.subf %7, %14 : vector<2x4x4x128xf32>
    %16 = arith.mulf %15, %15 : vector<2x4x4x128xf32>
    %cst_11 = arith.constant dense<0.000000e+00> : vector<128xf32>
    %17 = vector.multi_reduction <add>, %16, %cst_11 [0, 1, 2] : vector<2x4x4x128xf32> to vector<128xf32>
    %18 = vector.shape_cast %17 : vector<128xf32> to vector<1x1x1x128xf32>
    %cst_12 = arith.constant 3.125000e-02 : f32
    %19 = vector.broadcast %cst_12 : f32 to vector<1x1x1x128xf32>
    %20 = arith.mulf %18, %19 : vector<1x1x1x128xf32>
    %cst_13 = arith.constant 9.99999974E-6 : f32
    %21 = vector.broadcast %cst_13 : f32 to vector<1x1x1x128xf32>
    %22 = arith.addf %20, %21 : vector<1x1x1x128xf32>
    %23 = math.rsqrt %22 : vector<1x1x1x128xf32>
    %24 = vector.shape_cast %8 : vector<1x128xf32> to vector<1x1x1x128xf32>
    %25 = arith.mulf %24, %23 : vector<1x1x1x128xf32>
    %26 = vector.broadcast %25 : vector<1x1x1x128xf32> to vector<2x4x4x128xf32>
    %27 = arith.mulf %15, %26 : vector<2x4x4x128xf32>
    %28 = vector.shape_cast %9 : vector<1x128xf32> to vector<1x1x1x128xf32>
    %29 = vector.broadcast %28 : vector<1x1x1x128xf32> to vector<2x4x4x128xf32>
    %30 = arith.addf %27, %29 : vector<2x4x4x128xf32>
    %cst_14 = arith.constant 0.000000e+00 : f32
    %31 = vector.broadcast %cst_14 : f32 to vector<2x1x4x128xf32>
    %32 = tpu.concatenate %31, %30, %31 in 1 : vector<2x1x4x128xf32>, vector<2x4x4x128xf32>, vector<2x1x4x128xf32> -> vector<2x6x4x128xf32>
    %cst_15 = arith.constant 0.000000e+00 : f32
    %33 = vector.broadcast %cst_15 : f32 to vector<2x6x1x128xf32>
    %34 = tpu.concatenate %33, %32, %33 in 2 : vector<2x6x1x128xf32>, vector<2x6x4x128xf32>, vector<2x6x1x128xf32> -> vector<2x6x6x128xf32>
    %35 = vector.extract_strided_slice %34 {offsets = [0, 0, 0, 0], sizes = [2, 4, 4, 128], strides = [1, 1, 1, 1]} : vector<2x6x6x128xf32> to vector<2x4x4x128xf32>
    %36 = vector.shape_cast %35 : vector<2x4x4x128xf32> to vector<32x128xf32>
    %37 = arith.truncf %36 : vector<32x128xf32> to vector<32x128xbf16>
    %38 = vector.extract_strided_slice %34 {offsets = [0, 0, 1, 0], sizes = [2, 4, 4, 128], strides = [1, 1, 1, 1]} : vector<2x6x6x128xf32> to vector<2x4x4x128xf32>
    %39 = vector.shape_cast %38 : vector<2x4x4x128xf32> to vector<32x128xf32>
    %40 = arith.truncf %39 : vector<32x128xf32> to vector<32x128xbf16>
    %41 = vector.extract_strided_slice %34 {offsets = [0, 0, 2, 0], sizes = [2, 4, 4, 128], strides = [1, 1, 1, 1]} : vector<2x6x6x128xf32> to vector<2x4x4x128xf32>
    %42 = vector.shape_cast %41 : vector<2x4x4x128xf32> to vector<32x128xf32>
    %43 = arith.truncf %42 : vector<32x128xf32> to vector<32x128xbf16>
    %44 = vector.extract_strided_slice %34 {offsets = [0, 1, 0, 0], sizes = [2, 4, 4, 128], strides = [1, 1, 1, 1]} : vector<2x6x6x128xf32> to vector<2x4x4x128xf32>
    %45 = vector.shape_cast %44 : vector<2x4x4x128xf32> to vector<32x128xf32>
    %46 = arith.truncf %45 : vector<32x128xf32> to vector<32x128xbf16>
    %47 = vector.extract_strided_slice %34 {offsets = [0, 1, 1, 0], sizes = [2, 4, 4, 128], strides = [1, 1, 1, 1]} : vector<2x6x6x128xf32> to vector<2x4x4x128xf32>
    %48 = vector.shape_cast %47 : vector<2x4x4x128xf32> to vector<32x128xf32>
    %49 = arith.truncf %48 : vector<32x128xf32> to vector<32x128xbf16>
    %50 = vector.extract_strided_slice %34 {offsets = [0, 1, 2, 0], sizes = [2, 4, 4, 128], strides = [1, 1, 1, 1]} : vector<2x6x6x128xf32> to vector<2x4x4x128xf32>
    %51 = vector.shape_cast %50 : vector<2x4x4x128xf32> to vector<32x128xf32>
    %52 = arith.truncf %51 : vector<32x128xf32> to vector<32x128xbf16>
    %53 = vector.extract_strided_slice %34 {offsets = [0, 2, 0, 0], sizes = [2, 4, 4, 128], strides = [1, 1, 1, 1]} : vector<2x6x6x128xf32> to vector<2x4x4x128xf32>
    %54 = vector.shape_cast %53 : vector<2x4x4x128xf32> to vector<32x128xf32>
    %55 = arith.truncf %54 : vector<32x128xf32> to vector<32x128xbf16>
    %56 = vector.extract_strided_slice %34 {offsets = [0, 2, 1, 0], sizes = [2, 4, 4, 128], strides = [1, 1, 1, 1]} : vector<2x6x6x128xf32> to vector<2x4x4x128xf32>
    %57 = vector.shape_cast %56 : vector<2x4x4x128xf32> to vector<32x128xf32>
    %58 = arith.truncf %57 : vector<32x128xf32> to vector<32x128xbf16>
    %59 = vector.extract_strided_slice %34 {offsets = [0, 2, 2, 0], sizes = [2, 4, 4, 128], strides = [1, 1, 1, 1]} : vector<2x6x6x128xf32> to vector<2x4x4x128xf32>
    %60 = vector.shape_cast %59 : vector<2x4x4x128xf32> to vector<32x128xf32>
    %61 = arith.truncf %60 : vector<32x128xf32> to vector<32x128xbf16>
    %cst_16 = arith.constant 0.000000e+00 : f32
    %62 = vector.broadcast %cst_16 : f32 to vector<32x128xf32>
    %c0_17 = arith.constant 0 : index
    %c0_18 = arith.constant 0 : index
    %63 = vector.load %arg5[%c0_17, %c0_18] : memref<2048x128xbf16, #tpu.memory_space<vmem>>, vector<128x128xbf16>
    %cst_19 = arith.constant dense<0.000000e+00> : vector<32x128xf32>
    %64 = tpu.matmul %37, %63, %cst_19 {dimension_numbers = #tpu.dot_dimension_numbers<[1], [0], [0], [1], [0, 0, 1, 1], [], []>} : vector<32x128xbf16>, vector<128x128xbf16>, vector<32x128xf32> -> vector<32x128xf32>
    %65 = arith.addf %62, %64 : vector<32x128xf32>
    %c128 = arith.constant 128 : index
    %c0_20 = arith.constant 0 : index
    %66 = vector.load %arg5[%c128, %c0_20] : memref<2048x128xbf16, #tpu.memory_space<vmem>>, vector<128x128xbf16>
    %cst_21 = arith.constant dense<0.000000e+00> : vector<32x128xf32>
    %67 = tpu.matmul %40, %66, %cst_21 {dimension_numbers = #tpu.dot_dimension_numbers<[1], [0], [0], [1], [0, 0, 1, 1], [], []>} : vector<32x128xbf16>, vector<128x128xbf16>, vector<32x128xf32> -> vector<32x128xf32>
    %68 = arith.addf %65, %67 : vector<32x128xf32>
    %c256 = arith.constant 256 : index
    %c0_22 = arith.constant 0 : index
    %69 = vector.load %arg5[%c256, %c0_22] : memref<2048x128xbf16, #tpu.memory_space<vmem>>, vector<128x128xbf16>
    %cst_23 = arith.constant dense<0.000000e+00> : vector<32x128xf32>
    %70 = tpu.matmul %46, %69, %cst_23 {dimension_numbers = #tpu.dot_dimension_numbers<[1], [0], [0], [1], [0, 0, 1, 1], [], []>} : vector<32x128xbf16>, vector<128x128xbf16>, vector<32x128xf32> -> vector<32x128xf32>
    %71 = arith.addf %68, %70 : vector<32x128xf32>
    %c384 = arith.constant 384 : index
    %c0_24 = arith.constant 0 : index
    %72 = vector.load %arg5[%c384, %c0_24] : memref<2048x128xbf16, #tpu.memory_space<vmem>>, vector<128x128xbf16>
    %cst_25 = arith.constant dense<0.000000e+00> : vector<32x128xf32>
    %73 = tpu.matmul %49, %72, %cst_25 {dimension_numbers = #tpu.dot_dimension_numbers<[1], [0], [0], [1], [0, 0, 1, 1], [], []>} : vector<32x128xbf16>, vector<128x128xbf16>, vector<32x128xf32> -> vector<32x128xf32>
    %74 = arith.addf %71, %73 : vector<32x128xf32>
    %c0_26 = arith.constant 0 : index
    %c0_27 = arith.constant 0 : index
    %75 = vector.load %arg6[%c0_26, %c0_27] : memref<1x128xf32, #tpu.memory_space<vmem>>, vector<1x128xf32>
    %76 = vector.broadcast %75 : vector<1x128xf32> to vector<32x128xf32>
    %77 = arith.addf %74, %76 : vector<32x128xf32>
    %78 = vector.shape_cast %77 : vector<32x128xf32> to vector<2x4x4x128xf32>
    %cst_28 = arith.constant 0.000000e+00 : f32
    %79 = vector.broadcast %cst_28 : f32 to vector<32x128xf32>
    %c512 = arith.constant 512 : index
    %c0_29 = arith.constant 0 : index
    %80 = vector.load %arg5[%c512, %c0_29] : memref<2048x128xbf16, #tpu.memory_space<vmem>>, vector<128x128xbf16>
    %cst_30 = arith.constant dense<0.000000e+00> : vector<32x128xf32>
    %81 = tpu.matmul %40, %80, %cst_30 {dimension_numbers = #tpu.dot_dimension_numbers<[1], [0], [0], [1], [0, 0, 1, 1], [], []>} : vector<32x128xbf16>, vector<128x128xbf16>, vector<32x128xf32> -> vector<32x128xf32>
    %82 = arith.addf %79, %81 : vector<32x128xf32>
    %c640 = arith.constant 640 : index
    %c0_31 = arith.constant 0 : index
    %83 = vector.load %arg5[%c640, %c0_31] : memref<2048x128xbf16, #tpu.memory_space<vmem>>, vector<128x128xbf16>
    %cst_32 = arith.constant dense<0.000000e+00> : vector<32x128xf32>
    %84 = tpu.matmul %43, %83, %cst_32 {dimension_numbers = #tpu.dot_dimension_numbers<[1], [0], [0], [1], [0, 0, 1, 1], [], []>} : vector<32x128xbf16>, vector<128x128xbf16>, vector<32x128xf32> -> vector<32x128xf32>
    %85 = arith.addf %82, %84 : vector<32x128xf32>
    %c768 = arith.constant 768 : index
    %c0_33 = arith.constant 0 : index
    %86 = vector.load %arg5[%c768, %c0_33] : memref<2048x128xbf16, #tpu.memory_space<vmem>>, vector<128x128xbf16>
    %cst_34 = arith.constant dense<0.000000e+00> : vector<32x128xf32>
    %87 = tpu.matmul %49, %86, %cst_34 {dimension_numbers = #tpu.dot_dimension_numbers<[1], [0], [0], [1], [0, 0, 1, 1], [], []>} : vector<32x128xbf16>, vector<128x128xbf16>, vector<32x128xf32> -> vector<32x128xf32>
    %88 = arith.addf %85, %87 : vector<32x128xf32>
    %c896 = arith.constant 896 : index
    %c0_35 = arith.constant 0 : index
    %89 = vector.load %arg5[%c896, %c0_35] : memref<2048x128xbf16, #tpu.memory_space<vmem>>, vector<128x128xbf16>
    %cst_36 = arith.constant dense<0.000000e+00> : vector<32x128xf32>
    %90 = tpu.matmul %52, %89, %cst_36 {dimension_numbers = #tpu.dot_dimension_numbers<[1], [0], [0], [1], [0, 0, 1, 1], [], []>} : vector<32x128xbf16>, vector<128x128xbf16>, vector<32x128xf32> -> vector<32x128xf32>
    %91 = arith.addf %88, %90 : vector<32x128xf32>
    %c0_37 = arith.constant 0 : index
    %c0_38 = arith.constant 0 : index
    %92 = vector.load %arg6[%c0_37, %c0_38] : memref<1x128xf32, #tpu.memory_space<vmem>>, vector<1x128xf32>
    %93 = vector.broadcast %92 : vector<1x128xf32> to vector<32x128xf32>
    %94 = arith.addf %91, %93 : vector<32x128xf32>
    %95 = vector.shape_cast %94 : vector<32x128xf32> to vector<2x4x4x128xf32>
    %cst_39 = arith.constant 0.000000e+00 : f32
    %96 = vector.broadcast %cst_39 : f32 to vector<32x128xf32>
    %c1024 = arith.constant 1024 : index
    %c0_40 = arith.constant 0 : index
    %97 = vector.load %arg5[%c1024, %c0_40] : memref<2048x128xbf16, #tpu.memory_space<vmem>>, vector<128x128xbf16>
    %cst_41 = arith.constant dense<0.000000e+00> : vector<32x128xf32>
    %98 = tpu.matmul %46, %97, %cst_41 {dimension_numbers = #tpu.dot_dimension_numbers<[1], [0], [0], [1], [0, 0, 1, 1], [], []>} : vector<32x128xbf16>, vector<128x128xbf16>, vector<32x128xf32> -> vector<32x128xf32>
    %99 = arith.addf %96, %98 : vector<32x128xf32>
    %c1152 = arith.constant 1152 : index
    %c0_42 = arith.constant 0 : index
    %100 = vector.load %arg5[%c1152, %c0_42] : memref<2048x128xbf16, #tpu.memory_space<vmem>>, vector<128x128xbf16>
    %cst_43 = arith.constant dense<0.000000e+00> : vector<32x128xf32>
    %101 = tpu.matmul %49, %100, %cst_43 {dimension_numbers = #tpu.dot_dimension_numbers<[1], [0], [0], [1], [0, 0, 1, 1], [], []>} : vector<32x128xbf16>, vector<128x128xbf16>, vector<32x128xf32> -> vector<32x128xf32>
    %102 = arith.addf %99, %101 : vector<32x128xf32>
    %c1280 = arith.constant 1280 : index
    %c0_44 = arith.constant 0 : index
    %103 = vector.load %arg5[%c1280, %c0_44] : memref<2048x128xbf16, #tpu.memory_space<vmem>>, vector<128x128xbf16>
    %cst_45 = arith.constant dense<0.000000e+00> : vector<32x128xf32>
    %104 = tpu.matmul %55, %103, %cst_45 {dimension_numbers = #tpu.dot_dimension_numbers<[1], [0], [0], [1], [0, 0, 1, 1], [], []>} : vector<32x128xbf16>, vector<128x128xbf16>, vector<32x128xf32> -> vector<32x128xf32>
    %105 = arith.addf %102, %104 : vector<32x128xf32>
    %c1408 = arith.constant 1408 : index
    %c0_46 = arith.constant 0 : index
    %106 = vector.load %arg5[%c1408, %c0_46] : memref<2048x128xbf16, #tpu.memory_space<vmem>>, vector<128x128xbf16>
    %cst_47 = arith.constant dense<0.000000e+00> : vector<32x128xf32>
    %107 = tpu.matmul %58, %106, %cst_47 {dimension_numbers = #tpu.dot_dimension_numbers<[1], [0], [0], [1], [0, 0, 1, 1], [], []>} : vector<32x128xbf16>, vector<128x128xbf16>, vector<32x128xf32> -> vector<32x128xf32>
    %108 = arith.addf %105, %107 : vector<32x128xf32>
    %c0_48 = arith.constant 0 : index
    %c0_49 = arith.constant 0 : index
    %109 = vector.load %arg6[%c0_48, %c0_49] : memref<1x128xf32, #tpu.memory_space<vmem>>, vector<1x128xf32>
    %110 = vector.broadcast %109 : vector<1x128xf32> to vector<32x128xf32>
    %111 = arith.addf %108, %110 : vector<32x128xf32>
    %112 = vector.shape_cast %111 : vector<32x128xf32> to vector<2x4x4x128xf32>
    %cst_50 = arith.constant 0.000000e+00 : f32
    %113 = vector.broadcast %cst_50 : f32 to vector<32x128xf32>
    %c1536 = arith.constant 1536 : index
    %c0_51 = arith.constant 0 : index
    %114 = vector.load %arg5[%c1536, %c0_51] : memref<2048x128xbf16, #tpu.memory_space<vmem>>, vector<128x128xbf16>
    %cst_52 = arith.constant dense<0.000000e+00> : vector<32x128xf32>
    %115 = tpu.matmul %49, %114, %cst_52 {dimension_numbers = #tpu.dot_dimension_numbers<[1], [0], [0], [1], [0, 0, 1, 1], [], []>} : vector<32x128xbf16>, vector<128x128xbf16>, vector<32x128xf32> -> vector<32x128xf32>
    %116 = arith.addf %113, %115 : vector<32x128xf32>
    %c1664 = arith.constant 1664 : index
    %c0_53 = arith.constant 0 : index
    %117 = vector.load %arg5[%c1664, %c0_53] : memref<2048x128xbf16, #tpu.memory_space<vmem>>, vector<128x128xbf16>
    %cst_54 = arith.constant dense<0.000000e+00> : vector<32x128xf32>
    %118 = tpu.matmul %52, %117, %cst_54 {dimension_numbers = #tpu.dot_dimension_numbers<[1], [0], [0], [1], [0, 0, 1, 1], [], []>} : vector<32x128xbf16>, vector<128x128xbf16>, vector<32x128xf32> -> vector<32x128xf32>
    %119 = arith.addf %116, %118 : vector<32x128xf32>
    %c1792 = arith.constant 1792 : index
    %c0_55 = arith.constant 0 : index
    %120 = vector.load %arg5[%c1792, %c0_55] : memref<2048x128xbf16, #tpu.memory_space<vmem>>, vector<128x128xbf16>
    %cst_56 = arith.constant dense<0.000000e+00> : vector<32x128xf32>
    %121 = tpu.matmul %58, %120, %cst_56 {dimension_numbers = #tpu.dot_dimension_numbers<[1], [0], [0], [1], [0, 0, 1, 1], [], []>} : vector<32x128xbf16>, vector<128x128xbf16>, vector<32x128xf32> -> vector<32x128xf32>
    %122 = arith.addf %119, %121 : vector<32x128xf32>
    %c1920 = arith.constant 1920 : index
    %c0_57 = arith.constant 0 : index
    %123 = vector.load %arg5[%c1920, %c0_57] : memref<2048x128xbf16, #tpu.memory_space<vmem>>, vector<128x128xbf16>
    %cst_58 = arith.constant dense<0.000000e+00> : vector<32x128xf32>
    %124 = tpu.matmul %61, %123, %cst_58 {dimension_numbers = #tpu.dot_dimension_numbers<[1], [0], [0], [1], [0, 0, 1, 1], [], []>} : vector<32x128xbf16>, vector<128x128xbf16>, vector<32x128xf32> -> vector<32x128xf32>
    %125 = arith.addf %122, %124 : vector<32x128xf32>
    %c0_59 = arith.constant 0 : index
    %c0_60 = arith.constant 0 : index
    %126 = vector.load %arg6[%c0_59, %c0_60] : memref<1x128xf32, #tpu.memory_space<vmem>>, vector<1x128xf32>
    %127 = vector.broadcast %126 : vector<1x128xf32> to vector<32x128xf32>
    %128 = arith.addf %125, %127 : vector<32x128xf32>
    %129 = vector.shape_cast %128 : vector<32x128xf32> to vector<2x4x4x128xf32>
    %130 = tpu.concatenate %78, %95 in 3 : vector<2x4x4x128xf32>, vector<2x4x4x128xf32> -> vector<2x4x4x256xf32>
    %131 = vector.shape_cast %130 : vector<2x4x4x256xf32> to vector<2x4x8x128xf32>
    %132 = tpu.concatenate %112, %129 in 3 : vector<2x4x4x128xf32>, vector<2x4x4x128xf32> -> vector<2x4x4x256xf32>
    %133 = vector.shape_cast %132 : vector<2x4x4x256xf32> to vector<2x4x8x128xf32>
    %134 = tpu.concatenate %131, %133 in 2 : vector<2x4x8x128xf32>, vector<2x4x8x128xf32> -> vector<2x4x16x128xf32>
    %135 = vector.shape_cast %134 : vector<2x4x16x128xf32> to vector<2x8x8x128xf32>
    %c0_61 = arith.constant 0 : index
    %c0_62 = arith.constant 0 : index
    %136 = vector.load %arg7[%c0_61, %c0_62] : memref<1x128xf32, #tpu.memory_space<vmem>>, vector<1x128xf32>
    %c0_63 = arith.constant 0 : index
    %c0_64 = arith.constant 0 : index
    %137 = vector.load %arg8[%c0_63, %c0_64] : memref<1x128xf32, #tpu.memory_space<vmem>>, vector<1x128xf32>
    %cst_65 = arith.constant dense<0.000000e+00> : vector<128xf32>
    %138 = vector.multi_reduction <add>, %135, %cst_65 [0, 1, 2] : vector<2x8x8x128xf32> to vector<128xf32>
    %139 = vector.shape_cast %138 : vector<128xf32> to vector<1x1x1x128xf32>
    %cst_66 = arith.constant 7.812500e-03 : f32
    %140 = vector.broadcast %cst_66 : f32 to vector<1x1x1x128xf32>
    %141 = arith.mulf %139, %140 : vector<1x1x1x128xf32>
    %142 = vector.broadcast %141 : vector<1x1x1x128xf32> to vector<2x8x8x128xf32>
    %143 = arith.subf %135, %142 : vector<2x8x8x128xf32>
    %144 = arith.mulf %143, %143 : vector<2x8x8x128xf32>
    %cst_67 = arith.constant dense<0.000000e+00> : vector<128xf32>
    %145 = vector.multi_reduction <add>, %144, %cst_67 [0, 1, 2] : vector<2x8x8x128xf32> to vector<128xf32>
    %146 = vector.shape_cast %145 : vector<128xf32> to vector<1x1x1x128xf32>
    %cst_68 = arith.constant 7.812500e-03 : f32
    %147 = vector.broadcast %cst_68 : f32 to vector<1x1x1x128xf32>
    %148 = arith.mulf %146, %147 : vector<1x1x1x128xf32>
    %cst_69 = arith.constant 8.000000e-01 : f32
    %149 = vector.broadcast %cst_69 : f32 to vector<1x1x1x128xf32>
    %150 = arith.addf %148, %149 : vector<1x1x1x128xf32>
    %151 = math.rsqrt %150 : vector<1x1x1x128xf32>
    %152 = vector.shape_cast %136 : vector<1x128xf32> to vector<1x1x1x128xf32>
    %153 = arith.mulf %152, %151 : vector<1x1x1x128xf32>
    %154 = vector.broadcast %153 : vector<1x1x1x128xf32> to vector<2x8x8x128xf32>
    %155 = arith.mulf %143, %154 : vector<2x8x8x128xf32>
    %156 = vector.shape_cast %137 : vector<1x128xf32> to vector<1x1x1x128xf32>
    %157 = vector.broadcast %156 : vector<1x1x1x128xf32> to vector<2x8x8x128xf32>
    %158 = arith.addf %155, %157 : vector<2x8x8x128xf32>
    %cst_70 = arith.constant 0.000000e+00 : f32
    %159 = vector.broadcast %cst_70 : f32 to vector<2x8x8x128xf32>
    %160 = arith.cmpf ogt, %158, %159 : vector<2x8x8x128xf32>
    %cst_71 = arith.constant 2.000000e-01 : f32
    %161 = vector.broadcast %cst_71 : f32 to vector<2x8x8x128xf32>
    %162 = arith.mulf %161, %158 : vector<2x8x8x128xf32>
    %163 = arith.select %160, %158, %162 : vector<2x8x8x128xi1>, vector<2x8x8x128xf32>
    %cst_72 = arith.constant 0.000000e+00 : f32
    %164 = vector.broadcast %cst_72 : f32 to vector<2x1x8x128xf32>
    %165 = tpu.concatenate %164, %163, %164 in 1 : vector<2x1x8x128xf32>, vector<2x8x8x128xf32>, vector<2x1x8x128xf32> -> vector<2x10x8x128xf32>
    %cst_73 = arith.constant 0.000000e+00 : f32
    %166 = vector.broadcast %cst_73 : f32 to vector<2x10x1x128xf32>
    %167 = tpu.concatenate %166, %165, %166 in 2 : vector<2x10x1x128xf32>, vector<2x10x8x128xf32>, vector<2x10x1x128xf32> -> vector<2x10x10x128xf32>
    %168 = vector.extract_strided_slice %167 {offsets = [0, 0, 0, 0], sizes = [2, 8, 8, 128], strides = [1, 1, 1, 1]} : vector<2x10x10x128xf32> to vector<2x8x8x128xf32>
    %169 = vector.shape_cast %168 : vector<2x8x8x128xf32> to vector<128x128xf32>
    %170 = arith.truncf %169 : vector<128x128xf32> to vector<128x128xbf16>
    %171 = vector.extract_strided_slice %167 {offsets = [0, 0, 1, 0], sizes = [2, 8, 8, 128], strides = [1, 1, 1, 1]} : vector<2x10x10x128xf32> to vector<2x8x8x128xf32>
    %172 = vector.shape_cast %171 : vector<2x8x8x128xf32> to vector<128x128xf32>
    %173 = arith.truncf %172 : vector<128x128xf32> to vector<128x128xbf16>
    %174 = vector.extract_strided_slice %167 {offsets = [0, 0, 2, 0], sizes = [2, 8, 8, 128], strides = [1, 1, 1, 1]} : vector<2x10x10x128xf32> to vector<2x8x8x128xf32>
    %175 = vector.shape_cast %174 : vector<2x8x8x128xf32> to vector<128x128xf32>
    %176 = arith.truncf %175 : vector<128x128xf32> to vector<128x128xbf16>
    %177 = vector.extract_strided_slice %167 {offsets = [0, 1, 0, 0], sizes = [2, 8, 8, 128], strides = [1, 1, 1, 1]} : vector<2x10x10x128xf32> to vector<2x8x8x128xf32>
    %178 = vector.shape_cast %177 : vector<2x8x8x128xf32> to vector<128x128xf32>
    %179 = arith.truncf %178 : vector<128x128xf32> to vector<128x128xbf16>
    %180 = vector.extract_strided_slice %167 {offsets = [0, 1, 1, 0], sizes = [2, 8, 8, 128], strides = [1, 1, 1, 1]} : vector<2x10x10x128xf32> to vector<2x8x8x128xf32>
    %181 = vector.shape_cast %180 : vector<2x8x8x128xf32> to vector<128x128xf32>
    %182 = arith.truncf %181 : vector<128x128xf32> to vector<128x128xbf16>
    %183 = vector.extract_strided_slice %167 {offsets = [0, 1, 2, 0], sizes = [2, 8, 8, 128], strides = [1, 1, 1, 1]} : vector<2x10x10x128xf32> to vector<2x8x8x128xf32>
    %184 = vector.shape_cast %183 : vector<2x8x8x128xf32> to vector<128x128xf32>
    %185 = arith.truncf %184 : vector<128x128xf32> to vector<128x128xbf16>
    %186 = vector.extract_strided_slice %167 {offsets = [0, 2, 0, 0], sizes = [2, 8, 8, 128], strides = [1, 1, 1, 1]} : vector<2x10x10x128xf32> to vector<2x8x8x128xf32>
    %187 = vector.shape_cast %186 : vector<2x8x8x128xf32> to vector<128x128xf32>
    %188 = arith.truncf %187 : vector<128x128xf32> to vector<128x128xbf16>
    %189 = vector.extract_strided_slice %167 {offsets = [0, 2, 1, 0], sizes = [2, 8, 8, 128], strides = [1, 1, 1, 1]} : vector<2x10x10x128xf32> to vector<2x8x8x128xf32>
    %190 = vector.shape_cast %189 : vector<2x8x8x128xf32> to vector<128x128xf32>
    %191 = arith.truncf %190 : vector<128x128xf32> to vector<128x128xbf16>
    %192 = vector.extract_strided_slice %167 {offsets = [0, 2, 2, 0], sizes = [2, 8, 8, 128], strides = [1, 1, 1, 1]} : vector<2x10x10x128xf32> to vector<2x8x8x128xf32>
    %193 = vector.shape_cast %192 : vector<2x8x8x128xf32> to vector<128x128xf32>
    %194 = arith.truncf %193 : vector<128x128xf32> to vector<128x128xbf16>
    %cst_74 = arith.constant 0.000000e+00 : f32
    %195 = vector.broadcast %cst_74 : f32 to vector<128x128xf32>
    %c0_75 = arith.constant 0 : index
    %c0_76 = arith.constant 0 : index
    %196 = vector.load %arg9[%c0_75, %c0_76] : memref<2048x128xbf16, #tpu.memory_space<vmem>>, vector<128x128xbf16>
    %cst_77 = arith.constant dense<0.000000e+00> : vector<128x128xf32>
    %197 = tpu.matmul %170, %196, %cst_77 {dimension_numbers = #tpu.dot_dimension_numbers<[1], [0], [0], [1], [0, 0, 1, 1], [], []>} : vector<128x128xbf16>, vector<128x128xbf16>, vector<128x128xf32> -> vector<128x128xf32>
    %198 = arith.addf %195, %197 : vector<128x128xf32>
    %c128_78 = arith.constant 128 : index
    %c0_79 = arith.constant 0 : index
    %199 = vector.load %arg9[%c128_78, %c0_79] : memref<2048x128xbf16, #tpu.memory_space<vmem>>, vector<128x128xbf16>
    %cst_80 = arith.constant dense<0.000000e+00> : vector<128x128xf32>
    %200 = tpu.matmul %173, %199, %cst_80 {dimension_numbers = #tpu.dot_dimension_numbers<[1], [0], [0], [1], [0, 0, 1, 1], [], []>} : vector<128x128xbf16>, vector<128x128xbf16>, vector<128x128xf32> -> vector<128x128xf32>
    %201 = arith.addf %198, %200 : vector<128x128xf32>
    %c256_81 = arith.constant 256 : index
    %c0_82 = arith.constant 0 : index
    %202 = vector.load %arg9[%c256_81, %c0_82] : memref<2048x128xbf16, #tpu.memory_space<vmem>>, vector<128x128xbf16>
    %cst_83 = arith.constant dense<0.000000e+00> : vector<128x128xf32>
    %203 = tpu.matmul %179, %202, %cst_83 {dimension_numbers = #tpu.dot_dimension_numbers<[1], [0], [0], [1], [0, 0, 1, 1], [], []>} : vector<128x128xbf16>, vector<128x128xbf16>, vector<128x128xf32> -> vector<128x128xf32>
    %204 = arith.addf %201, %203 : vector<128x128xf32>
    %c384_84 = arith.constant 384 : index
    %c0_85 = arith.constant 0 : index
    %205 = vector.load %arg9[%c384_84, %c0_85] : memref<2048x128xbf16, #tpu.memory_space<vmem>>, vector<128x128xbf16>
    %cst_86 = arith.constant dense<0.000000e+00> : vector<128x128xf32>
    %206 = tpu.matmul %182, %205, %cst_86 {dimension_numbers = #tpu.dot_dimension_numbers<[1], [0], [0], [1], [0, 0, 1, 1], [], []>} : vector<128x128xbf16>, vector<128x128xbf16>, vector<128x128xf32> -> vector<128x128xf32>
    %207 = arith.addf %204, %206 : vector<128x128xf32>
    %c0_87 = arith.constant 0 : index
    %c0_88 = arith.constant 0 : index
    %208 = vector.load %arg10[%c0_87, %c0_88] : memref<1x128xf32, #tpu.memory_space<vmem>>, vector<1x128xf32>
    %209 = vector.broadcast %208 : vector<1x128xf32> to vector<128x128xf32>
    %210 = arith.addf %207, %209 : vector<128x128xf32>
    %211 = vector.shape_cast %210 : vector<128x128xf32> to vector<2x8x8x128xf32>
    %cst_89 = arith.constant 0.000000e+00 : f32
    %212 = vector.broadcast %cst_89 : f32 to vector<128x128xf32>
    %c512_90 = arith.constant 512 : index
    %c0_91 = arith.constant 0 : index
    %213 = vector.load %arg9[%c512_90, %c0_91] : memref<2048x128xbf16, #tpu.memory_space<vmem>>, vector<128x128xbf16>
    %cst_92 = arith.constant dense<0.000000e+00> : vector<128x128xf32>
    %214 = tpu.matmul %173, %213, %cst_92 {dimension_numbers = #tpu.dot_dimension_numbers<[1], [0], [0], [1], [0, 0, 1, 1], [], []>} : vector<128x128xbf16>, vector<128x128xbf16>, vector<128x128xf32> -> vector<128x128xf32>
    %215 = arith.addf %212, %214 : vector<128x128xf32>
    %c640_93 = arith.constant 640 : index
    %c0_94 = arith.constant 0 : index
    %216 = vector.load %arg9[%c640_93, %c0_94] : memref<2048x128xbf16, #tpu.memory_space<vmem>>, vector<128x128xbf16>
    %cst_95 = arith.constant dense<0.000000e+00> : vector<128x128xf32>
    %217 = tpu.matmul %176, %216, %cst_95 {dimension_numbers = #tpu.dot_dimension_numbers<[1], [0], [0], [1], [0, 0, 1, 1], [], []>} : vector<128x128xbf16>, vector<128x128xbf16>, vector<128x128xf32> -> vector<128x128xf32>
    %218 = arith.addf %215, %217 : vector<128x128xf32>
    %c768_96 = arith.constant 768 : index
    %c0_97 = arith.constant 0 : index
    %219 = vector.load %arg9[%c768_96, %c0_97] : memref<2048x128xbf16, #tpu.memory_space<vmem>>, vector<128x128xbf16>
    %cst_98 = arith.constant dense<0.000000e+00> : vector<128x128xf32>
    %220 = tpu.matmul %182, %219, %cst_98 {dimension_numbers = #tpu.dot_dimension_numbers<[1], [0], [0], [1], [0, 0, 1, 1], [], []>} : vector<128x128xbf16>, vector<128x128xbf16>, vector<128x128xf32> -> vector<128x128xf32>
    %221 = arith.addf %218, %220 : vector<128x128xf32>
    %c896_99 = arith.constant 896 : index
    %c0_100 = arith.constant 0 : index
    %222 = vector.load %arg9[%c896_99, %c0_100] : memref<2048x128xbf16, #tpu.memory_space<vmem>>, vector<128x128xbf16>
    %cst_101 = arith.constant dense<0.000000e+00> : vector<128x128xf32>
    %223 = tpu.matmul %185, %222, %cst_101 {dimension_numbers = #tpu.dot_dimension_numbers<[1], [0], [0], [1], [0, 0, 1, 1], [], []>} : vector<128x128xbf16>, vector<128x128xbf16>, vector<128x128xf32> -> vector<128x128xf32>
    %224 = arith.addf %221, %223 : vector<128x128xf32>
    %c0_102 = arith.constant 0 : index
    %c0_103 = arith.constant 0 : index
    %225 = vector.load %arg10[%c0_102, %c0_103] : memref<1x128xf32, #tpu.memory_space<vmem>>, vector<1x128xf32>
    %226 = vector.broadcast %225 : vector<1x128xf32> to vector<128x128xf32>
    %227 = arith.addf %224, %226 : vector<128x128xf32>
    %228 = vector.shape_cast %227 : vector<128x128xf32> to vector<2x8x8x128xf32>
    %cst_104 = arith.constant 0.000000e+00 : f32
    %229 = vector.broadcast %cst_104 : f32 to vector<128x128xf32>
    %c1024_105 = arith.constant 1024 : index
    %c0_106 = arith.constant 0 : index
    %230 = vector.load %arg9[%c1024_105, %c0_106] : memref<2048x128xbf16, #tpu.memory_space<vmem>>, vector<128x128xbf16>
    %cst_107 = arith.constant dense<0.000000e+00> : vector<128x128xf32>
    %231 = tpu.matmul %179, %230, %cst_107 {dimension_numbers = #tpu.dot_dimension_numbers<[1], [0], [0], [1], [0, 0, 1, 1], [], []>} : vector<128x128xbf16>, vector<128x128xbf16>, vector<128x128xf32> -> vector<128x128xf32>
    %232 = arith.addf %229, %231 : vector<128x128xf32>
    %c1152_108 = arith.constant 1152 : index
    %c0_109 = arith.constant 0 : index
    %233 = vector.load %arg9[%c1152_108, %c0_109] : memref<2048x128xbf16, #tpu.memory_space<vmem>>, vector<128x128xbf16>
    %cst_110 = arith.constant dense<0.000000e+00> : vector<128x128xf32>
    %234 = tpu.matmul %182, %233, %cst_110 {dimension_numbers = #tpu.dot_dimension_numbers<[1], [0], [0], [1], [0, 0, 1, 1], [], []>} : vector<128x128xbf16>, vector<128x128xbf16>, vector<128x128xf32> -> vector<128x128xf32>
    %235 = arith.addf %232, %234 : vector<128x128xf32>
    %c1280_111 = arith.constant 1280 : index
    %c0_112 = arith.constant 0 : index
    %236 = vector.load %arg9[%c1280_111, %c0_112] : memref<2048x128xbf16, #tpu.memory_space<vmem>>, vector<128x128xbf16>
    %cst_113 = arith.constant dense<0.000000e+00> : vector<128x128xf32>
    %237 = tpu.matmul %188, %236, %cst_113 {dimension_numbers = #tpu.dot_dimension_numbers<[1], [0], [0], [1], [0, 0, 1, 1], [], []>} : vector<128x128xbf16>, vector<128x128xbf16>, vector<128x128xf32> -> vector<128x128xf32>
    %238 = arith.addf %235, %237 : vector<128x128xf32>
    %c1408_114 = arith.constant 1408 : index
    %c0_115 = arith.constant 0 : index
    %239 = vector.load %arg9[%c1408_114, %c0_115] : memref<2048x128xbf16, #tpu.memory_space<vmem>>, vector<128x128xbf16>
    %cst_116 = arith.constant dense<0.000000e+00> : vector<128x128xf32>
    %240 = tpu.matmul %191, %239, %cst_116 {dimension_numbers = #tpu.dot_dimension_numbers<[1], [0], [0], [1], [0, 0, 1, 1], [], []>} : vector<128x128xbf16>, vector<128x128xbf16>, vector<128x128xf32> -> vector<128x128xf32>
    %241 = arith.addf %238, %240 : vector<128x128xf32>
    %c0_117 = arith.constant 0 : index
    %c0_118 = arith.constant 0 : index
    %242 = vector.load %arg10[%c0_117, %c0_118] : memref<1x128xf32, #tpu.memory_space<vmem>>, vector<1x128xf32>
    %243 = vector.broadcast %242 : vector<1x128xf32> to vector<128x128xf32>
    %244 = arith.addf %241, %243 : vector<128x128xf32>
    %245 = vector.shape_cast %244 : vector<128x128xf32> to vector<2x8x8x128xf32>
    %cst_119 = arith.constant 0.000000e+00 : f32
    %246 = vector.broadcast %cst_119 : f32 to vector<128x128xf32>
    %c1536_120 = arith.constant 1536 : index
    %c0_121 = arith.constant 0 : index
    %247 = vector.load %arg9[%c1536_120, %c0_121] : memref<2048x128xbf16, #tpu.memory_space<vmem>>, vector<128x128xbf16>
    %cst_122 = arith.constant dense<0.000000e+00> : vector<128x128xf32>
    %248 = tpu.matmul %182, %247, %cst_122 {dimension_numbers = #tpu.dot_dimension_numbers<[1], [0], [0], [1], [0, 0, 1, 1], [], []>} : vector<128x128xbf16>, vector<128x128xbf16>, vector<128x128xf32> -> vector<128x128xf32>
    %249 = arith.addf %246, %248 : vector<128x128xf32>
    %c1664_123 = arith.constant 1664 : index
    %c0_124 = arith.constant 0 : index
    %250 = vector.load %arg9[%c1664_123, %c0_124] : memref<2048x128xbf16, #tpu.memory_space<vmem>>, vector<128x128xbf16>
    %cst_125 = arith.constant dense<0.000000e+00> : vector<128x128xf32>
    %251 = tpu.matmul %185, %250, %cst_125 {dimension_numbers = #tpu.dot_dimension_numbers<[1], [0], [0], [1], [0, 0, 1, 1], [], []>} : vector<128x128xbf16>, vector<128x128xbf16>, vector<128x128xf32> -> vector<128x128xf32>
    %252 = arith.addf %249, %251 : vector<128x128xf32>
    %c1792_126 = arith.constant 1792 : index
    %c0_127 = arith.constant 0 : index
    %253 = vector.load %arg9[%c1792_126, %c0_127] : memref<2048x128xbf16, #tpu.memory_space<vmem>>, vector<128x128xbf16>
    %cst_128 = arith.constant dense<0.000000e+00> : vector<128x128xf32>
    %254 = tpu.matmul %191, %253, %cst_128 {dimension_numbers = #tpu.dot_dimension_numbers<[1], [0], [0], [1], [0, 0, 1, 1], [], []>} : vector<128x128xbf16>, vector<128x128xbf16>, vector<128x128xf32> -> vector<128x128xf32>
    %255 = arith.addf %252, %254 : vector<128x128xf32>
    %c1920_129 = arith.constant 1920 : index
    %c0_130 = arith.constant 0 : index
    %256 = vector.load %arg9[%c1920_129, %c0_130] : memref<2048x128xbf16, #tpu.memory_space<vmem>>, vector<128x128xbf16>
    %cst_131 = arith.constant dense<0.000000e+00> : vector<128x128xf32>
    %257 = tpu.matmul %194, %256, %cst_131 {dimension_numbers = #tpu.dot_dimension_numbers<[1], [0], [0], [1], [0, 0, 1, 1], [], []>} : vector<128x128xbf16>, vector<128x128xbf16>, vector<128x128xf32> -> vector<128x128xf32>
    %258 = arith.addf %255, %257 : vector<128x128xf32>
    %c0_132 = arith.constant 0 : index
    %c0_133 = arith.constant 0 : index
    %259 = vector.load %arg10[%c0_132, %c0_133] : memref<1x128xf32, #tpu.memory_space<vmem>>, vector<1x128xf32>
    %260 = vector.broadcast %259 : vector<1x128xf32> to vector<128x128xf32>
    %261 = arith.addf %258, %260 : vector<128x128xf32>
    %262 = vector.shape_cast %261 : vector<128x128xf32> to vector<2x8x8x128xf32>
    %263 = tpu.concatenate %211, %228 in 3 : vector<2x8x8x128xf32>, vector<2x8x8x128xf32> -> vector<2x8x8x256xf32>
    %264 = vector.shape_cast %263 : vector<2x8x8x256xf32> to vector<2x8x16x128xf32>
    %265 = tpu.concatenate %245, %262 in 3 : vector<2x8x8x128xf32>, vector<2x8x8x128xf32> -> vector<2x8x8x256xf32>
    %266 = vector.shape_cast %265 : vector<2x8x8x256xf32> to vector<2x8x16x128xf32>
    %267 = tpu.concatenate %264, %266 in 2 : vector<2x8x16x128xf32>, vector<2x8x16x128xf32> -> vector<2x8x32x128xf32>
    %268 = vector.shape_cast %267 : vector<2x8x32x128xf32> to vector<2x16x16x128xf32>
    %c0_134 = arith.constant 0 : index
    %c0_135 = arith.constant 0 : index
    %269 = vector.load %arg11[%c0_134, %c0_135] : memref<1x128xf32, #tpu.memory_space<vmem>>, vector<1x128xf32>
    %c0_136 = arith.constant 0 : index
    %c0_137 = arith.constant 0 : index
    %270 = vector.load %arg12[%c0_136, %c0_137] : memref<1x128xf32, #tpu.memory_space<vmem>>, vector<1x128xf32>
    %cst_138 = arith.constant dense<0.000000e+00> : vector<128xf32>
    %271 = vector.multi_reduction <add>, %268, %cst_138 [0, 1, 2] : vector<2x16x16x128xf32> to vector<128xf32>
    %272 = vector.shape_cast %271 : vector<128xf32> to vector<1x1x1x128xf32>
    %cst_139 = arith.constant 0.001953125 : f32
    %273 = vector.broadcast %cst_139 : f32 to vector<1x1x1x128xf32>
    %274 = arith.mulf %272, %273 : vector<1x1x1x128xf32>
    %275 = vector.broadcast %274 : vector<1x1x1x128xf32> to vector<2x16x16x128xf32>
    %276 = arith.subf %268, %275 : vector<2x16x16x128xf32>
    %277 = arith.mulf %276, %276 : vector<2x16x16x128xf32>
    %cst_140 = arith.constant dense<0.000000e+00> : vector<128xf32>
    %278 = vector.multi_reduction <add>, %277, %cst_140 [0, 1, 2] : vector<2x16x16x128xf32> to vector<128xf32>
    %279 = vector.shape_cast %278 : vector<128xf32> to vector<1x1x1x128xf32>
    %cst_141 = arith.constant 0.001953125 : f32
    %280 = vector.broadcast %cst_141 : f32 to vector<1x1x1x128xf32>
    %281 = arith.mulf %279, %280 : vector<1x1x1x128xf32>
    %cst_142 = arith.constant 8.000000e-01 : f32
    %282 = vector.broadcast %cst_142 : f32 to vector<1x1x1x128xf32>
    %283 = arith.addf %281, %282 : vector<1x1x1x128xf32>
    %284 = math.rsqrt %283 : vector<1x1x1x128xf32>
    %285 = vector.shape_cast %269 : vector<1x128xf32> to vector<1x1x1x128xf32>
    %286 = arith.mulf %285, %284 : vector<1x1x1x128xf32>
    %287 = vector.broadcast %286 : vector<1x1x1x128xf32> to vector<2x16x16x128xf32>
    %288 = arith.mulf %276, %287 : vector<2x16x16x128xf32>
    %289 = vector.shape_cast %270 : vector<1x128xf32> to vector<1x1x1x128xf32>
    %290 = vector.broadcast %289 : vector<1x1x1x128xf32> to vector<2x16x16x128xf32>
    %291 = arith.addf %288, %290 : vector<2x16x16x128xf32>
    %cst_143 = arith.constant 0.000000e+00 : f32
    %292 = vector.broadcast %cst_143 : f32 to vector<2x16x16x128xf32>
    %293 = arith.cmpf ogt, %291, %292 : vector<2x16x16x128xf32>
    %cst_144 = arith.constant 2.000000e-01 : f32
    %294 = vector.broadcast %cst_144 : f32 to vector<2x16x16x128xf32>
    %295 = arith.mulf %294, %291 : vector<2x16x16x128xf32>
    %296 = arith.select %293, %291, %295 : vector<2x16x16x128xi1>, vector<2x16x16x128xf32>
    %cst_145 = arith.constant 0.000000e+00 : f32
    %297 = vector.broadcast %cst_145 : f32 to vector<2x1x16x128xf32>
    %298 = tpu.concatenate %297, %296, %297 in 1 : vector<2x1x16x128xf32>, vector<2x16x16x128xf32>, vector<2x1x16x128xf32> -> vector<2x18x16x128xf32>
    %cst_146 = arith.constant 0.000000e+00 : f32
    %299 = vector.broadcast %cst_146 : f32 to vector<2x18x1x128xf32>
    %300 = tpu.concatenate %299, %298, %299 in 2 : vector<2x18x1x128xf32>, vector<2x18x16x128xf32>, vector<2x18x1x128xf32> -> vector<2x18x18x128xf32>
    %301 = vector.extract_strided_slice %300 {offsets = [0, 0, 0, 0], sizes = [2, 16, 16, 128], strides = [1, 1, 1, 1]} : vector<2x18x18x128xf32> to vector<2x16x16x128xf32>
    %302 = vector.shape_cast %301 : vector<2x16x16x128xf32> to vector<512x128xf32>
    %303 = arith.truncf %302 : vector<512x128xf32> to vector<512x128xbf16>
    %304 = vector.extract_strided_slice %300 {offsets = [0, 0, 1, 0], sizes = [2, 16, 16, 128], strides = [1, 1, 1, 1]} : vector<2x18x18x128xf32> to vector<2x16x16x128xf32>
    %305 = vector.shape_cast %304 : vector<2x16x16x128xf32> to vector<512x128xf32>
    %306 = arith.truncf %305 : vector<512x128xf32> to vector<512x128xbf16>
    %307 = vector.extract_strided_slice %300 {offsets = [0, 0, 2, 0], sizes = [2, 16, 16, 128], strides = [1, 1, 1, 1]} : vector<2x18x18x128xf32> to vector<2x16x16x128xf32>
    %308 = vector.shape_cast %307 : vector<2x16x16x128xf32> to vector<512x128xf32>
    %309 = arith.truncf %308 : vector<512x128xf32> to vector<512x128xbf16>
    %310 = vector.extract_strided_slice %300 {offsets = [0, 1, 0, 0], sizes = [2, 16, 16, 128], strides = [1, 1, 1, 1]} : vector<2x18x18x128xf32> to vector<2x16x16x128xf32>
    %311 = vector.shape_cast %310 : vector<2x16x16x128xf32> to vector<512x128xf32>
    %312 = arith.truncf %311 : vector<512x128xf32> to vector<512x128xbf16>
    %313 = vector.extract_strided_slice %300 {offsets = [0, 1, 1, 0], sizes = [2, 16, 16, 128], strides = [1, 1, 1, 1]} : vector<2x18x18x128xf32> to vector<2x16x16x128xf32>
    %314 = vector.shape_cast %313 : vector<2x16x16x128xf32> to vector<512x128xf32>
    %315 = arith.truncf %314 : vector<512x128xf32> to vector<512x128xbf16>
    %316 = vector.extract_strided_slice %300 {offsets = [0, 1, 2, 0], sizes = [2, 16, 16, 128], strides = [1, 1, 1, 1]} : vector<2x18x18x128xf32> to vector<2x16x16x128xf32>
    %317 = vector.shape_cast %316 : vector<2x16x16x128xf32> to vector<512x128xf32>
    %318 = arith.truncf %317 : vector<512x128xf32> to vector<512x128xbf16>
    %319 = vector.extract_strided_slice %300 {offsets = [0, 2, 0, 0], sizes = [2, 16, 16, 128], strides = [1, 1, 1, 1]} : vector<2x18x18x128xf32> to vector<2x16x16x128xf32>
    %320 = vector.shape_cast %319 : vector<2x16x16x128xf32> to vector<512x128xf32>
    %321 = arith.truncf %320 : vector<512x128xf32> to vector<512x128xbf16>
    %322 = vector.extract_strided_slice %300 {offsets = [0, 2, 1, 0], sizes = [2, 16, 16, 128], strides = [1, 1, 1, 1]} : vector<2x18x18x128xf32> to vector<2x16x16x128xf32>
    %323 = vector.shape_cast %322 : vector<2x16x16x128xf32> to vector<512x128xf32>
    %324 = arith.truncf %323 : vector<512x128xf32> to vector<512x128xbf16>
    %325 = vector.extract_strided_slice %300 {offsets = [0, 2, 2, 0], sizes = [2, 16, 16, 128], strides = [1, 1, 1, 1]} : vector<2x18x18x128xf32> to vector<2x16x16x128xf32>
    %326 = vector.shape_cast %325 : vector<2x16x16x128xf32> to vector<512x128xf32>
    %327 = arith.truncf %326 : vector<512x128xf32> to vector<512x128xbf16>
    %cst_147 = arith.constant 0.000000e+00 : f32
    %328 = vector.broadcast %cst_147 : f32 to vector<8x512xf32>
    %c0_148 = arith.constant 0 : index
    %c0_149 = arith.constant 0 : index
    %c0_150 = arith.constant 0 : index
    %329 = vector.load %arg13[%c0_148, %c0_149, %c0_150] : memref<9x8x128xf32, #tpu.memory_space<vmem>>, vector<1x8x128xf32>
    %330 = vector.shape_cast %329 : vector<1x8x128xf32> to vector<8x128xf32>
    %331 = arith.truncf %330 : vector<8x128xf32> to vector<8x128xbf16>
    %cst_151 = arith.constant dense<0.000000e+00> : vector<8x512xf32>
    %332 = tpu.matmul %331, %303, %cst_151 {dimension_numbers = #tpu.dot_dimension_numbers<[1], [1], [0], [0], [0, 0, 1, 0], [], []>} : vector<8x128xbf16>, vector<512x128xbf16>, vector<8x512xf32> -> vector<8x512xf32>
    %333 = arith.addf %328, %332 : vector<8x512xf32>
    %c1 = arith.constant 1 : index
    %c0_152 = arith.constant 0 : index
    %c0_153 = arith.constant 0 : index
    %334 = vector.load %arg13[%c1, %c0_152, %c0_153] : memref<9x8x128xf32, #tpu.memory_space<vmem>>, vector<1x8x128xf32>
    %335 = vector.shape_cast %334 : vector<1x8x128xf32> to vector<8x128xf32>
    %336 = arith.truncf %335 : vector<8x128xf32> to vector<8x128xbf16>
    %cst_154 = arith.constant dense<0.000000e+00> : vector<8x512xf32>
    %337 = tpu.matmul %336, %306, %cst_154 {dimension_numbers = #tpu.dot_dimension_numbers<[1], [1], [0], [0], [0, 0, 1, 0], [], []>} : vector<8x128xbf16>, vector<512x128xbf16>, vector<8x512xf32> -> vector<8x512xf32>
    %338 = arith.addf %333, %337 : vector<8x512xf32>
    %c2 = arith.constant 2 : index
    %c0_155 = arith.constant 0 : index
    %c0_156 = arith.constant 0 : index
    %339 = vector.load %arg13[%c2, %c0_155, %c0_156] : memref<9x8x128xf32, #tpu.memory_space<vmem>>, vector<1x8x128xf32>
    %340 = vector.shape_cast %339 : vector<1x8x128xf32> to vector<8x128xf32>
    %341 = arith.truncf %340 : vector<8x128xf32> to vector<8x128xbf16>
    %cst_157 = arith.constant dense<0.000000e+00> : vector<8x512xf32>
    %342 = tpu.matmul %341, %309, %cst_157 {dimension_numbers = #tpu.dot_dimension_numbers<[1], [1], [0], [0], [0, 0, 1, 0], [], []>} : vector<8x128xbf16>, vector<512x128xbf16>, vector<8x512xf32> -> vector<8x512xf32>
    %343 = arith.addf %338, %342 : vector<8x512xf32>
    %c3 = arith.constant 3 : index
    %c0_158 = arith.constant 0 : index
    %c0_159 = arith.constant 0 : index
    %344 = vector.load %arg13[%c3, %c0_158, %c0_159] : memref<9x8x128xf32, #tpu.memory_space<vmem>>, vector<1x8x128xf32>
    %345 = vector.shape_cast %344 : vector<1x8x128xf32> to vector<8x128xf32>
    %346 = arith.truncf %345 : vector<8x128xf32> to vector<8x128xbf16>
    %cst_160 = arith.constant dense<0.000000e+00> : vector<8x512xf32>
    %347 = tpu.matmul %346, %312, %cst_160 {dimension_numbers = #tpu.dot_dimension_numbers<[1], [1], [0], [0], [0, 0, 1, 0], [], []>} : vector<8x128xbf16>, vector<512x128xbf16>, vector<8x512xf32> -> vector<8x512xf32>
    %348 = arith.addf %343, %347 : vector<8x512xf32>
    %c4 = arith.constant 4 : index
    %c0_161 = arith.constant 0 : index
    %c0_162 = arith.constant 0 : index
    %349 = vector.load %arg13[%c4, %c0_161, %c0_162] : memref<9x8x128xf32, #tpu.memory_space<vmem>>, vector<1x8x128xf32>
    %350 = vector.shape_cast %349 : vector<1x8x128xf32> to vector<8x128xf32>
    %351 = arith.truncf %350 : vector<8x128xf32> to vector<8x128xbf16>
    %cst_163 = arith.constant dense<0.000000e+00> : vector<8x512xf32>
    %352 = tpu.matmul %351, %315, %cst_163 {dimension_numbers = #tpu.dot_dimension_numbers<[1], [1], [0], [0], [0, 0, 1, 0], [], []>} : vector<8x128xbf16>, vector<512x128xbf16>, vector<8x512xf32> -> vector<8x512xf32>
    %353 = arith.addf %348, %352 : vector<8x512xf32>
    %c5 = arith.constant 5 : index
    %c0_164 = arith.constant 0 : index
    %c0_165 = arith.constant 0 : index
    %354 = vector.load %arg13[%c5, %c0_164, %c0_165] : memref<9x8x128xf32, #tpu.memory_space<vmem>>, vector<1x8x128xf32>
    %355 = vector.shape_cast %354 : vector<1x8x128xf32> to vector<8x128xf32>
    %356 = arith.truncf %355 : vector<8x128xf32> to vector<8x128xbf16>
    %cst_166 = arith.constant dense<0.000000e+00> : vector<8x512xf32>
    %357 = tpu.matmul %356, %318, %cst_166 {dimension_numbers = #tpu.dot_dimension_numbers<[1], [1], [0], [0], [0, 0, 1, 0], [], []>} : vector<8x128xbf16>, vector<512x128xbf16>, vector<8x512xf32> -> vector<8x512xf32>
    %358 = arith.addf %353, %357 : vector<8x512xf32>
    %c6 = arith.constant 6 : index
    %c0_167 = arith.constant 0 : index
    %c0_168 = arith.constant 0 : index
    %359 = vector.load %arg13[%c6, %c0_167, %c0_168] : memref<9x8x128xf32, #tpu.memory_space<vmem>>, vector<1x8x128xf32>
    %360 = vector.shape_cast %359 : vector<1x8x128xf32> to vector<8x128xf32>
    %361 = arith.truncf %360 : vector<8x128xf32> to vector<8x128xbf16>
    %cst_169 = arith.constant dense<0.000000e+00> : vector<8x512xf32>
    %362 = tpu.matmul %361, %321, %cst_169 {dimension_numbers = #tpu.dot_dimension_numbers<[1], [1], [0], [0], [0, 0, 1, 0], [], []>} : vector<8x128xbf16>, vector<512x128xbf16>, vector<8x512xf32> -> vector<8x512xf32>
    %363 = arith.addf %358, %362 : vector<8x512xf32>
    %c7 = arith.constant 7 : index
    %c0_170 = arith.constant 0 : index
    %c0_171 = arith.constant 0 : index
    %364 = vector.load %arg13[%c7, %c0_170, %c0_171] : memref<9x8x128xf32, #tpu.memory_space<vmem>>, vector<1x8x128xf32>
    %365 = vector.shape_cast %364 : vector<1x8x128xf32> to vector<8x128xf32>
    %366 = arith.truncf %365 : vector<8x128xf32> to vector<8x128xbf16>
    %cst_172 = arith.constant dense<0.000000e+00> : vector<8x512xf32>
    %367 = tpu.matmul %366, %324, %cst_172 {dimension_numbers = #tpu.dot_dimension_numbers<[1], [1], [0], [0], [0, 0, 1, 0], [], []>} : vector<8x128xbf16>, vector<512x128xbf16>, vector<8x512xf32> -> vector<8x512xf32>
    %368 = arith.addf %363, %367 : vector<8x512xf32>
    %c8 = arith.constant 8 : index
    %c0_173 = arith.constant 0 : index
    %c0_174 = arith.constant 0 : index
    %369 = vector.load %arg13[%c8, %c0_173, %c0_174] : memref<9x8x128xf32, #tpu.memory_space<vmem>>, vector<1x8x128xf32>
    %370 = vector.shape_cast %369 : vector<1x8x128xf32> to vector<8x128xf32>
    %371 = arith.truncf %370 : vector<8x128xf32> to vector<8x128xbf16>
    %cst_175 = arith.constant dense<0.000000e+00> : vector<8x512xf32>
    %372 = tpu.matmul %371, %327, %cst_175 {dimension_numbers = #tpu.dot_dimension_numbers<[1], [1], [0], [0], [0, 0, 1, 0], [], []>} : vector<8x128xbf16>, vector<512x128xbf16>, vector<8x512xf32> -> vector<8x512xf32>
    %373 = arith.addf %368, %372 : vector<8x512xf32>
    %c0_176 = arith.constant 0 : index
    %c0_177 = arith.constant 0 : index
    %374 = vector.load %arg14[%c0_176, %c0_177] : memref<8x1xf32, #tpu.memory_space<vmem>>, vector<8x1xf32>
    %375 = vector.broadcast %374 : vector<8x1xf32> to vector<8x512xf32>
    %376 = arith.addf %373, %375 : vector<8x512xf32>
    %c0_178 = arith.constant 0 : index
    %c0_179 = arith.constant 0 : index
    %377 = vector.load %arg15[%c0_178, %c0_179] : memref<8x512xf32, #tpu.memory_space<vmem>>, vector<8x512xf32>
    tpu.vector_store %arg15[%c0_178, %c0_179], %376 {strides = array<i32>} : memref<8x512xf32, #tpu.memory_space<vmem>>, vector<8x512xf32>,
    return
  }
}

</mosaic_0001>

<llo_original>
// kernel: tpu_custom_call.1
$region0: #{tpu_custom_call.1}
  #allocation0 [shape = 'u32[]', space=smem, size = 0x4, offset = 0x4, fixed_abs, tag = 'smem constant byte address 0x4 - core index']
  #allocation1 [shape = 'u32[144,128]{1,0:T(1,128)}', space=vmem, size = 0x12000, scoped, tag = 'internal scratch']
  %s0 = inlined_call_operand.hbm [shape: f32[2,32], index: 0, kind: input, shape index: {}]
  %s1 = inlined_call_operand.hbm [shape: bf16[32,2048], index: 1, kind: input, shape index: {}]
  %s2 = inlined_call_operand.vmem [shape: f32[1,2048], index: 2, kind: input, shape index: {}]
  %s3 = inlined_call_operand.vmem [shape: f32[1,128], index: 3, kind: input, shape index: {}]
  %s4 = inlined_call_operand.vmem [shape: f32[1,128], index: 4, kind: input, shape index: {}]
  %s5 = inlined_call_operand.hbm [shape: bf16[2048,128], index: 5, kind: input, shape index: {}]
  %s6 = inlined_call_operand.vmem [shape: f32[1,128], index: 6, kind: input, shape index: {}]
  %s7 = inlined_call_operand.vmem [shape: f32[1,128], index: 7, kind: input, shape index: {}]
  %s8 = inlined_call_operand.vmem [shape: f32[1,128], index: 8, kind: input, shape index: {}]
  %s9 = inlined_call_operand.hbm [shape: bf16[2048,128], index: 9, kind: input, shape index: {}]
  %s10 = inlined_call_operand.vmem [shape: f32[1,128], index: 10, kind: input, shape index: {}]
  %s11 = inlined_call_operand.vmem [shape: f32[1,128], index: 11, kind: input, shape index: {}]
  %s12 = inlined_call_operand.vmem [shape: f32[1,128], index: 12, kind: input, shape index: {}]
  %s13 = inlined_call_operand.hbm [shape: f32[9,8,128], index: 13, kind: input, shape index: {}]
  %s14 = inlined_call_operand.vmem [shape: f32[8,1], index: 14, kind: input, shape index: {}]
  %s15 = inlined_call_operand.hbm [shape: f32[8,512], index: 15, kind: output, shape index: {}]
  %s16 = sld [smem:[#allocation0]]
  $region90: #{tpu_custom_call.1} parent=0
    _
  %s18 = ssub.s32 1, %s16
  %s19 = scalar_select 0, %s18, %s16
  $region1: #{tpu_custom_call.1} parent=0
    #allocation2 [shape = 'u8[1024]{0}', space=vmem, size = 0x400, scoped, tag = 'input window, operand 0, single buffered']
    #allocation3 [shape = 's32[1]{0}', space=sflag, size = 0x4, scoped, tag = 'scoped memory for tpu_custom_call.1']
    #allocation4 [shape = 's32[1]{0}', space=sflag, size = 0x4, scoped, tag = 'scoped memory for tpu_custom_call.1']
    #allocation5 [shape = 'u8[131072]{0}', space=vmem, size = 0x20000, scoped, tag = 'input window, operand 1, single buffered']
    #allocation6 [shape = 's32[1]{0}', space=sflag, size = 0x4, scoped, tag = 'scoped memory for tpu_custom_call.1']
    #allocation7 [shape = 'u8[524288]{0}', space=vmem, size = 0x80000, scoped, tag = 'input window, operand 5, single buffered']
    #allocation8 [shape = 'u8[524288]{0}', space=vmem, size = 0x80000, scoped, tag = 'input window, operand 9, single buffered']
    #allocation9 [shape = 's32[1]{0}', space=sflag, size = 0x4, scoped, tag = 'scoped memory for tpu_custom_call.1']
    #allocation10 [shape = 'u8[36864]{0}', space=vmem, size = 0x9000, scoped, tag = 'input window, operand 13, single buffered']
    #allocation11 [shape = 'u8[16384]{0}', space=vmem, size = 0x4000, scoped, tag = 'output window, operand 0, single buffered']
    %20 = vsyncpa [#allocation3], 0
    %21 = vsyncpa [#allocation6], 0
    %22 = vsyncpa [#allocation9], 0
    %23 = vsyncpa [#allocation4], 0
    // Predicated region
    $region2: #{tpu_custom_call.1} parent=1 // pred_check
      _
    $region3: #{tpu_custom_call.1} parent=1 // pred_check_branch
      %25 = sbr.rel (0) target = $region5
    $region4: #{tpu_custom_call.1} parent=1 // pred_region
      %s27 = ssub.s32 32, 32
      %28 = vsyncadd [#allocation3], %s27
      %s30 = sshll.u32 [#allocation2], 4
      %s31 = int_to_ptr.vmem [resolvable:$true] %s30
      %33 = dma.hbm_to_vmem [thread:$0]  %s0, 32, %s31, [#allocation3]
    $region5: #{tpu_custom_call.1} parent=1 // pred_fallthru
      _
    // Predicated region
    $region6: #{tpu_custom_call.1} parent=1 // pred_check
      _
    $region7: #{tpu_custom_call.1} parent=1 // pred_check_branch
      %35 = sbr.rel (0) target = $region9
    $region8: #{tpu_custom_call.1} parent=1 // pred_region
      %s37 = ssub.s32 4096, 4096
      %38 = vsyncadd [#allocation6], %s37
      %s39 = sshll.u32 [#allocation5], 4
      %s40 = int_to_ptr.vmem [resolvable:$true] %s39
      %45 = dma.hbm_to_vmem [thread:$0]  %s1, 4096, %s40, [#allocation6], 1024, 1024, 64
    $region9: #{tpu_custom_call.1} parent=1 // pred_fallthru
      _
    // Predicated region
    $region10: #{tpu_custom_call.1} parent=1 // pred_check
      _
    $region11: #{tpu_custom_call.1} parent=1 // pred_check_branch
      %47 = sbr.rel (0) target = $region13
    $region12: #{tpu_custom_call.1} parent=1 // pred_region
      _
    $region13: #{tpu_custom_call.1} parent=1 // pred_fallthru
      _
    // Predicated region
    $region14: #{tpu_custom_call.1} parent=1 // pred_check
      _
    $region15: #{tpu_custom_call.1} parent=1 // pred_check_branch
      %49 = sbr.rel (0) target = $region17
    $region16: #{tpu_custom_call.1} parent=1 // pred_region
      _
    $region17: #{tpu_custom_call.1} parent=1 // pred_fallthru
      _
    // Predicated region
    $region18: #{tpu_custom_call.1} parent=1 // pred_check
      _
    $region19: #{tpu_custom_call.1} parent=1 // pred_check_branch
      %51 = sbr.rel (0) target = $region21
    $region20: #{tpu_custom_call.1} parent=1 // pred_region
      _
    $region21: #{tpu_custom_call.1} parent=1 // pred_fallthru
      _
    // Predicated region
    $region22: #{tpu_custom_call.1} parent=1 // pred_check
      _
    $region23: #{tpu_custom_call.1} parent=1 // pred_check_branch
      %53 = sbr.rel (0) target = $region25
    $region24: #{tpu_custom_call.1} parent=1 // pred_region
      %s55 = ssub.s32 16384, 16384
      %56 = vsyncadd [#allocation6], %s55
      %s57 = sshll.u32 [#allocation7], 4
      %s58 = int_to_ptr.vmem [resolvable:$true] %s57
      %63 = dma.hbm_to_vmem [thread:$0]  %s5, 16384, %s58, [#allocation6], 64, 64, 4
    $region25: #{tpu_custom_call.1} parent=1 // pred_fallthru
      _
    // Predicated region
    $region26: #{tpu_custom_call.1} parent=1 // pred_check
      _
    $region27: #{tpu_custom_call.1} parent=1 // pred_check_branch
      %65 = sbr.rel (0) target = $region29
    $region28: #{tpu_custom_call.1} parent=1 // pred_region
      _
    $region29: #{tpu_custom_call.1} parent=1 // pred_fallthru
      _
    // Predicated region
    $region30: #{tpu_custom_call.1} parent=1 // pred_check
      _
    $region31: #{tpu_custom_call.1} parent=1 // pred_check_branch
      %67 = sbr.rel (0) target = $region33
    $region32: #{tpu_custom_call.1} parent=1 // pred_region
      _
    $region33: #{tpu_custom_call.1} parent=1 // pred_fallthru
      _
    // Predicated region
    $region34: #{tpu_custom_call.1} parent=1 // pred_check
      _
    $region35: #{tpu_custom_call.1} parent=1 // pred_check_branch
      %69 = sbr.rel (0) target = $region37
    $region36: #{tpu_custom_call.1} parent=1 // pred_region
      _
    $region37: #{tpu_custom_call.1} parent=1 // pred_fallthru
      _
    // Predicated region
    $region38: #{tpu_custom_call.1} parent=1 // pred_check
      _
    $region39: #{tpu_custom_call.1} parent=1 // pred_check_branch
      %71 = sbr.rel (0) target = $region41
    $region40: #{tpu_custom_call.1} parent=1 // pred_region
      %s73 = ssub.s32 16384, 16384
      %74 = vsyncadd [#allocation9], %s73
      %s75 = sshll.u32 [#allocation8], 4
      %s76 = int_to_ptr.vmem [resolvable:$true] %s75
      %81 = dma.hbm_to_vmem [thread:$0]  %s9, 16384, %s76, [#allocation9], 64, 64, 4
    $region41: #{tpu_custom_call.1} parent=1 // pred_fallthru
      _
    // Predicated region
    $region42: #{tpu_custom_call.1} parent=1 // pred_check
      _
    $region43: #{tpu_custom_call.1} parent=1 // pred_check_branch
      %83 = sbr.rel (0) target = $region45
    $region44: #{tpu_custom_call.1} parent=1 // pred_region
      _
    $region45: #{tpu_custom_call.1} parent=1 // pred_fallthru
      _
    // Predicated region
    $region46: #{tpu_custom_call.1} parent=1 // pred_check
      _
    $region47: #{tpu_custom_call.1} parent=1 // pred_check_branch
      %85 = sbr.rel (0) target = $region49
    $region48: #{tpu_custom_call.1} parent=1 // pred_region
      _
    $region49: #{tpu_custom_call.1} parent=1 // pred_fallthru
      _
    // Predicated region
    $region50: #{tpu_custom_call.1} parent=1 // pred_check
      _
    $region51: #{tpu_custom_call.1} parent=1 // pred_check_branch
      %87 = sbr.rel (0) target = $region53
    $region52: #{tpu_custom_call.1} parent=1 // pred_region
      _
    $region53: #{tpu_custom_call.1} parent=1 // pred_fallthru
      _
    // Predicated region
    $region54: #{tpu_custom_call.1} parent=1 // pred_check
      _
    $region55: #{tpu_custom_call.1} parent=1 // pred_check_branch
      %89 = sbr.rel (0) target = $region57
    $region56: #{tpu_custom_call.1} parent=1 // pred_region
      %s91 = ssub.s32 1152, 1152
      %92 = vsyncadd [#allocation9], %s91
      %s93 = sshll.u32 [#allocation10], 4
      %s94 = int_to_ptr.vmem [resolvable:$true] %s93
      %99 = dma.hbm_to_vmem [thread:$0]  %s13, 1152, %s94, [#allocation9], 128, 128, 8
    $region57: #{tpu_custom_call.1} parent=1 // pred_fallthru
      _
    // Predicated region
    $region58: #{tpu_custom_call.1} parent=1 // pred_check
      _
    $region59: #{tpu_custom_call.1} parent=1 // pred_check_branch
      %101 = sbr.rel (0) target = $region61
    $region60: #{tpu_custom_call.1} parent=1 // pred_region
      _
    $region61: #{tpu_custom_call.1} parent=1 // pred_fallthru
      _
    // Predicated region
    $region62: #{tpu_custom_call.1} parent=1 // pred_check
      _
    $region63: #{tpu_custom_call.1} parent=1 // pred_check_branch
      %103 = sbr.rel (0) target = $region65
    $region64: #{tpu_custom_call.1} parent=1 // pred_region
      %104 = dma.done [#allocation3], 32
    $region65: #{tpu_custom_call.1} parent=1 // pred_fallthru
      _
    // Predicated region
    $region66: #{tpu_custom_call.1} parent=1 // pred_check
      _
    $region67: #{tpu_custom_call.1} parent=1 // pred_check_branch
      %106 = sbr.rel (0) target = $region69
    $region68: #{tpu_custom_call.1} parent=1 // pred_region
      %107 = dma.done [#allocation6], 4096
    $region69: #{tpu_custom_call.1} parent=1 // pred_fallthru
      _
    // Predicated region
    $region70: #{tpu_custom_call.1} parent=1 // pred_check
      _
    $region71: #{tpu_custom_call.1} parent=1 // pred_check_branch
      %109 = sbr.rel (0) target = $region73
    $region72: #{tpu_custom_call.1} parent=1 // pred_region
      %110 = dma.done [#allocation6], 16384
    $region73: #{tpu_custom_call.1} parent=1 // pred_fallthru
      _
    // Predicated region
    $region74: #{tpu_custom_call.1} parent=1 // pred_check
      _
    $region75: #{tpu_custom_call.1} parent=1 // pred_check_branch
      %112 = sbr.rel (0) target = $region77
    $region76: #{tpu_custom_call.1} parent=1 // pred_region
      %113 = dma.done [#allocation9], 16384
    $region77: #{tpu_custom_call.1} parent=1 // pred_fallthru
      _
    // Predicated region
    $region78: #{tpu_custom_call.1} parent=1 // pred_check
      _
    $region79: #{tpu_custom_call.1} parent=1 // pred_check_branch
      %115 = sbr.rel (0) target = $region81
    $region80: #{tpu_custom_call.1} parent=1 // pred_region
      %116 = dma.done [#allocation9], 1152
    $region81: #{tpu_custom_call.1} parent=1 // pred_fallthru
      _
    %v118 = vld [vmem:[#allocation2] sm:$0x3]
    %v119 = vpack.c.bf16 %v118, %v118
    %v120 = vld [vmem:[#allocation5] sm:$0xff]
    %v121 = vld [vmem:[#allocation5 + $0x8] sm:$0xff]
    %v122 = vld [vmem:[#allocation5 + $0x10] sm:$0xff]
    %v123 = vld [vmem:[#allocation5 + $0x18] sm:$0xff]
    %v124 = vld [vmem:[#allocation5 + $0x20] sm:$0xff]
    %v125 = vld [vmem:[#allocation5 + $0x28] sm:$0xff]
    %v126 = vld [vmem:[#allocation5 + $0x30] sm:$0xff]
    %v127 = vld [vmem:[#allocation5 + $0x38] sm:$0xff]
    %v128 = vld [vmem:[#allocation5 + $0x40] sm:$0xff]
    %v129 = vld [vmem:[#allocation5 + $0x48] sm:$0xff]
    %v130 = vld [vmem:[#allocation5 + $0x50] sm:$0xff]
    %v131 = vld [vmem:[#allocation5 + $0x58] sm:$0xff]
    %v132 = vld [vmem:[#allocation5 + $0x60] sm:$0xff]
    %v133 = vld [vmem:[#allocation5 + $0x68] sm:$0xff]
    %v134 = vld [vmem:[#allocation5 + $0x70] sm:$0xff]
    %v135 = vld [vmem:[#allocation5 + $0x78] sm:$0xff]
    %v136 = vld [vmem:[#allocation5 + $0x80] sm:$0xff]
    %v137 = vld [vmem:[#allocation5 + $0x88] sm:$0xff]
    %v138 = vld [vmem:[#allocation5 + $0x90] sm:$0xff]
    %v139 = vld [vmem:[#allocation5 + $0x98] sm:$0xff]
    %v140 = vld [vmem:[#allocation5 + $0xa0] sm:$0xff]
    %v141 = vld [vmem:[#allocation5 + $0xa8] sm:$0xff]
    %v142 = vld [vmem:[#allocation5 + $0xb0] sm:$0xff]
    %v143 = vld [vmem:[#allocation5 + $0xb8] sm:$0xff]
    %v144 = vld [vmem:[#allocation5 + $0xc0] sm:$0xff]
    %v145 = vld [vmem:[#allocation5 + $0xc8] sm:$0xff]
    %v146 = vld [vmem:[#allocation5 + $0xd0] sm:$0xff]
    %v147 = vld [vmem:[#allocation5 + $0xd8] sm:$0xff]
    %v148 = vld [vmem:[#allocation5 + $0xe0] sm:$0xff]
    %v149 = vld [vmem:[#allocation5 + $0xe8] sm:$0xff]
    %v150 = vld [vmem:[#allocation5 + $0xf0] sm:$0xff]
    %v151 = vld [vmem:[#allocation5 + $0xf8] sm:$0xff]
    %v152 = vld [vmem:[%s2] sm:$0xff]
    %v153 = vld [vmem:[%s2 + $0x8] sm:$0xff]
    %v156 = vlaneseq
    %v157 = vshrl.u32 %v156, 7
    %v158 = vsub.s32 0, %v157
    %v159 = vrot.slane %v152, %v158
    %v160 = vlaneseq
    %v161 = vshrl.u32 %v160, 7
    %v162 = vsub.s32 1, %v161
    %v163 = vrot.slane %v152, %v162
    %v164 = vlaneseq
    %v165 = vshrl.u32 %v164, 7
    %v166 = vsub.s32 2, %v165
    %v167 = vrot.slane %v152, %v166
    %v168 = vlaneseq
    %v169 = vshrl.u32 %v168, 7
    %v170 = vsub.s32 3, %v169
    %v171 = vrot.slane %v152, %v170
    %v172 = vlaneseq
    %v173 = vshrl.u32 %v172, 7
    %v174 = vsub.s32 4, %v173
    %v175 = vrot.slane %v152, %v174
    %v176 = vlaneseq
    %v177 = vshrl.u32 %v176, 7
    %v178 = vsub.s32 5, %v177
    %v179 = vrot.slane %v152, %v178
    %v180 = vlaneseq
    %v181 = vshrl.u32 %v180, 7
    %v182 = vsub.s32 6, %v181
    %v183 = vrot.slane %v152, %v182
    %v184 = vlaneseq
    %v185 = vshrl.u32 %v184, 7
    %v186 = vsub.s32 7, %v185
    %v187 = vrot.slane %v152, %v186
    %v188 = vlaneseq
    %v189 = vshrl.u32 %v188, 7
    %v190 = vsub.s32 0, %v189
    %v191 = vrot.slane %v153, %v190
    %v192 = vlaneseq
    %v193 = vshrl.u32 %v192, 7
    %v194 = vsub.s32 1, %v193
    %v195 = vrot.slane %v153, %v194
    %v196 = vlaneseq
    %v197 = vshrl.u32 %v196, 7
    %v198 = vsub.s32 2, %v197
    %v199 = vrot.slane %v153, %v198
    %v200 = vlaneseq
    %v201 = vshrl.u32 %v200, 7
    %v202 = vsub.s32 3, %v201
    %v203 = vrot.slane %v153, %v202
    %v204 = vlaneseq
    %v205 = vshrl.u32 %v204, 7
    %v206 = vsub.s32 4, %v205
    %v207 = vrot.slane %v153, %v206
    %v208 = vlaneseq
    %v209 = vshrl.u32 %v208, 7
    %v210 = vsub.s32 5, %v209
    %v211 = vrot.slane %v153, %v210
    %v212 = vlaneseq
    %v213 = vshrl.u32 %v212, 7
    %v214 = vsub.s32 6, %v213
    %v215 = vrot.slane %v153, %v214
    %v216 = vlaneseq
    %v217 = vshrl.u32 %v216, 7
    %v218 = vsub.s32 7, %v217
    %v219 = vrot.slane %v153, %v218
    %v268 = vunpack.c.l.b16 %v120
    %v269 = vunpack.c.h.b16 %v120
    %v270 = vunpack.c.l.b16 %v121
    %v271 = vunpack.c.h.b16 %v121
    %v272 = vunpack.c.l.b16 %v122
    %v273 = vunpack.c.h.b16 %v122
    %v274 = vunpack.c.l.b16 %v123
    %v275 = vunpack.c.h.b16 %v123
    %v276 = vunpack.c.l.b16 %v124
    %v277 = vunpack.c.h.b16 %v124
    %v278 = vunpack.c.l.b16 %v125
    %v279 = vunpack.c.h.b16 %v125
    %v280 = vunpack.c.l.b16 %v126
    %v281 = vunpack.c.h.b16 %v126
    %v282 = vunpack.c.l.b16 %v127
    %v283 = vunpack.c.h.b16 %v127
    %v284 = vunpack.c.l.b16 %v128
    %v285 = vunpack.c.h.b16 %v128
    %v286 = vunpack.c.l.b16 %v129
    %v287 = vunpack.c.h.b16 %v129
    %v288 = vunpack.c.l.b16 %v130
    %v289 = vunpack.c.h.b16 %v130
    %v290 = vunpack.c.l.b16 %v131
    %v291 = vunpack.c.h.b16 %v131
    %v292 = vunpack.c.l.b16 %v132
    %v293 = vunpack.c.h.b16 %v132
    %v294 = vunpack.c.l.b16 %v133
    %v295 = vunpack.c.h.b16 %v133
    %v296 = vunpack.c.l.b16 %v134
    %v297 = vunpack.c.h.b16 %v134
    %v298 = vunpack.c.l.b16 %v135
    %v299 = vunpack.c.h.b16 %v135
    %v300 = vunpack.c.l.b16 %v136
    %v301 = vunpack.c.h.b16 %v136
    %v302 = vunpack.c.l.b16 %v137
    %v303 = vunpack.c.h.b16 %v137
    %v304 = vunpack.c.l.b16 %v138
    %v305 = vunpack.c.h.b16 %v138
    %v306 = vunpack.c.l.b16 %v139
    %v307 = vunpack.c.h.b16 %v139
    %v308 = vunpack.c.l.b16 %v140
    %v309 = vunpack.c.h.b16 %v140
    %v310 = vunpack.c.l.b16 %v141
    %v311 = vunpack.c.h.b16 %v141
    %v312 = vunpack.c.l.b16 %v142
    %v313 = vunpack.c.h.b16 %v142
    %v314 = vunpack.c.l.b16 %v143
    %v315 = vunpack.c.h.b16 %v143
    %v316 = vunpack.c.l.b16 %v144
    %v317 = vunpack.c.h.b16 %v144
    %v318 = vunpack.c.l.b16 %v145
    %v319 = vunpack.c.h.b16 %v145
    %v320 = vunpack.c.l.b16 %v146
    %v321 = vunpack.c.h.b16 %v146
    %v322 = vunpack.c.l.b16 %v147
    %v323 = vunpack.c.h.b16 %v147
    %v324 = vunpack.c.l.b16 %v148
    %v325 = vunpack.c.h.b16 %v148
    %v326 = vunpack.c.l.b16 %v149
    %v327 = vunpack.c.h.b16 %v149
    %v328 = vunpack.c.l.b16 %v150
    %v329 = vunpack.c.h.b16 %v150
    %v330 = vunpack.c.l.b16 %v151
    %v331 = vunpack.c.h.b16 %v151
    %v332 = vpack.c.b16 %v284, %v268
    %v333 = vpack.c.b16 %v285, %v269
    %v334 = vpack.c.b16 %v286, %v270
    %v335 = vpack.c.b16 %v287, %v271
    %v336 = vpack.c.b16 %v288, %v272
    %v337 = vpack.c.b16 %v289, %v273
    %v338 = vpack.c.b16 %v290, %v274
    %v339 = vpack.c.b16 %v291, %v275
    %v340 = vpack.c.b16 %v292, %v276
    %v341 = vpack.c.b16 %v293, %v277
    %v342 = vpack.c.b16 %v294, %v278
    %v343 = vpack.c.b16 %v295, %v279
    %v344 = vpack.c.b16 %v296, %v280
    %v345 = vpack.c.b16 %v297, %v281
    %v346 = vpack.c.b16 %v298, %v282
    %v347 = vpack.c.b16 %v299, %v283
    %v348 = vpack.c.b16 %v316, %v300
    %v349 = vpack.c.b16 %v317, %v301
    %v350 = vpack.c.b16 %v318, %v302
    %v351 = vpack.c.b16 %v319, %v303
    %v352 = vpack.c.b16 %v320, %v304
    %v353 = vpack.c.b16 %v321, %v305
    %v354 = vpack.c.b16 %v322, %v306
    %v355 = vpack.c.b16 %v323, %v307
    %v356 = vpack.c.b16 %v324, %v308
    %v357 = vpack.c.b16 %v325, %v309
    %v358 = vpack.c.b16 %v326, %v310
    %v359 = vpack.c.b16 %v327, %v311
    %v360 = vpack.c.b16 %v328, %v312
    %v361 = vpack.c.b16 %v329, %v313
    %v362 = vpack.c.b16 %v330, %v314
    %v363 = vpack.c.b16 %v331, %v315
    %vm396 = vcmask 261120
    %v398 = vsel %vm396, %v119, 0
    %400 = vmatprep.subr.bf16.mxu0 %v333
    %401 = vmatpush1.bf16.msra.mxu0 %v332
    %402 = vmatprep.subr.bf16.mxu0 %v349
    %403 = vmatpush1.bf16.msra.mxu0 %v348
    %404 = vmatprep.subr.bf16.mxu0 0
    %405 = vmatpush1.bf16.msra.mxu0 0
    %406 = vmatprep.subr.bf16.mxu0 0
    %407 = vmatpush1.bf16.msra.mxu0 0
    %408 = vmatprep.subr.bf16.mxu0 0
    %409 = vmatpush1.bf16.msra.mxu0 0
    %410 = vmatprep.subr.bf16.mxu0 0
    %411 = vmatpush1.bf16.msra.mxu0 0
    %412 = vmatprep.subr.bf16.mxu0 0
    %413 = vmatpush1.bf16.msra.mxu0 0
    %414 = vmatprep.subr.bf16.mxu0 0
    %415 = vmatpush1.bf16.msra.mxu0 0
    %416 = vmatprep.subr.bf16.mxu0 0
    %417 = vmatpush1.bf16.msra.mxu0 0
    %418 = vmatprep.subr.bf16.mxu0 0
    %419 = vmatpush1.bf16.msra.mxu0 0
    %420 = vmatprep.subr.bf16.mxu0 0
    %421 = vmatpush1.bf16.msra.mxu0 0
    %422 = vmatprep.subr.bf16.mxu0 0
    %423 = vmatpush1.bf16.msra.mxu0 0
    %424 = vmatprep.subr.bf16.mxu0 0
    %425 = vmatpush1.bf16.msra.mxu0 0
    %426 = vmatprep.subr.bf16.mxu0 0
    %427 = vmatpush1.bf16.msra.mxu0 0
    %428 = vmatprep.subr.bf16.mxu0 0
    %429 = vmatpush1.bf16.msra.mxu0 0
    %430 = vmatprep.subr.bf16.mxu0 0
    %431 = vmatpush1.bf16.msra.mxu0 0
    %432 = vmatprep.mubr.bf16.mxu0 0
    %433 = vmatmul.mubr.bf16.gmra.mrb[0].mxu0 %v398
    %v434 = vpop.f32.mrb[0].mxu0
    %v435 = vadd.f32 %v159, %v434
    %v436 = vpop.f32.mrb[0].mxu0
    %v437 = vadd.f32 %v163, %v436
    %v438 = vpop.f32.mrb[0].mxu0
    %v439 = vpop.f32.mrb[0].mxu0
    %440 = vdwg.mxu0
    %441 = vmatprep.subr.bf16.mxu0 %v335
    %442 = vmatpush1.bf16.msra.mxu0 %v334
    %443 = vmatprep.subr.bf16.mxu0 %v351
    %444 = vmatpush1.bf16.msra.mxu0 %v350
    %445 = vmatprep.subr.bf16.mxu0 0
    %446 = vmatpush1.bf16.msra.mxu0 0
    %447 = vmatprep.subr.bf16.mxu0 0
    %448 = vmatpush1.bf16.msra.mxu0 0
    %449 = vmatprep.subr.bf16.mxu0 0
    %450 = vmatpush1.bf16.msra.mxu0 0
    %451 = vmatprep.subr.bf16.mxu0 0
    %452 = vmatpush1.bf16.msra.mxu0 0
    %453 = vmatprep.subr.bf16.mxu0 0
    %454 = vmatpush1.bf16.msra.mxu0 0
    %455 = vmatprep.subr.bf16.mxu0 0
    %456 = vmatpush1.bf16.msra.mxu0 0
    %457 = vmatprep.subr.bf16.mxu0 0
    %458 = vmatpush1.bf16.msra.mxu0 0
    %459 = vmatprep.subr.bf16.mxu0 0
    %460 = vmatpush1.bf16.msra.mxu0 0
    %461 = vmatprep.subr.bf16.mxu0 0
    %462 = vmatpush1.bf16.msra.mxu0 0
    %463 = vmatprep.subr.bf16.mxu0 0
    %464 = vmatpush1.bf16.msra.mxu0 0
    %465 = vmatprep.subr.bf16.mxu0 0
    %466 = vmatpush1.bf16.msra.mxu0 0
    %467 = vmatprep.subr.bf16.mxu0 0
    %468 = vmatpush1.bf16.msra.mxu0 0
    %469 = vmatprep.subr.bf16.mxu0 0
    %470 = vmatpush1.bf16.msra.mxu0 0
    %471 = vmatprep.subr.bf16.mxu0 0
    %472 = vmatpush1.bf16.msra.mxu0 0
    %473 = vmatprep.mubr.bf16.mxu0 0
    %474 = vmatmul.mubr.bf16.gmra.mrb[0].mxu0 %v398
    %v475 = vpop.f32.mrb[0].mxu0
    %v476 = vadd.f32 %v167, %v475
    %v477 = vpop.f32.mrb[0].mxu0
    %v478 = vadd.f32 %v171, %v477
    %v479 = vpop.f32.mrb[0].mxu0
    %v480 = vpop.f32.mrb[0].mxu0
    %481 = vdwg.mxu0
    %482 = vmatprep.subr.bf16.mxu0 %v337
    %483 = vmatpush1.bf16.msra.mxu0 %v336
    %484 = vmatprep.subr.bf16.mxu0 %v353
    %485 = vmatpush1.bf16.msra.mxu0 %v352
    %486 = vmatprep.subr.bf16.mxu0 0
    %487 = vmatpush1.bf16.msra.mxu0 0
    %488 = vmatprep.subr.bf16.mxu0 0
    %489 = vmatpush1.bf16.msra.mxu0 0
    %490 = vmatprep.subr.bf16.mxu0 0
    %491 = vmatpush1.bf16.msra.mxu0 0
    %492 = vmatprep.subr.bf16.mxu0 0
    %493 = vmatpush1.bf16.msra.mxu0 0
    %494 = vmatprep.subr.bf16.mxu0 0
    %495 = vmatpush1.bf16.msra.mxu0 0
    %496 = vmatprep.subr.bf16.mxu0 0
    %497 = vmatpush1.bf16.msra.mxu0 0
    %498 = vmatprep.subr.bf16.mxu0 0
    %499 = vmatpush1.bf16.msra.mxu0 0
    %500 = vmatprep.subr.bf16.mxu0 0
    %501 = vmatpush1.bf16.msra.mxu0 0
    %502 = vmatprep.subr.bf16.mxu0 0
    %503 = vmatpush1.bf16.msra.mxu0 0
    %504 = vmatprep.subr.bf16.mxu0 0
    %505 = vmatpush1.bf16.msra.mxu0 0
    %506 = vmatprep.subr.bf16.mxu0 0
    %507 = vmatpush1.bf16.msra.mxu0 0
    %508 = vmatprep.subr.bf16.mxu0 0
    %509 = vmatpush1.bf16.msra.mxu0 0
    %510 = vmatprep.subr.bf16.mxu0 0
    %511 = vmatpush1.bf16.msra.mxu0 0
    %512 = vmatprep.subr.bf16.mxu0 0
    %513 = vmatpush1.bf16.msra.mxu0 0
    %514 = vmatprep.mubr.bf16.mxu0 0
    %515 = vmatmul.mubr.bf16.gmra.mrb[0].mxu0 %v398
    %v516 = vpop.f32.mrb[0].mxu0
    %v517 = vadd.f32 %v175, %v516
    %v518 = vpop.f32.mrb[0].mxu0
    %v519 = vadd.f32 %v179, %v518
    %v520 = vpop.f32.mrb[0].mxu0
    %v521 = vpop.f32.mrb[0].mxu0
    %522 = vdwg.mxu0
    %523 = vmatprep.subr.bf16.mxu0 %v339
    %524 = vmatpush1.bf16.msra.mxu0 %v338
    %525 = vmatprep.subr.bf16.mxu0 %v355
    %526 = vmatpush1.bf16.msra.mxu0 %v354
    %527 = vmatprep.subr.bf16.mxu0 0
    %528 = vmatpush1.bf16.msra.mxu0 0
    %529 = vmatprep.subr.bf16.mxu0 0
    %530 = vmatpush1.bf16.msra.mxu0 0
    %531 = vmatprep.subr.bf16.mxu0 0
    %532 = vmatpush1.bf16.msra.mxu0 0
    %533 = vmatprep.subr.bf16.mxu0 0
    %534 = vmatpush1.bf16.msra.mxu0 0
    %535 = vmatprep.subr.bf16.mxu0 0
    %536 = vmatpush1.bf16.msra.mxu0 0
    %537 = vmatprep.subr.bf16.mxu0 0
    %538 = vmatpush1.bf16.msra.mxu0 0
    %539 = vmatprep.subr.bf16.mxu0 0
    %540 = vmatpush1.bf16.msra.mxu0 0
    %541 = vmatprep.subr.bf16.mxu0 0
    %542 = vmatpush1.bf16.msra.mxu0 0
    %543 = vmatprep.subr.bf16.mxu0 0
    %544 = vmatpush1.bf16.msra.mxu0 0
    %545 = vmatprep.subr.bf16.mxu0 0
    %546 = vmatpush1.bf16.msra.mxu0 0
    %547 = vmatprep.subr.bf16.mxu0 0
    %548 = vmatpush1.bf16.msra.mxu0 0
    %549 = vmatprep.subr.bf16.mxu0 0
    %550 = vmatpush1.bf16.msra.mxu0 0
    %551 = vmatprep.subr.bf16.mxu0 0
    %552 = vmatpush1.bf16.msra.mxu0 0
    %553 = vmatprep.subr.bf16.mxu0 0
    %554 = vmatpush1.bf16.msra.mxu0 0
    %555 = vmatprep.mubr.bf16.mxu0 0
    %556 = vmatmul.mubr.bf16.gmra.mrb[0].mxu0 %v398
    %v557 = vpop.f32.mrb[0].mxu0
    %v558 = vadd.f32 %v183, %v557
    %v559 = vpop.f32.mrb[0].mxu0
    %v560 = vadd.f32 %v187, %v559
    %v561 = vpop.f32.mrb[0].mxu0
    %v562 = vpop.f32.mrb[0].mxu0
    %563 = vdwg.mxu0
    %564 = vmatprep.subr.bf16.mxu0 %v341
    %565 = vmatpush1.bf16.msra.mxu0 %v340
    %566 = vmatprep.subr.bf16.mxu0 %v357
    %567 = vmatpush1.bf16.msra.mxu0 %v356
    %568 = vmatprep.subr.bf16.mxu0 0
    %569 = vmatpush1.bf16.msra.mxu0 0
    %570 = vmatprep.subr.bf16.mxu0 0
    %571 = vmatpush1.bf16.msra.mxu0 0
    %572 = vmatprep.subr.bf16.mxu0 0
    %573 = vmatpush1.bf16.msra.mxu0 0
    %574 = vmatprep.subr.bf16.mxu0 0
    %575 = vmatpush1.bf16.msra.mxu0 0
    %576 = vmatprep.subr.bf16.mxu0 0
    %577 = vmatpush1.bf16.msra.mxu0 0
    %578 = vmatprep.subr.bf16.mxu0 0
    %579 = vmatpush1.bf16.msra.mxu0 0
    %580 = vmatprep.subr.bf16.mxu0 0
    %581 = vmatpush1.bf16.msra.mxu0 0
    %582 = vmatprep.subr.bf16.mxu0 0
    %583 = vmatpush1.bf16.msra.mxu0 0
    %584 = vmatprep.subr.bf16.mxu0 0
    %585 = vmatpush1.bf16.msra.mxu0 0
    %586 = vmatprep.subr.bf16.mxu0 0
    %587 = vmatpush1.bf16.msra.mxu0 0
    %588 = vmatprep.subr.bf16.mxu0 0
    %589 = vmatpush1.bf16.msra.mxu0 0
    %590 = vmatprep.subr.bf16.mxu0 0
    %591 = vmatpush1.bf16.msra.mxu0 0
    %592 = vmatprep.subr.bf16.mxu0 0
    %593 = vmatpush1.bf16.msra.mxu0 0
    %594 = vmatprep.subr.bf16.mxu0 0
    %595 = vmatpush1.bf16.msra.mxu0 0
    %596 = vmatprep.mubr.bf16.mxu0 0
    %597 = vmatmul.mubr.bf16.gmra.mrb[0].mxu0 %v398
    %v598 = vpop.f32.mrb[0].mxu0
    %v599 = vadd.f32 %v191, %v598
    %v600 = vpop.f32.mrb[0].mxu0
    %v601 = vadd.f32 %v195, %v600
    %v602 = vpop.f32.mrb[0].mxu0
    %v603 = vpop.f32.mrb[0].mxu0
    %604 = vdwg.mxu0
    %605 = vmatprep.subr.bf16.mxu0 %v343
    %606 = vmatpush1.bf16.msra.mxu0 %v342
    %607 = vmatprep.subr.bf16.mxu0 %v359
    %608 = vmatpush1.bf16.msra.mxu0 %v358
    %609 = vmatprep.subr.bf16.mxu0 0
    %610 = vmatpush1.bf16.msra.mxu0 0
    %611 = vmatprep.subr.bf16.mxu0 0
    %612 = vmatpush1.bf16.msra.mxu0 0
    %613 = vmatprep.subr.bf16.mxu0 0
    %614 = vmatpush1.bf16.msra.mxu0 0
    %615 = vmatprep.subr.bf16.mxu0 0
    %616 = vmatpush1.bf16.msra.mxu0 0
    %617 = vmatprep.subr.bf16.mxu0 0
    %618 = vmatpush1.bf16.msra.mxu0 0
    %619 = vmatprep.subr.bf16.mxu0 0
    %620 = vmatpush1.bf16.msra.mxu0 0
    %621 = vmatprep.subr.bf16.mxu0 0
    %622 = vmatpush1.bf16.msra.mxu0 0
    %623 = vmatprep.subr.bf16.mxu0 0
    %624 = vmatpush1.bf16.msra.mxu0 0
    %625 = vmatprep.subr.bf16.mxu0 0
    %626 = vmatpush1.bf16.msra.mxu0 0
    %627 = vmatprep.subr.bf16.mxu0 0
    %628 = vmatpush1.bf16.msra.mxu0 0
    %629 = vmatprep.subr.bf16.mxu0 0
    %630 = vmatpush1.bf16.msra.mxu0 0
    %631 = vmatprep.subr.bf16.mxu0 0
    %632 = vmatpush1.bf16.msra.mxu0 0
    %633 = vmatprep.subr.bf16.mxu0 0
    %634 = vmatpush1.bf16.msra.mxu0 0
    %635 = vmatprep.subr.bf16.mxu0 0
    %636 = vmatpush1.bf16.msra.mxu0 0
    %637 = vmatprep.mubr.bf16.mxu0 0
    %638 = vmatmul.mubr.bf16.gmra.mrb[0].mxu0 %v398
    %v639 = vpop.f32.mrb[0].mxu0
    %v640 = vadd.f32 %v199, %v639
    %v641 = vpop.f32.mrb[0].mxu0
    %v642 = vadd.f32 %v203, %v641
    %v643 = vpop.f32.mrb[0].mxu0
    %v644 = vpop.f32.mrb[0].mxu0
    %645 = vdwg.mxu0
    %646 = vmatprep.subr.bf16.mxu0 %v345
    %647 = vmatpush1.bf16.msra.mxu0 %v344
    %648 = vmatprep.subr.bf16.mxu0 %v361
    %649 = vmatpush1.bf16.msra.mxu0 %v360
    %650 = vmatprep.subr.bf16.mxu0 0
    %651 = vmatpush1.bf16.msra.mxu0 0
    %652 = vmatprep.subr.bf16.mxu0 0
    %653 = vmatpush1.bf16.msra.mxu0 0
    %654 = vmatprep.subr.bf16.mxu0 0
    %655 = vmatpush1.bf16.msra.mxu0 0
    %656 = vmatprep.subr.bf16.mxu0 0
    %657 = vmatpush1.bf16.msra.mxu0 0
    %658 = vmatprep.subr.bf16.mxu0 0
    %659 = vmatpush1.bf16.msra.mxu0 0
    %660 = vmatprep.subr.bf16.mxu0 0
    %661 = vmatpush1.bf16.msra.mxu0 0
    %662 = vmatprep.subr.bf16.mxu0 0
    %663 = vmatpush1.bf16.msra.mxu0 0
    %664 = vmatprep.subr.bf16.mxu0 0
    %665 = vmatpush1.bf16.msra.mxu0 0
    %666 = vmatprep.subr.bf16.mxu0 0
    %667 = vmatpush1.bf16.msra.mxu0 0
    %668 = vmatprep.subr.bf16.mxu0 0
    %669 = vmatpush1.bf16.msra.mxu0 0
    %670 = vmatprep.subr.bf16.mxu0 0
    %671 = vmatpush1.bf16.msra.mxu0 0
    %672 = vmatprep.subr.bf16.mxu0 0
    %673 = vmatpush1.bf16.msra.mxu0 0
    %674 = vmatprep.subr.bf16.mxu0 0
    %675 = vmatpush1.bf16.msra.mxu0 0
    %676 = vmatprep.subr.bf16.mxu0 0
    %677 = vmatpush1.bf16.msra.mxu0 0
    %678 = vmatprep.mubr.bf16.mxu0 0
    %679 = vmatmul.mubr.bf16.gmra.mrb[0].mxu0 %v398
    %v680 = vpop.f32.mrb[0].mxu0
    %v681 = vadd.f32 %v207, %v680
    %v682 = vpop.f32.mrb[0].mxu0
    %v683 = vadd.f32 %v211, %v682
    %v684 = vpop.f32.mrb[0].mxu0
    %v685 = vpop.f32.mrb[0].mxu0
    %686 = vdwg.mxu0
    %687 = vmatprep.subr.bf16.mxu0 %v347
    %688 = vmatpush1.bf16.msra.mxu0 %v346
    %689 = vmatprep.subr.bf16.mxu0 %v363
    %690 = vmatpush1.bf16.msra.mxu0 %v362
    %691 = vmatprep.subr.bf16.mxu0 0
    %692 = vmatpush1.bf16.msra.mxu0 0
    %693 = vmatprep.subr.bf16.mxu0 0
    %694 = vmatpush1.bf16.msra.mxu0 0
    %695 = vmatprep.subr.bf16.mxu0 0
    %696 = vmatpush1.bf16.msra.mxu0 0
    %697 = vmatprep.subr.bf16.mxu0 0
    %698 = vmatpush1.bf16.msra.mxu0 0
    %699 = vmatprep.subr.bf16.mxu0 0
    %700 = vmatpush1.bf16.msra.mxu0 0
    %701 = vmatprep.subr.bf16.mxu0 0
    %702 = vmatpush1.bf16.msra.mxu0 0
    %703 = vmatprep.subr.bf16.mxu0 0
    %704 = vmatpush1.bf16.msra.mxu0 0
    %705 = vmatprep.subr.bf16.mxu0 0
    %706 = vmatpush1.bf16.msra.mxu0 0
    %707 = vmatprep.subr.bf16.mxu0 0
    %708 = vmatpush1.bf16.msra.mxu0 0
    %709 = vmatprep.subr.bf16.mxu0 0
    %710 = vmatpush1.bf16.msra.mxu0 0
    %711 = vmatprep.subr.bf16.mxu0 0
    %712 = vmatpush1.bf16.msra.mxu0 0
    %713 = vmatprep.subr.bf16.mxu0 0
    %714 = vmatpush1.bf16.msra.mxu0 0
    %715 = vmatprep.subr.bf16.mxu0 0
    %716 = vmatpush1.bf16.msra.mxu0 0
    %717 = vmatprep.subr.bf16.mxu0 0
    %718 = vmatpush1.bf16.msra.mxu0 0
    %719 = vmatprep.mubr.bf16.mxu0 0
    %720 = vmatmul.mubr.bf16.gmra.mrb[0].mxu0 %v398
    %v721 = vpop.f32.mrb[0].mxu0
    %v722 = vadd.f32 %v215, %v721
    %v723 = vpop.f32.mrb[0].mxu0
    %v724 = vadd.f32 %v219, %v723
    %v725 = vpop.f32.mrb[0].mxu0
    %v726 = vpop.f32.mrb[0].mxu0
    %727 = vdwg.mxu0
    %vm728 = vcmask 1040384
    %v729 = vsel %vm728, %v435, 0.0
    %v730 = vrot.slane %v437, 7
    %vm731 = vcmask 1041409
    %v732 = vsel %vm731, %v730, %v729
    %v733 = vrot.slane %v476, 6
    %vm734 = vcmask 1042434
    %v735 = vsel %vm734, %v733, %v732
    %v736 = vrot.slane %v478, 5
    %vm737 = vcmask 1043459
    %v738 = vsel %vm737, %v736, %v735
    %v739 = vsel %vm728, %v517, 0.0
    %v740 = vrot.slane %v519, 7
    %v741 = vsel %vm731, %v740, %v739
    %v742 = vrot.slane %v558, 6
    %v743 = vsel %vm734, %v742, %v741
    %v744 = vrot.slane %v560, 5
    %v745 = vsel %vm737, %v744, %v743
    %v746 = vsel %vm728, %v599, 0.0
    %v747 = vrot.slane %v601, 7
    %v748 = vsel %vm731, %v747, %v746
    %v749 = vrot.slane %v640, 6
    %v750 = vsel %vm734, %v749, %v748
    %v751 = vrot.slane %v642, 5
    %v752 = vsel %vm737, %v751, %v750
    %v753 = vsel %vm728, %v681, 0.0
    %v754 = vrot.slane %v683, 7
    %v755 = vsel %vm731, %v754, %v753
    %v756 = vrot.slane %v722, 6
    %v757 = vsel %vm734, %v756, %v755
    %v758 = vrot.slane %v724, 5
    %v759 = vsel %vm737, %v758, %v757
    %v760 = vrot.slane %v435, 1
    %v761 = vsel %vm728, %v760, 0.0
    %v762 = vsel %vm731, %v437, %v761
    %v763 = vrot.slane %v476, 7
    %v764 = vsel %vm734, %v763, %v762
    %v765 = vrot.slane %v478, 6
    %v766 = vsel %vm737, %v765, %v764
    %v767 = vrot.slane %v517, 1
    %v768 = vsel %vm728, %v767, 0.0
    %v769 = vsel %vm731, %v519, %v768
    %v770 = vrot.slane %v558, 7
    %v771 = vsel %vm734, %v770, %v769
    %v772 = vrot.slane %v560, 6
    %v773 = vsel %vm737, %v772, %v771
    %v774 = vrot.slane %v599, 1
    %v775 = vsel %vm728, %v774, 0.0
    %v776 = vsel %vm731, %v601, %v775
    %v777 = vrot.slane %v640, 7
    %v778 = vsel %vm734, %v777, %v776
    %v779 = vrot.slane %v642, 6
    %v780 = vsel %vm737, %v779, %v778
    %v781 = vrot.slane %v681, 1
    %v782 = vsel %vm728, %v781, 0.0
    %v783 = vsel %vm731, %v683, %v782
    %v784 = vrot.slane %v722, 7
    %v785 = vsel %vm734, %v784, %v783
    %v786 = vrot.slane %v724, 6
    %v787 = vsel %vm737, %v786, %v785
    %v788 = vld [vmem:[%s3] sm:$0x1]
    %v789 = vld [vmem:[%s4] sm:$0x1]
    %vm790 = vcmask 1043456
    %v791 = vsel %vm790, %v738, 0.0
    %v792 = vsel %vm790, %v745, 0.0
    %v793 = vadd.f32 %v791, %v792
    %v794 = vsel %vm790, %v752, 0.0
    %v795 = vadd.f32 %v793, %v794
    %v796 = vsel %vm790, %v759, 0.0
    %v797 = vadd.f32 %v795, %v796
    %v798 = vsel %vm790, %v766, 0.0
    %v799 = vadd.f32 %v797, %v798
    %v800 = vsel %vm790, %v773, 0.0
    %v801 = vadd.f32 %v799, %v800
    %v802 = vsel %vm790, %v780, 0.0
    %v803 = vadd.f32 %v801, %v802
    %v804 = vsel %vm790, %v787, 0.0
    %v805 = vadd.f32 %v803, %v804
    %v806 = vrot.slane %v805, 4
    %v807 = vadd.f32 %v805, %v806
    %v808 = vrot.slane %v807, 2
    %v809 = vadd.f32 %v807, %v808
    %v810 = vrot.slane %v809, 1
    %v811 = vadd.f32 %v809, %v810
    %v812 = vmul.f32 %v811, 0.03125
    %v813 = vsub.f32 %v738, %v812
    %v814 = vsub.f32 %v745, %v812
    %v815 = vsub.f32 %v752, %v812
    %v816 = vsub.f32 %v759, %v812
    %v817 = vsub.f32 %v766, %v812
    %v818 = vsub.f32 %v773, %v812
    %v819 = vsub.f32 %v780, %v812
    %v820 = vsub.f32 %v787, %v812
    %v821 = vmul.f32 %v813, %v813
    %v822 = vmul.f32 %v814, %v814
    %v823 = vmul.f32 %v815, %v815
    %v824 = vmul.f32 %v816, %v816
    %v825 = vmul.f32 %v817, %v817
    %v826 = vmul.f32 %v818, %v818
    %v827 = vmul.f32 %v819, %v819
    %v828 = vmul.f32 %v820, %v820
    %v829 = vsel %vm790, %v821, 0.0
    %v830 = vsel %vm790, %v822, 0.0
    %v831 = vadd.f32 %v829, %v830
    %v832 = vsel %vm790, %v823, 0.0
    %v833 = vadd.f32 %v831, %v832
    %v834 = vsel %vm790, %v824, 0.0
    %v835 = vadd.f32 %v833, %v834
    %v836 = vsel %vm790, %v825, 0.0
    %v837 = vadd.f32 %v835, %v836
    %v838 = vsel %vm790, %v826, 0.0
    %v839 = vadd.f32 %v837, %v838
    %v840 = vsel %vm790, %v827, 0.0
    %v841 = vadd.f32 %v839, %v840
    %v842 = vsel %vm790, %v828, 0.0
    %v843 = vadd.f32 %v841, %v842
    %v844 = vrot.slane %v843, 4
    %v845 = vadd.f32 %v843, %v844
    %v846 = vrot.slane %v845, 2
    %v847 = vadd.f32 %v845, %v846
    %v848 = vrot.slane %v847, 1
    %v849 = vadd.f32 %v847, %v848
    %v850 = vmul.f32 %v849, 0.03125
    %v851 = vadd.f32 %v850, 1e-05
    %v852 = vrsqrt.pop %v851
    %v853 = vmul.f32 %v788, %v852
    %v855 = vlaneseq
    %v856 = vshrl.u32 %v855, 7
    %v857 = vsub.s32 0, %v856
    %v858 = vrot.slane %v853, %v857
    %v860 = vmul.f32 %v813, %v858
    %v861 = vmul.f32 %v814, %v858
    %v862 = vmul.f32 %v815, %v858
    %v863 = vmul.f32 %v816, %v858
    %v864 = vmul.f32 %v817, %v858
    %v865 = vmul.f32 %v818, %v858
    %v866 = vmul.f32 %v819, %v858
    %v867 = vmul.f32 %v820, %v858
    %v869 = vlaneseq
    %v870 = vshrl.u32 %v869, 7
    %v871 = vsub.s32 0, %v870
    %v872 = vrot.slane %v789, %v871
    %v874 = vadd.f32 %v860, %v872
    %v875 = vadd.f32 %v861, %v872
    %v876 = vadd.f32 %v862, %v872
    %v877 = vadd.f32 %v863, %v872
    %v878 = vadd.f32 %v864, %v872
    %v879 = vadd.f32 %v865, %v872
    %v880 = vadd.f32 %v866, %v872
    %v881 = vadd.f32 %v867, %v872
    %v891 = vrot.slane 0.0, 7
    %v892 = vrot.slane %v874, 7
    %v893 = vrot.slane %v875, 7
    %v894 = vrot.slane %v876, 7
    %v895 = vrot.slane %v877, 7
    %v896 = vrot.slane %v878, 7
    %v897 = vrot.slane %v879, 7
    %v898 = vrot.slane %v880, 7
    %v899 = vrot.slane %v881, 7
    %v909 = vsel %vm728, 0.0, %v891
    %v910 = vsel %vm728, 0.0, %v892
    %v911 = vsel %vm728, 0.0, %v893
    %v912 = vsel %vm728, 0.0, %v894
    %v913 = vsel %vm728, 0.0, %v895
    %v914 = vsel %vm728, 0.0, %v896
    %v915 = vsel %vm728, 0.0, %v897
    %v916 = vsel %vm728, 0.0, %v898
    %v917 = vsel %vm728, 0.0, %v899
    %vm918 = vcmask 1044480
    %v919 = vsel %vm918, %v909, 0.0
    %v920 = vsel %vm918, %v910, 0.0
    %v921 = vsel %vm918, %v911, 0.0
    %v922 = vsel %vm918, %v912, 0.0
    %v923 = vsel %vm918, %v913, 0.0
    %v924 = vsel %vm918, %v914, 0.0
    %v925 = vsel %vm918, %v915, 0.0
    %v926 = vsel %vm918, %v916, 0.0
    %v927 = vsel %vm918, %v917, 0.0
    %v935 = vcombine.low %v919, %v920
    %v936 = vcombine.low %v921, %v922
    %v937 = vcombine.low %v919, %v924
    %v938 = vcombine.low %v925, %v926
    %v943 = vpack.c.bf16 %v936, %v935
    %v944 = vpack.c.bf16 %v938, %v937
    %v945 = vcombine.high %v919, %v919
    %v946 = vcombine.high %v920, %v920
    %v947 = vcombine.high %v921, %v921
    %v948 = vcombine.high %v922, %v922
    %v949 = vcombine.high %v924, %v924
    %v950 = vcombine.high %v925, %v925
    %v951 = vcombine.high %v926, %v926
    %vm952 = vcmask 1042432
    %vm953 = vcmask 1046532
    %vm954 = vmor %vm952, %vm953
    %v955 = vrot.slane %v919, 5
    %v956 = vrot.slane %v955, 4
    %v957 = vrot.slane %v945, 5
    %v958 = vsel %vm954, %v956, %v957
    %v959 = vrot.slane %v920, 5
    %v960 = vrot.slane %v959, 4
    %v961 = vrot.slane %v946, 5
    %v962 = vsel %vm954, %v960, %v961
    %v963 = vrot.slane %v921, 5
    %v964 = vrot.slane %v963, 4
    %v965 = vrot.slane %v947, 5
    %v966 = vsel %vm954, %v964, %v965
    %v967 = vrot.slane %v922, 5
    %v968 = vrot.slane %v967, 4
    %v969 = vrot.slane %v948, 5
    %v970 = vsel %vm954, %v968, %v969
    %v971 = vrot.slane %v924, 5
    %v972 = vrot.slane %v971, 4
    %v973 = vrot.slane %v949, 5
    %v974 = vsel %vm954, %v972, %v973
    %v975 = vrot.slane %v925, 5
    %v976 = vrot.slane %v975, 4
    %v977 = vrot.slane %v950, 5
    %v978 = vsel %vm954, %v976, %v977
    %v979 = vrot.slane %v926, 5
    %v980 = vrot.slane %v979, 4
    %v981 = vrot.slane %v951, 5
    %v982 = vsel %vm954, %v980, %v981
    %v983 = vcombine.low %v958, %v962
    %v984 = vcombine.low %v966, %v970
    %v985 = vcombine.low %v958, %v974
    %v986 = vcombine.low %v978, %v982
    %v991 = vpack.c.bf16 %v984, %v983
    %v992 = vpack.c.bf16 %v986, %v985
    %vm993 = vcmask 1041408
    %vm994 = vcmask 1045508
    %vm995 = vmor %vm993, %vm994
    %v996 = vrot.slane %v919, 6
    %v997 = vrot.slane %v996, 4
    %v998 = vrot.slane %v945, 6
    %v999 = vsel %vm995, %v997, %v998
    %v1000 = vrot.slane %v920, 6
    %v1001 = vrot.slane %v1000, 4
    %v1002 = vrot.slane %v946, 6
    %v1003 = vsel %vm995, %v1001, %v1002
    %v1004 = vrot.slane %v921, 6
    %v1005 = vrot.slane %v1004, 4
    %v1006 = vrot.slane %v947, 6
    %v1007 = vsel %vm995, %v1005, %v1006
    %v1008 = vrot.slane %v922, 6
    %v1009 = vrot.slane %v1008, 4
    %v1010 = vrot.slane %v948, 6
    %v1011 = vsel %vm995, %v1009, %v1010
    %v1012 = vrot.slane %v924, 6
    %v1013 = vrot.slane %v1012, 4
    %v1014 = vrot.slane %v949, 6
    %v1015 = vsel %vm995, %v1013, %v1014
    %v1016 = vrot.slane %v925, 6
    %v1017 = vrot.slane %v1016, 4
    %v1018 = vrot.slane %v950, 6
    %v1019 = vsel %vm995, %v1017, %v1018
    %v1020 = vrot.slane %v926, 6
    %v1021 = vrot.slane %v1020, 4
    %v1022 = vrot.slane %v951, 6
    %v1023 = vsel %vm995, %v1021, %v1022
    %v1024 = vcombine.low %v999, %v1003
    %v1025 = vcombine.low %v1007, %v1011
    %v1026 = vcombine.low %v999, %v1015
    %v1027 = vcombine.low %v1019, %v1023
    %v1032 = vpack.c.bf16 %v1025, %v1024
    %v1033 = vpack.c.bf16 %v1027, %v1026
    %v1036 = vcombine.low %v920, %v921
    %v1037 = vcombine.low %v922, %v923
    %v1038 = vcombine.low %v924, %v925
    %v1039 = vcombine.low %v926, %v927
    %v1044 = vpack.c.bf16 %v1037, %v1036
    %v1045 = vpack.c.bf16 %v1039, %v1038
    %v1046 = vcombine.high %v923, %v923
    %v1047 = vcombine.high %v927, %v927
    %v1048 = vrot.slane %v923, 5
    %v1049 = vrot.slane %v1048, 4
    %v1050 = vrot.slane %v1046, 5
    %v1051 = vsel %vm954, %v1049, %v1050
    %v1052 = vrot.slane %v927, 5
    %v1053 = vrot.slane %v1052, 4
    %v1054 = vrot.slane %v1047, 5
    %v1055 = vsel %vm954, %v1053, %v1054
    %v1056 = vcombine.low %v962, %v966
    %v1057 = vcombine.low %v970, %v1051
    %v1058 = vcombine.low %v974, %v978
    %v1059 = vcombine.low %v982, %v1055
    %v1064 = vpack.c.bf16 %v1057, %v1056
    %v1065 = vpack.c.bf16 %v1059, %v1058
    %v1066 = vrot.slane %v923, 6
    %v1067 = vrot.slane %v1066, 4
    %v1068 = vrot.slane %v1046, 6
    %v1069 = vsel %vm995, %v1067, %v1068
    %v1070 = vrot.slane %v927, 6
    %v1071 = vrot.slane %v1070, 4
    %v1072 = vrot.slane %v1047, 6
    %v1073 = vsel %vm995, %v1071, %v1072
    %v1074 = vcombine.low %v1003, %v1007
    %v1075 = vcombine.low %v1011, %v1069
    %v1076 = vcombine.low %v1015, %v1019
    %v1077 = vcombine.low %v1023, %v1073
    %v1082 = vpack.c.bf16 %v1075, %v1074
    %v1083 = vpack.c.bf16 %v1077, %v1076
    %v1084 = vcombine.low %v923, %v919
    %v1085 = vcombine.low %v927, %v919
    %v1088 = vpack.c.bf16 %v1084, %v936
    %v1089 = vpack.c.bf16 %v1085, %v938
    %v1090 = vcombine.low %v1051, %v958
    %v1091 = vcombine.low %v1055, %v958
    %v1094 = vpack.c.bf16 %v1090, %v984
    %v1095 = vpack.c.bf16 %v1091, %v986
    %v1096 = vcombine.low %v1069, %v999
    %v1097 = vcombine.low %v1073, %v999
    %v1100 = vpack.c.bf16 %v1096, %v1025
    %v1101 = vpack.c.bf16 %v1097, %v1027
    %v1102 = vld [vmem:[#allocation7] sm:$0xf]
    %v1103 = vld [vmem:[#allocation7 + $0x4] sm:$0xf]
    %v1104 = vld [vmem:[#allocation7 + $0x8] sm:$0xf]
    %v1105 = vld [vmem:[#allocation7 + $0xc] sm:$0xf]
    %v1106 = vld [vmem:[#allocation7 + $0x10] sm:$0xf]
    %v1107 = vld [vmem:[#allocation7 + $0x14] sm:$0xf]
    %v1108 = vld [vmem:[#allocation7 + $0x18] sm:$0xf]
    %v1109 = vld [vmem:[#allocation7 + $0x1c] sm:$0xf]
    %v1110 = vld [vmem:[#allocation7 + $0x20] sm:$0xf]
    %v1111 = vld [vmem:[#allocation7 + $0x24] sm:$0xf]
    %v1112 = vld [vmem:[#allocation7 + $0x28] sm:$0xf]
    %v1113 = vld [vmem:[#allocation7 + $0x2c] sm:$0xf]
    %v1114 = vld [vmem:[#allocation7 + $0x30] sm:$0xf]
    %v1115 = vld [vmem:[#allocation7 + $0x34] sm:$0xf]
    %v1116 = vld [vmem:[#allocation7 + $0x38] sm:$0xf]
    %v1117 = vld [vmem:[#allocation7 + $0x3c] sm:$0xf]
    %v1118 = vld [vmem:[#allocation7 + $0x40] sm:$0xf]
    %v1119 = vld [vmem:[#allocation7 + $0x44] sm:$0xf]
    %v1120 = vld [vmem:[#allocation7 + $0x48] sm:$0xf]
    %v1121 = vld [vmem:[#allocation7 + $0x4c] sm:$0xf]
    %v1122 = vld [vmem:[#allocation7 + $0x50] sm:$0xf]
    %v1123 = vld [vmem:[#allocation7 + $0x54] sm:$0xf]
    %v1124 = vld [vmem:[#allocation7 + $0x58] sm:$0xf]
    %v1125 = vld [vmem:[#allocation7 + $0x5c] sm:$0xf]
    %v1126 = vld [vmem:[#allocation7 + $0x60] sm:$0xf]
    %v1127 = vld [vmem:[#allocation7 + $0x64] sm:$0xf]
    %v1128 = vld [vmem:[#allocation7 + $0x68] sm:$0xf]
    %v1129 = vld [vmem:[#allocation7 + $0x6c] sm:$0xf]
    %v1130 = vld [vmem:[#allocation7 + $0x70] sm:$0xf]
    %v1131 = vld [vmem:[#allocation7 + $0x74] sm:$0xf]
    %v1132 = vld [vmem:[#allocation7 + $0x78] sm:$0xf]
    %v1133 = vld [vmem:[#allocation7 + $0x7c] sm:$0xf]
    %v1150 = vunpack.c.l.b16 %v1118
    %v1151 = vunpack.c.l.b16 %v1119
    %v1152 = vunpack.c.l.b16 %v1120
    %v1153 = vunpack.c.l.b16 %v1121
    %v1154 = vunpack.c.l.b16 %v1122
    %v1155 = vunpack.c.l.b16 %v1123
    %v1156 = vunpack.c.l.b16 %v1124
    %v1157 = vunpack.c.l.b16 %v1125
    %v1158 = vunpack.c.l.b16 %v1126
    %v1159 = vunpack.c.l.b16 %v1127
    %v1160 = vunpack.c.l.b16 %v1128
    %v1161 = vunpack.c.l.b16 %v1129
    %v1162 = vunpack.c.l.b16 %v1130
    %v1163 = vunpack.c.l.b16 %v1131
    %v1164 = vunpack.c.l.b16 %v1132
    %v1165 = vunpack.c.l.b16 %v1133
    %v1166 = vpack.c.b16 %v1151, %v1150
    %v1167 = vpack.c.b16 %v1153, %v1152
    %v1168 = vpack.c.b16 %v1155, %v1154
    %v1169 = vpack.c.b16 %v1157, %v1156
    %v1170 = vpack.c.b16 %v1159, %v1158
    %v1171 = vpack.c.b16 %v1161, %v1160
    %v1172 = vpack.c.b16 %v1163, %v1162
    %v1173 = vpack.c.b16 %v1165, %v1164
    %1182 = vmatprep.subr.bf16.mxu0 0
    %1183 = vmatpush1.bf16.msra.mxu0 %v1166
    %1184 = vmatprep.subr.bf16.mxu0 0
    %1185 = vmatpush1.bf16.msra.mxu0 %v1167
    %1186 = vmatprep.subr.bf16.mxu0 0
    %1187 = vmatpush1.bf16.msra.mxu0 %v1168
    %1188 = vmatprep.subr.bf16.mxu0 0
    %1189 = vmatpush1.bf16.msra.mxu0 %v1169
    %1190 = vmatprep.subr.bf16.mxu0 0
    %1191 = vmatpush1.bf16.msra.mxu0 %v1170
    %1192 = vmatprep.subr.bf16.mxu0 0
    %1193 = vmatpush1.bf16.msra.mxu0 %v1171
    %1194 = vmatprep.subr.bf16.mxu0 0
    %1195 = vmatpush1.bf16.msra.mxu0 %v1172
    %1196 = vmatprep.subr.bf16.mxu0 0
    %1197 = vmatpush1.bf16.msra.mxu0 %v1173
    %1198 = vmatprep.subr.bf16.mxu0 0
    %1199 = vmatpush1.bf16.msra.mxu0 0
    %1200 = vmatprep.subr.bf16.mxu0 0
    %1201 = vmatpush1.bf16.msra.mxu0 0
    %1202 = vmatprep.subr.bf16.mxu0 0
    %1203 = vmatpush1.bf16.msra.mxu0 0
    %1204 = vmatprep.subr.bf16.mxu0 0
    %1205 = vmatpush1.bf16.msra.mxu0 0
    %1206 = vmatprep.subr.bf16.mxu0 0
    %1207 = vmatpush1.bf16.msra.mxu0 0
    %1208 = vmatprep.subr.bf16.mxu0 0
    %1209 = vmatpush1.bf16.msra.mxu0 0
    %1210 = vmatprep.subr.bf16.mxu0 0
    %1211 = vmatpush1.bf16.msra.mxu0 0
    %1212 = vmatprep.subr.bf16.mxu0 0
    %1213 = vmatpush1.bf16.msra.mxu0 0
    %1214 = vmatprep.mubr.bf16.mxu0 0
    %1215 = vmatmul.mubr.bf16.gmra.mrb[0].mxu0 %v991
    %v1216 = vpop.f32.mrb[0].mxu0
    %v1217 = vadd.f32 0.0, %v1216
    %v1218 = vpop.f32.mrb[0].mxu0
    %v1219 = vpop.f32.mrb[0].mxu0
    %v1220 = vadd.f32 0.0, %v1219
    %v1221 = vpop.f32.mrb[0].mxu0
    %1222 = vmatprep.mubr.bf16.mxu0 0
    %1223 = vmatmul.mubr.bf16.gmra.mrb[0].mxu0 %v992
    %v1224 = vpop.f32.mrb[0].mxu0
    %v1225 = vadd.f32 0.0, %v1224
    %v1226 = vpop.f32.mrb[0].mxu0
    %v1227 = vpop.f32.mrb[0].mxu0
    %v1228 = vadd.f32 0.0, %v1227
    %v1229 = vpop.f32.mrb[0].mxu0
    %1230 = vdwg.mxu0
    %v1247 = vunpack.c.l.b16 %v1102
    %v1248 = vunpack.c.l.b16 %v1103
    %v1249 = vunpack.c.l.b16 %v1104
    %v1250 = vunpack.c.l.b16 %v1105
    %v1251 = vunpack.c.l.b16 %v1106
    %v1252 = vunpack.c.l.b16 %v1107
    %v1253 = vunpack.c.l.b16 %v1108
    %v1254 = vunpack.c.l.b16 %v1109
    %v1255 = vunpack.c.l.b16 %v1110
    %v1256 = vunpack.c.l.b16 %v1111
    %v1257 = vunpack.c.l.b16 %v1112
    %v1258 = vunpack.c.l.b16 %v1113
    %v1259 = vunpack.c.l.b16 %v1114
    %v1260 = vunpack.c.l.b16 %v1115
    %v1261 = vunpack.c.l.b16 %v1116
    %v1262 = vunpack.c.l.b16 %v1117
    %v1263 = vpack.c.b16 %v1248, %v1247
    %v1264 = vpack.c.b16 %v1250, %v1249
    %v1265 = vpack.c.b16 %v1252, %v1251
    %v1266 = vpack.c.b16 %v1254, %v1253
    %v1267 = vpack.c.b16 %v1256, %v1255
    %v1268 = vpack.c.b16 %v1258, %v1257
    %v1269 = vpack.c.b16 %v1260, %v1259
    %v1270 = vpack.c.b16 %v1262, %v1261
    %1279 = vmatprep.subr.bf16.mxu0 0
    %1280 = vmatpush1.bf16.msra.mxu0 %v1263
    %1281 = vmatprep.subr.bf16.mxu0 0
    %1282 = vmatpush1.bf16.msra.mxu0 %v1264
    %1283 = vmatprep.subr.bf16.mxu0 0
    %1284 = vmatpush1.bf16.msra.mxu0 %v1265
    %1285 = vmatprep.subr.bf16.mxu0 0
    %1286 = vmatpush1.bf16.msra.mxu0 %v1266
    %1287 = vmatprep.subr.bf16.mxu0 0
    %1288 = vmatpush1.bf16.msra.mxu0 %v1267
    %1289 = vmatprep.subr.bf16.mxu0 0
    %1290 = vmatpush1.bf16.msra.mxu0 %v1268
    %1291 = vmatprep.subr.bf16.mxu0 0
    %1292 = vmatpush1.bf16.msra.mxu0 %v1269
    %1293 = vmatprep.subr.bf16.mxu0 0
    %1294 = vmatpush1.bf16.msra.mxu0 %v1270
    %1295 = vmatprep.subr.bf16.mxu0 0
    %1296 = vmatpush1.bf16.msra.mxu0 0
    %1297 = vmatprep.subr.bf16.mxu0 0
    %1298 = vmatpush1.bf16.msra.mxu0 0
    %1299 = vmatprep.subr.bf16.mxu0 0
    %1300 = vmatpush1.bf16.msra.mxu0 0
    %1301 = vmatprep.subr.bf16.mxu0 0
    %1302 = vmatpush1.bf16.msra.mxu0 0
    %1303 = vmatprep.subr.bf16.mxu0 0
    %1304 = vmatpush1.bf16.msra.mxu0 0
    %1305 = vmatprep.subr.bf16.mxu0 0
    %1306 = vmatpush1.bf16.msra.mxu0 0
    %1307 = vmatprep.subr.bf16.mxu0 0
    %1308 = vmatpush1.bf16.msra.mxu0 0
    %1309 = vmatprep.subr.bf16.mxu0 0
    %1310 = vmatpush1.bf16.msra.mxu0 0
    %1311 = vmatprep.mubr.bf16.mxu0 0
    %1312 = vmatmul.mubr.bf16.gmra.mrb[0].mxu0 %v943
    %v1313 = vpop.f32.mrb[0].mxu0
    %v1314 = vadd.f32 %v1217, %v1313
    %v1315 = vpop.f32.mrb[0].mxu0
    %v1316 = vpop.f32.mrb[0].mxu0
    %v1317 = vadd.f32 %v1220, %v1316
    %v1318 = vpop.f32.mrb[0].mxu0
    %1319 = vmatprep.mubr.bf16.mxu0 0
    %1320 = vmatmul.mubr.bf16.gmra.mrb[0].mxu0 %v944
    %v1321 = vpop.f32.mrb[0].mxu0
    %v1322 = vadd.f32 %v1225, %v1321
    %v1323 = vpop.f32.mrb[0].mxu0
    %v1324 = vpop.f32.mrb[0].mxu0
    %v1325 = vadd.f32 %v1228, %v1324
    %v1326 = vpop.f32.mrb[0].mxu0
    %1327 = vdwg.mxu0
    %v1328 = vld [vmem:[#allocation7 + $0x80] sm:$0xf]
    %v1329 = vld [vmem:[#allocation7 + $0x84] sm:$0xf]
    %v1330 = vld [vmem:[#allocation7 + $0x88] sm:$0xf]
    %v1331 = vld [vmem:[#allocation7 + $0x8c] sm:$0xf]
    %v1332 = vld [vmem:[#allocation7 + $0x90] sm:$0xf]
    %v1333 = vld [vmem:[#allocation7 + $0x94] sm:$0xf]
    %v1334 = vld [vmem:[#allocation7 + $0x98] sm:$0xf]
    %v1335 = vld [vmem:[#allocation7 + $0x9c] sm:$0xf]
    %v1336 = vld [vmem:[#allocation7 + $0xa0] sm:$0xf]
    %v1337 = vld [vmem:[#allocation7 + $0xa4] sm:$0xf]
    %v1338 = vld [vmem:[#allocation7 + $0xa8] sm:$0xf]
    %v1339 = vld [vmem:[#allocation7 + $0xac] sm:$0xf]
    %v1340 = vld [vmem:[#allocation7 + $0xb0] sm:$0xf]
    %v1341 = vld [vmem:[#allocation7 + $0xb4] sm:$0xf]
    %v1342 = vld [vmem:[#allocation7 + $0xb8] sm:$0xf]
    %v1343 = vld [vmem:[#allocation7 + $0xbc] sm:$0xf]
    %v1360 = vunpack.c.l.b16 %v1328
    %v1361 = vunpack.c.l.b16 %v1329
    %v1362 = vunpack.c.l.b16 %v1330
    %v1363 = vunpack.c.l.b16 %v1331
    %v1364 = vunpack.c.l.b16 %v1332
    %v1365 = vunpack.c.l.b16 %v1333
    %v1366 = vunpack.c.l.b16 %v1334
    %v1367 = vunpack.c.l.b16 %v1335
    %v1368 = vunpack.c.l.b16 %v1336
    %v1369 = vunpack.c.l.b16 %v1337
    %v1370 = vunpack.c.l.b16 %v1338
    %v1371 = vunpack.c.l.b16 %v1339
    %v1372 = vunpack.c.l.b16 %v1340
    %v1373 = vunpack.c.l.b16 %v1341
    %v1374 = vunpack.c.l.b16 %v1342
    %v1375 = vunpack.c.l.b16 %v1343
    %v1376 = vpack.c.b16 %v1361, %v1360
    %v1377 = vpack.c.b16 %v1363, %v1362
    %v1378 = vpack.c.b16 %v1365, %v1364
    %v1379 = vpack.c.b16 %v1367, %v1366
    %v1380 = vpack.c.b16 %v1369, %v1368
    %v1381 = vpack.c.b16 %v1371, %v1370
    %v1382 = vpack.c.b16 %v1373, %v1372
    %v1383 = vpack.c.b16 %v1375, %v1374
    %1392 = vmatprep.subr.bf16.mxu0 0
    %1393 = vmatpush1.bf16.msra.mxu0 %v1376
    %1394 = vmatprep.subr.bf16.mxu0 0
    %1395 = vmatpush1.bf16.msra.mxu0 %v1377
    %1396 = vmatprep.subr.bf16.mxu0 0
    %1397 = vmatpush1.bf16.msra.mxu0 %v1378
    %1398 = vmatprep.subr.bf16.mxu0 0
    %1399 = vmatpush1.bf16.msra.mxu0 %v1379
    %1400 = vmatprep.subr.bf16.mxu0 0
    %1401 = vmatpush1.bf16.msra.mxu0 %v1380
    %1402 = vmatprep.subr.bf16.mxu0 0
    %1403 = vmatpush1.bf16.msra.mxu0 %v1381
    %1404 = vmatprep.subr.bf16.mxu0 0
    %1405 = vmatpush1.bf16.msra.mxu0 %v1382
    %1406 = vmatprep.subr.bf16.mxu0 0
    %1407 = vmatpush1.bf16.msra.mxu0 %v1383
    %1408 = vmatprep.subr.bf16.mxu0 0
    %1409 = vmatpush1.bf16.msra.mxu0 0
    %1410 = vmatprep.subr.bf16.mxu0 0
    %1411 = vmatpush1.bf16.msra.mxu0 0
    %1412 = vmatprep.subr.bf16.mxu0 0
    %1413 = vmatpush1.bf16.msra.mxu0 0
    %1414 = vmatprep.subr.bf16.mxu0 0
    %1415 = vmatpush1.bf16.msra.mxu0 0
    %1416 = vmatprep.subr.bf16.mxu0 0
    %1417 = vmatpush1.bf16.msra.mxu0 0
    %1418 = vmatprep.subr.bf16.mxu0 0
    %1419 = vmatpush1.bf16.msra.mxu0 0
    %1420 = vmatprep.subr.bf16.mxu0 0
    %1421 = vmatpush1.bf16.msra.mxu0 0
    %1422 = vmatprep.subr.bf16.mxu0 0
    %1423 = vmatpush1.bf16.msra.mxu0 0
    %1424 = vmatprep.mubr.bf16.mxu0 0
    %1425 = vmatmul.mubr.bf16.gmra.mrb[0].mxu0 %v1044
    %v1426 = vpop.f32.mrb[0].mxu0
    %v1427 = vadd.f32 0.0, %v1426
    %v1428 = vpop.f32.mrb[0].mxu0
    %v1429 = vpop.f32.mrb[0].mxu0
    %v1430 = vadd.f32 0.0, %v1429
    %v1431 = vpop.f32.mrb[0].mxu0
    %1432 = vmatprep.mubr.bf16.mxu0 0
    %1433 = vmatmul.mubr.bf16.gmra.mrb[0].mxu0 %v1045
    %v1434 = vpop.f32.mrb[0].mxu0
    %v1435 = vadd.f32 0.0, %v1434
    %v1436 = vpop.f32.mrb[0].mxu0
    %v1437 = vpop.f32.mrb[0].mxu0
    %v1438 = vadd.f32 0.0, %v1437
    %v1439 = vpop.f32.mrb[0].mxu0
    %1440 = vdwg.mxu0
    %v1441 = vadd.f32 %v1314, %v1427
    %v1442 = vadd.f32 %v1317, %v1430
    %v1443 = vadd.f32 %v1322, %v1435
    %v1444 = vadd.f32 %v1325, %v1438
    %v1445 = vld [vmem:[#allocation7 + $0xc0] sm:$0xf]
    %v1446 = vld [vmem:[#allocation7 + $0xc4] sm:$0xf]
    %v1447 = vld [vmem:[#allocation7 + $0xc8] sm:$0xf]
    %v1448 = vld [vmem:[#allocation7 + $0xcc] sm:$0xf]
    %v1449 = vld [vmem:[#allocation7 + $0xd0] sm:$0xf]
    %v1450 = vld [vmem:[#allocation7 + $0xd4] sm:$0xf]
    %v1451 = vld [vmem:[#allocation7 + $0xd8] sm:$0xf]
    %v1452 = vld [vmem:[#allocation7 + $0xdc] sm:$0xf]
    %v1453 = vld [vmem:[#allocation7 + $0xe0] sm:$0xf]
    %v1454 = vld [vmem:[#allocation7 + $0xe4] sm:$0xf]
    %v1455 = vld [vmem:[#allocation7 + $0xe8] sm:$0xf]
    %v1456 = vld [vmem:[#allocation7 + $0xec] sm:$0xf]
    %v1457 = vld [vmem:[#allocation7 + $0xf0] sm:$0xf]
    %v1458 = vld [vmem:[#allocation7 + $0xf4] sm:$0xf]
    %v1459 = vld [vmem:[#allocation7 + $0xf8] sm:$0xf]
    %v1460 = vld [vmem:[#allocation7 + $0xfc] sm:$0xf]
    %v1477 = vunpack.c.l.b16 %v1445
    %v1478 = vunpack.c.l.b16 %v1446
    %v1479 = vunpack.c.l.b16 %v1447
    %v1480 = vunpack.c.l.b16 %v1448
    %v1481 = vunpack.c.l.b16 %v1449
    %v1482 = vunpack.c.l.b16 %v1450
    %v1483 = vunpack.c.l.b16 %v1451
    %v1484 = vunpack.c.l.b16 %v1452
    %v1485 = vunpack.c.l.b16 %v1453
    %v1486 = vunpack.c.l.b16 %v1454
    %v1487 = vunpack.c.l.b16 %v1455
    %v1488 = vunpack.c.l.b16 %v1456
    %v1489 = vunpack.c.l.b16 %v1457
    %v1490 = vunpack.c.l.b16 %v1458
    %v1491 = vunpack.c.l.b16 %v1459
    %v1492 = vunpack.c.l.b16 %v1460
    %v1493 = vpack.c.b16 %v1478, %v1477
    %v1494 = vpack.c.b16 %v1480, %v1479
    %v1495 = vpack.c.b16 %v1482, %v1481
    %v1496 = vpack.c.b16 %v1484, %v1483
    %v1497 = vpack.c.b16 %v1486, %v1485
    %v1498 = vpack.c.b16 %v1488, %v1487
    %v1499 = vpack.c.b16 %v1490, %v1489
    %v1500 = vpack.c.b16 %v1492, %v1491
    %1509 = vmatprep.subr.bf16.mxu0 0
    %1510 = vmatpush1.bf16.msra.mxu0 %v1493
    %1511 = vmatprep.subr.bf16.mxu0 0
    %1512 = vmatpush1.bf16.msra.mxu0 %v1494
    %1513 = vmatprep.subr.bf16.mxu0 0
    %1514 = vmatpush1.bf16.msra.mxu0 %v1495
    %1515 = vmatprep.subr.bf16.mxu0 0
    %1516 = vmatpush1.bf16.msra.mxu0 %v1496
    %1517 = vmatprep.subr.bf16.mxu0 0
    %1518 = vmatpush1.bf16.msra.mxu0 %v1497
    %1519 = vmatprep.subr.bf16.mxu0 0
    %1520 = vmatpush1.bf16.msra.mxu0 %v1498
    %1521 = vmatprep.subr.bf16.mxu0 0
    %1522 = vmatpush1.bf16.msra.mxu0 %v1499
    %1523 = vmatprep.subr.bf16.mxu0 0
    %1524 = vmatpush1.bf16.msra.mxu0 %v1500
    %1525 = vmatprep.subr.bf16.mxu0 0
    %1526 = vmatpush1.bf16.msra.mxu0 0
    %1527 = vmatprep.subr.bf16.mxu0 0
    %1528 = vmatpush1.bf16.msra.mxu0 0
    %1529 = vmatprep.subr.bf16.mxu0 0
    %1530 = vmatpush1.bf16.msra.mxu0 0
    %1531 = vmatprep.subr.bf16.mxu0 0
    %1532 = vmatpush1.bf16.msra.mxu0 0
    %1533 = vmatprep.subr.bf16.mxu0 0
    %1534 = vmatpush1.bf16.msra.mxu0 0
    %1535 = vmatprep.subr.bf16.mxu0 0
    %1536 = vmatpush1.bf16.msra.mxu0 0
    %1537 = vmatprep.subr.bf16.mxu0 0
    %1538 = vmatpush1.bf16.msra.mxu0 0
    %1539 = vmatprep.subr.bf16.mxu0 0
    %1540 = vmatpush1.bf16.msra.mxu0 0
    %1541 = vmatprep.mubr.bf16.mxu0 0
    %1542 = vmatmul.mubr.bf16.gmra.mrb[0].mxu0 %v1064
    %v1543 = vpop.f32.mrb[0].mxu0
    %v1544 = vadd.f32 0.0, %v1543
    %v1545 = vpop.f32.mrb[0].mxu0
    %v1546 = vpop.f32.mrb[0].mxu0
    %v1547 = vadd.f32 0.0, %v1546
    %v1548 = vpop.f32.mrb[0].mxu0
    %1549 = vmatprep.mubr.bf16.mxu0 0
    %1550 = vmatmul.mubr.bf16.gmra.mrb[0].mxu0 %v1065
    %v1551 = vpop.f32.mrb[0].mxu0
    %v1552 = vadd.f32 0.0, %v1551
    %v1553 = vpop.f32.mrb[0].mxu0
    %v1554 = vpop.f32.mrb[0].mxu0
    %v1555 = vadd.f32 0.0, %v1554
    %v1556 = vpop.f32.mrb[0].mxu0
    %1557 = vdwg.mxu0
    %v1558 = vadd.f32 %v1441, %v1544
    %v1559 = vadd.f32 %v1442, %v1547
    %v1560 = vadd.f32 %v1443, %v1552
    %v1561 = vadd.f32 %v1444, %v1555
    %v1562 = vld [vmem:[%s6] sm:$0x1]
    %v1564 = vlaneseq
    %v1565 = vshrl.u32 %v1564, 7
    %v1566 = vsub.s32 0, %v1565
    %v1567 = vrot.slane %v1562, %v1566
    %v1569 = vadd.f32 %v1558, %v1567
    %v1570 = vadd.f32 %v1559, %v1567
    %v1571 = vadd.f32 %v1560, %v1567
    %v1572 = vadd.f32 %v1561, %v1567
    %v1577 = vcombine.high %v1569, %v1569
    %v1578 = vcombine.high %v1570, %v1570
    %v1579 = vcombine.high %v1571, %v1571
    %v1580 = vcombine.high %v1572, %v1572
    %v1581 = vld [vmem:[#allocation7 + $0x100] sm:$0xf]
    %v1582 = vld [vmem:[#allocation7 + $0x104] sm:$0xf]
    %v1583 = vld [vmem:[#allocation7 + $0x108] sm:$0xf]
    %v1584 = vld [vmem:[#allocation7 + $0x10c] sm:$0xf]
    %v1585 = vld [vmem:[#allocation7 + $0x110] sm:$0xf]
    %v1586 = vld [vmem:[#allocation7 + $0x114] sm:$0xf]
    %v1587 = vld [vmem:[#allocation7 + $0x118] sm:$0xf]
    %v1588 = vld [vmem:[#allocation7 + $0x11c] sm:$0xf]
    %v1589 = vld [vmem:[#allocation7 + $0x120] sm:$0xf]
    %v1590 = vld [vmem:[#allocation7 + $0x124] sm:$0xf]
    %v1591 = vld [vmem:[#allocation7 + $0x128] sm:$0xf]
    %v1592 = vld [vmem:[#allocation7 + $0x12c] sm:$0xf]
    %v1593 = vld [vmem:[#allocation7 + $0x130] sm:$0xf]
    %v1594 = vld [vmem:[#allocation7 + $0x134] sm:$0xf]
    %v1595 = vld [vmem:[#allocation7 + $0x138] sm:$0xf]
    %v1596 = vld [vmem:[#allocation7 + $0x13c] sm:$0xf]
    %v1597 = vld [vmem:[#allocation7 + $0x140] sm:$0xf]
    %v1598 = vld [vmem:[#allocation7 + $0x144] sm:$0xf]
    %v1599 = vld [vmem:[#allocation7 + $0x148] sm:$0xf]
    %v1600 = vld [vmem:[#allocation7 + $0x14c] sm:$0xf]
    %v1601 = vld [vmem:[#allocation7 + $0x150] sm:$0xf]
    %v1602 = vld [vmem:[#allocation7 + $0x154] sm:$0xf]
    %v1603 = vld [vmem:[#allocation7 + $0x158] sm:$0xf]
    %v1604 = vld [vmem:[#allocation7 + $0x15c] sm:$0xf]
    %v1605 = vld [vmem:[#allocation7 + $0x160] sm:$0xf]
    %v1606 = vld [vmem:[#allocation7 + $0x164] sm:$0xf]
    %v1607 = vld [vmem:[#allocation7 + $0x168] sm:$0xf]
    %v1608 = vld [vmem:[#allocation7 + $0x16c] sm:$0xf]
    %v1609 = vld [vmem:[#allocation7 + $0x170] sm:$0xf]
    %v1610 = vld [vmem:[#allocation7 + $0x174] sm:$0xf]
    %v1611 = vld [vmem:[#allocation7 + $0x178] sm:$0xf]
    %v1612 = vld [vmem:[#allocation7 + $0x17c] sm:$0xf]
    %v1629 = vunpack.c.l.b16 %v1597
    %v1630 = vunpack.c.l.b16 %v1598
    %v1631 = vunpack.c.l.b16 %v1599
    %v1632 = vunpack.c.l.b16 %v1600
    %v1633 = vunpack.c.l.b16 %v1601
    %v1634 = vunpack.c.l.b16 %v1602
    %v1635 = vunpack.c.l.b16 %v1603
    %v1636 = vunpack.c.l.b16 %v1604
    %v1637 = vunpack.c.l.b16 %v1605
    %v1638 = vunpack.c.l.b16 %v1606
    %v1639 = vunpack.c.l.b16 %v1607
    %v1640 = vunpack.c.l.b16 %v1608
    %v1641 = vunpack.c.l.b16 %v1609
    %v1642 = vunpack.c.l.b16 %v1610
    %v1643 = vunpack.c.l.b16 %v1611
    %v1644 = vunpack.c.l.b16 %v1612
    %v1645 = vpack.c.b16 %v1630, %v1629
    %v1646 = vpack.c.b16 %v1632, %v1631
    %v1647 = vpack.c.b16 %v1634, %v1633
    %v1648 = vpack.c.b16 %v1636, %v1635
    %v1649 = vpack.c.b16 %v1638, %v1637
    %v1650 = vpack.c.b16 %v1640, %v1639
    %v1651 = vpack.c.b16 %v1642, %v1641
    %v1652 = vpack.c.b16 %v1644, %v1643
    %1661 = vmatprep.subr.bf16.mxu0 0
    %1662 = vmatpush1.bf16.msra.mxu0 %v1645
    %1663 = vmatprep.subr.bf16.mxu0 0
    %1664 = vmatpush1.bf16.msra.mxu0 %v1646
    %1665 = vmatprep.subr.bf16.mxu0 0
    %1666 = vmatpush1.bf16.msra.mxu0 %v1647
    %1667 = vmatprep.subr.bf16.mxu0 0
    %1668 = vmatpush1.bf16.msra.mxu0 %v1648
    %1669 = vmatprep.subr.bf16.mxu0 0
    %1670 = vmatpush1.bf16.msra.mxu0 %v1649
    %1671 = vmatprep.subr.bf16.mxu0 0
    %1672 = vmatpush1.bf16.msra.mxu0 %v1650
    %1673 = vmatprep.subr.bf16.mxu0 0
    %1674 = vmatpush1.bf16.msra.mxu0 %v1651
    %1675 = vmatprep.subr.bf16.mxu0 0
    %1676 = vmatpush1.bf16.msra.mxu0 %v1652
    %1677 = vmatprep.subr.bf16.mxu0 0
    %1678 = vmatpush1.bf16.msra.mxu0 0
    %1679 = vmatprep.subr.bf16.mxu0 0
    %1680 = vmatpush1.bf16.msra.mxu0 0
    %1681 = vmatprep.subr.bf16.mxu0 0
    %1682 = vmatpush1.bf16.msra.mxu0 0
    %1683 = vmatprep.subr.bf16.mxu0 0
    %1684 = vmatpush1.bf16.msra.mxu0 0
    %1685 = vmatprep.subr.bf16.mxu0 0
    %1686 = vmatpush1.bf16.msra.mxu0 0
    %1687 = vmatprep.subr.bf16.mxu0 0
    %1688 = vmatpush1.bf16.msra.mxu0 0
    %1689 = vmatprep.subr.bf16.mxu0 0
    %1690 = vmatpush1.bf16.msra.mxu0 0
    %1691 = vmatprep.subr.bf16.mxu0 0
    %1692 = vmatpush1.bf16.msra.mxu0 0
    %1693 = vmatprep.mubr.bf16.mxu0 0
    %1694 = vmatmul.mubr.bf16.gmra.mrb[0].mxu0 %v1032
    %v1695 = vpop.f32.mrb[0].mxu0
    %v1696 = vadd.f32 0.0, %v1695
    %v1697 = vpop.f32.mrb[0].mxu0
    %v1698 = vpop.f32.mrb[0].mxu0
    %v1699 = vadd.f32 0.0, %v1698
    %v1700 = vpop.f32.mrb[0].mxu0
    %1701 = vmatprep.mubr.bf16.mxu0 0
    %1702 = vmatmul.mubr.bf16.gmra.mrb[0].mxu0 %v1033
    %v1703 = vpop.f32.mrb[0].mxu0
    %v1704 = vadd.f32 0.0, %v1703
    %v1705 = vpop.f32.mrb[0].mxu0
    %v1706 = vpop.f32.mrb[0].mxu0
    %v1707 = vadd.f32 0.0, %v1706
    %v1708 = vpop.f32.mrb[0].mxu0
    %1709 = vdwg.mxu0
    %v1726 = vunpack.c.l.b16 %v1581
    %v1727 = vunpack.c.l.b16 %v1582
    %v1728 = vunpack.c.l.b16 %v1583
    %v1729 = vunpack.c.l.b16 %v1584
    %v1730 = vunpack.c.l.b16 %v1585
    %v1731 = vunpack.c.l.b16 %v1586
    %v1732 = vunpack.c.l.b16 %v1587
    %v1733 = vunpack.c.l.b16 %v1588
    %v1734 = vunpack.c.l.b16 %v1589
    %v1735 = vunpack.c.l.b16 %v1590
    %v1736 = vunpack.c.l.b16 %v1591
    %v1737 = vunpack.c.l.b16 %v1592
    %v1738 = vunpack.c.l.b16 %v1593
    %v1739 = vunpack.c.l.b16 %v1594
    %v1740 = vunpack.c.l.b16 %v1595
    %v1741 = vunpack.c.l.b16 %v1596
    %v1742 = vpack.c.b16 %v1727, %v1726
    %v1743 = vpack.c.b16 %v1729, %v1728
    %v1744 = vpack.c.b16 %v1731, %v1730
    %v1745 = vpack.c.b16 %v1733, %v1732
    %v1746 = vpack.c.b16 %v1735, %v1734
    %v1747 = vpack.c.b16 %v1737, %v1736
    %v1748 = vpack.c.b16 %v1739, %v1738
    %v1749 = vpack.c.b16 %v1741, %v1740
    %1758 = vmatprep.subr.bf16.mxu0 0
    %1759 = vmatpush1.bf16.msra.mxu0 %v1742
    %1760 = vmatprep.subr.bf16.mxu0 0
    %1761 = vmatpush1.bf16.msra.mxu0 %v1743
    %1762 = vmatprep.subr.bf16.mxu0 0
    %1763 = vmatpush1.bf16.msra.mxu0 %v1744
    %1764 = vmatprep.subr.bf16.mxu0 0
    %1765 = vmatpush1.bf16.msra.mxu0 %v1745
    %1766 = vmatprep.subr.bf16.mxu0 0
    %1767 = vmatpush1.bf16.msra.mxu0 %v1746
    %1768 = vmatprep.subr.bf16.mxu0 0
    %1769 = vmatpush1.bf16.msra.mxu0 %v1747
    %1770 = vmatprep.subr.bf16.mxu0 0
    %1771 = vmatpush1.bf16.msra.mxu0 %v1748
    %1772 = vmatprep.subr.bf16.mxu0 0
    %1773 = vmatpush1.bf16.msra.mxu0 %v1749
    %1774 = vmatprep.subr.bf16.mxu0 0
    %1775 = vmatpush1.bf16.msra.mxu0 0
    %1776 = vmatprep.subr.bf16.mxu0 0
    %1777 = vmatpush1.bf16.msra.mxu0 0
    %1778 = vmatprep.subr.bf16.mxu0 0
    %1779 = vmatpush1.bf16.msra.mxu0 0
    %1780 = vmatprep.subr.bf16.mxu0 0
    %1781 = vmatpush1.bf16.msra.mxu0 0
    %1782 = vmatprep.subr.bf16.mxu0 0
    %1783 = vmatpush1.bf16.msra.mxu0 0
    %1784 = vmatprep.subr.bf16.mxu0 0
    %1785 = vmatpush1.bf16.msra.mxu0 0
    %1786 = vmatprep.subr.bf16.mxu0 0
    %1787 = vmatpush1.bf16.msra.mxu0 0
    %1788 = vmatprep.subr.bf16.mxu0 0
    %1789 = vmatpush1.bf16.msra.mxu0 0
    %1790 = vmatprep.mubr.bf16.mxu0 0
    %1791 = vmatmul.mubr.bf16.gmra.mrb[0].mxu0 %v991
    %v1792 = vpop.f32.mrb[0].mxu0
    %v1793 = vadd.f32 %v1696, %v1792
    %v1794 = vpop.f32.mrb[0].mxu0
    %v1795 = vpop.f32.mrb[0].mxu0
    %v1796 = vadd.f32 %v1699, %v1795
    %v1797 = vpop.f32.mrb[0].mxu0
    %1798 = vmatprep.mubr.bf16.mxu0 0
    %1799 = vmatmul.mubr.bf16.gmra.mrb[0].mxu0 %v992
    %v1800 = vpop.f32.mrb[0].mxu0
    %v1801 = vadd.f32 %v1704, %v1800
    %v1802 = vpop.f32.mrb[0].mxu0
    %v1803 = vpop.f32.mrb[0].mxu0
    %v1804 = vadd.f32 %v1707, %v1803
    %v1805 = vpop.f32.mrb[0].mxu0
    %1806 = vdwg.mxu0
    %v1807 = vld [vmem:[#allocation7 + $0x180] sm:$0xf]
    %v1808 = vld [vmem:[#allocation7 + $0x184] sm:$0xf]
    %v1809 = vld [vmem:[#allocation7 + $0x188] sm:$0xf]
    %v1810 = vld [vmem:[#allocation7 + $0x18c] sm:$0xf]
    %v1811 = vld [vmem:[#allocation7 + $0x190] sm:$0xf]
    %v1812 = vld [vmem:[#allocation7 + $0x194] sm:$0xf]
    %v1813 = vld [vmem:[#allocation7 + $0x198] sm:$0xf]
    %v1814 = vld [vmem:[#allocation7 + $0x19c] sm:$0xf]
    %v1815 = vld [vmem:[#allocation7 + $0x1a0] sm:$0xf]
    %v1816 = vld [vmem:[#allocation7 + $0x1a4] sm:$0xf]
    %v1817 = vld [vmem:[#allocation7 + $0x1a8] sm:$0xf]
    %v1818 = vld [vmem:[#allocation7 + $0x1ac] sm:$0xf]
    %v1819 = vld [vmem:[#allocation7 + $0x1b0] sm:$0xf]
    %v1820 = vld [vmem:[#allocation7 + $0x1b4] sm:$0xf]
    %v1821 = vld [vmem:[#allocation7 + $0x1b8] sm:$0xf]
    %v1822 = vld [vmem:[#allocation7 + $0x1bc] sm:$0xf]
    %v1839 = vunpack.c.l.b16 %v1807
    %v1840 = vunpack.c.l.b16 %v1808
    %v1841 = vunpack.c.l.b16 %v1809
    %v1842 = vunpack.c.l.b16 %v1810
    %v1843 = vunpack.c.l.b16 %v1811
    %v1844 = vunpack.c.l.b16 %v1812
    %v1845 = vunpack.c.l.b16 %v1813
    %v1846 = vunpack.c.l.b16 %v1814
    %v1847 = vunpack.c.l.b16 %v1815
    %v1848 = vunpack.c.l.b16 %v1816
    %v1849 = vunpack.c.l.b16 %v1817
    %v1850 = vunpack.c.l.b16 %v1818
    %v1851 = vunpack.c.l.b16 %v1819
    %v1852 = vunpack.c.l.b16 %v1820
    %v1853 = vunpack.c.l.b16 %v1821
    %v1854 = vunpack.c.l.b16 %v1822
    %v1855 = vpack.c.b16 %v1840, %v1839
    %v1856 = vpack.c.b16 %v1842, %v1841
    %v1857 = vpack.c.b16 %v1844, %v1843
    %v1858 = vpack.c.b16 %v1846, %v1845
    %v1859 = vpack.c.b16 %v1848, %v1847
    %v1860 = vpack.c.b16 %v1850, %v1849
    %v1861 = vpack.c.b16 %v1852, %v1851
    %v1862 = vpack.c.b16 %v1854, %v1853
    %1871 = vmatprep.subr.bf16.mxu0 0
    %1872 = vmatpush1.bf16.msra.mxu0 %v1855
    %1873 = vmatprep.subr.bf16.mxu0 0
    %1874 = vmatpush1.bf16.msra.mxu0 %v1856
    %1875 = vmatprep.subr.bf16.mxu0 0
    %1876 = vmatpush1.bf16.msra.mxu0 %v1857
    %1877 = vmatprep.subr.bf16.mxu0 0
    %1878 = vmatpush1.bf16.msra.mxu0 %v1858
    %1879 = vmatprep.subr.bf16.mxu0 0
    %1880 = vmatpush1.bf16.msra.mxu0 %v1859
    %1881 = vmatprep.subr.bf16.mxu0 0
    %1882 = vmatpush1.bf16.msra.mxu0 %v1860
    %1883 = vmatprep.subr.bf16.mxu0 0
    %1884 = vmatpush1.bf16.msra.mxu0 %v1861
    %1885 = vmatprep.subr.bf16.mxu0 0
    %1886 = vmatpush1.bf16.msra.mxu0 %v1862
    %1887 = vmatprep.subr.bf16.mxu0 0
    %1888 = vmatpush1.bf16.msra.mxu0 0
    %1889 = vmatprep.subr.bf16.mxu0 0
    %1890 = vmatpush1.bf16.msra.mxu0 0
    %1891 = vmatprep.subr.bf16.mxu0 0
    %1892 = vmatpush1.bf16.msra.mxu0 0
    %1893 = vmatprep.subr.bf16.mxu0 0
    %1894 = vmatpush1.bf16.msra.mxu0 0
    %1895 = vmatprep.subr.bf16.mxu0 0
    %1896 = vmatpush1.bf16.msra.mxu0 0
    %1897 = vmatprep.subr.bf16.mxu0 0
    %1898 = vmatpush1.bf16.msra.mxu0 0
    %1899 = vmatprep.subr.bf16.mxu0 0
    %1900 = vmatpush1.bf16.msra.mxu0 0
    %1901 = vmatprep.subr.bf16.mxu0 0
    %1902 = vmatpush1.bf16.msra.mxu0 0
    %1903 = vmatprep.mubr.bf16.mxu0 0
    %1904 = vmatmul.mubr.bf16.gmra.mrb[0].mxu0 %v1064
    %v1905 = vpop.f32.mrb[0].mxu0
    %v1906 = vadd.f32 0.0, %v1905
    %v1907 = vpop.f32.mrb[0].mxu0
    %v1908 = vpop.f32.mrb[0].mxu0
    %v1909 = vadd.f32 0.0, %v1908
    %v1910 = vpop.f32.mrb[0].mxu0
    %1911 = vmatprep.mubr.bf16.mxu0 0
    %1912 = vmatmul.mubr.bf16.gmra.mrb[0].mxu0 %v1065
    %v1913 = vpop.f32.mrb[0].mxu0
    %v1914 = vadd.f32 0.0, %v1913
    %v1915 = vpop.f32.mrb[0].mxu0
    %v1916 = vpop.f32.mrb[0].mxu0
    %v1917 = vadd.f32 0.0, %v1916
    %v1918 = vpop.f32.mrb[0].mxu0
    %1919 = vdwg.mxu0
    %v1920 = vadd.f32 %v1793, %v1906
    %v1921 = vadd.f32 %v1796, %v1909
    %v1922 = vadd.f32 %v1801, %v1914
    %v1923 = vadd.f32 %v1804, %v1917
    %v1924 = vld [vmem:[#allocation7 + $0x1c0] sm:$0xf]
    %v1925 = vld [vmem:[#allocation7 + $0x1c4] sm:$0xf]
    %v1926 = vld [vmem:[#allocation7 + $0x1c8] sm:$0xf]
    %v1927 = vld [vmem:[#allocation7 + $0x1cc] sm:$0xf]
    %v1928 = vld [vmem:[#allocation7 + $0x1d0] sm:$0xf]
    %v1929 = vld [vmem:[#allocation7 + $0x1d4] sm:$0xf]
    %v1930 = vld [vmem:[#allocation7 + $0x1d8] sm:$0xf]
    %v1931 = vld [vmem:[#allocation7 + $0x1dc] sm:$0xf]
    %v1932 = vld [vmem:[#allocation7 + $0x1e0] sm:$0xf]
    %v1933 = vld [vmem:[#allocation7 + $0x1e4] sm:$0xf]
    %v1934 = vld [vmem:[#allocation7 + $0x1e8] sm:$0xf]
    %v1935 = vld [vmem:[#allocation7 + $0x1ec] sm:$0xf]
    %v1936 = vld [vmem:[#allocation7 + $0x1f0] sm:$0xf]
    %v1937 = vld [vmem:[#allocation7 + $0x1f4] sm:$0xf]
    %v1938 = vld [vmem:[#allocation7 + $0x1f8] sm:$0xf]
    %v1939 = vld [vmem:[#allocation7 + $0x1fc] sm:$0xf]
    %v1956 = vunpack.c.l.b16 %v1924
    %v1957 = vunpack.c.l.b16 %v1925
    %v1958 = vunpack.c.l.b16 %v1926
    %v1959 = vunpack.c.l.b16 %v1927
    %v1960 = vunpack.c.l.b16 %v1928
    %v1961 = vunpack.c.l.b16 %v1929
    %v1962 = vunpack.c.l.b16 %v1930
    %v1963 = vunpack.c.l.b16 %v1931
    %v1964 = vunpack.c.l.b16 %v1932
    %v1965 = vunpack.c.l.b16 %v1933
    %v1966 = vunpack.c.l.b16 %v1934
    %v1967 = vunpack.c.l.b16 %v1935
    %v1968 = vunpack.c.l.b16 %v1936
    %v1969 = vunpack.c.l.b16 %v1937
    %v1970 = vunpack.c.l.b16 %v1938
    %v1971 = vunpack.c.l.b16 %v1939
    %v1972 = vpack.c.b16 %v1957, %v1956
    %v1973 = vpack.c.b16 %v1959, %v1958
    %v1974 = vpack.c.b16 %v1961, %v1960
    %v1975 = vpack.c.b16 %v1963, %v1962
    %v1976 = vpack.c.b16 %v1965, %v1964
    %v1977 = vpack.c.b16 %v1967, %v1966
    %v1978 = vpack.c.b16 %v1969, %v1968
    %v1979 = vpack.c.b16 %v1971, %v1970
    %1988 = vmatprep.subr.bf16.mxu0 0
    %1989 = vmatpush1.bf16.msra.mxu0 %v1972
    %1990 = vmatprep.subr.bf16.mxu0 0
    %1991 = vmatpush1.bf16.msra.mxu0 %v1973
    %1992 = vmatprep.subr.bf16.mxu0 0
    %1993 = vmatpush1.bf16.msra.mxu0 %v1974
    %1994 = vmatprep.subr.bf16.mxu0 0
    %1995 = vmatpush1.bf16.msra.mxu0 %v1975
    %1996 = vmatprep.subr.bf16.mxu0 0
    %1997 = vmatpush1.bf16.msra.mxu0 %v1976
    %1998 = vmatprep.subr.bf16.mxu0 0
    %1999 = vmatpush1.bf16.msra.mxu0 %v1977
    %2000 = vmatprep.subr.bf16.mxu0 0
    %2001 = vmatpush1.bf16.msra.mxu0 %v1978
    %2002 = vmatprep.subr.bf16.mxu0 0
    %2003 = vmatpush1.bf16.msra.mxu0 %v1979
    %2004 = vmatprep.subr.bf16.mxu0 0
    %2005 = vmatpush1.bf16.msra.mxu0 0
    %2006 = vmatprep.subr.bf16.mxu0 0
    %2007 = vmatpush1.bf16.msra.mxu0 0
    %2008 = vmatprep.subr.bf16.mxu0 0
    %2009 = vmatpush1.bf16.msra.mxu0 0
    %2010 = vmatprep.subr.bf16.mxu0 0
    %2011 = vmatpush1.bf16.msra.mxu0 0
    %2012 = vmatprep.subr.bf16.mxu0 0
    %2013 = vmatpush1.bf16.msra.mxu0 0
    %2014 = vmatprep.subr.bf16.mxu0 0
    %2015 = vmatpush1.bf16.msra.mxu0 0
    %2016 = vmatprep.subr.bf16.mxu0 0
    %2017 = vmatpush1.bf16.msra.mxu0 0
    %2018 = vmatprep.subr.bf16.mxu0 0
    %2019 = vmatpush1.bf16.msra.mxu0 0
    %2020 = vmatprep.mubr.bf16.mxu0 0
    %2021 = vmatmul.mubr.bf16.gmra.mrb[0].mxu0 %v1082
    %v2022 = vpop.f32.mrb[0].mxu0
    %v2023 = vadd.f32 0.0, %v2022
    %v2024 = vpop.f32.mrb[0].mxu0
    %v2025 = vpop.f32.mrb[0].mxu0
    %v2026 = vadd.f32 0.0, %v2025
    %v2027 = vpop.f32.mrb[0].mxu0
    %2028 = vmatprep.mubr.bf16.mxu0 0
    %2029 = vmatmul.mubr.bf16.gmra.mrb[0].mxu0 %v1083
    %v2030 = vpop.f32.mrb[0].mxu0
    %v2031 = vadd.f32 0.0, %v2030
    %v2032 = vpop.f32.mrb[0].mxu0
    %v2033 = vpop.f32.mrb[0].mxu0
    %v2034 = vadd.f32 0.0, %v2033
    %v2035 = vpop.f32.mrb[0].mxu0
    %2036 = vdwg.mxu0
    %v2037 = vadd.f32 %v1920, %v2023
    %v2038 = vadd.f32 %v1921, %v2026
    %v2039 = vadd.f32 %v1922, %v2031
    %v2040 = vadd.f32 %v1923, %v2034
    %v2041 = vadd.f32 %v2037, %v1567
    %v2042 = vadd.f32 %v2038, %v1567
    %v2043 = vadd.f32 %v2039, %v1567
    %v2044 = vadd.f32 %v2040, %v1567
    %v2049 = vcombine.high %v2041, %v2041
    %v2050 = vcombine.high %v2042, %v2042
    %v2051 = vcombine.high %v2043, %v2043
    %v2052 = vcombine.high %v2044, %v2044
    %v2053 = vld [vmem:[#allocation7 + $0x200] sm:$0xf]
    %v2054 = vld [vmem:[#allocation7 + $0x204] sm:$0xf]
    %v2055 = vld [vmem:[#allocation7 + $0x208] sm:$0xf]
    %v2056 = vld [vmem:[#allocation7 + $0x20c] sm:$0xf]
    %v2057 = vld [vmem:[#allocation7 + $0x210] sm:$0xf]
    %v2058 = vld [vmem:[#allocation7 + $0x214] sm:$0xf]
    %v2059 = vld [vmem:[#allocation7 + $0x218] sm:$0xf]
    %v2060 = vld [vmem:[#allocation7 + $0x21c] sm:$0xf]
    %v2061 = vld [vmem:[#allocation7 + $0x220] sm:$0xf]
    %v2062 = vld [vmem:[#allocation7 + $0x224] sm:$0xf]
    %v2063 = vld [vmem:[#allocation7 + $0x228] sm:$0xf]
    %v2064 = vld [vmem:[#allocation7 + $0x22c] sm:$0xf]
    %v2065 = vld [vmem:[#allocation7 + $0x230] sm:$0xf]
    %v2066 = vld [vmem:[#allocation7 + $0x234] sm:$0xf]
    %v2067 = vld [vmem:[#allocation7 + $0x238] sm:$0xf]
    %v2068 = vld [vmem:[#allocation7 + $0x23c] sm:$0xf]
    %v2069 = vld [vmem:[#allocation7 + $0x240] sm:$0xf]
    %v2070 = vld [vmem:[#allocation7 + $0x244] sm:$0xf]
    %v2071 = vld [vmem:[#allocation7 + $0x248] sm:$0xf]
    %v2072 = vld [vmem:[#allocation7 + $0x24c] sm:$0xf]
    %v2073 = vld [vmem:[#allocation7 + $0x250] sm:$0xf]
    %v2074 = vld [vmem:[#allocation7 + $0x254] sm:$0xf]
    %v2075 = vld [vmem:[#allocation7 + $0x258] sm:$0xf]
    %v2076 = vld [vmem:[#allocation7 + $0x25c] sm:$0xf]
    %v2077 = vld [vmem:[#allocation7 + $0x260] sm:$0xf]
    %v2078 = vld [vmem:[#allocation7 + $0x264] sm:$0xf]
    %v2079 = vld [vmem:[#allocation7 + $0x268] sm:$0xf]
    %v2080 = vld [vmem:[#allocation7 + $0x26c] sm:$0xf]
    %v2081 = vld [vmem:[#allocation7 + $0x270] sm:$0xf]
    %v2082 = vld [vmem:[#allocation7 + $0x274] sm:$0xf]
    %v2083 = vld [vmem:[#allocation7 + $0x278] sm:$0xf]
    %v2084 = vld [vmem:[#allocation7 + $0x27c] sm:$0xf]
    %v2101 = vunpack.c.l.b16 %v2069
    %v2102 = vunpack.c.l.b16 %v2070
    %v2103 = vunpack.c.l.b16 %v2071
    %v2104 = vunpack.c.l.b16 %v2072
    %v2105 = vunpack.c.l.b16 %v2073
    %v2106 = vunpack.c.l.b16 %v2074
    %v2107 = vunpack.c.l.b16 %v2075
    %v2108 = vunpack.c.l.b16 %v2076
    %v2109 = vunpack.c.l.b16 %v2077
    %v2110 = vunpack.c.l.b16 %v2078
    %v2111 = vunpack.c.l.b16 %v2079
    %v2112 = vunpack.c.l.b16 %v2080
    %v2113 = vunpack.c.l.b16 %v2081
    %v2114 = vunpack.c.l.b16 %v2082
    %v2115 = vunpack.c.l.b16 %v2083
    %v2116 = vunpack.c.l.b16 %v2084
    %v2117 = vpack.c.b16 %v2102, %v2101
    %v2118 = vpack.c.b16 %v2104, %v2103
    %v2119 = vpack.c.b16 %v2106, %v2105
    %v2120 = vpack.c.b16 %v2108, %v2107
    %v2121 = vpack.c.b16 %v2110, %v2109
    %v2122 = vpack.c.b16 %v2112, %v2111
    %v2123 = vpack.c.b16 %v2114, %v2113
    %v2124 = vpack.c.b16 %v2116, %v2115
    %2133 = vmatprep.subr.bf16.mxu0 0
    %2134 = vmatpush1.bf16.msra.mxu0 %v2117
    %2135 = vmatprep.subr.bf16.mxu0 0
    %2136 = vmatpush1.bf16.msra.mxu0 %v2118
    %2137 = vmatprep.subr.bf16.mxu0 0
    %2138 = vmatpush1.bf16.msra.mxu0 %v2119
    %2139 = vmatprep.subr.bf16.mxu0 0
    %2140 = vmatpush1.bf16.msra.mxu0 %v2120
    %2141 = vmatprep.subr.bf16.mxu0 0
    %2142 = vmatpush1.bf16.msra.mxu0 %v2121
    %2143 = vmatprep.subr.bf16.mxu0 0
    %2144 = vmatpush1.bf16.msra.mxu0 %v2122
    %2145 = vmatprep.subr.bf16.mxu0 0
    %2146 = vmatpush1.bf16.msra.mxu0 %v2123
    %2147 = vmatprep.subr.bf16.mxu0 0
    %2148 = vmatpush1.bf16.msra.mxu0 %v2124
    %2149 = vmatprep.subr.bf16.mxu0 0
    %2150 = vmatpush1.bf16.msra.mxu0 0
    %2151 = vmatprep.subr.bf16.mxu0 0
    %2152 = vmatpush1.bf16.msra.mxu0 0
    %2153 = vmatprep.subr.bf16.mxu0 0
    %2154 = vmatpush1.bf16.msra.mxu0 0
    %2155 = vmatprep.subr.bf16.mxu0 0
    %2156 = vmatpush1.bf16.msra.mxu0 0
    %2157 = vmatprep.subr.bf16.mxu0 0
    %2158 = vmatpush1.bf16.msra.mxu0 0
    %2159 = vmatprep.subr.bf16.mxu0 0
    %2160 = vmatpush1.bf16.msra.mxu0 0
    %2161 = vmatprep.subr.bf16.mxu0 0
    %2162 = vmatpush1.bf16.msra.mxu0 0
    %2163 = vmatprep.subr.bf16.mxu0 0
    %2164 = vmatpush1.bf16.msra.mxu0 0
    %2165 = vmatprep.mubr.bf16.mxu0 0
    %2166 = vmatmul.mubr.bf16.gmra.mrb[0].mxu0 %v1064
    %v2167 = vpop.f32.mrb[0].mxu0
    %v2168 = vadd.f32 0.0, %v2167
    %v2169 = vpop.f32.mrb[0].mxu0
    %v2170 = vpop.f32.mrb[0].mxu0
    %v2171 = vadd.f32 0.0, %v2170
    %v2172 = vpop.f32.mrb[0].mxu0
    %2173 = vmatprep.mubr.bf16.mxu0 0
    %2174 = vmatmul.mubr.bf16.gmra.mrb[0].mxu0 %v1065
    %v2175 = vpop.f32.mrb[0].mxu0
    %v2176 = vadd.f32 0.0, %v2175
    %v2177 = vpop.f32.mrb[0].mxu0
    %v2178 = vpop.f32.mrb[0].mxu0
    %v2179 = vadd.f32 0.0, %v2178
    %v2180 = vpop.f32.mrb[0].mxu0
    %2181 = vdwg.mxu0
    %v2198 = vunpack.c.l.b16 %v2053
    %v2199 = vunpack.c.l.b16 %v2054
    %v2200 = vunpack.c.l.b16 %v2055
    %v2201 = vunpack.c.l.b16 %v2056
    %v2202 = vunpack.c.l.b16 %v2057
    %v2203 = vunpack.c.l.b16 %v2058
    %v2204 = vunpack.c.l.b16 %v2059
    %v2205 = vunpack.c.l.b16 %v2060
    %v2206 = vunpack.c.l.b16 %v2061
    %v2207 = vunpack.c.l.b16 %v2062
    %v2208 = vunpack.c.l.b16 %v2063
    %v2209 = vunpack.c.l.b16 %v2064
    %v2210 = vunpack.c.l.b16 %v2065
    %v2211 = vunpack.c.l.b16 %v2066
    %v2212 = vunpack.c.l.b16 %v2067
    %v2213 = vunpack.c.l.b16 %v2068
    %v2214 = vpack.c.b16 %v2199, %v2198
    %v2215 = vpack.c.b16 %v2201, %v2200
    %v2216 = vpack.c.b16 %v2203, %v2202
    %v2217 = vpack.c.b16 %v2205, %v2204
    %v2218 = vpack.c.b16 %v2207, %v2206
    %v2219 = vpack.c.b16 %v2209, %v2208
    %v2220 = vpack.c.b16 %v2211, %v2210
    %v2221 = vpack.c.b16 %v2213, %v2212
    %2230 = vmatprep.subr.bf16.mxu0 0
    %2231 = vmatpush1.bf16.msra.mxu0 %v2214
    %2232 = vmatprep.subr.bf16.mxu0 0
    %2233 = vmatpush1.bf16.msra.mxu0 %v2215
    %2234 = vmatprep.subr.bf16.mxu0 0
    %2235 = vmatpush1.bf16.msra.mxu0 %v2216
    %2236 = vmatprep.subr.bf16.mxu0 0
    %2237 = vmatpush1.bf16.msra.mxu0 %v2217
    %2238 = vmatprep.subr.bf16.mxu0 0
    %2239 = vmatpush1.bf16.msra.mxu0 %v2218
    %2240 = vmatprep.subr.bf16.mxu0 0
    %2241 = vmatpush1.bf16.msra.mxu0 %v2219
    %2242 = vmatprep.subr.bf16.mxu0 0
    %2243 = vmatpush1.bf16.msra.mxu0 %v2220
    %2244 = vmatprep.subr.bf16.mxu0 0
    %2245 = vmatpush1.bf16.msra.mxu0 %v2221
    %2246 = vmatprep.subr.bf16.mxu0 0
    %2247 = vmatpush1.bf16.msra.mxu0 0
    %2248 = vmatprep.subr.bf16.mxu0 0
    %2249 = vmatpush1.bf16.msra.mxu0 0
    %2250 = vmatprep.subr.bf16.mxu0 0
    %2251 = vmatpush1.bf16.msra.mxu0 0
    %2252 = vmatprep.subr.bf16.mxu0 0
    %2253 = vmatpush1.bf16.msra.mxu0 0
    %2254 = vmatprep.subr.bf16.mxu0 0
    %2255 = vmatpush1.bf16.msra.mxu0 0
    %2256 = vmatprep.subr.bf16.mxu0 0
    %2257 = vmatpush1.bf16.msra.mxu0 0
    %2258 = vmatprep.subr.bf16.mxu0 0
    %2259 = vmatpush1.bf16.msra.mxu0 0
    %2260 = vmatprep.subr.bf16.mxu0 0
    %2261 = vmatpush1.bf16.msra.mxu0 0
    %2262 = vmatprep.mubr.bf16.mxu0 0
    %2263 = vmatmul.mubr.bf16.gmra.mrb[0].mxu0 %v1044
    %v2264 = vpop.f32.mrb[0].mxu0
    %v2265 = vadd.f32 %v2168, %v2264
    %v2266 = vpop.f32.mrb[0].mxu0
    %v2267 = vpop.f32.mrb[0].mxu0
    %v2268 = vadd.f32 %v2171, %v2267
    %v2269 = vpop.f32.mrb[0].mxu0
    %2270 = vmatprep.mubr.bf16.mxu0 0
    %2271 = vmatmul.mubr.bf16.gmra.mrb[0].mxu0 %v1045
    %v2272 = vpop.f32.mrb[0].mxu0
    %v2273 = vadd.f32 %v2176, %v2272
    %v2274 = vpop.f32.mrb[0].mxu0
    %v2275 = vpop.f32.mrb[0].mxu0
    %v2276 = vadd.f32 %v2179, %v2275
    %v2277 = vpop.f32.mrb[0].mxu0
    %2278 = vdwg.mxu0
    %v2279 = vld [vmem:[#allocation7 + $0x280] sm:$0xf]
    %v2280 = vld [vmem:[#allocation7 + $0x284] sm:$0xf]
    %v2281 = vld [vmem:[#allocation7 + $0x288] sm:$0xf]
    %v2282 = vld [vmem:[#allocation7 + $0x28c] sm:$0xf]
    %v2283 = vld [vmem:[#allocation7 + $0x290] sm:$0xf]
    %v2284 = vld [vmem:[#allocation7 + $0x294] sm:$0xf]
    %v2285 = vld [vmem:[#allocation7 + $0x298] sm:$0xf]
    %v2286 = vld [vmem:[#allocation7 + $0x29c] sm:$0xf]
    %v2287 = vld [vmem:[#allocation7 + $0x2a0] sm:$0xf]
    %v2288 = vld [vmem:[#allocation7 + $0x2a4] sm:$0xf]
    %v2289 = vld [vmem:[#allocation7 + $0x2a8] sm:$0xf]
    %v2290 = vld [vmem:[#allocation7 + $0x2ac] sm:$0xf]
    %v2291 = vld [vmem:[#allocation7 + $0x2b0] sm:$0xf]
    %v2292 = vld [vmem:[#allocation7 + $0x2b4] sm:$0xf]
    %v2293 = vld [vmem:[#allocation7 + $0x2b8] sm:$0xf]
    %v2294 = vld [vmem:[#allocation7 + $0x2bc] sm:$0xf]
    %v2311 = vunpack.c.l.b16 %v2279
    %v2312 = vunpack.c.l.b16 %v2280
    %v2313 = vunpack.c.l.b16 %v2281
    %v2314 = vunpack.c.l.b16 %v2282
    %v2315 = vunpack.c.l.b16 %v2283
    %v2316 = vunpack.c.l.b16 %v2284
    %v2317 = vunpack.c.l.b16 %v2285
    %v2318 = vunpack.c.l.b16 %v2286
    %v2319 = vunpack.c.l.b16 %v2287
    %v2320 = vunpack.c.l.b16 %v2288
    %v2321 = vunpack.c.l.b16 %v2289
    %v2322 = vunpack.c.l.b16 %v2290
    %v2323 = vunpack.c.l.b16 %v2291
    %v2324 = vunpack.c.l.b16 %v2292
    %v2325 = vunpack.c.l.b16 %v2293
    %v2326 = vunpack.c.l.b16 %v2294
    %v2327 = vpack.c.b16 %v2312, %v2311
    %v2328 = vpack.c.b16 %v2314, %v2313
    %v2329 = vpack.c.b16 %v2316, %v2315
    %v2330 = vpack.c.b16 %v2318, %v2317
    %v2331 = vpack.c.b16 %v2320, %v2319
    %v2332 = vpack.c.b16 %v2322, %v2321
    %v2333 = vpack.c.b16 %v2324, %v2323
    %v2334 = vpack.c.b16 %v2326, %v2325
    %2343 = vmatprep.subr.bf16.mxu0 0
    %2344 = vmatpush1.bf16.msra.mxu0 %v2327
    %2345 = vmatprep.subr.bf16.mxu0 0
    %2346 = vmatpush1.bf16.msra.mxu0 %v2328
    %2347 = vmatprep.subr.bf16.mxu0 0
    %2348 = vmatpush1.bf16.msra.mxu0 %v2329
    %2349 = vmatprep.subr.bf16.mxu0 0
    %2350 = vmatpush1.bf16.msra.mxu0 %v2330
    %2351 = vmatprep.subr.bf16.mxu0 0
    %2352 = vmatpush1.bf16.msra.mxu0 %v2331
    %2353 = vmatprep.subr.bf16.mxu0 0
    %2354 = vmatpush1.bf16.msra.mxu0 %v2332
    %2355 = vmatprep.subr.bf16.mxu0 0
    %2356 = vmatpush1.bf16.msra.mxu0 %v2333
    %2357 = vmatprep.subr.bf16.mxu0 0
    %2358 = vmatpush1.bf16.msra.mxu0 %v2334
    %2359 = vmatprep.subr.bf16.mxu0 0
    %2360 = vmatpush1.bf16.msra.mxu0 0
    %2361 = vmatprep.subr.bf16.mxu0 0
    %2362 = vmatpush1.bf16.msra.mxu0 0
    %2363 = vmatprep.subr.bf16.mxu0 0
    %2364 = vmatpush1.bf16.msra.mxu0 0
    %2365 = vmatprep.subr.bf16.mxu0 0
    %2366 = vmatpush1.bf16.msra.mxu0 0
    %2367 = vmatprep.subr.bf16.mxu0 0
    %2368 = vmatpush1.bf16.msra.mxu0 0
    %2369 = vmatprep.subr.bf16.mxu0 0
    %2370 = vmatpush1.bf16.msra.mxu0 0
    %2371 = vmatprep.subr.bf16.mxu0 0
    %2372 = vmatpush1.bf16.msra.mxu0 0
    %2373 = vmatprep.subr.bf16.mxu0 0
    %2374 = vmatpush1.bf16.msra.mxu0 0
    %2375 = vmatprep.mubr.bf16.mxu0 0
    %2376 = vmatmul.mubr.bf16.gmra.mrb[0].mxu0 %v1088
    %v2377 = vpop.f32.mrb[0].mxu0
    %v2378 = vadd.f32 0.0, %v2377
    %v2379 = vpop.f32.mrb[0].mxu0
    %v2380 = vpop.f32.mrb[0].mxu0
    %v2381 = vadd.f32 0.0, %v2380
    %v2382 = vpop.f32.mrb[0].mxu0
    %2383 = vmatprep.mubr.bf16.mxu0 0
    %2384 = vmatmul.mubr.bf16.gmra.mrb[0].mxu0 %v1089
    %v2385 = vpop.f32.mrb[0].mxu0
    %v2386 = vadd.f32 0.0, %v2385
    %v2387 = vpop.f32.mrb[0].mxu0
    %v2388 = vpop.f32.mrb[0].mxu0
    %v2389 = vadd.f32 0.0, %v2388
    %v2390 = vpop.f32.mrb[0].mxu0
    %2391 = vdwg.mxu0
    %v2392 = vadd.f32 %v2265, %v2378
    %v2393 = vadd.f32 %v2268, %v2381
    %v2394 = vadd.f32 %v2273, %v2386
    %v2395 = vadd.f32 %v2276, %v2389
    %v2396 = vld [vmem:[#allocation7 + $0x2c0] sm:$0xf]
    %v2397 = vld [vmem:[#allocation7 + $0x2c4] sm:$0xf]
    %v2398 = vld [vmem:[#allocation7 + $0x2c8] sm:$0xf]
    %v2399 = vld [vmem:[#allocation7 + $0x2cc] sm:$0xf]
    %v2400 = vld [vmem:[#allocation7 + $0x2d0] sm:$0xf]
    %v2401 = vld [vmem:[#allocation7 + $0x2d4] sm:$0xf]
    %v2402 = vld [vmem:[#allocation7 + $0x2d8] sm:$0xf]
    %v2403 = vld [vmem:[#allocation7 + $0x2dc] sm:$0xf]
    %v2404 = vld [vmem:[#allocation7 + $0x2e0] sm:$0xf]
    %v2405 = vld [vmem:[#allocation7 + $0x2e4] sm:$0xf]
    %v2406 = vld [vmem:[#allocation7 + $0x2e8] sm:$0xf]
    %v2407 = vld [vmem:[#allocation7 + $0x2ec] sm:$0xf]
    %v2408 = vld [vmem:[#allocation7 + $0x2f0] sm:$0xf]
    %v2409 = vld [vmem:[#allocation7 + $0x2f4] sm:$0xf]
    %v2410 = vld [vmem:[#allocation7 + $0x2f8] sm:$0xf]
    %v2411 = vld [vmem:[#allocation7 + $0x2fc] sm:$0xf]
    %v2428 = vunpack.c.l.b16 %v2396
    %v2429 = vunpack.c.l.b16 %v2397
    %v2430 = vunpack.c.l.b16 %v2398
    %v2431 = vunpack.c.l.b16 %v2399
    %v2432 = vunpack.c.l.b16 %v2400
    %v2433 = vunpack.c.l.b16 %v2401
    %v2434 = vunpack.c.l.b16 %v2402
    %v2435 = vunpack.c.l.b16 %v2403
    %v2436 = vunpack.c.l.b16 %v2404
    %v2437 = vunpack.c.l.b16 %v2405
    %v2438 = vunpack.c.l.b16 %v2406
    %v2439 = vunpack.c.l.b16 %v2407
    %v2440 = vunpack.c.l.b16 %v2408
    %v2441 = vunpack.c.l.b16 %v2409
    %v2442 = vunpack.c.l.b16 %v2410
    %v2443 = vunpack.c.l.b16 %v2411
    %v2444 = vpack.c.b16 %v2429, %v2428
    %v2445 = vpack.c.b16 %v2431, %v2430
    %v2446 = vpack.c.b16 %v2433, %v2432
    %v2447 = vpack.c.b16 %v2435, %v2434
    %v2448 = vpack.c.b16 %v2437, %v2436
    %v2449 = vpack.c.b16 %v2439, %v2438
    %v2450 = vpack.c.b16 %v2441, %v2440
    %v2451 = vpack.c.b16 %v2443, %v2442
    %2460 = vmatprep.subr.bf16.mxu0 0
    %2461 = vmatpush1.bf16.msra.mxu0 %v2444
    %2462 = vmatprep.subr.bf16.mxu0 0
    %2463 = vmatpush1.bf16.msra.mxu0 %v2445
    %2464 = vmatprep.subr.bf16.mxu0 0
    %2465 = vmatpush1.bf16.msra.mxu0 %v2446
    %2466 = vmatprep.subr.bf16.mxu0 0
    %2467 = vmatpush1.bf16.msra.mxu0 %v2447
    %2468 = vmatprep.subr.bf16.mxu0 0
    %2469 = vmatpush1.bf16.msra.mxu0 %v2448
    %2470 = vmatprep.subr.bf16.mxu0 0
    %2471 = vmatpush1.bf16.msra.mxu0 %v2449
    %2472 = vmatprep.subr.bf16.mxu0 0
    %2473 = vmatpush1.bf16.msra.mxu0 %v2450
    %2474 = vmatprep.subr.bf16.mxu0 0
    %2475 = vmatpush1.bf16.msra.mxu0 %v2451
    %2476 = vmatprep.subr.bf16.mxu0 0
    %2477 = vmatpush1.bf16.msra.mxu0 0
    %2478 = vmatprep.subr.bf16.mxu0 0
    %2479 = vmatpush1.bf16.msra.mxu0 0
    %2480 = vmatprep.subr.bf16.mxu0 0
    %2481 = vmatpush1.bf16.msra.mxu0 0
    %2482 = vmatprep.subr.bf16.mxu0 0
    %2483 = vmatpush1.bf16.msra.mxu0 0
    %2484 = vmatprep.subr.bf16.mxu0 0
    %2485 = vmatpush1.bf16.msra.mxu0 0
    %2486 = vmatprep.subr.bf16.mxu0 0
    %2487 = vmatpush1.bf16.msra.mxu0 0
    %2488 = vmatprep.subr.bf16.mxu0 0
    %2489 = vmatpush1.bf16.msra.mxu0 0
    %2490 = vmatprep.subr.bf16.mxu0 0
    %2491 = vmatpush1.bf16.msra.mxu0 0
    %2492 = vmatprep.mubr.bf16.mxu0 0
    %2493 = vmatmul.mubr.bf16.gmra.mrb[0].mxu0 %v1094
    %v2494 = vpop.f32.mrb[0].mxu0
    %v2495 = vadd.f32 0.0, %v2494
    %v2496 = vpop.f32.mrb[0].mxu0
    %v2497 = vpop.f32.mrb[0].mxu0
    %v2498 = vadd.f32 0.0, %v2497
    %v2499 = vpop.f32.mrb[0].mxu0
    %2500 = vmatprep.mubr.bf16.mxu0 0
    %2501 = vmatmul.mubr.bf16.gmra.mrb[0].mxu0 %v1095
    %v2502 = vpop.f32.mrb[0].mxu0
    %v2503 = vadd.f32 0.0, %v2502
    %v2504 = vpop.f32.mrb[0].mxu0
    %v2505 = vpop.f32.mrb[0].mxu0
    %v2506 = vadd.f32 0.0, %v2505
    %v2507 = vpop.f32.mrb[0].mxu0
    %2508 = vdwg.mxu0
    %v2509 = vadd.f32 %v2392, %v2495
    %v2510 = vadd.f32 %v2393, %v2498
    %v2511 = vadd.f32 %v2394, %v2503
    %v2512 = vadd.f32 %v2395, %v2506
    %v2513 = vadd.f32 %v2509, %v1567
    %v2514 = vadd.f32 %v2510, %v1567
    %v2515 = vadd.f32 %v2511, %v1567
    %v2516 = vadd.f32 %v2512, %v1567
    %v2521 = vcombine.high %v2513, %v2513
    %v2522 = vcombine.high %v2514, %v2514
    %v2523 = vcombine.high %v2515, %v2515
    %v2524 = vcombine.high %v2516, %v2516
    %v2525 = vld [vmem:[#allocation7 + $0x300] sm:$0xf]
    %v2526 = vld [vmem:[#allocation7 + $0x304] sm:$0xf]
    %v2527 = vld [vmem:[#allocation7 + $0x308] sm:$0xf]
    %v2528 = vld [vmem:[#allocation7 + $0x30c] sm:$0xf]
    %v2529 = vld [vmem:[#allocation7 + $0x310] sm:$0xf]
    %v2530 = vld [vmem:[#allocation7 + $0x314] sm:$0xf]
    %v2531 = vld [vmem:[#allocation7 + $0x318] sm:$0xf]
    %v2532 = vld [vmem:[#allocation7 + $0x31c] sm:$0xf]
    %v2533 = vld [vmem:[#allocation7 + $0x320] sm:$0xf]
    %v2534 = vld [vmem:[#allocation7 + $0x324] sm:$0xf]
    %v2535 = vld [vmem:[#allocation7 + $0x328] sm:$0xf]
    %v2536 = vld [vmem:[#allocation7 + $0x32c] sm:$0xf]
    %v2537 = vld [vmem:[#allocation7 + $0x330] sm:$0xf]
    %v2538 = vld [vmem:[#allocation7 + $0x334] sm:$0xf]
    %v2539 = vld [vmem:[#allocation7 + $0x338] sm:$0xf]
    %v2540 = vld [vmem:[#allocation7 + $0x33c] sm:$0xf]
    %v2541 = vld [vmem:[#allocation7 + $0x340] sm:$0xf]
    %v2542 = vld [vmem:[#allocation7 + $0x344] sm:$0xf]
    %v2543 = vld [vmem:[#allocation7 + $0x348] sm:$0xf]
    %v2544 = vld [vmem:[#allocation7 + $0x34c] sm:$0xf]
    %v2545 = vld [vmem:[#allocation7 + $0x350] sm:$0xf]
    %v2546 = vld [vmem:[#allocation7 + $0x354] sm:$0xf]
    %v2547 = vld [vmem:[#allocation7 + $0x358] sm:$0xf]
    %v2548 = vld [vmem:[#allocation7 + $0x35c] sm:$0xf]
    %v2549 = vld [vmem:[#allocation7 + $0x360] sm:$0xf]
    %v2550 = vld [vmem:[#allocation7 + $0x364] sm:$0xf]
    %v2551 = vld [vmem:[#allocation7 + $0x368] sm:$0xf]
    %v2552 = vld [vmem:[#allocation7 + $0x36c] sm:$0xf]
    %v2553 = vld [vmem:[#allocation7 + $0x370] sm:$0xf]
    %v2554 = vld [vmem:[#allocation7 + $0x374] sm:$0xf]
    %v2555 = vld [vmem:[#allocation7 + $0x378] sm:$0xf]
    %v2556 = vld [vmem:[#allocation7 + $0x37c] sm:$0xf]
    %v2573 = vunpack.c.l.b16 %v2541
    %v2574 = vunpack.c.l.b16 %v2542
    %v2575 = vunpack.c.l.b16 %v2543
    %v2576 = vunpack.c.l.b16 %v2544
    %v2577 = vunpack.c.l.b16 %v2545
    %v2578 = vunpack.c.l.b16 %v2546
    %v2579 = vunpack.c.l.b16 %v2547
    %v2580 = vunpack.c.l.b16 %v2548
    %v2581 = vunpack.c.l.b16 %v2549
    %v2582 = vunpack.c.l.b16 %v2550
    %v2583 = vunpack.c.l.b16 %v2551
    %v2584 = vunpack.c.l.b16 %v2552
    %v2585 = vunpack.c.l.b16 %v2553
    %v2586 = vunpack.c.l.b16 %v2554
    %v2587 = vunpack.c.l.b16 %v2555
    %v2588 = vunpack.c.l.b16 %v2556
    %v2589 = vpack.c.b16 %v2574, %v2573
    %v2590 = vpack.c.b16 %v2576, %v2575
    %v2591 = vpack.c.b16 %v2578, %v2577
    %v2592 = vpack.c.b16 %v2580, %v2579
    %v2593 = vpack.c.b16 %v2582, %v2581
    %v2594 = vpack.c.b16 %v2584, %v2583
    %v2595 = vpack.c.b16 %v2586, %v2585
    %v2596 = vpack.c.b16 %v2588, %v2587
    %2605 = vmatprep.subr.bf16.mxu0 0
    %2606 = vmatpush1.bf16.msra.mxu0 %v2589
    %2607 = vmatprep.subr.bf16.mxu0 0
    %2608 = vmatpush1.bf16.msra.mxu0 %v2590
    %2609 = vmatprep.subr.bf16.mxu0 0
    %2610 = vmatpush1.bf16.msra.mxu0 %v2591
    %2611 = vmatprep.subr.bf16.mxu0 0
    %2612 = vmatpush1.bf16.msra.mxu0 %v2592
    %2613 = vmatprep.subr.bf16.mxu0 0
    %2614 = vmatpush1.bf16.msra.mxu0 %v2593
    %2615 = vmatprep.subr.bf16.mxu0 0
    %2616 = vmatpush1.bf16.msra.mxu0 %v2594
    %2617 = vmatprep.subr.bf16.mxu0 0
    %2618 = vmatpush1.bf16.msra.mxu0 %v2595
    %2619 = vmatprep.subr.bf16.mxu0 0
    %2620 = vmatpush1.bf16.msra.mxu0 %v2596
    %2621 = vmatprep.subr.bf16.mxu0 0
    %2622 = vmatpush1.bf16.msra.mxu0 0
    %2623 = vmatprep.subr.bf16.mxu0 0
    %2624 = vmatpush1.bf16.msra.mxu0 0
    %2625 = vmatprep.subr.bf16.mxu0 0
    %2626 = vmatpush1.bf16.msra.mxu0 0
    %2627 = vmatprep.subr.bf16.mxu0 0
    %2628 = vmatpush1.bf16.msra.mxu0 0
    %2629 = vmatprep.subr.bf16.mxu0 0
    %2630 = vmatpush1.bf16.msra.mxu0 0
    %2631 = vmatprep.subr.bf16.mxu0 0
    %2632 = vmatpush1.bf16.msra.mxu0 0
    %2633 = vmatprep.subr.bf16.mxu0 0
    %2634 = vmatpush1.bf16.msra.mxu0 0
    %2635 = vmatprep.subr.bf16.mxu0 0
    %2636 = vmatpush1.bf16.msra.mxu0 0
    %2637 = vmatprep.mubr.bf16.mxu0 0
    %2638 = vmatmul.mubr.bf16.gmra.mrb[0].mxu0 %v1082
    %v2639 = vpop.f32.mrb[0].mxu0
    %v2640 = vadd.f32 0.0, %v2639
    %v2641 = vpop.f32.mrb[0].mxu0
    %v2642 = vpop.f32.mrb[0].mxu0
    %v2643 = vadd.f32 0.0, %v2642
    %v2644 = vpop.f32.mrb[0].mxu0
    %2645 = vmatprep.mubr.bf16.mxu0 0
    %2646 = vmatmul.mubr.bf16.gmra.mrb[0].mxu0 %v1083
    %v2647 = vpop.f32.mrb[0].mxu0
    %v2648 = vadd.f32 0.0, %v2647
    %v2649 = vpop.f32.mrb[0].mxu0
    %v2650 = vpop.f32.mrb[0].mxu0
    %v2651 = vadd.f32 0.0, %v2650
    %v2652 = vpop.f32.mrb[0].mxu0
    %2653 = vdwg.mxu0
    %v2670 = vunpack.c.l.b16 %v2525
    %v2671 = vunpack.c.l.b16 %v2526
    %v2672 = vunpack.c.l.b16 %v2527
    %v2673 = vunpack.c.l.b16 %v2528
    %v2674 = vunpack.c.l.b16 %v2529
    %v2675 = vunpack.c.l.b16 %v2530
    %v2676 = vunpack.c.l.b16 %v2531
    %v2677 = vunpack.c.l.b16 %v2532
    %v2678 = vunpack.c.l.b16 %v2533
    %v2679 = vunpack.c.l.b16 %v2534
    %v2680 = vunpack.c.l.b16 %v2535
    %v2681 = vunpack.c.l.b16 %v2536
    %v2682 = vunpack.c.l.b16 %v2537
    %v2683 = vunpack.c.l.b16 %v2538
    %v2684 = vunpack.c.l.b16 %v2539
    %v2685 = vunpack.c.l.b16 %v2540
    %v2686 = vpack.c.b16 %v2671, %v2670
    %v2687 = vpack.c.b16 %v2673, %v2672
    %v2688 = vpack.c.b16 %v2675, %v2674
    %v2689 = vpack.c.b16 %v2677, %v2676
    %v2690 = vpack.c.b16 %v2679, %v2678
    %v2691 = vpack.c.b16 %v2681, %v2680
    %v2692 = vpack.c.b16 %v2683, %v2682
    %v2693 = vpack.c.b16 %v2685, %v2684
    %2702 = vmatprep.subr.bf16.mxu0 0
    %2703 = vmatpush1.bf16.msra.mxu0 %v2686
    %2704 = vmatprep.subr.bf16.mxu0 0
    %2705 = vmatpush1.bf16.msra.mxu0 %v2687
    %2706 = vmatprep.subr.bf16.mxu0 0
    %2707 = vmatpush1.bf16.msra.mxu0 %v2688
    %2708 = vmatprep.subr.bf16.mxu0 0
    %2709 = vmatpush1.bf16.msra.mxu0 %v2689
    %2710 = vmatprep.subr.bf16.mxu0 0
    %2711 = vmatpush1.bf16.msra.mxu0 %v2690
    %2712 = vmatprep.subr.bf16.mxu0 0
    %2713 = vmatpush1.bf16.msra.mxu0 %v2691
    %2714 = vmatprep.subr.bf16.mxu0 0
    %2715 = vmatpush1.bf16.msra.mxu0 %v2692
    %2716 = vmatprep.subr.bf16.mxu0 0
    %2717 = vmatpush1.bf16.msra.mxu0 %v2693
    %2718 = vmatprep.subr.bf16.mxu0 0
    %2719 = vmatpush1.bf16.msra.mxu0 0
    %2720 = vmatprep.subr.bf16.mxu0 0
    %2721 = vmatpush1.bf16.msra.mxu0 0
    %2722 = vmatprep.subr.bf16.mxu0 0
    %2723 = vmatpush1.bf16.msra.mxu0 0
    %2724 = vmatprep.subr.bf16.mxu0 0
    %2725 = vmatpush1.bf16.msra.mxu0 0
    %2726 = vmatprep.subr.bf16.mxu0 0
    %2727 = vmatpush1.bf16.msra.mxu0 0
    %2728 = vmatprep.subr.bf16.mxu0 0
    %2729 = vmatpush1.bf16.msra.mxu0 0
    %2730 = vmatprep.subr.bf16.mxu0 0
    %2731 = vmatpush1.bf16.msra.mxu0 0
    %2732 = vmatprep.subr.bf16.mxu0 0
    %2733 = vmatpush1.bf16.msra.mxu0 0
    %2734 = vmatprep.mubr.bf16.mxu0 0
    %2735 = vmatmul.mubr.bf16.gmra.mrb[0].mxu0 %v1064
    %v2736 = vpop.f32.mrb[0].mxu0
    %v2737 = vadd.f32 %v2640, %v2736
    %v2738 = vpop.f32.mrb[0].mxu0
    %v2739 = vpop.f32.mrb[0].mxu0
    %v2740 = vadd.f32 %v2643, %v2739
    %v2741 = vpop.f32.mrb[0].mxu0
    %2742 = vmatprep.mubr.bf16.mxu0 0
    %2743 = vmatmul.mubr.bf16.gmra.mrb[0].mxu0 %v1065
    %v2744 = vpop.f32.mrb[0].mxu0
    %v2745 = vadd.f32 %v2648, %v2744
    %v2746 = vpop.f32.mrb[0].mxu0
    %v2747 = vpop.f32.mrb[0].mxu0
    %v2748 = vadd.f32 %v2651, %v2747
    %v2749 = vpop.f32.mrb[0].mxu0
    %2750 = vdwg.mxu0
    %v2751 = vld [vmem:[#allocation7 + $0x380] sm:$0xf]
    %v2752 = vld [vmem:[#allocation7 + $0x384] sm:$0xf]
    %v2753 = vld [vmem:[#allocation7 + $0x388] sm:$0xf]
    %v2754 = vld [vmem:[#allocation7 + $0x38c] sm:$0xf]
    %v2755 = vld [vmem:[#allocation7 + $0x390] sm:$0xf]
    %v2756 = vld [vmem:[#allocation7 + $0x394] sm:$0xf]
    %v2757 = vld [vmem:[#allocation7 + $0x398] sm:$0xf]
    %v2758 = vld [vmem:[#allocation7 + $0x39c] sm:$0xf]
    %v2759 = vld [vmem:[#allocation7 + $0x3a0] sm:$0xf]
    %v2760 = vld [vmem:[#allocation7 + $0x3a4] sm:$0xf]
    %v2761 = vld [vmem:[#allocation7 + $0x3a8] sm:$0xf]
    %v2762 = vld [vmem:[#allocation7 + $0x3ac] sm:$0xf]
    %v2763 = vld [vmem:[#allocation7 + $0x3b0] sm:$0xf]
    %v2764 = vld [vmem:[#allocation7 + $0x3b4] sm:$0xf]
    %v2765 = vld [vmem:[#allocation7 + $0x3b8] sm:$0xf]
    %v2766 = vld [vmem:[#allocation7 + $0x3bc] sm:$0xf]
    %v2783 = vunpack.c.l.b16 %v2751
    %v2784 = vunpack.c.l.b16 %v2752
    %v2785 = vunpack.c.l.b16 %v2753
    %v2786 = vunpack.c.l.b16 %v2754
    %v2787 = vunpack.c.l.b16 %v2755
    %v2788 = vunpack.c.l.b16 %v2756
    %v2789 = vunpack.c.l.b16 %v2757
    %v2790 = vunpack.c.l.b16 %v2758
    %v2791 = vunpack.c.l.b16 %v2759
    %v2792 = vunpack.c.l.b16 %v2760
    %v2793 = vunpack.c.l.b16 %v2761
    %v2794 = vunpack.c.l.b16 %v2762
    %v2795 = vunpack.c.l.b16 %v2763
    %v2796 = vunpack.c.l.b16 %v2764
    %v2797 = vunpack.c.l.b16 %v2765
    %v2798 = vunpack.c.l.b16 %v2766
    %v2799 = vpack.c.b16 %v2784, %v2783
    %v2800 = vpack.c.b16 %v2786, %v2785
    %v2801 = vpack.c.b16 %v2788, %v2787
    %v2802 = vpack.c.b16 %v2790, %v2789
    %v2803 = vpack.c.b16 %v2792, %v2791
    %v2804 = vpack.c.b16 %v2794, %v2793
    %v2805 = vpack.c.b16 %v2796, %v2795
    %v2806 = vpack.c.b16 %v2798, %v2797
    %2815 = vmatprep.subr.bf16.mxu0 0
    %2816 = vmatpush1.bf16.msra.mxu0 %v2799
    %2817 = vmatprep.subr.bf16.mxu0 0
    %2818 = vmatpush1.bf16.msra.mxu0 %v2800
    %2819 = vmatprep.subr.bf16.mxu0 0
    %2820 = vmatpush1.bf16.msra.mxu0 %v2801
    %2821 = vmatprep.subr.bf16.mxu0 0
    %2822 = vmatpush1.bf16.msra.mxu0 %v2802
    %2823 = vmatprep.subr.bf16.mxu0 0
    %2824 = vmatpush1.bf16.msra.mxu0 %v2803
    %2825 = vmatprep.subr.bf16.mxu0 0
    %2826 = vmatpush1.bf16.msra.mxu0 %v2804
    %2827 = vmatprep.subr.bf16.mxu0 0
    %2828 = vmatpush1.bf16.msra.mxu0 %v2805
    %2829 = vmatprep.subr.bf16.mxu0 0
    %2830 = vmatpush1.bf16.msra.mxu0 %v2806
    %2831 = vmatprep.subr.bf16.mxu0 0
    %2832 = vmatpush1.bf16.msra.mxu0 0
    %2833 = vmatprep.subr.bf16.mxu0 0
    %2834 = vmatpush1.bf16.msra.mxu0 0
    %2835 = vmatprep.subr.bf16.mxu0 0
    %2836 = vmatpush1.bf16.msra.mxu0 0
    %2837 = vmatprep.subr.bf16.mxu0 0
    %2838 = vmatpush1.bf16.msra.mxu0 0
    %2839 = vmatprep.subr.bf16.mxu0 0
    %2840 = vmatpush1.bf16.msra.mxu0 0
    %2841 = vmatprep.subr.bf16.mxu0 0
    %2842 = vmatpush1.bf16.msra.mxu0 0
    %2843 = vmatprep.subr.bf16.mxu0 0
    %2844 = vmatpush1.bf16.msra.mxu0 0
    %2845 = vmatprep.subr.bf16.mxu0 0
    %2846 = vmatpush1.bf16.msra.mxu0 0
    %2847 = vmatprep.mubr.bf16.mxu0 0
    %2848 = vmatmul.mubr.bf16.gmra.mrb[0].mxu0 %v1094
    %v2849 = vpop.f32.mrb[0].mxu0
    %v2850 = vadd.f32 0.0, %v2849
    %v2851 = vpop.f32.mrb[0].mxu0
    %v2852 = vpop.f32.mrb[0].mxu0
    %v2853 = vadd.f32 0.0, %v2852
    %v2854 = vpop.f32.mrb[0].mxu0
    %2855 = vmatprep.mubr.bf16.mxu0 0
    %2856 = vmatmul.mubr.bf16.gmra.mrb[0].mxu0 %v1095
    %v2857 = vpop.f32.mrb[0].mxu0
    %v2858 = vadd.f32 0.0, %v2857
    %v2859 = vpop.f32.mrb[0].mxu0
    %v2860 = vpop.f32.mrb[0].mxu0
    %v2861 = vadd.f32 0.0, %v2860
    %v2862 = vpop.f32.mrb[0].mxu0
    %2863 = vdwg.mxu0
    %v2864 = vadd.f32 %v2737, %v2850
    %v2865 = vadd.f32 %v2740, %v2853
    %v2866 = vadd.f32 %v2745, %v2858
    %v2867 = vadd.f32 %v2748, %v2861
    %v2868 = vld [vmem:[#allocation7 + $0x3c0] sm:$0xf]
    %v2869 = vld [vmem:[#allocation7 + $0x3c4] sm:$0xf]
    %v2870 = vld [vmem:[#allocation7 + $0x3c8] sm:$0xf]
    %v2871 = vld [vmem:[#allocation7 + $0x3cc] sm:$0xf]
    %v2872 = vld [vmem:[#allocation7 + $0x3d0] sm:$0xf]
    %v2873 = vld [vmem:[#allocation7 + $0x3d4] sm:$0xf]
    %v2874 = vld [vmem:[#allocation7 + $0x3d8] sm:$0xf]
    %v2875 = vld [vmem:[#allocation7 + $0x3dc] sm:$0xf]
    %v2876 = vld [vmem:[#allocation7 + $0x3e0] sm:$0xf]
    %v2877 = vld [vmem:[#allocation7 + $0x3e4] sm:$0xf]
    %v2878 = vld [vmem:[#allocation7 + $0x3e8] sm:$0xf]
    %v2879 = vld [vmem:[#allocation7 + $0x3ec] sm:$0xf]
    %v2880 = vld [vmem:[#allocation7 + $0x3f0] sm:$0xf]
    %v2881 = vld [vmem:[#allocation7 + $0x3f4] sm:$0xf]
    %v2882 = vld [vmem:[#allocation7 + $0x3f8] sm:$0xf]
    %v2883 = vld [vmem:[#allocation7 + $0x3fc] sm:$0xf]
    %v2900 = vunpack.c.l.b16 %v2868
    %v2901 = vunpack.c.l.b16 %v2869
    %v2902 = vunpack.c.l.b16 %v2870
    %v2903 = vunpack.c.l.b16 %v2871
    %v2904 = vunpack.c.l.b16 %v2872
    %v2905 = vunpack.c.l.b16 %v2873
    %v2906 = vunpack.c.l.b16 %v2874
    %v2907 = vunpack.c.l.b16 %v2875
    %v2908 = vunpack.c.l.b16 %v2876
    %v2909 = vunpack.c.l.b16 %v2877
    %v2910 = vunpack.c.l.b16 %v2878
    %v2911 = vunpack.c.l.b16 %v2879
    %v2912 = vunpack.c.l.b16 %v2880
    %v2913 = vunpack.c.l.b16 %v2881
    %v2914 = vunpack.c.l.b16 %v2882
    %v2915 = vunpack.c.l.b16 %v2883
    %v2916 = vpack.c.b16 %v2901, %v2900
    %v2917 = vpack.c.b16 %v2903, %v2902
    %v2918 = vpack.c.b16 %v2905, %v2904
    %v2919 = vpack.c.b16 %v2907, %v2906
    %v2920 = vpack.c.b16 %v2909, %v2908
    %v2921 = vpack.c.b16 %v2911, %v2910
    %v2922 = vpack.c.b16 %v2913, %v2912
    %v2923 = vpack.c.b16 %v2915, %v2914
    %2932 = vmatprep.subr.bf16.mxu0 0
    %2933 = vmatpush1.bf16.msra.mxu0 %v2916
    %2934 = vmatprep.subr.bf16.mxu0 0
    %2935 = vmatpush1.bf16.msra.mxu0 %v2917
    %2936 = vmatprep.subr.bf16.mxu0 0
    %2937 = vmatpush1.bf16.msra.mxu0 %v2918
    %2938 = vmatprep.subr.bf16.mxu0 0
    %2939 = vmatpush1.bf16.msra.mxu0 %v2919
    %2940 = vmatprep.subr.bf16.mxu0 0
    %2941 = vmatpush1.bf16.msra.mxu0 %v2920
    %2942 = vmatprep.subr.bf16.mxu0 0
    %2943 = vmatpush1.bf16.msra.mxu0 %v2921
    %2944 = vmatprep.subr.bf16.mxu0 0
    %2945 = vmatpush1.bf16.msra.mxu0 %v2922
    %2946 = vmatprep.subr.bf16.mxu0 0
    %2947 = vmatpush1.bf16.msra.mxu0 %v2923
    %2948 = vmatprep.subr.bf16.mxu0 0
    %2949 = vmatpush1.bf16.msra.mxu0 0
    %2950 = vmatprep.subr.bf16.mxu0 0
    %2951 = vmatpush1.bf16.msra.mxu0 0
    %2952 = vmatprep.subr.bf16.mxu0 0
    %2953 = vmatpush1.bf16.msra.mxu0 0
    %2954 = vmatprep.subr.bf16.mxu0 0
    %2955 = vmatpush1.bf16.msra.mxu0 0
    %2956 = vmatprep.subr.bf16.mxu0 0
    %2957 = vmatpush1.bf16.msra.mxu0 0
    %2958 = vmatprep.subr.bf16.mxu0 0
    %2959 = vmatpush1.bf16.msra.mxu0 0
    %2960 = vmatprep.subr.bf16.mxu0 0
    %2961 = vmatpush1.bf16.msra.mxu0 0
    %2962 = vmatprep.subr.bf16.mxu0 0
    %2963 = vmatpush1.bf16.msra.mxu0 0
    %2964 = vmatprep.mubr.bf16.mxu0 0
    %2965 = vmatmul.mubr.bf16.gmra.mrb[0].mxu0 %v1100
    %v2966 = vpop.f32.mrb[0].mxu0
    %v2967 = vadd.f32 0.0, %v2966
    %v2968 = vpop.f32.mrb[0].mxu0
    %v2969 = vpop.f32.mrb[0].mxu0
    %v2970 = vadd.f32 0.0, %v2969
    %v2971 = vpop.f32.mrb[0].mxu0
    %2972 = vmatprep.mubr.bf16.mxu0 0
    %2973 = vmatmul.mubr.bf16.gmra.mrb[0].mxu0 %v1101
    %v2974 = vpop.f32.mrb[0].mxu0
    %v2975 = vadd.f32 0.0, %v2974
    %v2976 = vpop.f32.mrb[0].mxu0
    %v2977 = vpop.f32.mrb[0].mxu0
    %v2978 = vadd.f32 0.0, %v2977
    %v2979 = vpop.f32.mrb[0].mxu0
    %2980 = vdwg.mxu0
    %v2981 = vadd.f32 %v2864, %v2967
    %v2982 = vadd.f32 %v2865, %v2970
    %v2983 = vadd.f32 %v2866, %v2975
    %v2984 = vadd.f32 %v2867, %v2978
    %v2985 = vadd.f32 %v2981, %v1567
    %v2986 = vadd.f32 %v2982, %v1567
    %v2987 = vadd.f32 %v2983, %v1567
    %v2988 = vadd.f32 %v2984, %v1567
    %v2993 = vcombine.high %v2985, %v2985
    %v2994 = vcombine.high %v2986, %v2986
    %v2995 = vcombine.high %v2987, %v2987
    %v2996 = vcombine.high %v2988, %v2988
    %v2997 = vcombine.low %v1569, %v2041
    %v2998 = vcombine.low %v1577, %v2049
    %v2999 = vcombine.low %v1570, %v2042
    %v3000 = vcombine.low %v1578, %v2050
    %v3001 = vcombine.low %v1571, %v2043
    %v3002 = vcombine.low %v1579, %v2051
    %v3003 = vcombine.low %v1572, %v2044
    %v3004 = vcombine.low %v1580, %v2052
    %v3014 = vunpack.c.l.s4 1935823168
    %v3015 = vunpack.c.0.s8 %v3014
    %v3016 = vlaneseq
    %v3017 = vshrl.u32 %v3016, 7
    %v3018 = vsub.s32 %v3015, %v3017
    %v3019 = vrot.slane %v2997, %v3018
    %v3021 = vunpack.c.l.s4 1935823168
    %v3022 = vunpack.c.0.s8 %v3021
    %v3023 = vlaneseq
    %v3024 = vshrl.u32 %v3023, 7
    %v3025 = vsub.s32 %v3022, %v3024
    %v3026 = vrot.slane %v2998, %v3025
    %v3028 = vunpack.c.l.s4 1935823168
    %v3029 = vunpack.c.0.s8 %v3028
    %v3030 = vlaneseq
    %v3031 = vshrl.u32 %v3030, 7
    %v3032 = vsub.s32 %v3029, %v3031
    %v3033 = vrot.slane %v2999, %v3032
    %v3035 = vunpack.c.l.s4 1935823168
    %v3036 = vunpack.c.0.s8 %v3035
    %v3037 = vlaneseq
    %v3038 = vshrl.u32 %v3037, 7
    %v3039 = vsub.s32 %v3036, %v3038
    %v3040 = vrot.slane %v3000, %v3039
    %v3042 = vunpack.c.l.s4 1935823168
    %v3043 = vunpack.c.0.s8 %v3042
    %v3044 = vlaneseq
    %v3045 = vshrl.u32 %v3044, 7
    %v3046 = vsub.s32 %v3043, %v3045
    %v3047 = vrot.slane %v3001, %v3046
    %v3049 = vunpack.c.l.s4 1935823168
    %v3050 = vunpack.c.0.s8 %v3049
    %v3051 = vlaneseq
    %v3052 = vshrl.u32 %v3051, 7
    %v3053 = vsub.s32 %v3050, %v3052
    %v3054 = vrot.slane %v3002, %v3053
    %v3056 = vunpack.c.l.s4 1935823168
    %v3057 = vunpack.c.0.s8 %v3056
    %v3058 = vlaneseq
    %v3059 = vshrl.u32 %v3058, 7
    %v3060 = vsub.s32 %v3057, %v3059
    %v3061 = vrot.slane %v3003, %v3060
    %v3063 = vunpack.c.l.s4 1935823168
    %v3064 = vunpack.c.0.s8 %v3063
    %v3065 = vlaneseq
    %v3066 = vshrl.u32 %v3065, 7
    %v3067 = vsub.s32 %v3064, %v3066
    %v3068 = vrot.slane %v3004, %v3067
    %v3069 = vcombine.low %v2513, %v2985
    %v3070 = vcombine.low %v2521, %v2993
    %v3071 = vcombine.low %v2514, %v2986
    %v3072 = vcombine.low %v2522, %v2994
    %v3073 = vcombine.low %v2515, %v2987
    %v3074 = vcombine.low %v2523, %v2995
    %v3075 = vcombine.low %v2516, %v2988
    %v3076 = vcombine.low %v2524, %v2996
    %v3086 = vunpack.c.l.s4 1935823168
    %v3087 = vunpack.c.0.s8 %v3086
    %v3088 = vlaneseq
    %v3089 = vshrl.u32 %v3088, 7
    %v3090 = vsub.s32 %v3087, %v3089
    %v3091 = vrot.slane %v3069, %v3090
    %v3093 = vunpack.c.l.s4 1935823168
    %v3094 = vunpack.c.0.s8 %v3093
    %v3095 = vlaneseq
    %v3096 = vshrl.u32 %v3095, 7
    %v3097 = vsub.s32 %v3094, %v3096
    %v3098 = vrot.slane %v3070, %v3097
    %v3100 = vunpack.c.l.s4 1935823168
    %v3101 = vunpack.c.0.s8 %v3100
    %v3102 = vlaneseq
    %v3103 = vshrl.u32 %v3102, 7
    %v3104 = vsub.s32 %v3101, %v3103
    %v3105 = vrot.slane %v3071, %v3104
    %v3107 = vunpack.c.l.s4 1935823168
    %v3108 = vunpack.c.0.s8 %v3107
    %v3109 = vlaneseq
    %v3110 = vshrl.u32 %v3109, 7
    %v3111 = vsub.s32 %v3108, %v3110
    %v3112 = vrot.slane %v3072, %v3111
    %v3114 = vunpack.c.l.s4 1935823168
    %v3115 = vunpack.c.0.s8 %v3114
    %v3116 = vlaneseq
    %v3117 = vshrl.u32 %v3116, 7
    %v3118 = vsub.s32 %v3115, %v3117
    %v3119 = vrot.slane %v3073, %v3118
    %v3121 = vunpack.c.l.s4 1935823168
    %v3122 = vunpack.c.0.s8 %v3121
    %v3123 = vlaneseq
    %v3124 = vshrl.u32 %v3123, 7
    %v3125 = vsub.s32 %v3122, %v3124
    %v3126 = vrot.slane %v3074, %v3125
    %v3128 = vunpack.c.l.s4 1935823168
    %v3129 = vunpack.c.0.s8 %v3128
    %v3130 = vlaneseq
    %v3131 = vshrl.u32 %v3130, 7
    %v3132 = vsub.s32 %v3129, %v3131
    %v3133 = vrot.slane %v3075, %v3132
    %v3135 = vunpack.c.l.s4 1935823168
    %v3136 = vunpack.c.0.s8 %v3135
    %v3137 = vlaneseq
    %v3138 = vshrl.u32 %v3137, 7
    %v3139 = vsub.s32 %v3136, %v3138
    %v3140 = vrot.slane %v3076, %v3139
    %v3141 = vld [vmem:[%s7] sm:$0x1]
    %v3142 = vld [vmem:[%s8] sm:$0x1]
    %v3143 = vadd.f32 %v3019, %v3091
    %v3144 = vadd.f32 %v3143, %v3026
    %v3145 = vadd.f32 %v3144, %v3098
    %v3146 = vadd.f32 %v3145, %v3033
    %v3147 = vadd.f32 %v3146, %v3105
    %v3148 = vadd.f32 %v3147, %v3040
    %v3149 = vadd.f32 %v3148, %v3112
    %v3150 = vadd.f32 %v3149, %v3047
    %v3151 = vadd.f32 %v3150, %v3119
    %v3152 = vadd.f32 %v3151, %v3054
    %v3153 = vadd.f32 %v3152, %v3126
    %v3154 = vadd.f32 %v3153, %v3061
    %v3155 = vadd.f32 %v3154, %v3133
    %v3156 = vadd.f32 %v3155, %v3068
    %v3157 = vadd.f32 %v3156, %v3140
    %v3158 = vrot.slane %v3157, 4
    %v3159 = vadd.f32 %v3157, %v3158
    %v3160 = vrot.slane %v3159, 2
    %v3161 = vadd.f32 %v3159, %v3160
    %v3162 = vrot.slane %v3161, 1
    %v3163 = vadd.f32 %v3161, %v3162
    %v3164 = vmul.f32 %v3163, 0.0078125
    %v3165 = vsub.f32 %v3019, %v3164
    %v3166 = vsub.f32 %v3091, %v3164
    %v3167 = vsub.f32 %v3026, %v3164
    %v3168 = vsub.f32 %v3098, %v3164
    %v3169 = vsub.f32 %v3033, %v3164
    %v3170 = vsub.f32 %v3105, %v3164
    %v3171 = vsub.f32 %v3040, %v3164
    %v3172 = vsub.f32 %v3112, %v3164
    %v3173 = vsub.f32 %v3047, %v3164
    %v3174 = vsub.f32 %v3119, %v3164
    %v3175 = vsub.f32 %v3054, %v3164
    %v3176 = vsub.f32 %v3126, %v3164
    %v3177 = vsub.f32 %v3061, %v3164
    %v3178 = vsub.f32 %v3133, %v3164
    %v3179 = vsub.f32 %v3068, %v3164
    %v3180 = vsub.f32 %v3140, %v3164
    %v3181 = vmul.f32 %v3165, %v3165
    %v3182 = vmul.f32 %v3166, %v3166
    %v3183 = vmul.f32 %v3167, %v3167
    %v3184 = vmul.f32 %v3168, %v3168
    %v3185 = vmul.f32 %v3169, %v3169
    %v3186 = vmul.f32 %v3170, %v3170
    %v3187 = vmul.f32 %v3171, %v3171
    %v3188 = vmul.f32 %v3172, %v3172
    %v3189 = vmul.f32 %v3173, %v3173
    %v3190 = vmul.f32 %v3174, %v3174
    %v3191 = vmul.f32 %v3175, %v3175
    %v3192 = vmul.f32 %v3176, %v3176
    %v3193 = vmul.f32 %v3177, %v3177
    %v3194 = vmul.f32 %v3178, %v3178
    %v3195 = vmul.f32 %v3179, %v3179
    %v3196 = vmul.f32 %v3180, %v3180
    %v3197 = vadd.f32 %v3181, %v3182
    %v3198 = vadd.f32 %v3197, %v3183
    %v3199 = vadd.f32 %v3198, %v3184
    %v3200 = vadd.f32 %v3199, %v3185
    %v3201 = vadd.f32 %v3200, %v3186
    %v3202 = vadd.f32 %v3201, %v3187
    %v3203 = vadd.f32 %v3202, %v3188
    %v3204 = vadd.f32 %v3203, %v3189
    %v3205 = vadd.f32 %v3204, %v3190
    %v3206 = vadd.f32 %v3205, %v3191
    %v3207 = vadd.f32 %v3206, %v3192
    %v3208 = vadd.f32 %v3207, %v3193
    %v3209 = vadd.f32 %v3208, %v3194
    %v3210 = vadd.f32 %v3209, %v3195
    %v3211 = vadd.f32 %v3210, %v3196
    %v3212 = vrot.slane %v3211, 4
    %v3213 = vadd.f32 %v3211, %v3212
    %v3214 = vrot.slane %v3213, 2
    %v3215 = vadd.f32 %v3213, %v3214
    %v3216 = vrot.slane %v3215, 1
    %v3217 = vadd.f32 %v3215, %v3216
    %v3218 = vmul.f32 %v3217, 0.0078125
    %v3219 = vadd.f32 %v3218, 0.8
    %v3220 = vrsqrt.pop %v3219
    %v3221 = vmul.f32 %v3141, %v3220
    %v3223 = vlaneseq
    %v3224 = vshrl.u32 %v3223, 7
    %v3225 = vsub.s32 0, %v3224
    %v3226 = vrot.slane %v3221, %v3225
    %v3228 = vmul.f32 %v3165, %v3226
    %v3229 = vmul.f32 %v3166, %v3226
    %v3230 = vmul.f32 %v3167, %v3226
    %v3231 = vmul.f32 %v3168, %v3226
    %v3232 = vmul.f32 %v3169, %v3226
    %v3233 = vmul.f32 %v3170, %v3226
    %v3234 = vmul.f32 %v3171, %v3226
    %v3235 = vmul.f32 %v3172, %v3226
    %v3236 = vmul.f32 %v3173, %v3226
    %v3237 = vmul.f32 %v3174, %v3226
    %v3238 = vmul.f32 %v3175, %v3226
    %v3239 = vmul.f32 %v3176, %v3226
    %v3240 = vmul.f32 %v3177, %v3226
    %v3241 = vmul.f32 %v3178, %v3226
    %v3242 = vmul.f32 %v3179, %v3226
    %v3243 = vmul.f32 %v3180, %v3226
    %v3245 = vlaneseq
    %v3246 = vshrl.u32 %v3245, 7
    %v3247 = vsub.s32 0, %v3246
    %v3248 = vrot.slane %v3142, %v3247
    %v3250 = vadd.f32 %v3228, %v3248
    %v3251 = vadd.f32 %v3229, %v3248
    %v3252 = vadd.f32 %v3230, %v3248
    %v3253 = vadd.f32 %v3231, %v3248
    %v3254 = vadd.f32 %v3232, %v3248
    %v3255 = vadd.f32 %v3233, %v3248
    %v3256 = vadd.f32 %v3234, %v3248
    %v3257 = vadd.f32 %v3235, %v3248
    %v3258 = vadd.f32 %v3236, %v3248
    %v3259 = vadd.f32 %v3237, %v3248
    %v3260 = vadd.f32 %v3238, %v3248
    %v3261 = vadd.f32 %v3239, %v3248
    %v3262 = vadd.f32 %v3240, %v3248
    %v3263 = vadd.f32 %v3241, %v3248
    %v3264 = vadd.f32 %v3242, %v3248
    %v3265 = vadd.f32 %v3243, %v3248
    %vm3266 = vcmp.gt.f32.partialorder %v3250, 0.0
    %vm3267 = vcmp.gt.f32.partialorder %v3251, 0.0
    %vm3268 = vcmp.gt.f32.partialorder %v3252, 0.0
    %vm3269 = vcmp.gt.f32.partialorder %v3253, 0.0
    %vm3270 = vcmp.gt.f32.partialorder %v3254, 0.0
    %vm3271 = vcmp.gt.f32.partialorder %v3255, 0.0
    %vm3272 = vcmp.gt.f32.partialorder %v3256, 0.0
    %vm3273 = vcmp.gt.f32.partialorder %v3257, 0.0
    %vm3274 = vcmp.gt.f32.partialorder %v3258, 0.0
    %vm3275 = vcmp.gt.f32.partialorder %v3259, 0.0
    %vm3276 = vcmp.gt.f32.partialorder %v3260, 0.0
    %vm3277 = vcmp.gt.f32.partialorder %v3261, 0.0
    %vm3278 = vcmp.gt.f32.partialorder %v3262, 0.0
    %vm3279 = vcmp.gt.f32.partialorder %v3263, 0.0
    %vm3280 = vcmp.gt.f32.partialorder %v3264, 0.0
    %vm3281 = vcmp.gt.f32.partialorder %v3265, 0.0
    %v3282 = vmul.f32 %v3250, 0.2
    %v3283 = vmul.f32 %v3251, 0.2
    %v3284 = vmul.f32 %v3252, 0.2
    %v3285 = vmul.f32 %v3253, 0.2
    %v3286 = vmul.f32 %v3254, 0.2
    %v3287 = vmul.f32 %v3255, 0.2
    %v3288 = vmul.f32 %v3256, 0.2
    %v3289 = vmul.f32 %v3257, 0.2
    %v3290 = vmul.f32 %v3258, 0.2
    %v3291 = vmul.f32 %v3259, 0.2
    %v3292 = vmul.f32 %v3260, 0.2
    %v3293 = vmul.f32 %v3261, 0.2
    %v3294 = vmul.f32 %v3262, 0.2
    %v3295 = vmul.f32 %v3263, 0.2
    %v3296 = vmul.f32 %v3264, 0.2
    %v3297 = vmul.f32 %v3265, 0.2
    %v3298 = vsel %vm3266, %v3250, %v3282
    %v3299 = vsel %vm3267, %v3251, %v3283
    %v3300 = vsel %vm3268, %v3252, %v3284
    %v3301 = vsel %vm3269, %v3253, %v3285
    %v3302 = vsel %vm3270, %v3254, %v3286
    %v3303 = vsel %vm3271, %v3255, %v3287
    %v3304 = vsel %vm3272, %v3256, %v3288
    %v3305 = vsel %vm3273, %v3257, %v3289
    %v3306 = vsel %vm3274, %v3258, %v3290
    %v3307 = vsel %vm3275, %v3259, %v3291
    %v3308 = vsel %vm3276, %v3260, %v3292
    %v3309 = vsel %vm3277, %v3261, %v3293
    %v3310 = vsel %vm3278, %v3262, %v3294
    %v3311 = vsel %vm3279, %v3263, %v3295
    %v3312 = vsel %vm3280, %v3264, %v3296
    %v3313 = vsel %vm3281, %v3265, %v3297
    %v3330 = vrot.slane %v3298, 7
    %v3331 = vrot.slane %v3299, 7
    %v3332 = vrot.slane %v3300, 7
    %v3333 = vrot.slane %v3301, 7
    %v3334 = vrot.slane %v3302, 7
    %v3335 = vrot.slane %v3303, 7
    %v3336 = vrot.slane %v3304, 7
    %v3337 = vrot.slane %v3305, 7
    %v3338 = vrot.slane %v3306, 7
    %v3339 = vrot.slane %v3307, 7
    %v3340 = vrot.slane %v3308, 7
    %v3341 = vrot.slane %v3309, 7
    %v3342 = vrot.slane %v3310, 7
    %v3343 = vrot.slane %v3311, 7
    %v3344 = vrot.slane %v3312, 7
    %v3345 = vrot.slane %v3313, 7
    %v3362 = vsel %vm728, 0.0, %v3330
    %v3363 = vsel %vm728, 0.0, %v3331
    %v3364 = vsel %vm728, 0.0, %v3332
    %v3365 = vsel %vm728, 0.0, %v3333
    %v3366 = vsel %vm728, 0.0, %v3334
    %v3367 = vsel %vm728, 0.0, %v3335
    %v3368 = vsel %vm728, 0.0, %v3336
    %v3369 = vsel %vm728, 0.0, %v3337
    %v3370 = vsel %vm728, 0.0, %v3338
    %v3371 = vsel %vm728, 0.0, %v3339
    %v3372 = vsel %vm728, 0.0, %v3340
    %v3373 = vsel %vm728, 0.0, %v3341
    %v3374 = vsel %vm728, 0.0, %v3342
    %v3375 = vsel %vm728, 0.0, %v3343
    %v3376 = vsel %vm728, 0.0, %v3344
    %v3377 = vsel %vm728, 0.0, %v3345
    %v3378 = vsel %vm728, %v891, 0.0
    %v3379 = vsel %vm728, %v3330, 0.0
    %v3380 = vsel %vm728, %v3331, 0.0
    %v3381 = vsel %vm728, %v3332, 0.0
    %v3382 = vsel %vm728, %v3333, 0.0
    %v3383 = vsel %vm728, %v3334, 0.0
    %v3384 = vsel %vm728, %v3335, 0.0
    %v3385 = vsel %vm728, %v3336, 0.0
    %v3386 = vsel %vm728, %v3337, 0.0
    %v3387 = vsel %vm728, %v3338, 0.0
    %v3388 = vsel %vm728, %v3339, 0.0
    %v3389 = vsel %vm728, %v3340, 0.0
    %v3390 = vsel %vm728, %v3341, 0.0
    %v3391 = vsel %vm728, %v3342, 0.0
    %v3392 = vsel %vm728, %v3343, 0.0
    %v3393 = vsel %vm728, %v3344, 0.0
    %v3394 = vsel %vm728, %v3345, 0.0
    %v3395 = vpack.c.bf16 %v3362, %v909
    %v3396 = vpack.c.bf16 %v3364, %v3363
    %v3397 = vpack.c.bf16 %v3366, %v3365
    %v3398 = vpack.c.bf16 %v3368, %v3367
    %v3399 = vpack.c.bf16 %v3370, %v909
    %v3400 = vpack.c.bf16 %v3372, %v3371
    %v3401 = vpack.c.bf16 %v3374, %v3373
    %v3402 = vpack.c.bf16 %v3376, %v3375
    %vm3433 = vcmask 1046528
    %v3434 = vrot.slane %v909, 1
    %v3435 = vrot.slane %v3378, 1
    %v3436 = vsel %vm3433, %v3434, %v3435
    %v3437 = vrot.slane %v3362, 1
    %v3438 = vrot.slane %v3379, 1
    %v3439 = vsel %vm3433, %v3437, %v3438
    %v3440 = vrot.slane %v3363, 1
    %v3441 = vrot.slane %v3380, 1
    %v3442 = vsel %vm3433, %v3440, %v3441
    %v3443 = vrot.slane %v3364, 1
    %v3444 = vrot.slane %v3381, 1
    %v3445 = vsel %vm3433, %v3443, %v3444
    %v3446 = vrot.slane %v3365, 1
    %v3447 = vrot.slane %v3382, 1
    %v3448 = vsel %vm3433, %v3446, %v3447
    %v3449 = vrot.slane %v3366, 1
    %v3450 = vrot.slane %v3383, 1
    %v3451 = vsel %vm3433, %v3449, %v3450
    %v3452 = vrot.slane %v3367, 1
    %v3453 = vrot.slane %v3384, 1
    %v3454 = vsel %vm3433, %v3452, %v3453
    %v3455 = vrot.slane %v3368, 1
    %v3456 = vrot.slane %v3385, 1
    %v3457 = vsel %vm3433, %v3455, %v3456
    %v3458 = vrot.slane %v3370, 1
    %v3459 = vrot.slane %v3387, 1
    %v3460 = vsel %vm3433, %v3458, %v3459
    %v3461 = vrot.slane %v3371, 1
    %v3462 = vrot.slane %v3388, 1
    %v3463 = vsel %vm3433, %v3461, %v3462
    %v3464 = vrot.slane %v3372, 1
    %v3465 = vrot.slane %v3389, 1
    %v3466 = vsel %vm3433, %v3464, %v3465
    %v3467 = vrot.slane %v3373, 1
    %v3468 = vrot.slane %v3390, 1
    %v3469 = vsel %vm3433, %v3467, %v3468
    %v3470 = vrot.slane %v3374, 1
    %v3471 = vrot.slane %v3391, 1
    %v3472 = vsel %vm3433, %v3470, %v3471
    %v3473 = vrot.slane %v3375, 1
    %v3474 = vrot.slane %v3392, 1
    %v3475 = vsel %vm3433, %v3473, %v3474
    %v3476 = vrot.slane %v3376, 1
    %v3477 = vrot.slane %v3393, 1
    %v3478 = vsel %vm3433, %v3476, %v3477
    %v3494 = vpack.c.bf16 %v3439, %v3436
    %v3495 = vpack.c.bf16 %v3445, %v3442
    %v3496 = vpack.c.bf16 %v3451, %v3448
    %v3497 = vpack.c.bf16 %v3457, %v3454
    %v3498 = vpack.c.bf16 %v3460, %v3436
    %v3499 = vpack.c.bf16 %v3466, %v3463
    %v3500 = vpack.c.bf16 %v3472, %v3469
    %v3501 = vpack.c.bf16 %v3478, %v3475
    %vm3502 = vcmask 1045504
    %v3503 = vrot.slane %v909, 2
    %v3504 = vrot.slane %v3378, 2
    %v3505 = vsel %vm3502, %v3503, %v3504
    %v3506 = vrot.slane %v3362, 2
    %v3507 = vrot.slane %v3379, 2
    %v3508 = vsel %vm3502, %v3506, %v3507
    %v3509 = vrot.slane %v3363, 2
    %v3510 = vrot.slane %v3380, 2
    %v3511 = vsel %vm3502, %v3509, %v3510
    %v3512 = vrot.slane %v3364, 2
    %v3513 = vrot.slane %v3381, 2
    %v3514 = vsel %vm3502, %v3512, %v3513
    %v3515 = vrot.slane %v3365, 2
    %v3516 = vrot.slane %v3382, 2
    %v3517 = vsel %vm3502, %v3515, %v3516
    %v3518 = vrot.slane %v3366, 2
    %v3519 = vrot.slane %v3383, 2
    %v3520 = vsel %vm3502, %v3518, %v3519
    %v3521 = vrot.slane %v3367, 2
    %v3522 = vrot.slane %v3384, 2
    %v3523 = vsel %vm3502, %v3521, %v3522
    %v3524 = vrot.slane %v3368, 2
    %v3525 = vrot.slane %v3385, 2
    %v3526 = vsel %vm3502, %v3524, %v3525
    %v3527 = vrot.slane %v3370, 2
    %v3528 = vrot.slane %v3387, 2
    %v3529 = vsel %vm3502, %v3527, %v3528
    %v3530 = vrot.slane %v3371, 2
    %v3531 = vrot.slane %v3388, 2
    %v3532 = vsel %vm3502, %v3530, %v3531
    %v3533 = vrot.slane %v3372, 2
    %v3534 = vrot.slane %v3389, 2
    %v3535 = vsel %vm3502, %v3533, %v3534
    %v3536 = vrot.slane %v3373, 2
    %v3537 = vrot.slane %v3390, 2
    %v3538 = vsel %vm3502, %v3536, %v3537
    %v3539 = vrot.slane %v3374, 2
    %v3540 = vrot.slane %v3391, 2
    %v3541 = vsel %vm3502, %v3539, %v3540
    %v3542 = vrot.slane %v3375, 2
    %v3543 = vrot.slane %v3392, 2
    %v3544 = vsel %vm3502, %v3542, %v3543
    %v3545 = vrot.slane %v3376, 2
    %v3546 = vrot.slane %v3393, 2
    %v3547 = vsel %vm3502, %v3545, %v3546
    %v3563 = vpack.c.bf16 %v3508, %v3505
    %v3564 = vpack.c.bf16 %v3514, %v3511
    %v3565 = vpack.c.bf16 %v3520, %v3517
    %v3566 = vpack.c.bf16 %v3526, %v3523
    %v3567 = vpack.c.bf16 %v3529, %v3505
    %v3568 = vpack.c.bf16 %v3535, %v3532
    %v3569 = vpack.c.bf16 %v3541, %v3538
    %v3570 = vpack.c.bf16 %v3547, %v3544
    %v3571 = vpack.c.bf16 %v3363, %v3362
    %v3572 = vpack.c.bf16 %v3365, %v3364
    %v3573 = vpack.c.bf16 %v3367, %v3366
    %v3574 = vpack.c.bf16 %v3369, %v3368
    %v3575 = vpack.c.bf16 %v3371, %v3370
    %v3576 = vpack.c.bf16 %v3373, %v3372
    %v3577 = vpack.c.bf16 %v3375, %v3374
    %v3578 = vpack.c.bf16 %v3377, %v3376
    %v3583 = vrot.slane %v3369, 1
    %v3584 = vrot.slane %v3386, 1
    %v3585 = vsel %vm3433, %v3583, %v3584
    %v3586 = vrot.slane %v3377, 1
    %v3587 = vrot.slane %v3394, 1
    %v3588 = vsel %vm3433, %v3586, %v3587
    %v3591 = vpack.c.bf16 %v3442, %v3439
    %v3592 = vpack.c.bf16 %v3448, %v3445
    %v3593 = vpack.c.bf16 %v3454, %v3451
    %v3594 = vpack.c.bf16 %v3585, %v3457
    %v3595 = vpack.c.bf16 %v3463, %v3460
    %v3596 = vpack.c.bf16 %v3469, %v3466
    %v3597 = vpack.c.bf16 %v3475, %v3472
    %v3598 = vpack.c.bf16 %v3588, %v3478
    %v3599 = vrot.slane %v3369, 2
    %v3600 = vrot.slane %v3386, 2
    %v3601 = vsel %vm3502, %v3599, %v3600
    %v3602 = vrot.slane %v3377, 2
    %v3603 = vrot.slane %v3394, 2
    %v3604 = vsel %vm3502, %v3602, %v3603
    %v3607 = vpack.c.bf16 %v3511, %v3508
    %v3608 = vpack.c.bf16 %v3517, %v3514
    %v3609 = vpack.c.bf16 %v3523, %v3520
    %v3610 = vpack.c.bf16 %v3601, %v3526
    %v3611 = vpack.c.bf16 %v3532, %v3529
    %v3612 = vpack.c.bf16 %v3538, %v3535
    %v3613 = vpack.c.bf16 %v3544, %v3541
    %v3614 = vpack.c.bf16 %v3604, %v3547
    %v3615 = vpack.c.bf16 %v909, %v3369
    %v3616 = vpack.c.bf16 %v909, %v3377
    %v3617 = vpack.c.bf16 %v3436, %v3585
    %v3618 = vpack.c.bf16 %v3436, %v3588
    %v3619 = vpack.c.bf16 %v3505, %v3601
    %v3620 = vpack.c.bf16 %v3505, %v3604
    %v3621 = vld [vmem:[#allocation8] sm:$0xf]
    %v3622 = vld [vmem:[#allocation8 + $0x4] sm:$0xf]
    %v3623 = vld [vmem:[#allocation8 + $0x8] sm:$0xf]
    %v3624 = vld [vmem:[#allocation8 + $0xc] sm:$0xf]
    %v3625 = vld [vmem:[#allocation8 + $0x10] sm:$0xf]
    %v3626 = vld [vmem:[#allocation8 + $0x14] sm:$0xf]
    %v3627 = vld [vmem:[#allocation8 + $0x18] sm:$0xf]
    %v3628 = vld [vmem:[#allocation8 + $0x1c] sm:$0xf]
    %v3629 = vld [vmem:[#allocation8 + $0x20] sm:$0xf]
    %v3630 = vld [vmem:[#allocation8 + $0x24] sm:$0xf]
    %v3631 = vld [vmem:[#allocation8 + $0x28] sm:$0xf]
    %v3632 = vld [vmem:[#allocation8 + $0x2c] sm:$0xf]
    %v3633 = vld [vmem:[#allocation8 + $0x30] sm:$0xf]
    %v3634 = vld [vmem:[#allocation8 + $0x34] sm:$0xf]
    %v3635 = vld [vmem:[#allocation8 + $0x38] sm:$0xf]
    %v3636 = vld [vmem:[#allocation8 + $0x3c] sm:$0xf]
    %v3637 = vld [vmem:[#allocation8 + $0x40] sm:$0xf]
    %v3638 = vld [vmem:[#allocation8 + $0x44] sm:$0xf]
    %v3639 = vld [vmem:[#allocation8 + $0x48] sm:$0xf]
    %v3640 = vld [vmem:[#allocation8 + $0x4c] sm:$0xf]
    %v3641 = vld [vmem:[#allocation8 + $0x50] sm:$0xf]
    %v3642 = vld [vmem:[#allocation8 + $0x54] sm:$0xf]
    %v3643 = vld [vmem:[#allocation8 + $0x58] sm:$0xf]
    %v3644 = vld [vmem:[#allocation8 + $0x5c] sm:$0xf]
    %v3645 = vld [vmem:[#allocation8 + $0x60] sm:$0xf]
    %v3646 = vld [vmem:[#allocation8 + $0x64] sm:$0xf]
    %v3647 = vld [vmem:[#allocation8 + $0x68] sm:$0xf]
    %v3648 = vld [vmem:[#allocation8 + $0x6c] sm:$0xf]
    %v3649 = vld [vmem:[#allocation8 + $0x70] sm:$0xf]
    %v3650 = vld [vmem:[#allocation8 + $0x74] sm:$0xf]
    %v3651 = vld [vmem:[#allocation8 + $0x78] sm:$0xf]
    %v3652 = vld [vmem:[#allocation8 + $0x7c] sm:$0xf]
    %v3669 = vunpack.c.l.b16 %v3637
    %v3670 = vunpack.c.l.b16 %v3638
    %v3671 = vunpack.c.l.b16 %v3639
    %v3672 = vunpack.c.l.b16 %v3640
    %v3673 = vunpack.c.l.b16 %v3641
    %v3674 = vunpack.c.l.b16 %v3642
    %v3675 = vunpack.c.l.b16 %v3643
    %v3676 = vunpack.c.l.b16 %v3644
    %v3677 = vunpack.c.l.b16 %v3645
    %v3678 = vunpack.c.l.b16 %v3646
    %v3679 = vunpack.c.l.b16 %v3647
    %v3680 = vunpack.c.l.b16 %v3648
    %v3681 = vunpack.c.l.b16 %v3649
    %v3682 = vunpack.c.l.b16 %v3650
    %v3683 = vunpack.c.l.b16 %v3651
    %v3684 = vunpack.c.l.b16 %v3652
    %v3685 = vpack.c.b16 %v3670, %v3669
    %v3686 = vpack.c.b16 %v3672, %v3671
    %v3687 = vpack.c.b16 %v3674, %v3673
    %v3688 = vpack.c.b16 %v3676, %v3675
    %v3689 = vpack.c.b16 %v3678, %v3677
    %v3690 = vpack.c.b16 %v3680, %v3679
    %v3691 = vpack.c.b16 %v3682, %v3681
    %v3692 = vpack.c.b16 %v3684, %v3683
    %3701 = vmatprep.subr.bf16.mxu0 0
    %3702 = vmatpush1.bf16.msra.mxu0 %v3685
    %3703 = vmatprep.subr.bf16.mxu0 0
    %3704 = vmatpush1.bf16.msra.mxu0 %v3686
    %3705 = vmatprep.subr.bf16.mxu0 0
    %3706 = vmatpush1.bf16.msra.mxu0 %v3687
    %3707 = vmatprep.subr.bf16.mxu0 0
    %3708 = vmatpush1.bf16.msra.mxu0 %v3688
    %3709 = vmatprep.subr.bf16.mxu0 0
    %3710 = vmatpush1.bf16.msra.mxu0 %v3689
    %3711 = vmatprep.subr.bf16.mxu0 0
    %3712 = vmatpush1.bf16.msra.mxu0 %v3690
    %3713 = vmatprep.subr.bf16.mxu0 0
    %3714 = vmatpush1.bf16.msra.mxu0 %v3691
    %3715 = vmatprep.subr.bf16.mxu0 0
    %3716 = vmatpush1.bf16.msra.mxu0 %v3692
    %3717 = vmatprep.subr.bf16.mxu0 0
    %3718 = vmatpush1.bf16.msra.mxu0 0
    %3719 = vmatprep.subr.bf16.mxu0 0
    %3720 = vmatpush1.bf16.msra.mxu0 0
    %3721 = vmatprep.subr.bf16.mxu0 0
    %3722 = vmatpush1.bf16.msra.mxu0 0
    %3723 = vmatprep.subr.bf16.mxu0 0
    %3724 = vmatpush1.bf16.msra.mxu0 0
    %3725 = vmatprep.subr.bf16.mxu0 0
    %3726 = vmatpush1.bf16.msra.mxu0 0
    %3727 = vmatprep.subr.bf16.mxu0 0
    %3728 = vmatpush1.bf16.msra.mxu0 0
    %3729 = vmatprep.subr.bf16.mxu0 0
    %3730 = vmatpush1.bf16.msra.mxu0 0
    %3731 = vmatprep.subr.bf16.mxu0 0
    %3732 = vmatpush1.bf16.msra.mxu0 0
    %3733 = vmatprep.mubr.bf16.mxu0 0
    %3734 = vmatmul.mubr.bf16.gmra.mrb[0].mxu0 %v3494
    %v3735 = vpop.f32.mrb[0].mxu0
    %v3736 = vadd.f32 0.0, %v3735
    %v3737 = vpop.f32.mrb[0].mxu0
    %v3738 = vpop.f32.mrb[0].mxu0
    %v3739 = vadd.f32 0.0, %v3738
    %v3740 = vpop.f32.mrb[0].mxu0
    %3741 = vmatprep.mubr.bf16.mxu0 0
    %3742 = vmatmul.mubr.bf16.gmra.mrb[0].mxu0 %v3495
    %v3743 = vpop.f32.mrb[0].mxu0
    %v3744 = vadd.f32 0.0, %v3743
    %v3745 = vpop.f32.mrb[0].mxu0
    %v3746 = vpop.f32.mrb[0].mxu0
    %v3747 = vadd.f32 0.0, %v3746
    %v3748 = vpop.f32.mrb[0].mxu0
    %3749 = vmatprep.mubr.bf16.mxu0 0
    %3750 = vmatmul.mubr.bf16.gmra.mrb[0].mxu0 %v3496
    %v3751 = vpop.f32.mrb[0].mxu0
    %v3752 = vadd.f32 0.0, %v3751
    %v3753 = vpop.f32.mrb[0].mxu0
    %v3754 = vpop.f32.mrb[0].mxu0
    %v3755 = vadd.f32 0.0, %v3754
    %v3756 = vpop.f32.mrb[0].mxu0
    %3757 = vmatprep.mubr.bf16.mxu0 0
    %3758 = vmatmul.mubr.bf16.gmra.mrb[0].mxu0 %v3497
    %v3759 = vpop.f32.mrb[0].mxu0
    %v3760 = vadd.f32 0.0, %v3759
    %v3761 = vpop.f32.mrb[0].mxu0
    %v3762 = vpop.f32.mrb[0].mxu0
    %v3763 = vadd.f32 0.0, %v3762
    %v3764 = vpop.f32.mrb[0].mxu0
    %3765 = vmatprep.mubr.bf16.mxu0 0
    %3766 = vmatmul.mubr.bf16.gmra.mrb[0].mxu0 %v3498
    %v3767 = vpop.f32.mrb[0].mxu0
    %v3768 = vadd.f32 0.0, %v3767
    %v3769 = vpop.f32.mrb[0].mxu0
    %v3770 = vpop.f32.mrb[0].mxu0
    %v3771 = vadd.f32 0.0, %v3770
    %v3772 = vpop.f32.mrb[0].mxu0
    %3773 = vmatprep.mubr.bf16.mxu0 0
    %3774 = vmatmul.mubr.bf16.gmra.mrb[0].mxu0 %v3499
    %v3775 = vpop.f32.mrb[0].mxu0
    %v3776 = vadd.f32 0.0, %v3775
    %v3777 = vpop.f32.mrb[0].mxu0
    %v3778 = vpop.f32.mrb[0].mxu0
    %v3779 = vadd.f32 0.0, %v3778
    %v3780 = vpop.f32.mrb[0].mxu0
    %3781 = vmatprep.mubr.bf16.mxu0 0
    %3782 = vmatmul.mubr.bf16.gmra.mrb[0].mxu0 %v3500
    %v3783 = vpop.f32.mrb[0].mxu0
    %v3784 = vadd.f32 0.0, %v3783
    %v3785 = vpop.f32.mrb[0].mxu0
    %v3786 = vpop.f32.mrb[0].mxu0
    %v3787 = vadd.f32 0.0, %v3786
    %v3788 = vpop.f32.mrb[0].mxu0
    %3789 = vmatprep.mubr.bf16.mxu0 0
    %3790 = vmatmul.mubr.bf16.gmra.mrb[0].mxu0 %v3501
    %v3791 = vpop.f32.mrb[0].mxu0
    %v3792 = vadd.f32 0.0, %v3791
    %v3793 = vpop.f32.mrb[0].mxu0
    %v3794 = vpop.f32.mrb[0].mxu0
    %v3795 = vadd.f32 0.0, %v3794
    %v3796 = vpop.f32.mrb[0].mxu0
    %3797 = vdwg.mxu0
    %v3814 = vunpack.c.l.b16 %v3621
    %v3815 = vunpack.c.l.b16 %v3622
    %v3816 = vunpack.c.l.b16 %v3623
    %v3817 = vunpack.c.l.b16 %v3624
    %v3818 = vunpack.c.l.b16 %v3625
    %v3819 = vunpack.c.l.b16 %v3626
    %v3820 = vunpack.c.l.b16 %v3627
    %v3821 = vunpack.c.l.b16 %v3628
    %v3822 = vunpack.c.l.b16 %v3629
    %v3823 = vunpack.c.l.b16 %v3630
    %v3824 = vunpack.c.l.b16 %v3631
    %v3825 = vunpack.c.l.b16 %v3632
    %v3826 = vunpack.c.l.b16 %v3633
    %v3827 = vunpack.c.l.b16 %v3634
    %v3828 = vunpack.c.l.b16 %v3635
    %v3829 = vunpack.c.l.b16 %v3636
    %v3830 = vpack.c.b16 %v3815, %v3814
    %v3831 = vpack.c.b16 %v3817, %v3816
    %v3832 = vpack.c.b16 %v3819, %v3818
    %v3833 = vpack.c.b16 %v3821, %v3820
    %v3834 = vpack.c.b16 %v3823, %v3822
    %v3835 = vpack.c.b16 %v3825, %v3824
    %v3836 = vpack.c.b16 %v3827, %v3826
    %v3837 = vpack.c.b16 %v3829, %v3828
    %3846 = vmatprep.subr.bf16.mxu0 0
    %3847 = vmatpush1.bf16.msra.mxu0 %v3830
    %3848 = vmatprep.subr.bf16.mxu0 0
    %3849 = vmatpush1.bf16.msra.mxu0 %v3831
    %3850 = vmatprep.subr.bf16.mxu0 0
    %3851 = vmatpush1.bf16.msra.mxu0 %v3832
    %3852 = vmatprep.subr.bf16.mxu0 0
    %3853 = vmatpush1.bf16.msra.mxu0 %v3833
    %3854 = vmatprep.subr.bf16.mxu0 0
    %3855 = vmatpush1.bf16.msra.mxu0 %v3834
    %3856 = vmatprep.subr.bf16.mxu0 0
    %3857 = vmatpush1.bf16.msra.mxu0 %v3835
    %3858 = vmatprep.subr.bf16.mxu0 0
    %3859 = vmatpush1.bf16.msra.mxu0 %v3836
    %3860 = vmatprep.subr.bf16.mxu0 0
    %3861 = vmatpush1.bf16.msra.mxu0 %v3837
    %3862 = vmatprep.subr.bf16.mxu0 0
    %3863 = vmatpush1.bf16.msra.mxu0 0
    %3864 = vmatprep.subr.bf16.mxu0 0
    %3865 = vmatpush1.bf16.msra.mxu0 0
    %3866 = vmatprep.subr.bf16.mxu0 0
    %3867 = vmatpush1.bf16.msra.mxu0 0
    %3868 = vmatprep.subr.bf16.mxu0 0
    %3869 = vmatpush1.bf16.msra.mxu0 0
    %3870 = vmatprep.subr.bf16.mxu0 0
    %3871 = vmatpush1.bf16.msra.mxu0 0
    %3872 = vmatprep.subr.bf16.mxu0 0
    %3873 = vmatpush1.bf16.msra.mxu0 0
    %3874 = vmatprep.subr.bf16.mxu0 0
    %3875 = vmatpush1.bf16.msra.mxu0 0
    %3876 = vmatprep.subr.bf16.mxu0 0
    %3877 = vmatpush1.bf16.msra.mxu0 0
    %3878 = vmatprep.mubr.bf16.mxu0 0
    %3879 = vmatmul.mubr.bf16.gmra.mrb[0].mxu0 %v3395
    %v3880 = vpop.f32.mrb[0].mxu0
    %v3881 = vadd.f32 %v3736, %v3880
    %v3882 = vpop.f32.mrb[0].mxu0
    %v3883 = vpop.f32.mrb[0].mxu0
    %v3884 = vadd.f32 %v3739, %v3883
    %v3885 = vpop.f32.mrb[0].mxu0
    %3886 = vmatprep.mubr.bf16.mxu0 0
    %3887 = vmatmul.mubr.bf16.gmra.mrb[0].mxu0 %v3396
    %v3888 = vpop.f32.mrb[0].mxu0
    %v3889 = vadd.f32 %v3744, %v3888
    %v3890 = vpop.f32.mrb[0].mxu0
    %v3891 = vpop.f32.mrb[0].mxu0
    %v3892 = vadd.f32 %v3747, %v3891
    %v3893 = vpop.f32.mrb[0].mxu0
    %3894 = vmatprep.mubr.bf16.mxu0 0
    %3895 = vmatmul.mubr.bf16.gmra.mrb[0].mxu0 %v3397
    %v3896 = vpop.f32.mrb[0].mxu0
    %v3897 = vadd.f32 %v3752, %v3896
    %v3898 = vpop.f32.mrb[0].mxu0
    %v3899 = vpop.f32.mrb[0].mxu0
    %v3900 = vadd.f32 %v3755, %v3899
    %v3901 = vpop.f32.mrb[0].mxu0
    %3902 = vmatprep.mubr.bf16.mxu0 0
    %3903 = vmatmul.mubr.bf16.gmra.mrb[0].mxu0 %v3398
    %v3904 = vpop.f32.mrb[0].mxu0
    %v3905 = vadd.f32 %v3760, %v3904
    %v3906 = vpop.f32.mrb[0].mxu0
    %v3907 = vpop.f32.mrb[0].mxu0
    %v3908 = vadd.f32 %v3763, %v3907
    %v3909 = vpop.f32.mrb[0].mxu0
    %3910 = vmatprep.mubr.bf16.mxu0 0
    %3911 = vmatmul.mubr.bf16.gmra.mrb[0].mxu0 %v3399
    %v3912 = vpop.f32.mrb[0].mxu0
    %v3913 = vadd.f32 %v3768, %v3912
    %v3914 = vpop.f32.mrb[0].mxu0
    %v3915 = vpop.f32.mrb[0].mxu0
    %v3916 = vadd.f32 %v3771, %v3915
    %v3917 = vpop.f32.mrb[0].mxu0
    %3918 = vmatprep.mubr.bf16.mxu0 0
    %3919 = vmatmul.mubr.bf16.gmra.mrb[0].mxu0 %v3400
    %v3920 = vpop.f32.mrb[0].mxu0
    %v3921 = vadd.f32 %v3776, %v3920
    %v3922 = vpop.f32.mrb[0].mxu0
    %v3923 = vpop.f32.mrb[0].mxu0
    %v3924 = vadd.f32 %v3779, %v3923
    %v3925 = vpop.f32.mrb[0].mxu0
    %3926 = vmatprep.mubr.bf16.mxu0 0
    %3927 = vmatmul.mubr.bf16.gmra.mrb[0].mxu0 %v3401
    %v3928 = vpop.f32.mrb[0].mxu0
    %v3929 = vadd.f32 %v3784, %v3928
    %v3930 = vpop.f32.mrb[0].mxu0
    %v3931 = vpop.f32.mrb[0].mxu0
    %v3932 = vadd.f32 %v3787, %v3931
    %v3933 = vpop.f32.mrb[0].mxu0
    %3934 = vmatprep.mubr.bf16.mxu0 0
    %3935 = vmatmul.mubr.bf16.gmra.mrb[0].mxu0 %v3402
    %v3936 = vpop.f32.mrb[0].mxu0
    %v3937 = vadd.f32 %v3792, %v3936
    %v3938 = vpop.f32.mrb[0].mxu0
    %v3939 = vpop.f32.mrb[0].mxu0
    %v3940 = vadd.f32 %v3795, %v3939
    %v3941 = vpop.f32.mrb[0].mxu0
    %3942 = vdwg.mxu0
    %v3943 = vld [vmem:[#allocation8 + $0x80] sm:$0xf]
    %v3944 = vld [vmem:[#allocation8 + $0x84] sm:$0xf]
    %v3945 = vld [vmem:[#allocation8 + $0x88] sm:$0xf]
    %v3946 = vld [vmem:[#allocation8 + $0x8c] sm:$0xf]
    %v3947 = vld [vmem:[#allocation8 + $0x90] sm:$0xf]
    %v3948 = vld [vmem:[#allocation8 + $0x94] sm:$0xf]
    %v3949 = vld [vmem:[#allocation8 + $0x98] sm:$0xf]
    %v3950 = vld [vmem:[#allocation8 + $0x9c] sm:$0xf]
    %v3951 = vld [vmem:[#allocation8 + $0xa0] sm:$0xf]
    %v3952 = vld [vmem:[#allocation8 + $0xa4] sm:$0xf]
    %v3953 = vld [vmem:[#allocation8 + $0xa8] sm:$0xf]
    %v3954 = vld [vmem:[#allocation8 + $0xac] sm:$0xf]
    %v3955 = vld [vmem:[#allocation8 + $0xb0] sm:$0xf]
    %v3956 = vld [vmem:[#allocation8 + $0xb4] sm:$0xf]
    %v3957 = vld [vmem:[#allocation8 + $0xb8] sm:$0xf]
    %v3958 = vld [vmem:[#allocation8 + $0xbc] sm:$0xf]
    %v3975 = vunpack.c.l.b16 %v3943
    %v3976 = vunpack.c.l.b16 %v3944
    %v3977 = vunpack.c.l.b16 %v3945
    %v3978 = vunpack.c.l.b16 %v3946
    %v3979 = vunpack.c.l.b16 %v3947
    %v3980 = vunpack.c.l.b16 %v3948
    %v3981 = vunpack.c.l.b16 %v3949
    %v3982 = vunpack.c.l.b16 %v3950
    %v3983 = vunpack.c.l.b16 %v3951
    %v3984 = vunpack.c.l.b16 %v3952
    %v3985 = vunpack.c.l.b16 %v3953
    %v3986 = vunpack.c.l.b16 %v3954
    %v3987 = vunpack.c.l.b16 %v3955
    %v3988 = vunpack.c.l.b16 %v3956
    %v3989 = vunpack.c.l.b16 %v3957
    %v3990 = vunpack.c.l.b16 %v3958
    %v3991 = vpack.c.b16 %v3976, %v3975
    %v3992 = vpack.c.b16 %v3978, %v3977
    %v3993 = vpack.c.b16 %v3980, %v3979
    %v3994 = vpack.c.b16 %v3982, %v3981
    %v3995 = vpack.c.b16 %v3984, %v3983
    %v3996 = vpack.c.b16 %v3986, %v3985
    %v3997 = vpack.c.b16 %v3988, %v3987
    %v3998 = vpack.c.b16 %v3990, %v3989
    %4007 = vmatprep.subr.bf16.mxu0 0
    %4008 = vmatpush1.bf16.msra.mxu0 %v3991
    %4009 = vmatprep.subr.bf16.mxu0 0
    %4010 = vmatpush1.bf16.msra.mxu0 %v3992
    %4011 = vmatprep.subr.bf16.mxu0 0
    %4012 = vmatpush1.bf16.msra.mxu0 %v3993
    %4013 = vmatprep.subr.bf16.mxu0 0
    %4014 = vmatpush1.bf16.msra.mxu0 %v3994
    %4015 = vmatprep.subr.bf16.mxu0 0
    %4016 = vmatpush1.bf16.msra.mxu0 %v3995
    %4017 = vmatprep.subr.bf16.mxu0 0
    %4018 = vmatpush1.bf16.msra.mxu0 %v3996
    %4019 = vmatprep.subr.bf16.mxu0 0
    %4020 = vmatpush1.bf16.msra.mxu0 %v3997
    %4021 = vmatprep.subr.bf16.mxu0 0
    %4022 = vmatpush1.bf16.msra.mxu0 %v3998
    %4023 = vmatprep.subr.bf16.mxu0 0
    %4024 = vmatpush1.bf16.msra.mxu0 0
    %4025 = vmatprep.subr.bf16.mxu0 0
    %4026 = vmatpush1.bf16.msra.mxu0 0
    %4027 = vmatprep.subr.bf16.mxu0 0
    %4028 = vmatpush1.bf16.msra.mxu0 0
    %4029 = vmatprep.subr.bf16.mxu0 0
    %4030 = vmatpush1.bf16.msra.mxu0 0
    %4031 = vmatprep.subr.bf16.mxu0 0
    %4032 = vmatpush1.bf16.msra.mxu0 0
    %4033 = vmatprep.subr.bf16.mxu0 0
    %4034 = vmatpush1.bf16.msra.mxu0 0
    %4035 = vmatprep.subr.bf16.mxu0 0
    %4036 = vmatpush1.bf16.msra.mxu0 0
    %4037 = vmatprep.subr.bf16.mxu0 0
    %4038 = vmatpush1.bf16.msra.mxu0 0
    %4039 = vmatprep.mubr.bf16.mxu0 0
    %4040 = vmatmul.mubr.bf16.gmra.mrb[0].mxu0 %v3571
    %v4041 = vpop.f32.mrb[0].mxu0
    %v4042 = vadd.f32 0.0, %v4041
    %v4043 = vpop.f32.mrb[0].mxu0
    %v4044 = vpop.f32.mrb[0].mxu0
    %v4045 = vadd.f32 0.0, %v4044
    %v4046 = vpop.f32.mrb[0].mxu0
    %4047 = vmatprep.mubr.bf16.mxu0 0
    %4048 = vmatmul.mubr.bf16.gmra.mrb[0].mxu0 %v3572
    %v4049 = vpop.f32.mrb[0].mxu0
    %v4050 = vadd.f32 0.0, %v4049
    %v4051 = vpop.f32.mrb[0].mxu0
    %v4052 = vpop.f32.mrb[0].mxu0
    %v4053 = vadd.f32 0.0, %v4052
    %v4054 = vpop.f32.mrb[0].mxu0
    %4055 = vmatprep.mubr.bf16.mxu0 0
    %4056 = vmatmul.mubr.bf16.gmra.mrb[0].mxu0 %v3573
    %v4057 = vpop.f32.mrb[0].mxu0
    %v4058 = vadd.f32 0.0, %v4057
    %v4059 = vpop.f32.mrb[0].mxu0
    %v4060 = vpop.f32.mrb[0].mxu0
    %v4061 = vadd.f32 0.0, %v4060
    %v4062 = vpop.f32.mrb[0].mxu0
    %4063 = vmatprep.mubr.bf16.mxu0 0
    %4064 = vmatmul.mubr.bf16.gmra.mrb[0].mxu0 %v3574
    %v4065 = vpop.f32.mrb[0].mxu0
    %v4066 = vadd.f32 0.0, %v4065
    %v4067 = vpop.f32.mrb[0].mxu0
    %v4068 = vpop.f32.mrb[0].mxu0
    %v4069 = vadd.f32 0.0, %v4068
    %v4070 = vpop.f32.mrb[0].mxu0
    %4071 = vmatprep.mubr.bf16.mxu0 0
    %4072 = vmatmul.mubr.bf16.gmra.mrb[0].mxu0 %v3575
    %v4073 = vpop.f32.mrb[0].mxu0
    %v4074 = vadd.f32 0.0, %v4073
    %v4075 = vpop.f32.mrb[0].mxu0
    %v4076 = vpop.f32.mrb[0].mxu0
    %v4077 = vadd.f32 0.0, %v4076
    %v4078 = vpop.f32.mrb[0].mxu0
    %4079 = vmatprep.mubr.bf16.mxu0 0
    %4080 = vmatmul.mubr.bf16.gmra.mrb[0].mxu0 %v3576
    %v4081 = vpop.f32.mrb[0].mxu0
    %v4082 = vadd.f32 0.0, %v4081
    %v4083 = vpop.f32.mrb[0].mxu0
    %v4084 = vpop.f32.mrb[0].mxu0
    %v4085 = vadd.f32 0.0, %v4084
    %v4086 = vpop.f32.mrb[0].mxu0
    %4087 = vmatprep.mubr.bf16.mxu0 0
    %4088 = vmatmul.mubr.bf16.gmra.mrb[0].mxu0 %v3577
    %v4089 = vpop.f32.mrb[0].mxu0
    %v4090 = vadd.f32 0.0, %v4089
    %v4091 = vpop.f32.mrb[0].mxu0
    %v4092 = vpop.f32.mrb[0].mxu0
    %v4093 = vadd.f32 0.0, %v4092
    %v4094 = vpop.f32.mrb[0].mxu0
    %4095 = vmatprep.mubr.bf16.mxu0 0
    %4096 = vmatmul.mubr.bf16.gmra.mrb[0].mxu0 %v3578
    %v4097 = vpop.f32.mrb[0].mxu0
    %v4098 = vadd.f32 0.0, %v4097
    %v4099 = vpop.f32.mrb[0].mxu0
    %v4100 = vpop.f32.mrb[0].mxu0
    %v4101 = vadd.f32 0.0, %v4100
    %v4102 = vpop.f32.mrb[0].mxu0
    %4103 = vdwg.mxu0
    %v4104 = vadd.f32 %v3881, %v4042
    %v4105 = vadd.f32 %v3884, %v4045
    %v4106 = vadd.f32 %v3889, %v4050
    %v4107 = vadd.f32 %v3892, %v4053
    %v4108 = vadd.f32 %v3897, %v4058
    %v4109 = vadd.f32 %v3900, %v4061
    %v4110 = vadd.f32 %v3905, %v4066
    %v4111 = vadd.f32 %v3908, %v4069
    %v4112 = vadd.f32 %v3913, %v4074
    %v4113 = vadd.f32 %v3916, %v4077
    %v4114 = vadd.f32 %v3921, %v4082
    %v4115 = vadd.f32 %v3924, %v4085
    %v4116 = vadd.f32 %v3929, %v4090
    %v4117 = vadd.f32 %v3932, %v4093
    %v4118 = vadd.f32 %v3937, %v4098
    %v4119 = vadd.f32 %v3940, %v4101
    %v4120 = vld [vmem:[#allocation8 + $0xc0] sm:$0xf]
    %v4121 = vld [vmem:[#allocation8 + $0xc4] sm:$0xf]
    %v4122 = vld [vmem:[#allocation8 + $0xc8] sm:$0xf]
    %v4123 = vld [vmem:[#allocation8 + $0xcc] sm:$0xf]
    %v4124 = vld [vmem:[#allocation8 + $0xd0] sm:$0xf]
    %v4125 = vld [vmem:[#allocation8 + $0xd4] sm:$0xf]
    %v4126 = vld [vmem:[#allocation8 + $0xd8] sm:$0xf]
    %v4127 = vld [vmem:[#allocation8 + $0xdc] sm:$0xf]
    %v4128 = vld [vmem:[#allocation8 + $0xe0] sm:$0xf]
    %v4129 = vld [vmem:[#allocation8 + $0xe4] sm:$0xf]
    %v4130 = vld [vmem:[#allocation8 + $0xe8] sm:$0xf]
    %v4131 = vld [vmem:[#allocation8 + $0xec] sm:$0xf]
    %v4132 = vld [vmem:[#allocation8 + $0xf0] sm:$0xf]
    %v4133 = vld [vmem:[#allocation8 + $0xf4] sm:$0xf]
    %v4134 = vld [vmem:[#allocation8 + $0xf8] sm:$0xf]
    %v4135 = vld [vmem:[#allocation8 + $0xfc] sm:$0xf]
    %v4152 = vunpack.c.l.b16 %v4120
    %v4153 = vunpack.c.l.b16 %v4121
    %v4154 = vunpack.c.l.b16 %v4122
    %v4155 = vunpack.c.l.b16 %v4123
    %v4156 = vunpack.c.l.b16 %v4124
    %v4157 = vunpack.c.l.b16 %v4125
    %v4158 = vunpack.c.l.b16 %v4126
    %v4159 = vunpack.c.l.b16 %v4127
    %v4160 = vunpack.c.l.b16 %v4128
    %v4161 = vunpack.c.l.b16 %v4129
    %v4162 = vunpack.c.l.b16 %v4130
    %v4163 = vunpack.c.l.b16 %v4131
    %v4164 = vunpack.c.l.b16 %v4132
    %v4165 = vunpack.c.l.b16 %v4133
    %v4166 = vunpack.c.l.b16 %v4134
    %v4167 = vunpack.c.l.b16 %v4135
    %v4168 = vpack.c.b16 %v4153, %v4152
    %v4169 = vpack.c.b16 %v4155, %v4154
    %v4170 = vpack.c.b16 %v4157, %v4156
    %v4171 = vpack.c.b16 %v4159, %v4158
    %v4172 = vpack.c.b16 %v4161, %v4160
    %v4173 = vpack.c.b16 %v4163, %v4162
    %v4174 = vpack.c.b16 %v4165, %v4164
    %v4175 = vpack.c.b16 %v4167, %v4166
    %4184 = vmatprep.subr.bf16.mxu0 0
    %4185 = vmatpush1.bf16.msra.mxu0 %v4168
    %4186 = vmatprep.subr.bf16.mxu0 0
    %4187 = vmatpush1.bf16.msra.mxu0 %v4169
    %4188 = vmatprep.subr.bf16.mxu0 0
    %4189 = vmatpush1.bf16.msra.mxu0 %v4170
    %4190 = vmatprep.subr.bf16.mxu0 0
    %4191 = vmatpush1.bf16.msra.mxu0 %v4171
    %4192 = vmatprep.subr.bf16.mxu0 0
    %4193 = vmatpush1.bf16.msra.mxu0 %v4172
    %4194 = vmatprep.subr.bf16.mxu0 0
    %4195 = vmatpush1.bf16.msra.mxu0 %v4173
    %4196 = vmatprep.subr.bf16.mxu0 0
    %4197 = vmatpush1.bf16.msra.mxu0 %v4174
    %4198 = vmatprep.subr.bf16.mxu0 0
    %4199 = vmatpush1.bf16.msra.mxu0 %v4175
    %4200 = vmatprep.subr.bf16.mxu0 0
    %4201 = vmatpush1.bf16.msra.mxu0 0
    %4202 = vmatprep.subr.bf16.mxu0 0
    %4203 = vmatpush1.bf16.msra.mxu0 0
    %4204 = vmatprep.subr.bf16.mxu0 0
    %4205 = vmatpush1.bf16.msra.mxu0 0
    %4206 = vmatprep.subr.bf16.mxu0 0
    %4207 = vmatpush1.bf16.msra.mxu0 0
    %4208 = vmatprep.subr.bf16.mxu0 0
    %4209 = vmatpush1.bf16.msra.mxu0 0
    %4210 = vmatprep.subr.bf16.mxu0 0
    %4211 = vmatpush1.bf16.msra.mxu0 0
    %4212 = vmatprep.subr.bf16.mxu0 0
    %4213 = vmatpush1.bf16.msra.mxu0 0
    %4214 = vmatprep.subr.bf16.mxu0 0
    %4215 = vmatpush1.bf16.msra.mxu0 0
    %4216 = vmatprep.mubr.bf16.mxu0 0
    %4217 = vmatmul.mubr.bf16.gmra.mrb[0].mxu0 %v3591
    %v4218 = vpop.f32.mrb[0].mxu0
    %v4219 = vadd.f32 0.0, %v4218
    %v4220 = vpop.f32.mrb[0].mxu0
    %v4221 = vpop.f32.mrb[0].mxu0
    %v4222 = vadd.f32 0.0, %v4221
    %v4223 = vpop.f32.mrb[0].mxu0
    %4224 = vmatprep.mubr.bf16.mxu0 0
    %4225 = vmatmul.mubr.bf16.gmra.mrb[0].mxu0 %v3592
    %v4226 = vpop.f32.mrb[0].mxu0
    %v4227 = vadd.f32 0.0, %v4226
    %v4228 = vpop.f32.mrb[0].mxu0
    %v4229 = vpop.f32.mrb[0].mxu0
    %v4230 = vadd.f32 0.0, %v4229
    %v4231 = vpop.f32.mrb[0].mxu0
    %4232 = vmatprep.mubr.bf16.mxu0 0
    %4233 = vmatmul.mubr.bf16.gmra.mrb[0].mxu0 %v3593
    %v4234 = vpop.f32.mrb[0].mxu0
    %v4235 = vadd.f32 0.0, %v4234
    %v4236 = vpop.f32.mrb[0].mxu0
    %v4237 = vpop.f32.mrb[0].mxu0
    %v4238 = vadd.f32 0.0, %v4237
    %v4239 = vpop.f32.mrb[0].mxu0
    %4240 = vmatprep.mubr.bf16.mxu0 0
    %4241 = vmatmul.mubr.bf16.gmra.mrb[0].mxu0 %v3594
    %v4242 = vpop.f32.mrb[0].mxu0
    %v4243 = vadd.f32 0.0, %v4242
    %v4244 = vpop.f32.mrb[0].mxu0
    %v4245 = vpop.f32.mrb[0].mxu0
    %v4246 = vadd.f32 0.0, %v4245
    %v4247 = vpop.f32.mrb[0].mxu0
    %4248 = vmatprep.mubr.bf16.mxu0 0
    %4249 = vmatmul.mubr.bf16.gmra.mrb[0].mxu0 %v3595
    %v4250 = vpop.f32.mrb[0].mxu0
    %v4251 = vadd.f32 0.0, %v4250
    %v4252 = vpop.f32.mrb[0].mxu0
    %v4253 = vpop.f32.mrb[0].mxu0
    %v4254 = vadd.f32 0.0, %v4253
    %v4255 = vpop.f32.mrb[0].mxu0
    %4256 = vmatprep.mubr.bf16.mxu0 0
    %4257 = vmatmul.mubr.bf16.gmra.mrb[0].mxu0 %v3596
    %v4258 = vpop.f32.mrb[0].mxu0
    %v4259 = vadd.f32 0.0, %v4258
    %v4260 = vpop.f32.mrb[0].mxu0
    %v4261 = vpop.f32.mrb[0].mxu0
    %v4262 = vadd.f32 0.0, %v4261
    %v4263 = vpop.f32.mrb[0].mxu0
    %4264 = vmatprep.mubr.bf16.mxu0 0
    %4265 = vmatmul.mubr.bf16.gmra.mrb[0].mxu0 %v3597
    %v4266 = vpop.f32.mrb[0].mxu0
    %v4267 = vadd.f32 0.0, %v4266
    %v4268 = vpop.f32.mrb[0].mxu0
    %v4269 = vpop.f32.mrb[0].mxu0
    %v4270 = vadd.f32 0.0, %v4269
    %v4271 = vpop.f32.mrb[0].mxu0
    %4272 = vmatprep.mubr.bf16.mxu0 0
    %4273 = vmatmul.mubr.bf16.gmra.mrb[0].mxu0 %v3598
    %v4274 = vpop.f32.mrb[0].mxu0
    %v4275 = vadd.f32 0.0, %v4274
    %v4276 = vpop.f32.mrb[0].mxu0
    %v4277 = vpop.f32.mrb[0].mxu0
    %v4278 = vadd.f32 0.0, %v4277
    %v4279 = vpop.f32.mrb[0].mxu0
    %4280 = vdwg.mxu0
    %v4281 = vadd.f32 %v4104, %v4219
    %v4282 = vadd.f32 %v4105, %v4222
    %v4283 = vadd.f32 %v4106, %v4227
    %v4284 = vadd.f32 %v4107, %v4230
    %v4285 = vadd.f32 %v4108, %v4235
    %v4286 = vadd.f32 %v4109, %v4238
    %v4287 = vadd.f32 %v4110, %v4243
    %v4288 = vadd.f32 %v4111, %v4246
    %v4289 = vadd.f32 %v4112, %v4251
    %v4290 = vadd.f32 %v4113, %v4254
    %v4291 = vadd.f32 %v4114, %v4259
    %v4292 = vadd.f32 %v4115, %v4262
    %v4293 = vadd.f32 %v4116, %v4267
    %v4294 = vadd.f32 %v4117, %v4270
    %v4295 = vadd.f32 %v4118, %v4275
    %v4296 = vadd.f32 %v4119, %v4278
    %v4297 = vld [vmem:[%s10] sm:$0x1]
    %v4299 = vlaneseq
    %v4300 = vshrl.u32 %v4299, 7
    %v4301 = vsub.s32 0, %v4300
    %v4302 = vrot.slane %v4297, %v4301
    %v4304 = vadd.f32 %v4281, %v4302
    %v4305 = vadd.f32 %v4282, %v4302
    %v4306 = vadd.f32 %v4283, %v4302
    %v4307 = vadd.f32 %v4284, %v4302
    %v4308 = vadd.f32 %v4285, %v4302
    %v4309 = vadd.f32 %v4286, %v4302
    %v4310 = vadd.f32 %v4287, %v4302
    %v4311 = vadd.f32 %v4288, %v4302
    %v4312 = vadd.f32 %v4289, %v4302
    %v4313 = vadd.f32 %v4290, %v4302
    %v4314 = vadd.f32 %v4291, %v4302
    %v4315 = vadd.f32 %v4292, %v4302
    %v4316 = vadd.f32 %v4293, %v4302
    %v4317 = vadd.f32 %v4294, %v4302
    %v4318 = vadd.f32 %v4295, %v4302
    %v4319 = vadd.f32 %v4296, %v4302
    %v4320 = vld [vmem:[#allocation8 + $0x100] sm:$0xf]
    %v4321 = vld [vmem:[#allocation8 + $0x104] sm:$0xf]
    %v4322 = vld [vmem:[#allocation8 + $0x108] sm:$0xf]
    %v4323 = vld [vmem:[#allocation8 + $0x10c] sm:$0xf]
    %v4324 = vld [vmem:[#allocation8 + $0x110] sm:$0xf]
    %v4325 = vld [vmem:[#allocation8 + $0x114] sm:$0xf]
    %v4326 = vld [vmem:[#allocation8 + $0x118] sm:$0xf]
    %v4327 = vld [vmem:[#allocation8 + $0x11c] sm:$0xf]
    %v4328 = vld [vmem:[#allocation8 + $0x120] sm:$0xf]
    %v4329 = vld [vmem:[#allocation8 + $0x124] sm:$0xf]
    %v4330 = vld [vmem:[#allocation8 + $0x128] sm:$0xf]
    %v4331 = vld [vmem:[#allocation8 + $0x12c] sm:$0xf]
    %v4332 = vld [vmem:[#allocation8 + $0x130] sm:$0xf]
    %v4333 = vld [vmem:[#allocation8 + $0x134] sm:$0xf]
    %v4334 = vld [vmem:[#allocation8 + $0x138] sm:$0xf]
    %v4335 = vld [vmem:[#allocation8 + $0x13c] sm:$0xf]
    %v4336 = vld [vmem:[#allocation8 + $0x140] sm:$0xf]
    %v4337 = vld [vmem:[#allocation8 + $0x144] sm:$0xf]
    %v4338 = vld [vmem:[#allocation8 + $0x148] sm:$0xf]
    %v4339 = vld [vmem:[#allocation8 + $0x14c] sm:$0xf]
    %v4340 = vld [vmem:[#allocation8 + $0x150] sm:$0xf]
    %v4341 = vld [vmem:[#allocation8 + $0x154] sm:$0xf]
    %v4342 = vld [vmem:[#allocation8 + $0x158] sm:$0xf]
    %v4343 = vld [vmem:[#allocation8 + $0x15c] sm:$0xf]
    %v4344 = vld [vmem:[#allocation8 + $0x160] sm:$0xf]
    %v4345 = vld [vmem:[#allocation8 + $0x164] sm:$0xf]
    %v4346 = vld [vmem:[#allocation8 + $0x168] sm:$0xf]
    %v4347 = vld [vmem:[#allocation8 + $0x16c] sm:$0xf]
    %v4348 = vld [vmem:[#allocation8 + $0x170] sm:$0xf]
    %v4349 = vld [vmem:[#allocation8 + $0x174] sm:$0xf]
    %v4350 = vld [vmem:[#allocation8 + $0x178] sm:$0xf]
    %v4351 = vld [vmem:[#allocation8 + $0x17c] sm:$0xf]
    %v4368 = vunpack.c.l.b16 %v4336
    %v4369 = vunpack.c.l.b16 %v4337
    %v4370 = vunpack.c.l.b16 %v4338
    %v4371 = vunpack.c.l.b16 %v4339
    %v4372 = vunpack.c.l.b16 %v4340
    %v4373 = vunpack.c.l.b16 %v4341
    %v4374 = vunpack.c.l.b16 %v4342
    %v4375 = vunpack.c.l.b16 %v4343
    %v4376 = vunpack.c.l.b16 %v4344
    %v4377 = vunpack.c.l.b16 %v4345
    %v4378 = vunpack.c.l.b16 %v4346
    %v4379 = vunpack.c.l.b16 %v4347
    %v4380 = vunpack.c.l.b16 %v4348
    %v4381 = vunpack.c.l.b16 %v4349
    %v4382 = vunpack.c.l.b16 %v4350
    %v4383 = vunpack.c.l.b16 %v4351
    %v4384 = vpack.c.b16 %v4369, %v4368
    %v4385 = vpack.c.b16 %v4371, %v4370
    %v4386 = vpack.c.b16 %v4373, %v4372
    %v4387 = vpack.c.b16 %v4375, %v4374
    %v4388 = vpack.c.b16 %v4377, %v4376
    %v4389 = vpack.c.b16 %v4379, %v4378
    %v4390 = vpack.c.b16 %v4381, %v4380
    %v4391 = vpack.c.b16 %v4383, %v4382
    %4400 = vmatprep.subr.bf16.mxu0 0
    %4401 = vmatpush1.bf16.msra.mxu0 %v4384
    %4402 = vmatprep.subr.bf16.mxu0 0
    %4403 = vmatpush1.bf16.msra.mxu0 %v4385
    %4404 = vmatprep.subr.bf16.mxu0 0
    %4405 = vmatpush1.bf16.msra.mxu0 %v4386
    %4406 = vmatprep.subr.bf16.mxu0 0
    %4407 = vmatpush1.bf16.msra.mxu0 %v4387
    %4408 = vmatprep.subr.bf16.mxu0 0
    %4409 = vmatpush1.bf16.msra.mxu0 %v4388
    %4410 = vmatprep.subr.bf16.mxu0 0
    %4411 = vmatpush1.bf16.msra.mxu0 %v4389
    %4412 = vmatprep.subr.bf16.mxu0 0
    %4413 = vmatpush1.bf16.msra.mxu0 %v4390
    %4414 = vmatprep.subr.bf16.mxu0 0
    %4415 = vmatpush1.bf16.msra.mxu0 %v4391
    %4416 = vmatprep.subr.bf16.mxu0 0
    %4417 = vmatpush1.bf16.msra.mxu0 0
    %4418 = vmatprep.subr.bf16.mxu0 0
    %4419 = vmatpush1.bf16.msra.mxu0 0
    %4420 = vmatprep.subr.bf16.mxu0 0
    %4421 = vmatpush1.bf16.msra.mxu0 0
    %4422 = vmatprep.subr.bf16.mxu0 0
    %4423 = vmatpush1.bf16.msra.mxu0 0
    %4424 = vmatprep.subr.bf16.mxu0 0
    %4425 = vmatpush1.bf16.msra.mxu0 0
    %4426 = vmatprep.subr.bf16.mxu0 0
    %4427 = vmatpush1.bf16.msra.mxu0 0
    %4428 = vmatprep.subr.bf16.mxu0 0
    %4429 = vmatpush1.bf16.msra.mxu0 0
    %4430 = vmatprep.subr.bf16.mxu0 0
    %4431 = vmatpush1.bf16.msra.mxu0 0
    %4432 = vmatprep.mubr.bf16.mxu0 0
    %4433 = vmatmul.mubr.bf16.gmra.mrb[0].mxu0 %v3563
    %v4434 = vpop.f32.mrb[0].mxu0
    %v4435 = vadd.f32 0.0, %v4434
    %v4436 = vpop.f32.mrb[0].mxu0
    %v4437 = vpop.f32.mrb[0].mxu0
    %v4438 = vadd.f32 0.0, %v4437
    %v4439 = vpop.f32.mrb[0].mxu0
    %4440 = vmatprep.mubr.bf16.mxu0 0
    %4441 = vmatmul.mubr.bf16.gmra.mrb[0].mxu0 %v3564
    %v4442 = vpop.f32.mrb[0].mxu0
    %v4443 = vadd.f32 0.0, %v4442
    %v4444 = vpop.f32.mrb[0].mxu0
    %v4445 = vpop.f32.mrb[0].mxu0
    %v4446 = vadd.f32 0.0, %v4445
    %v4447 = vpop.f32.mrb[0].mxu0
    %4448 = vmatprep.mubr.bf16.mxu0 0
    %4449 = vmatmul.mubr.bf16.gmra.mrb[0].mxu0 %v3565
    %v4450 = vpop.f32.mrb[0].mxu0
    %v4451 = vadd.f32 0.0, %v4450
    %v4452 = vpop.f32.mrb[0].mxu0
    %v4453 = vpop.f32.mrb[0].mxu0
    %v4454 = vadd.f32 0.0, %v4453
    %v4455 = vpop.f32.mrb[0].mxu0
    %4456 = vmatprep.mubr.bf16.mxu0 0
    %4457 = vmatmul.mubr.bf16.gmra.mrb[0].mxu0 %v3566
    %v4458 = vpop.f32.mrb[0].mxu0
    %v4459 = vadd.f32 0.0, %v4458
    %v4460 = vpop.f32.mrb[0].mxu0
    %v4461 = vpop.f32.mrb[0].mxu0
    %v4462 = vadd.f32 0.0, %v4461
    %v4463 = vpop.f32.mrb[0].mxu0
    %4464 = vmatprep.mubr.bf16.mxu0 0
    %4465 = vmatmul.mubr.bf16.gmra.mrb[0].mxu0 %v3567
    %v4466 = vpop.f32.mrb[0].mxu0
    %v4467 = vadd.f32 0.0, %v4466
    %v4468 = vpop.f32.mrb[0].mxu0
    %v4469 = vpop.f32.mrb[0].mxu0
    %v4470 = vadd.f32 0.0, %v4469
    %v4471 = vpop.f32.mrb[0].mxu0
    %4472 = vmatprep.mubr.bf16.mxu0 0
    %4473 = vmatmul.mubr.bf16.gmra.mrb[0].mxu0 %v3568
    %v4474 = vpop.f32.mrb[0].mxu0
    %v4475 = vadd.f32 0.0, %v4474
    %v4476 = vpop.f32.mrb[0].mxu0
    %v4477 = vpop.f32.mrb[0].mxu0
    %v4478 = vadd.f32 0.0, %v4477
    %v4479 = vpop.f32.mrb[0].mxu0
    %4480 = vmatprep.mubr.bf16.mxu0 0
    %4481 = vmatmul.mubr.bf16.gmra.mrb[0].mxu0 %v3569
    %v4482 = vpop.f32.mrb[0].mxu0
    %v4483 = vadd.f32 0.0, %v4482
    %v4484 = vpop.f32.mrb[0].mxu0
    %v4485 = vpop.f32.mrb[0].mxu0
    %v4486 = vadd.f32 0.0, %v4485
    %v4487 = vpop.f32.mrb[0].mxu0
    %4488 = vmatprep.mubr.bf16.mxu0 0
    %4489 = vmatmul.mubr.bf16.gmra.mrb[0].mxu0 %v3570
    %v4490 = vpop.f32.mrb[0].mxu0
    %v4491 = vadd.f32 0.0, %v4490
    %v4492 = vpop.f32.mrb[0].mxu0
    %v4493 = vpop.f32.mrb[0].mxu0
    %v4494 = vadd.f32 0.0, %v4493
    %v4495 = vpop.f32.mrb[0].mxu0
    %4496 = vdwg.mxu0
    %v4513 = vunpack.c.l.b16 %v4320
    %v4514 = vunpack.c.l.b16 %v4321
    %v4515 = vunpack.c.l.b16 %v4322
    %v4516 = vunpack.c.l.b16 %v4323
    %v4517 = vunpack.c.l.b16 %v4324
    %v4518 = vunpack.c.l.b16 %v4325
    %v4519 = vunpack.c.l.b16 %v4326
    %v4520 = vunpack.c.l.b16 %v4327
    %v4521 = vunpack.c.l.b16 %v4328
    %v4522 = vunpack.c.l.b16 %v4329
    %v4523 = vunpack.c.l.b16 %v4330
    %v4524 = vunpack.c.l.b16 %v4331
    %v4525 = vunpack.c.l.b16 %v4332
    %v4526 = vunpack.c.l.b16 %v4333
    %v4527 = vunpack.c.l.b16 %v4334
    %v4528 = vunpack.c.l.b16 %v4335
    %v4529 = vpack.c.b16 %v4514, %v4513
    %v4530 = vpack.c.b16 %v4516, %v4515
    %v4531 = vpack.c.b16 %v4518, %v4517
    %v4532 = vpack.c.b16 %v4520, %v4519
    %v4533 = vpack.c.b16 %v4522, %v4521
    %v4534 = vpack.c.b16 %v4524, %v4523
    %v4535 = vpack.c.b16 %v4526, %v4525
    %v4536 = vpack.c.b16 %v4528, %v4527
    %4545 = vmatprep.subr.bf16.mxu0 0
    %4546 = vmatpush1.bf16.msra.mxu0 %v4529
    %4547 = vmatprep.subr.bf16.mxu0 0
    %4548 = vmatpush1.bf16.msra.mxu0 %v4530
    %4549 = vmatprep.subr.bf16.mxu0 0
    %4550 = vmatpush1.bf16.msra.mxu0 %v4531
    %4551 = vmatprep.subr.bf16.mxu0 0
    %4552 = vmatpush1.bf16.msra.mxu0 %v4532
    %4553 = vmatprep.subr.bf16.mxu0 0
    %4554 = vmatpush1.bf16.msra.mxu0 %v4533
    %4555 = vmatprep.subr.bf16.mxu0 0
    %4556 = vmatpush1.bf16.msra.mxu0 %v4534
    %4557 = vmatprep.subr.bf16.mxu0 0
    %4558 = vmatpush1.bf16.msra.mxu0 %v4535
    %4559 = vmatprep.subr.bf16.mxu0 0
    %4560 = vmatpush1.bf16.msra.mxu0 %v4536
    %4561 = vmatprep.subr.bf16.mxu0 0
    %4562 = vmatpush1.bf16.msra.mxu0 0
    %4563 = vmatprep.subr.bf16.mxu0 0
    %4564 = vmatpush1.bf16.msra.mxu0 0
    %4565 = vmatprep.subr.bf16.mxu0 0
    %4566 = vmatpush1.bf16.msra.mxu0 0
    %4567 = vmatprep.subr.bf16.mxu0 0
    %4568 = vmatpush1.bf16.msra.mxu0 0
    %4569 = vmatprep.subr.bf16.mxu0 0
    %4570 = vmatpush1.bf16.msra.mxu0 0
    %4571 = vmatprep.subr.bf16.mxu0 0
    %4572 = vmatpush1.bf16.msra.mxu0 0
    %4573 = vmatprep.subr.bf16.mxu0 0
    %4574 = vmatpush1.bf16.msra.mxu0 0
    %4575 = vmatprep.subr.bf16.mxu0 0
    %4576 = vmatpush1.bf16.msra.mxu0 0
    %4577 = vmatprep.mubr.bf16.mxu0 0
    %4578 = vmatmul.mubr.bf16.gmra.mrb[0].mxu0 %v3494
    %v4579 = vpop.f32.mrb[0].mxu0
    %v4580 = vadd.f32 %v4435, %v4579
    %v4581 = vpop.f32.mrb[0].mxu0
    %v4582 = vpop.f32.mrb[0].mxu0
    %v4583 = vadd.f32 %v4438, %v4582
    %v4584 = vpop.f32.mrb[0].mxu0
    %4585 = vmatprep.mubr.bf16.mxu0 0
    %4586 = vmatmul.mubr.bf16.gmra.mrb[0].mxu0 %v3495
    %v4587 = vpop.f32.mrb[0].mxu0
    %v4588 = vadd.f32 %v4443, %v4587
    %v4589 = vpop.f32.mrb[0].mxu0
    %v4590 = vpop.f32.mrb[0].mxu0
    %v4591 = vadd.f32 %v4446, %v4590
    %v4592 = vpop.f32.mrb[0].mxu0
    %4593 = vmatprep.mubr.bf16.mxu0 0
    %4594 = vmatmul.mubr.bf16.gmra.mrb[0].mxu0 %v3496
    %v4595 = vpop.f32.mrb[0].mxu0
    %v4596 = vadd.f32 %v4451, %v4595
    %v4597 = vpop.f32.mrb[0].mxu0
    %v4598 = vpop.f32.mrb[0].mxu0
    %v4599 = vadd.f32 %v4454, %v4598
    %v4600 = vpop.f32.mrb[0].mxu0
    %4601 = vmatprep.mubr.bf16.mxu0 0
    %4602 = vmatmul.mubr.bf16.gmra.mrb[0].mxu0 %v3497
    %v4603 = vpop.f32.mrb[0].mxu0
    %v4604 = vadd.f32 %v4459, %v4603
    %v4605 = vpop.f32.mrb[0].mxu0
    %v4606 = vpop.f32.mrb[0].mxu0
    %v4607 = vadd.f32 %v4462, %v4606
    %v4608 = vpop.f32.mrb[0].mxu0
    %4609 = vmatprep.mubr.bf16.mxu0 0
    %4610 = vmatmul.mubr.bf16.gmra.mrb[0].mxu0 %v3498
    %v4611 = vpop.f32.mrb[0].mxu0
    %v4612 = vadd.f32 %v4467, %v4611
    %v4613 = vpop.f32.mrb[0].mxu0
    %v4614 = vpop.f32.mrb[0].mxu0
    %v4615 = vadd.f32 %v4470, %v4614
    %v4616 = vpop.f32.mrb[0].mxu0
    %4617 = vmatprep.mubr.bf16.mxu0 0
    %4618 = vmatmul.mubr.bf16.gmra.mrb[0].mxu0 %v3499
    %v4619 = vpop.f32.mrb[0].mxu0
    %v4620 = vadd.f32 %v4475, %v4619
    %v4621 = vpop.f32.mrb[0].mxu0
    %v4622 = vpop.f32.mrb[0].mxu0
    %v4623 = vadd.f32 %v4478, %v4622
    %v4624 = vpop.f32.mrb[0].mxu0
    %4625 = vmatprep.mubr.bf16.mxu0 0
    %4626 = vmatmul.mubr.bf16.gmra.mrb[0].mxu0 %v3500
    %v4627 = vpop.f32.mrb[0].mxu0
    %v4628 = vadd.f32 %v4483, %v4627
    %v4629 = vpop.f32.mrb[0].mxu0
    %v4630 = vpop.f32.mrb[0].mxu0
    %v4631 = vadd.f32 %v4486, %v4630
    %v4632 = vpop.f32.mrb[0].mxu0
    %4633 = vmatprep.mubr.bf16.mxu0 0
    %4634 = vmatmul.mubr.bf16.gmra.mrb[0].mxu0 %v3501
    %v4635 = vpop.f32.mrb[0].mxu0
    %v4636 = vadd.f32 %v4491, %v4635
    %v4637 = vpop.f32.mrb[0].mxu0
    %v4638 = vpop.f32.mrb[0].mxu0
    %v4639 = vadd.f32 %v4494, %v4638
    %v4640 = vpop.f32.mrb[0].mxu0
    %4641 = vdwg.mxu0
    %v4642 = vld [vmem:[#allocation8 + $0x180] sm:$0xf]
    %v4643 = vld [vmem:[#allocation8 + $0x184] sm:$0xf]
    %v4644 = vld [vmem:[#allocation8 + $0x188] sm:$0xf]
    %v4645 = vld [vmem:[#allocation8 + $0x18c] sm:$0xf]
    %v4646 = vld [vmem:[#allocation8 + $0x190] sm:$0xf]
    %v4647 = vld [vmem:[#allocation8 + $0x194] sm:$0xf]
    %v4648 = vld [vmem:[#allocation8 + $0x198] sm:$0xf]
    %v4649 = vld [vmem:[#allocation8 + $0x19c] sm:$0xf]
    %v4650 = vld [vmem:[#allocation8 + $0x1a0] sm:$0xf]
    %v4651 = vld [vmem:[#allocation8 + $0x1a4] sm:$0xf]
    %v4652 = vld [vmem:[#allocation8 + $0x1a8] sm:$0xf]
    %v4653 = vld [vmem:[#allocation8 + $0x1ac] sm:$0xf]
    %v4654 = vld [vmem:[#allocation8 + $0x1b0] sm:$0xf]
    %v4655 = vld [vmem:[#allocation8 + $0x1b4] sm:$0xf]
    %v4656 = vld [vmem:[#allocation8 + $0x1b8] sm:$0xf]
    %v4657 = vld [vmem:[#allocation8 + $0x1bc] sm:$0xf]
    %v4674 = vunpack.c.l.b16 %v4642
    %v4675 = vunpack.c.l.b16 %v4643
    %v4676 = vunpack.c.l.b16 %v4644
    %v4677 = vunpack.c.l.b16 %v4645
    %v4678 = vunpack.c.l.b16 %v4646
    %v4679 = vunpack.c.l.b16 %v4647
    %v4680 = vunpack.c.l.b16 %v4648
    %v4681 = vunpack.c.l.b16 %v4649
    %v4682 = vunpack.c.l.b16 %v4650
    %v4683 = vunpack.c.l.b16 %v4651
    %v4684 = vunpack.c.l.b16 %v4652
    %v4685 = vunpack.c.l.b16 %v4653
    %v4686 = vunpack.c.l.b16 %v4654
    %v4687 = vunpack.c.l.b16 %v4655
    %v4688 = vunpack.c.l.b16 %v4656
    %v4689 = vunpack.c.l.b16 %v4657
    %v4690 = vpack.c.b16 %v4675, %v4674
    %v4691 = vpack.c.b16 %v4677, %v4676
    %v4692 = vpack.c.b16 %v4679, %v4678
    %v4693 = vpack.c.b16 %v4681, %v4680
    %v4694 = vpack.c.b16 %v4683, %v4682
    %v4695 = vpack.c.b16 %v4685, %v4684
    %v4696 = vpack.c.b16 %v4687, %v4686
    %v4697 = vpack.c.b16 %v4689, %v4688
    %4706 = vmatprep.subr.bf16.mxu0 0
    %4707 = vmatpush1.bf16.msra.mxu0 %v4690
    %4708 = vmatprep.subr.bf16.mxu0 0
    %4709 = vmatpush1.bf16.msra.mxu0 %v4691
    %4710 = vmatprep.subr.bf16.mxu0 0
    %4711 = vmatpush1.bf16.msra.mxu0 %v4692
    %4712 = vmatprep.subr.bf16.mxu0 0
    %4713 = vmatpush1.bf16.msra.mxu0 %v4693
    %4714 = vmatprep.subr.bf16.mxu0 0
    %4715 = vmatpush1.bf16.msra.mxu0 %v4694
    %4716 = vmatprep.subr.bf16.mxu0 0
    %4717 = vmatpush1.bf16.msra.mxu0 %v4695
    %4718 = vmatprep.subr.bf16.mxu0 0
    %4719 = vmatpush1.bf16.msra.mxu0 %v4696
    %4720 = vmatprep.subr.bf16.mxu0 0
    %4721 = vmatpush1.bf16.msra.mxu0 %v4697
    %4722 = vmatprep.subr.bf16.mxu0 0
    %4723 = vmatpush1.bf16.msra.mxu0 0
    %4724 = vmatprep.subr.bf16.mxu0 0
    %4725 = vmatpush1.bf16.msra.mxu0 0
    %4726 = vmatprep.subr.bf16.mxu0 0
    %4727 = vmatpush1.bf16.msra.mxu0 0
    %4728 = vmatprep.subr.bf16.mxu0 0
    %4729 = vmatpush1.bf16.msra.mxu0 0
    %4730 = vmatprep.subr.bf16.mxu0 0
    %4731 = vmatpush1.bf16.msra.mxu0 0
    %4732 = vmatprep.subr.bf16.mxu0 0
    %4733 = vmatpush1.bf16.msra.mxu0 0
    %4734 = vmatprep.subr.bf16.mxu0 0
    %4735 = vmatpush1.bf16.msra.mxu0 0
    %4736 = vmatprep.subr.bf16.mxu0 0
    %4737 = vmatpush1.bf16.msra.mxu0 0
    %4738 = vmatprep.mubr.bf16.mxu0 0
    %4739 = vmatmul.mubr.bf16.gmra.mrb[0].mxu0 %v3591
    %v4740 = vpop.f32.mrb[0].mxu0
    %v4741 = vadd.f32 0.0, %v4740
    %v4742 = vpop.f32.mrb[0].mxu0
    %v4743 = vpop.f32.mrb[0].mxu0
    %v4744 = vadd.f32 0.0, %v4743
    %v4745 = vpop.f32.mrb[0].mxu0
    %4746 = vmatprep.mubr.bf16.mxu0 0
    %4747 = vmatmul.mubr.bf16.gmra.mrb[0].mxu0 %v3592
    %v4748 = vpop.f32.mrb[0].mxu0
    %v4749 = vadd.f32 0.0, %v4748
    %v4750 = vpop.f32.mrb[0].mxu0
    %v4751 = vpop.f32.mrb[0].mxu0
    %v4752 = vadd.f32 0.0, %v4751
    %v4753 = vpop.f32.mrb[0].mxu0
    %4754 = vmatprep.mubr.bf16.mxu0 0
    %4755 = vmatmul.mubr.bf16.gmra.mrb[0].mxu0 %v3593
    %v4756 = vpop.f32.mrb[0].mxu0
    %v4757 = vadd.f32 0.0, %v4756
    %v4758 = vpop.f32.mrb[0].mxu0
    %v4759 = vpop.f32.mrb[0].mxu0
    %v4760 = vadd.f32 0.0, %v4759
    %v4761 = vpop.f32.mrb[0].mxu0
    %4762 = vmatprep.mubr.bf16.mxu0 0
    %4763 = vmatmul.mubr.bf16.gmra.mrb[0].mxu0 %v3594
    %v4764 = vpop.f32.mrb[0].mxu0
    %v4765 = vadd.f32 0.0, %v4764
    %v4766 = vpop.f32.mrb[0].mxu0
    %v4767 = vpop.f32.mrb[0].mxu0
    %v4768 = vadd.f32 0.0, %v4767
    %v4769 = vpop.f32.mrb[0].mxu0
    %4770 = vmatprep.mubr.bf16.mxu0 0
    %4771 = vmatmul.mubr.bf16.gmra.mrb[0].mxu0 %v3595
    %v4772 = vpop.f32.mrb[0].mxu0
    %v4773 = vadd.f32 0.0, %v4772
    %v4774 = vpop.f32.mrb[0].mxu0
    %v4775 = vpop.f32.mrb[0].mxu0
    %v4776 = vadd.f32 0.0, %v4775
    %v4777 = vpop.f32.mrb[0].mxu0
    %4778 = vmatprep.mubr.bf16.mxu0 0
    %4779 = vmatmul.mubr.bf16.gmra.mrb[0].mxu0 %v3596
    %v4780 = vpop.f32.mrb[0].mxu0
    %v4781 = vadd.f32 0.0, %v4780
    %v4782 = vpop.f32.mrb[0].mxu0
    %v4783 = vpop.f32.mrb[0].mxu0
    %v4784 = vadd.f32 0.0, %v4783
    %v4785 = vpop.f32.mrb[0].mxu0
    %4786 = vmatprep.mubr.bf16.mxu0 0
    %4787 = vmatmul.mubr.bf16.gmra.mrb[0].mxu0 %v3597
    %v4788 = vpop.f32.mrb[0].mxu0
    %v4789 = vadd.f32 0.0, %v4788
    %v4790 = vpop.f32.mrb[0].mxu0
    %v4791 = vpop.f32.mrb[0].mxu0
    %v4792 = vadd.f32 0.0, %v4791
    %v4793 = vpop.f32.mrb[0].mxu0
    %4794 = vmatprep.mubr.bf16.mxu0 0
    %4795 = vmatmul.mubr.bf16.gmra.mrb[0].mxu0 %v3598
    %v4796 = vpop.f32.mrb[0].mxu0
    %v4797 = vadd.f32 0.0, %v4796
    %v4798 = vpop.f32.mrb[0].mxu0
    %v4799 = vpop.f32.mrb[0].mxu0
    %v4800 = vadd.f32 0.0, %v4799
    %v4801 = vpop.f32.mrb[0].mxu0
    %4802 = vdwg.mxu0
    %v4803 = vadd.f32 %v4580, %v4741
    %v4804 = vadd.f32 %v4583, %v4744
    %v4805 = vadd.f32 %v4588, %v4749
    %v4806 = vadd.f32 %v4591, %v4752
    %v4807 = vadd.f32 %v4596, %v4757
    %v4808 = vadd.f32 %v4599, %v4760
    %v4809 = vadd.f32 %v4604, %v4765
    %v4810 = vadd.f32 %v4607, %v4768
    %v4811 = vadd.f32 %v4612, %v4773
    %v4812 = vadd.f32 %v4615, %v4776
    %v4813 = vadd.f32 %v4620, %v4781
    %v4814 = vadd.f32 %v4623, %v4784
    %v4815 = vadd.f32 %v4628, %v4789
    %v4816 = vadd.f32 %v4631, %v4792
    %v4817 = vadd.f32 %v4636, %v4797
    %v4818 = vadd.f32 %v4639, %v4800
    %v4819 = vld [vmem:[#allocation8 + $0x1c0] sm:$0xf]
    %v4820 = vld [vmem:[#allocation8 + $0x1c4] sm:$0xf]
    %v4821 = vld [vmem:[#allocation8 + $0x1c8] sm:$0xf]
    %v4822 = vld [vmem:[#allocation8 + $0x1cc] sm:$0xf]
    %v4823 = vld [vmem:[#allocation8 + $0x1d0] sm:$0xf]
    %v4824 = vld [vmem:[#allocation8 + $0x1d4] sm:$0xf]
    %v4825 = vld [vmem:[#allocation8 + $0x1d8] sm:$0xf]
    %v4826 = vld [vmem:[#allocation8 + $0x1dc] sm:$0xf]
    %v4827 = vld [vmem:[#allocation8 + $0x1e0] sm:$0xf]
    %v4828 = vld [vmem:[#allocation8 + $0x1e4] sm:$0xf]
    %v4829 = vld [vmem:[#allocation8 + $0x1e8] sm:$0xf]
    %v4830 = vld [vmem:[#allocation8 + $0x1ec] sm:$0xf]
    %v4831 = vld [vmem:[#allocation8 + $0x1f0] sm:$0xf]
    %v4832 = vld [vmem:[#allocation8 + $0x1f4] sm:$0xf]
    %v4833 = vld [vmem:[#allocation8 + $0x1f8] sm:$0xf]
    %v4834 = vld [vmem:[#allocation8 + $0x1fc] sm:$0xf]
    %v4851 = vunpack.c.l.b16 %v4819
    %v4852 = vunpack.c.l.b16 %v4820
    %v4853 = vunpack.c.l.b16 %v4821
    %v4854 = vunpack.c.l.b16 %v4822
    %v4855 = vunpack.c.l.b16 %v4823
    %v4856 = vunpack.c.l.b16 %v4824
    %v4857 = vunpack.c.l.b16 %v4825
    %v4858 = vunpack.c.l.b16 %v4826
    %v4859 = vunpack.c.l.b16 %v4827
    %v4860 = vunpack.c.l.b16 %v4828
    %v4861 = vunpack.c.l.b16 %v4829
    %v4862 = vunpack.c.l.b16 %v4830
    %v4863 = vunpack.c.l.b16 %v4831
    %v4864 = vunpack.c.l.b16 %v4832
    %v4865 = vunpack.c.l.b16 %v4833
    %v4866 = vunpack.c.l.b16 %v4834
    %v4867 = vpack.c.b16 %v4852, %v4851
    %v4868 = vpack.c.b16 %v4854, %v4853
    %v4869 = vpack.c.b16 %v4856, %v4855
    %v4870 = vpack.c.b16 %v4858, %v4857
    %v4871 = vpack.c.b16 %v4860, %v4859
    %v4872 = vpack.c.b16 %v4862, %v4861
    %v4873 = vpack.c.b16 %v4864, %v4863
    %v4874 = vpack.c.b16 %v4866, %v4865
    %4883 = vmatprep.subr.bf16.mxu0 0
    %4884 = vmatpush1.bf16.msra.mxu0 %v4867
    %4885 = vmatprep.subr.bf16.mxu0 0
    %4886 = vmatpush1.bf16.msra.mxu0 %v4868
    %4887 = vmatprep.subr.bf16.mxu0 0
    %4888 = vmatpush1.bf16.msra.mxu0 %v4869
    %4889 = vmatprep.subr.bf16.mxu0 0
    %4890 = vmatpush1.bf16.msra.mxu0 %v4870
    %4891 = vmatprep.subr.bf16.mxu0 0
    %4892 = vmatpush1.bf16.msra.mxu0 %v4871
    %4893 = vmatprep.subr.bf16.mxu0 0
    %4894 = vmatpush1.bf16.msra.mxu0 %v4872
    %4895 = vmatprep.subr.bf16.mxu0 0
    %4896 = vmatpush1.bf16.msra.mxu0 %v4873
    %4897 = vmatprep.subr.bf16.mxu0 0
    %4898 = vmatpush1.bf16.msra.mxu0 %v4874
    %4899 = vmatprep.subr.bf16.mxu0 0
    %4900 = vmatpush1.bf16.msra.mxu0 0
    %4901 = vmatprep.subr.bf16.mxu0 0
    %4902 = vmatpush1.bf16.msra.mxu0 0
    %4903 = vmatprep.subr.bf16.mxu0 0
    %4904 = vmatpush1.bf16.msra.mxu0 0
    %4905 = vmatprep.subr.bf16.mxu0 0
    %4906 = vmatpush1.bf16.msra.mxu0 0
    %4907 = vmatprep.subr.bf16.mxu0 0
    %4908 = vmatpush1.bf16.msra.mxu0 0
    %4909 = vmatprep.subr.bf16.mxu0 0
    %4910 = vmatpush1.bf16.msra.mxu0 0
    %4911 = vmatprep.subr.bf16.mxu0 0
    %4912 = vmatpush1.bf16.msra.mxu0 0
    %4913 = vmatprep.subr.bf16.mxu0 0
    %4914 = vmatpush1.bf16.msra.mxu0 0
    %4915 = vmatprep.mubr.bf16.mxu0 0
    %4916 = vmatmul.mubr.bf16.gmra.mrb[0].mxu0 %v3607
    %v4917 = vpop.f32.mrb[0].mxu0
    %v4918 = vadd.f32 0.0, %v4917
    %v4919 = vpop.f32.mrb[0].mxu0
    %v4920 = vpop.f32.mrb[0].mxu0
    %v4921 = vadd.f32 0.0, %v4920
    %v4922 = vpop.f32.mrb[0].mxu0
    %4923 = vmatprep.mubr.bf16.mxu0 0
    %4924 = vmatmul.mubr.bf16.gmra.mrb[0].mxu0 %v3608
    %v4925 = vpop.f32.mrb[0].mxu0
    %v4926 = vadd.f32 0.0, %v4925
    %v4927 = vpop.f32.mrb[0].mxu0
    %v4928 = vpop.f32.mrb[0].mxu0
    %v4929 = vadd.f32 0.0, %v4928
    %v4930 = vpop.f32.mrb[0].mxu0
    %4931 = vmatprep.mubr.bf16.mxu0 0
    %4932 = vmatmul.mubr.bf16.gmra.mrb[0].mxu0 %v3609
    %v4933 = vpop.f32.mrb[0].mxu0
    %v4934 = vadd.f32 0.0, %v4933
    %v4935 = vpop.f32.mrb[0].mxu0
    %v4936 = vpop.f32.mrb[0].mxu0
    %v4937 = vadd.f32 0.0, %v4936
    %v4938 = vpop.f32.mrb[0].mxu0
    %4939 = vmatprep.mubr.bf16.mxu0 0
    %4940 = vmatmul.mubr.bf16.gmra.mrb[0].mxu0 %v3610
    %v4941 = vpop.f32.mrb[0].mxu0
    %v4942 = vadd.f32 0.0, %v4941
    %v4943 = vpop.f32.mrb[0].mxu0
    %v4944 = vpop.f32.mrb[0].mxu0
    %v4945 = vadd.f32 0.0, %v4944
    %v4946 = vpop.f32.mrb[0].mxu0
    %4947 = vmatprep.mubr.bf16.mxu0 0
    %4948 = vmatmul.mubr.bf16.gmra.mrb[0].mxu0 %v3611
    %v4949 = vpop.f32.mrb[0].mxu0
    %v4950 = vadd.f32 0.0, %v4949
    %v4951 = vpop.f32.mrb[0].mxu0
    %v4952 = vpop.f32.mrb[0].mxu0
    %v4953 = vadd.f32 0.0, %v4952
    %v4954 = vpop.f32.mrb[0].mxu0
    %4955 = vmatprep.mubr.bf16.mxu0 0
    %4956 = vmatmul.mubr.bf16.gmra.mrb[0].mxu0 %v3612
    %v4957 = vpop.f32.mrb[0].mxu0
    %v4958 = vadd.f32 0.0, %v4957
    %v4959 = vpop.f32.mrb[0].mxu0
    %v4960 = vpop.f32.mrb[0].mxu0
    %v4961 = vadd.f32 0.0, %v4960
    %v4962 = vpop.f32.mrb[0].mxu0
    %4963 = vmatprep.mubr.bf16.mxu0 0
    %4964 = vmatmul.mubr.bf16.gmra.mrb[0].mxu0 %v3613
    %v4965 = vpop.f32.mrb[0].mxu0
    %v4966 = vadd.f32 0.0, %v4965
    %v4967 = vpop.f32.mrb[0].mxu0
    %v4968 = vpop.f32.mrb[0].mxu0
    %v4969 = vadd.f32 0.0, %v4968
    %v4970 = vpop.f32.mrb[0].mxu0
    %4971 = vmatprep.mubr.bf16.mxu0 0
    %4972 = vmatmul.mubr.bf16.gmra.mrb[0].mxu0 %v3614
    %v4973 = vpop.f32.mrb[0].mxu0
    %v4974 = vadd.f32 0.0, %v4973
    %v4975 = vpop.f32.mrb[0].mxu0
    %v4976 = vpop.f32.mrb[0].mxu0
    %v4977 = vadd.f32 0.0, %v4976
    %v4978 = vpop.f32.mrb[0].mxu0
    %4979 = vdwg.mxu0
    %v4980 = vadd.f32 %v4803, %v4918
    %v4981 = vadd.f32 %v4804, %v4921
    %v4982 = vadd.f32 %v4805, %v4926
    %v4983 = vadd.f32 %v4806, %v4929
    %v4984 = vadd.f32 %v4807, %v4934
    %v4985 = vadd.f32 %v4808, %v4937
    %v4986 = vadd.f32 %v4809, %v4942
    %v4987 = vadd.f32 %v4810, %v4945
    %v4988 = vadd.f32 %v4811, %v4950
    %v4989 = vadd.f32 %v4812, %v4953
    %v4990 = vadd.f32 %v4813, %v4958
    %v4991 = vadd.f32 %v4814, %v4961
    %v4992 = vadd.f32 %v4815, %v4966
    %v4993 = vadd.f32 %v4816, %v4969
    %v4994 = vadd.f32 %v4817, %v4974
    %v4995 = vadd.f32 %v4818, %v4977
    %v4996 = vadd.f32 %v4980, %v4302
    %v4997 = vadd.f32 %v4981, %v4302
    %v4998 = vadd.f32 %v4982, %v4302
    %v4999 = vadd.f32 %v4983, %v4302
    %v5000 = vadd.f32 %v4984, %v4302
    %v5001 = vadd.f32 %v4985, %v4302
    %v5002 = vadd.f32 %v4986, %v4302
    %v5003 = vadd.f32 %v4987, %v4302
    %v5004 = vadd.f32 %v4988, %v4302
    %v5005 = vadd.f32 %v4989, %v4302
    %v5006 = vadd.f32 %v4990, %v4302
    %v5007 = vadd.f32 %v4991, %v4302
    %v5008 = vadd.f32 %v4992, %v4302
    %v5009 = vadd.f32 %v4993, %v4302
    %v5010 = vadd.f32 %v4994, %v4302
    %v5011 = vadd.f32 %v4995, %v4302
    %v5012 = vld [vmem:[#allocation8 + $0x200] sm:$0xf]
    %v5013 = vld [vmem:[#allocation8 + $0x204] sm:$0xf]
    %v5014 = vld [vmem:[#allocation8 + $0x208] sm:$0xf]
    %v5015 = vld [vmem:[#allocation8 + $0x20c] sm:$0xf]
    %v5016 = vld [vmem:[#allocation8 + $0x210] sm:$0xf]
    %v5017 = vld [vmem:[#allocation8 + $0x214] sm:$0xf]
    %v5018 = vld [vmem:[#allocation8 + $0x218] sm:$0xf]
    %v5019 = vld [vmem:[#allocation8 + $0x21c] sm:$0xf]
    %v5020 = vld [vmem:[#allocation8 + $0x220] sm:$0xf]
    %v5021 = vld [vmem:[#allocation8 + $0x224] sm:$0xf]
    %v5022 = vld [vmem:[#allocation8 + $0x228] sm:$0xf]
    %v5023 = vld [vmem:[#allocation8 + $0x22c] sm:$0xf]
    %v5024 = vld [vmem:[#allocation8 + $0x230] sm:$0xf]
    %v5025 = vld [vmem:[#allocation8 + $0x234] sm:$0xf]
    %v5026 = vld [vmem:[#allocation8 + $0x238] sm:$0xf]
    %v5027 = vld [vmem:[#allocation8 + $0x23c] sm:$0xf]
    %v5028 = vld [vmem:[#allocation8 + $0x240] sm:$0xf]
    %v5029 = vld [vmem:[#allocation8 + $0x244] sm:$0xf]
    %v5030 = vld [vmem:[#allocation8 + $0x248] sm:$0xf]
    %v5031 = vld [vmem:[#allocation8 + $0x24c] sm:$0xf]
    %v5032 = vld [vmem:[#allocation8 + $0x250] sm:$0xf]
    %v5033 = vld [vmem:[#allocation8 + $0x254] sm:$0xf]
    %v5034 = vld [vmem:[#allocation8 + $0x258] sm:$0xf]
    %v5035 = vld [vmem:[#allocation8 + $0x25c] sm:$0xf]
    %v5036 = vld [vmem:[#allocation8 + $0x260] sm:$0xf]
    %v5037 = vld [vmem:[#allocation8 + $0x264] sm:$0xf]
    %v5038 = vld [vmem:[#allocation8 + $0x268] sm:$0xf]
    %v5039 = vld [vmem:[#allocation8 + $0x26c] sm:$0xf]
    %v5040 = vld [vmem:[#allocation8 + $0x270] sm:$0xf]
    %v5041 = vld [vmem:[#allocation8 + $0x274] sm:$0xf]
    %v5042 = vld [vmem:[#allocation8 + $0x278] sm:$0xf]
    %v5043 = vld [vmem:[#allocation8 + $0x27c] sm:$0xf]
    %v5060 = vunpack.c.l.b16 %v5028
    %v5061 = vunpack.c.l.b16 %v5029
    %v5062 = vunpack.c.l.b16 %v5030
    %v5063 = vunpack.c.l.b16 %v5031
    %v5064 = vunpack.c.l.b16 %v5032
    %v5065 = vunpack.c.l.b16 %v5033
    %v5066 = vunpack.c.l.b16 %v5034
    %v5067 = vunpack.c.l.b16 %v5035
    %v5068 = vunpack.c.l.b16 %v5036
    %v5069 = vunpack.c.l.b16 %v5037
    %v5070 = vunpack.c.l.b16 %v5038
    %v5071 = vunpack.c.l.b16 %v5039
    %v5072 = vunpack.c.l.b16 %v5040
    %v5073 = vunpack.c.l.b16 %v5041
    %v5074 = vunpack.c.l.b16 %v5042
    %v5075 = vunpack.c.l.b16 %v5043
    %v5076 = vpack.c.b16 %v5061, %v5060
    %v5077 = vpack.c.b16 %v5063, %v5062
    %v5078 = vpack.c.b16 %v5065, %v5064
    %v5079 = vpack.c.b16 %v5067, %v5066
    %v5080 = vpack.c.b16 %v5069, %v5068
    %v5081 = vpack.c.b16 %v5071, %v5070
    %v5082 = vpack.c.b16 %v5073, %v5072
    %v5083 = vpack.c.b16 %v5075, %v5074
    %5092 = vmatprep.subr.bf16.mxu0 0
    %5093 = vmatpush1.bf16.msra.mxu0 %v5076
    %5094 = vmatprep.subr.bf16.mxu0 0
    %5095 = vmatpush1.bf16.msra.mxu0 %v5077
    %5096 = vmatprep.subr.bf16.mxu0 0
    %5097 = vmatpush1.bf16.msra.mxu0 %v5078
    %5098 = vmatprep.subr.bf16.mxu0 0
    %5099 = vmatpush1.bf16.msra.mxu0 %v5079
    %5100 = vmatprep.subr.bf16.mxu0 0
    %5101 = vmatpush1.bf16.msra.mxu0 %v5080
    %5102 = vmatprep.subr.bf16.mxu0 0
    %5103 = vmatpush1.bf16.msra.mxu0 %v5081
    %5104 = vmatprep.subr.bf16.mxu0 0
    %5105 = vmatpush1.bf16.msra.mxu0 %v5082
    %5106 = vmatprep.subr.bf16.mxu0 0
    %5107 = vmatpush1.bf16.msra.mxu0 %v5083
    %5108 = vmatprep.subr.bf16.mxu0 0
    %5109 = vmatpush1.bf16.msra.mxu0 0
    %5110 = vmatprep.subr.bf16.mxu0 0
    %5111 = vmatpush1.bf16.msra.mxu0 0
    %5112 = vmatprep.subr.bf16.mxu0 0
    %5113 = vmatpush1.bf16.msra.mxu0 0
    %5114 = vmatprep.subr.bf16.mxu0 0
    %5115 = vmatpush1.bf16.msra.mxu0 0
    %5116 = vmatprep.subr.bf16.mxu0 0
    %5117 = vmatpush1.bf16.msra.mxu0 0
    %5118 = vmatprep.subr.bf16.mxu0 0
    %5119 = vmatpush1.bf16.msra.mxu0 0
    %5120 = vmatprep.subr.bf16.mxu0 0
    %5121 = vmatpush1.bf16.msra.mxu0 0
    %5122 = vmatprep.subr.bf16.mxu0 0
    %5123 = vmatpush1.bf16.msra.mxu0 0
    %5124 = vmatprep.mubr.bf16.mxu0 0
    %5125 = vmatmul.mubr.bf16.gmra.mrb[0].mxu0 %v3591
    %v5126 = vpop.f32.mrb[0].mxu0
    %v5127 = vadd.f32 0.0, %v5126
    %v5128 = vpop.f32.mrb[0].mxu0
    %v5129 = vpop.f32.mrb[0].mxu0
    %v5130 = vadd.f32 0.0, %v5129
    %v5131 = vpop.f32.mrb[0].mxu0
    %5132 = vmatprep.mubr.bf16.mxu0 0
    %5133 = vmatmul.mubr.bf16.gmra.mrb[0].mxu0 %v3592
    %v5134 = vpop.f32.mrb[0].mxu0
    %v5135 = vadd.f32 0.0, %v5134
    %v5136 = vpop.f32.mrb[0].mxu0
    %v5137 = vpop.f32.mrb[0].mxu0
    %v5138 = vadd.f32 0.0, %v5137
    %v5139 = vpop.f32.mrb[0].mxu0
    %5140 = vmatprep.mubr.bf16.mxu0 0
    %5141 = vmatmul.mubr.bf16.gmra.mrb[0].mxu0 %v3593
    %v5142 = vpop.f32.mrb[0].mxu0
    %v5143 = vadd.f32 0.0, %v5142
    %v5144 = vpop.f32.mrb[0].mxu0
    %v5145 = vpop.f32.mrb[0].mxu0
    %v5146 = vadd.f32 0.0, %v5145
    %v5147 = vpop.f32.mrb[0].mxu0
    %5148 = vmatprep.mubr.bf16.mxu0 0
    %5149 = vmatmul.mubr.bf16.gmra.mrb[0].mxu0 %v3594
    %v5150 = vpop.f32.mrb[0].mxu0
    %v5151 = vadd.f32 0.0, %v5150
    %v5152 = vpop.f32.mrb[0].mxu0
    %v5153 = vpop.f32.mrb[0].mxu0
    %v5154 = vadd.f32 0.0, %v5153
    %v5155 = vpop.f32.mrb[0].mxu0
    %5156 = vmatprep.mubr.bf16.mxu0 0
    %5157 = vmatmul.mubr.bf16.gmra.mrb[0].mxu0 %v3595
    %v5158 = vpop.f32.mrb[0].mxu0
    %v5159 = vadd.f32 0.0, %v5158
    %v5160 = vpop.f32.mrb[0].mxu0
    %v5161 = vpop.f32.mrb[0].mxu0
    %v5162 = vadd.f32 0.0, %v5161
    %v5163 = vpop.f32.mrb[0].mxu0
    %5164 = vmatprep.mubr.bf16.mxu0 0
    %5165 = vmatmul.mubr.bf16.gmra.mrb[0].mxu0 %v3596
    %v5166 = vpop.f32.mrb[0].mxu0
    %v5167 = vadd.f32 0.0, %v5166
    %v5168 = vpop.f32.mrb[0].mxu0
    %v5169 = vpop.f32.mrb[0].mxu0
    %v5170 = vadd.f32 0.0, %v5169
    %v5171 = vpop.f32.mrb[0].mxu0
    %5172 = vmatprep.mubr.bf16.mxu0 0
    %5173 = vmatmul.mubr.bf16.gmra.mrb[0].mxu0 %v3597
    %v5174 = vpop.f32.mrb[0].mxu0
    %v5175 = vadd.f32 0.0, %v5174
    %v5176 = vpop.f32.mrb[0].mxu0
    %v5177 = vpop.f32.mrb[0].mxu0
    %v5178 = vadd.f32 0.0, %v5177
    %v5179 = vpop.f32.mrb[0].mxu0
    %5180 = vmatprep.mubr.bf16.mxu0 0
    %5181 = vmatmul.mubr.bf16.gmra.mrb[0].mxu0 %v3598
    %v5182 = vpop.f32.mrb[0].mxu0
    %v5183 = vadd.f32 0.0, %v5182
    %v5184 = vpop.f32.mrb[0].mxu0
    %v5185 = vpop.f32.mrb[0].mxu0
    %v5186 = vadd.f32 0.0, %v5185
    %v5187 = vpop.f32.mrb[0].mxu0
    %5188 = vdwg.mxu0
    %v5205 = vunpack.c.l.b16 %v5012
    %v5206 = vunpack.c.l.b16 %v5013
    %v5207 = vunpack.c.l.b16 %v5014
    %v5208 = vunpack.c.l.b16 %v5015
    %v5209 = vunpack.c.l.b16 %v5016
    %v5210 = vunpack.c.l.b16 %v5017
    %v5211 = vunpack.c.l.b16 %v5018
    %v5212 = vunpack.c.l.b16 %v5019
    %v5213 = vunpack.c.l.b16 %v5020
    %v5214 = vunpack.c.l.b16 %v5021
    %v5215 = vunpack.c.l.b16 %v5022
    %v5216 = vunpack.c.l.b16 %v5023
    %v5217 = vunpack.c.l.b16 %v5024
    %v5218 = vunpack.c.l.b16 %v5025
    %v5219 = vunpack.c.l.b16 %v5026
    %v5220 = vunpack.c.l.b16 %v5027
    %v5221 = vpack.c.b16 %v5206, %v5205
    %v5222 = vpack.c.b16 %v5208, %v5207
    %v5223 = vpack.c.b16 %v5210, %v5209
    %v5224 = vpack.c.b16 %v5212, %v5211
    %v5225 = vpack.c.b16 %v5214, %v5213
    %v5226 = vpack.c.b16 %v5216, %v5215
    %v5227 = vpack.c.b16 %v5218, %v5217
    %v5228 = vpack.c.b16 %v5220, %v5219
    %5237 = vmatprep.subr.bf16.mxu0 0
    %5238 = vmatpush1.bf16.msra.mxu0 %v5221
    %5239 = vmatprep.subr.bf16.mxu0 0
    %5240 = vmatpush1.bf16.msra.mxu0 %v5222
    %5241 = vmatprep.subr.bf16.mxu0 0
    %5242 = vmatpush1.bf16.msra.mxu0 %v5223
    %5243 = vmatprep.subr.bf16.mxu0 0
    %5244 = vmatpush1.bf16.msra.mxu0 %v5224
    %5245 = vmatprep.subr.bf16.mxu0 0
    %5246 = vmatpush1.bf16.msra.mxu0 %v5225
    %5247 = vmatprep.subr.bf16.mxu0 0
    %5248 = vmatpush1.bf16.msra.mxu0 %v5226
    %5249 = vmatprep.subr.bf16.mxu0 0
    %5250 = vmatpush1.bf16.msra.mxu0 %v5227
    %5251 = vmatprep.subr.bf16.mxu0 0
    %5252 = vmatpush1.bf16.msra.mxu0 %v5228
    %5253 = vmatprep.subr.bf16.mxu0 0
    %5254 = vmatpush1.bf16.msra.mxu0 0
    %5255 = vmatprep.subr.bf16.mxu0 0
    %5256 = vmatpush1.bf16.msra.mxu0 0
    %5257 = vmatprep.subr.bf16.mxu0 0
    %5258 = vmatpush1.bf16.msra.mxu0 0
    %5259 = vmatprep.subr.bf16.mxu0 0
    %5260 = vmatpush1.bf16.msra.mxu0 0
    %5261 = vmatprep.subr.bf16.mxu0 0
    %5262 = vmatpush1.bf16.msra.mxu0 0
    %5263 = vmatprep.subr.bf16.mxu0 0
    %5264 = vmatpush1.bf16.msra.mxu0 0
    %5265 = vmatprep.subr.bf16.mxu0 0
    %5266 = vmatpush1.bf16.msra.mxu0 0
    %5267 = vmatprep.subr.bf16.mxu0 0
    %5268 = vmatpush1.bf16.msra.mxu0 0
    %5269 = vmatprep.mubr.bf16.mxu0 0
    %5270 = vmatmul.mubr.bf16.gmra.mrb[0].mxu0 %v3571
    %v5271 = vpop.f32.mrb[0].mxu0
    %v5272 = vadd.f32 %v5127, %v5271
    %v5273 = vpop.f32.mrb[0].mxu0
    %v5274 = vpop.f32.mrb[0].mxu0
    %v5275 = vadd.f32 %v5130, %v5274
    %v5276 = vpop.f32.mrb[0].mxu0
    %5277 = vmatprep.mubr.bf16.mxu0 0
    %5278 = vmatmul.mubr.bf16.gmra.mrb[0].mxu0 %v3572
    %v5279 = vpop.f32.mrb[0].mxu0
    %v5280 = vadd.f32 %v5135, %v5279
    %v5281 = vpop.f32.mrb[0].mxu0
    %v5282 = vpop.f32.mrb[0].mxu0
    %v5283 = vadd.f32 %v5138, %v5282
    %v5284 = vpop.f32.mrb[0].mxu0
    %5285 = vmatprep.mubr.bf16.mxu0 0
    %5286 = vmatmul.mubr.bf16.gmra.mrb[0].mxu0 %v3573
    %v5287 = vpop.f32.mrb[0].mxu0
    %v5288 = vadd.f32 %v5143, %v5287
    %v5289 = vpop.f32.mrb[0].mxu0
    %v5290 = vpop.f32.mrb[0].mxu0
    %v5291 = vadd.f32 %v5146, %v5290
    %v5292 = vpop.f32.mrb[0].mxu0
    %5293 = vmatprep.mubr.bf16.mxu0 0
    %5294 = vmatmul.mubr.bf16.gmra.mrb[0].mxu0 %v3574
    %v5295 = vpop.f32.mrb[0].mxu0
    %v5296 = vadd.f32 %v5151, %v5295
    %v5297 = vpop.f32.mrb[0].mxu0
    %v5298 = vpop.f32.mrb[0].mxu0
    %v5299 = vadd.f32 %v5154, %v5298
    %v5300 = vpop.f32.mrb[0].mxu0
    %5301 = vmatprep.mubr.bf16.mxu0 0
    %5302 = vmatmul.mubr.bf16.gmra.mrb[0].mxu0 %v3575
    %v5303 = vpop.f32.mrb[0].mxu0
    %v5304 = vadd.f32 %v5159, %v5303
    %v5305 = vpop.f32.mrb[0].mxu0
    %v5306 = vpop.f32.mrb[0].mxu0
    %v5307 = vadd.f32 %v5162, %v5306
    %v5308 = vpop.f32.mrb[0].mxu0
    %5309 = vmatprep.mubr.bf16.mxu0 0
    %5310 = vmatmul.mubr.bf16.gmra.mrb[0].mxu0 %v3576
    %v5311 = vpop.f32.mrb[0].mxu0
    %v5312 = vadd.f32 %v5167, %v5311
    %v5313 = vpop.f32.mrb[0].mxu0
    %v5314 = vpop.f32.mrb[0].mxu0
    %v5315 = vadd.f32 %v5170, %v5314
    %v5316 = vpop.f32.mrb[0].mxu0
    %5317 = vmatprep.mubr.bf16.mxu0 0
    %5318 = vmatmul.mubr.bf16.gmra.mrb[0].mxu0 %v3577
    %v5319 = vpop.f32.mrb[0].mxu0
    %v5320 = vadd.f32 %v5175, %v5319
    %v5321 = vpop.f32.mrb[0].mxu0
    %v5322 = vpop.f32.mrb[0].mxu0
    %v5323 = vadd.f32 %v5178, %v5322
    %v5324 = vpop.f32.mrb[0].mxu0
    %5325 = vmatprep.mubr.bf16.mxu0 0
    %5326 = vmatmul.mubr.bf16.gmra.mrb[0].mxu0 %v3578
    %v5327 = vpop.f32.mrb[0].mxu0
    %v5328 = vadd.f32 %v5183, %v5327
    %v5329 = vpop.f32.mrb[0].mxu0
    %v5330 = vpop.f32.mrb[0].mxu0
    %v5331 = vadd.f32 %v5186, %v5330
    %v5332 = vpop.f32.mrb[0].mxu0
    %5333 = vdwg.mxu0
    %v5334 = vld [vmem:[#allocation8 + $0x280] sm:$0xf]
    %v5335 = vld [vmem:[#allocation8 + $0x284] sm:$0xf]
    %v5336 = vld [vmem:[#allocation8 + $0x288] sm:$0xf]
    %v5337 = vld [vmem:[#allocation8 + $0x28c] sm:$0xf]
    %v5338 = vld [vmem:[#allocation8 + $0x290] sm:$0xf]
    %v5339 = vld [vmem:[#allocation8 + $0x294] sm:$0xf]
    %v5340 = vld [vmem:[#allocation8 + $0x298] sm:$0xf]
    %v5341 = vld [vmem:[#allocation8 + $0x29c] sm:$0xf]
    %v5342 = vld [vmem:[#allocation8 + $0x2a0] sm:$0xf]
    %v5343 = vld [vmem:[#allocation8 + $0x2a4] sm:$0xf]
    %v5344 = vld [vmem:[#allocation8 + $0x2a8] sm:$0xf]
    %v5345 = vld [vmem:[#allocation8 + $0x2ac] sm:$0xf]
    %v5346 = vld [vmem:[#allocation8 + $0x2b0] sm:$0xf]
    %v5347 = vld [vmem:[#allocation8 + $0x2b4] sm:$0xf]
    %v5348 = vld [vmem:[#allocation8 + $0x2b8] sm:$0xf]
    %v5349 = vld [vmem:[#allocation8 + $0x2bc] sm:$0xf]
    %v5366 = vunpack.c.l.b16 %v5334
    %v5367 = vunpack.c.l.b16 %v5335
    %v5368 = vunpack.c.l.b16 %v5336
    %v5369 = vunpack.c.l.b16 %v5337
    %v5370 = vunpack.c.l.b16 %v5338
    %v5371 = vunpack.c.l.b16 %v5339
    %v5372 = vunpack.c.l.b16 %v5340
    %v5373 = vunpack.c.l.b16 %v5341
    %v5374 = vunpack.c.l.b16 %v5342
    %v5375 = vunpack.c.l.b16 %v5343
    %v5376 = vunpack.c.l.b16 %v5344
    %v5377 = vunpack.c.l.b16 %v5345
    %v5378 = vunpack.c.l.b16 %v5346
    %v5379 = vunpack.c.l.b16 %v5347
    %v5380 = vunpack.c.l.b16 %v5348
    %v5381 = vunpack.c.l.b16 %v5349
    %v5382 = vpack.c.b16 %v5367, %v5366
    %v5383 = vpack.c.b16 %v5369, %v5368
    %v5384 = vpack.c.b16 %v5371, %v5370
    %v5385 = vpack.c.b16 %v5373, %v5372
    %v5386 = vpack.c.b16 %v5375, %v5374
    %v5387 = vpack.c.b16 %v5377, %v5376
    %v5388 = vpack.c.b16 %v5379, %v5378
    %v5389 = vpack.c.b16 %v5381, %v5380
    %5398 = vmatprep.subr.bf16.mxu0 0
    %5399 = vmatpush1.bf16.msra.mxu0 %v5382
    %5400 = vmatprep.subr.bf16.mxu0 0
    %5401 = vmatpush1.bf16.msra.mxu0 %v5383
    %5402 = vmatprep.subr.bf16.mxu0 0
    %5403 = vmatpush1.bf16.msra.mxu0 %v5384
    %5404 = vmatprep.subr.bf16.mxu0 0
    %5405 = vmatpush1.bf16.msra.mxu0 %v5385
    %5406 = vmatprep.subr.bf16.mxu0 0
    %5407 = vmatpush1.bf16.msra.mxu0 %v5386
    %5408 = vmatprep.subr.bf16.mxu0 0
    %5409 = vmatpush1.bf16.msra.mxu0 %v5387
    %5410 = vmatprep.subr.bf16.mxu0 0
    %5411 = vmatpush1.bf16.msra.mxu0 %v5388
    %5412 = vmatprep.subr.bf16.mxu0 0
    %5413 = vmatpush1.bf16.msra.mxu0 %v5389
    %5414 = vmatprep.subr.bf16.mxu0 0
    %5415 = vmatpush1.bf16.msra.mxu0 0
    %5416 = vmatprep.subr.bf16.mxu0 0
    %5417 = vmatpush1.bf16.msra.mxu0 0
    %5418 = vmatprep.subr.bf16.mxu0 0
    %5419 = vmatpush1.bf16.msra.mxu0 0
    %5420 = vmatprep.subr.bf16.mxu0 0
    %5421 = vmatpush1.bf16.msra.mxu0 0
    %5422 = vmatprep.subr.bf16.mxu0 0
    %5423 = vmatpush1.bf16.msra.mxu0 0
    %5424 = vmatprep.subr.bf16.mxu0 0
    %5425 = vmatpush1.bf16.msra.mxu0 0
    %5426 = vmatprep.subr.bf16.mxu0 0
    %5427 = vmatpush1.bf16.msra.mxu0 0
    %5428 = vmatprep.subr.bf16.mxu0 0
    %5429 = vmatpush1.bf16.msra.mxu0 0
    %5430 = vmatprep.mubr.bf16.mxu0 0
    %5431 = vmatmul.mubr.bf16.gmra.mrb[0].mxu0 %v3396
    %v5432 = vpop.f32.mrb[0].mxu0
    %v5433 = vadd.f32 0.0, %v5432
    %v5434 = vpop.f32.mrb[0].mxu0
    %v5435 = vpop.f32.mrb[0].mxu0
    %v5436 = vadd.f32 0.0, %v5435
    %v5437 = vpop.f32.mrb[0].mxu0
    %5438 = vmatprep.mubr.bf16.mxu0 0
    %5439 = vmatmul.mubr.bf16.gmra.mrb[0].mxu0 %v3397
    %v5440 = vpop.f32.mrb[0].mxu0
    %v5441 = vadd.f32 0.0, %v5440
    %v5442 = vpop.f32.mrb[0].mxu0
    %v5443 = vpop.f32.mrb[0].mxu0
    %v5444 = vadd.f32 0.0, %v5443
    %v5445 = vpop.f32.mrb[0].mxu0
    %5446 = vmatprep.mubr.bf16.mxu0 0
    %5447 = vmatmul.mubr.bf16.gmra.mrb[0].mxu0 %v3398
    %v5448 = vpop.f32.mrb[0].mxu0
    %v5449 = vadd.f32 0.0, %v5448
    %v5450 = vpop.f32.mrb[0].mxu0
    %v5451 = vpop.f32.mrb[0].mxu0
    %v5452 = vadd.f32 0.0, %v5451
    %v5453 = vpop.f32.mrb[0].mxu0
    %5454 = vmatprep.mubr.bf16.mxu0 0
    %5455 = vmatmul.mubr.bf16.gmra.mrb[0].mxu0 %v3615
    %v5456 = vpop.f32.mrb[0].mxu0
    %v5457 = vadd.f32 0.0, %v5456
    %v5458 = vpop.f32.mrb[0].mxu0
    %v5459 = vpop.f32.mrb[0].mxu0
    %v5460 = vadd.f32 0.0, %v5459
    %v5461 = vpop.f32.mrb[0].mxu0
    %5462 = vmatprep.mubr.bf16.mxu0 0
    %5463 = vmatmul.mubr.bf16.gmra.mrb[0].mxu0 %v3400
    %v5464 = vpop.f32.mrb[0].mxu0
    %v5465 = vadd.f32 0.0, %v5464
    %v5466 = vpop.f32.mrb[0].mxu0
    %v5467 = vpop.f32.mrb[0].mxu0
    %v5468 = vadd.f32 0.0, %v5467
    %v5469 = vpop.f32.mrb[0].mxu0
    %5470 = vmatprep.mubr.bf16.mxu0 0
    %5471 = vmatmul.mubr.bf16.gmra.mrb[0].mxu0 %v3401
    %v5472 = vpop.f32.mrb[0].mxu0
    %v5473 = vadd.f32 0.0, %v5472
    %v5474 = vpop.f32.mrb[0].mxu0
    %v5475 = vpop.f32.mrb[0].mxu0
    %v5476 = vadd.f32 0.0, %v5475
    %v5477 = vpop.f32.mrb[0].mxu0
    %5478 = vmatprep.mubr.bf16.mxu0 0
    %5479 = vmatmul.mubr.bf16.gmra.mrb[0].mxu0 %v3402
    %v5480 = vpop.f32.mrb[0].mxu0
    %v5481 = vadd.f32 0.0, %v5480
    %v5482 = vpop.f32.mrb[0].mxu0
    %v5483 = vpop.f32.mrb[0].mxu0
    %v5484 = vadd.f32 0.0, %v5483
    %v5485 = vpop.f32.mrb[0].mxu0
    %5486 = vmatprep.mubr.bf16.mxu0 0
    %5487 = vmatmul.mubr.bf16.gmra.mrb[0].mxu0 %v3616
    %v5488 = vpop.f32.mrb[0].mxu0
    %v5489 = vadd.f32 0.0, %v5488
    %v5490 = vpop.f32.mrb[0].mxu0
    %v5491 = vpop.f32.mrb[0].mxu0
    %v5492 = vadd.f32 0.0, %v5491
    %v5493 = vpop.f32.mrb[0].mxu0
    %5494 = vdwg.mxu0
    %v5495 = vadd.f32 %v5272, %v5433
    %v5496 = vadd.f32 %v5275, %v5436
    %v5497 = vadd.f32 %v5280, %v5441
    %v5498 = vadd.f32 %v5283, %v5444
    %v5499 = vadd.f32 %v5288, %v5449
    %v5500 = vadd.f32 %v5291, %v5452
    %v5501 = vadd.f32 %v5296, %v5457
    %v5502 = vadd.f32 %v5299, %v5460
    %v5503 = vadd.f32 %v5304, %v5465
    %v5504 = vadd.f32 %v5307, %v5468
    %v5505 = vadd.f32 %v5312, %v5473
    %v5506 = vadd.f32 %v5315, %v5476
    %v5507 = vadd.f32 %v5320, %v5481
    %v5508 = vadd.f32 %v5323, %v5484
    %v5509 = vadd.f32 %v5328, %v5489
    %v5510 = vadd.f32 %v5331, %v5492
    %v5511 = vld [vmem:[#allocation8 + $0x2c0] sm:$0xf]
    %v5512 = vld [vmem:[#allocation8 + $0x2c4] sm:$0xf]
    %v5513 = vld [vmem:[#allocation8 + $0x2c8] sm:$0xf]
    %v5514 = vld [vmem:[#allocation8 + $0x2cc] sm:$0xf]
    %v5515 = vld [vmem:[#allocation8 + $0x2d0] sm:$0xf]
    %v5516 = vld [vmem:[#allocation8 + $0x2d4] sm:$0xf]
    %v5517 = vld [vmem:[#allocation8 + $0x2d8] sm:$0xf]
    %v5518 = vld [vmem:[#allocation8 + $0x2dc] sm:$0xf]
    %v5519 = vld [vmem:[#allocation8 + $0x2e0] sm:$0xf]
    %v5520 = vld [vmem:[#allocation8 + $0x2e4] sm:$0xf]
    %v5521 = vld [vmem:[#allocation8 + $0x2e8] sm:$0xf]
    %v5522 = vld [vmem:[#allocation8 + $0x2ec] sm:$0xf]
    %v5523 = vld [vmem:[#allocation8 + $0x2f0] sm:$0xf]
    %v5524 = vld [vmem:[#allocation8 + $0x2f4] sm:$0xf]
    %v5525 = vld [vmem:[#allocation8 + $0x2f8] sm:$0xf]
    %v5526 = vld [vmem:[#allocation8 + $0x2fc] sm:$0xf]
    %v5543 = vunpack.c.l.b16 %v5511
    %v5544 = vunpack.c.l.b16 %v5512
    %v5545 = vunpack.c.l.b16 %v5513
    %v5546 = vunpack.c.l.b16 %v5514
    %v5547 = vunpack.c.l.b16 %v5515
    %v5548 = vunpack.c.l.b16 %v5516
    %v5549 = vunpack.c.l.b16 %v5517
    %v5550 = vunpack.c.l.b16 %v5518
    %v5551 = vunpack.c.l.b16 %v5519
    %v5552 = vunpack.c.l.b16 %v5520
    %v5553 = vunpack.c.l.b16 %v5521
    %v5554 = vunpack.c.l.b16 %v5522
    %v5555 = vunpack.c.l.b16 %v5523
    %v5556 = vunpack.c.l.b16 %v5524
    %v5557 = vunpack.c.l.b16 %v5525
    %v5558 = vunpack.c.l.b16 %v5526
    %v5559 = vpack.c.b16 %v5544, %v5543
    %v5560 = vpack.c.b16 %v5546, %v5545
    %v5561 = vpack.c.b16 %v5548, %v5547
    %v5562 = vpack.c.b16 %v5550, %v5549
    %v5563 = vpack.c.b16 %v5552, %v5551
    %v5564 = vpack.c.b16 %v5554, %v5553
    %v5565 = vpack.c.b16 %v5556, %v5555
    %v5566 = vpack.c.b16 %v5558, %v5557
    %5575 = vmatprep.subr.bf16.mxu0 0
    %5576 = vmatpush1.bf16.msra.mxu0 %v5559
    %5577 = vmatprep.subr.bf16.mxu0 0
    %5578 = vmatpush1.bf16.msra.mxu0 %v5560
    %5579 = vmatprep.subr.bf16.mxu0 0
    %5580 = vmatpush1.bf16.msra.mxu0 %v5561
    %5581 = vmatprep.subr.bf16.mxu0 0
    %5582 = vmatpush1.bf16.msra.mxu0 %v5562
    %5583 = vmatprep.subr.bf16.mxu0 0
    %5584 = vmatpush1.bf16.msra.mxu0 %v5563
    %5585 = vmatprep.subr.bf16.mxu0 0
    %5586 = vmatpush1.bf16.msra.mxu0 %v5564
    %5587 = vmatprep.subr.bf16.mxu0 0
    %5588 = vmatpush1.bf16.msra.mxu0 %v5565
    %5589 = vmatprep.subr.bf16.mxu0 0
    %5590 = vmatpush1.bf16.msra.mxu0 %v5566
    %5591 = vmatprep.subr.bf16.mxu0 0
    %5592 = vmatpush1.bf16.msra.mxu0 0
    %5593 = vmatprep.subr.bf16.mxu0 0
    %5594 = vmatpush1.bf16.msra.mxu0 0
    %5595 = vmatprep.subr.bf16.mxu0 0
    %5596 = vmatpush1.bf16.msra.mxu0 0
    %5597 = vmatprep.subr.bf16.mxu0 0
    %5598 = vmatpush1.bf16.msra.mxu0 0
    %5599 = vmatprep.subr.bf16.mxu0 0
    %5600 = vmatpush1.bf16.msra.mxu0 0
    %5601 = vmatprep.subr.bf16.mxu0 0
    %5602 = vmatpush1.bf16.msra.mxu0 0
    %5603 = vmatprep.subr.bf16.mxu0 0
    %5604 = vmatpush1.bf16.msra.mxu0 0
    %5605 = vmatprep.subr.bf16.mxu0 0
    %5606 = vmatpush1.bf16.msra.mxu0 0
    %5607 = vmatprep.mubr.bf16.mxu0 0
    %5608 = vmatmul.mubr.bf16.gmra.mrb[0].mxu0 %v3495
    %v5609 = vpop.f32.mrb[0].mxu0
    %v5610 = vadd.f32 0.0, %v5609
    %v5611 = vpop.f32.mrb[0].mxu0
    %v5612 = vpop.f32.mrb[0].mxu0
    %v5613 = vadd.f32 0.0, %v5612
    %v5614 = vpop.f32.mrb[0].mxu0
    %5615 = vmatprep.mubr.bf16.mxu0 0
    %5616 = vmatmul.mubr.bf16.gmra.mrb[0].mxu0 %v3496
    %v5617 = vpop.f32.mrb[0].mxu0
    %v5618 = vadd.f32 0.0, %v5617
    %v5619 = vpop.f32.mrb[0].mxu0
    %v5620 = vpop.f32.mrb[0].mxu0
    %v5621 = vadd.f32 0.0, %v5620
    %v5622 = vpop.f32.mrb[0].mxu0
    %5623 = vmatprep.mubr.bf16.mxu0 0
    %5624 = vmatmul.mubr.bf16.gmra.mrb[0].mxu0 %v3497
    %v5625 = vpop.f32.mrb[0].mxu0
    %v5626 = vadd.f32 0.0, %v5625
    %v5627 = vpop.f32.mrb[0].mxu0
    %v5628 = vpop.f32.mrb[0].mxu0
    %v5629 = vadd.f32 0.0, %v5628
    %v5630 = vpop.f32.mrb[0].mxu0
    %5631 = vmatprep.mubr.bf16.mxu0 0
    %5632 = vmatmul.mubr.bf16.gmra.mrb[0].mxu0 %v3617
    %v5633 = vpop.f32.mrb[0].mxu0
    %v5634 = vadd.f32 0.0, %v5633
    %v5635 = vpop.f32.mrb[0].mxu0
    %v5636 = vpop.f32.mrb[0].mxu0
    %v5637 = vadd.f32 0.0, %v5636
    %v5638 = vpop.f32.mrb[0].mxu0
    %5639 = vmatprep.mubr.bf16.mxu0 0
    %5640 = vmatmul.mubr.bf16.gmra.mrb[0].mxu0 %v3499
    %v5641 = vpop.f32.mrb[0].mxu0
    %v5642 = vadd.f32 0.0, %v5641
    %v5643 = vpop.f32.mrb[0].mxu0
    %v5644 = vpop.f32.mrb[0].mxu0
    %v5645 = vadd.f32 0.0, %v5644
    %v5646 = vpop.f32.mrb[0].mxu0
    %5647 = vmatprep.mubr.bf16.mxu0 0
    %5648 = vmatmul.mubr.bf16.gmra.mrb[0].mxu0 %v3500
    %v5649 = vpop.f32.mrb[0].mxu0
    %v5650 = vadd.f32 0.0, %v5649
    %v5651 = vpop.f32.mrb[0].mxu0
    %v5652 = vpop.f32.mrb[0].mxu0
    %v5653 = vadd.f32 0.0, %v5652
    %v5654 = vpop.f32.mrb[0].mxu0
    %5655 = vmatprep.mubr.bf16.mxu0 0
    %5656 = vmatmul.mubr.bf16.gmra.mrb[0].mxu0 %v3501
    %v5657 = vpop.f32.mrb[0].mxu0
    %v5658 = vadd.f32 0.0, %v5657
    %v5659 = vpop.f32.mrb[0].mxu0
    %v5660 = vpop.f32.mrb[0].mxu0
    %v5661 = vadd.f32 0.0, %v5660
    %v5662 = vpop.f32.mrb[0].mxu0
    %5663 = vmatprep.mubr.bf16.mxu0 0
    %5664 = vmatmul.mubr.bf16.gmra.mrb[0].mxu0 %v3618
    %v5665 = vpop.f32.mrb[0].mxu0
    %v5666 = vadd.f32 0.0, %v5665
    %v5667 = vpop.f32.mrb[0].mxu0
    %v5668 = vpop.f32.mrb[0].mxu0
    %v5669 = vadd.f32 0.0, %v5668
    %v5670 = vpop.f32.mrb[0].mxu0
    %5671 = vdwg.mxu0
    %v5672 = vadd.f32 %v5495, %v5610
    %v5673 = vadd.f32 %v5496, %v5613
    %v5674 = vadd.f32 %v5497, %v5618
    %v5675 = vadd.f32 %v5498, %v5621
    %v5676 = vadd.f32 %v5499, %v5626
    %v5677 = vadd.f32 %v5500, %v5629
    %v5678 = vadd.f32 %v5501, %v5634
    %v5679 = vadd.f32 %v5502, %v5637
    %v5680 = vadd.f32 %v5503, %v5642
    %v5681 = vadd.f32 %v5504, %v5645
    %v5682 = vadd.f32 %v5505, %v5650
    %v5683 = vadd.f32 %v5506, %v5653
    %v5684 = vadd.f32 %v5507, %v5658
    %v5685 = vadd.f32 %v5508, %v5661
    %v5686 = vadd.f32 %v5509, %v5666
    %v5687 = vadd.f32 %v5510, %v5669
    %v5688 = vadd.f32 %v5672, %v4302
    %v5689 = vadd.f32 %v5673, %v4302
    %v5690 = vadd.f32 %v5674, %v4302
    %v5691 = vadd.f32 %v5675, %v4302
    %v5692 = vadd.f32 %v5676, %v4302
    %v5693 = vadd.f32 %v5677, %v4302
    %v5694 = vadd.f32 %v5678, %v4302
    %v5695 = vadd.f32 %v5679, %v4302
    %v5696 = vadd.f32 %v5680, %v4302
    %v5697 = vadd.f32 %v5681, %v4302
    %v5698 = vadd.f32 %v5682, %v4302
    %v5699 = vadd.f32 %v5683, %v4302
    %v5700 = vadd.f32 %v5684, %v4302
    %v5701 = vadd.f32 %v5685, %v4302
    %v5702 = vadd.f32 %v5686, %v4302
    %v5703 = vadd.f32 %v5687, %v4302
    %v5704 = vld [vmem:[#allocation8 + $0x300] sm:$0xf]
    %v5705 = vld [vmem:[#allocation8 + $0x304] sm:$0xf]
    %v5706 = vld [vmem:[#allocation8 + $0x308] sm:$0xf]
    %v5707 = vld [vmem:[#allocation8 + $0x30c] sm:$0xf]
    %v5708 = vld [vmem:[#allocation8 + $0x310] sm:$0xf]
    %v5709 = vld [vmem:[#allocation8 + $0x314] sm:$0xf]
    %v5710 = vld [vmem:[#allocation8 + $0x318] sm:$0xf]
    %v5711 = vld [vmem:[#allocation8 + $0x31c] sm:$0xf]
    %v5712 = vld [vmem:[#allocation8 + $0x320] sm:$0xf]
    %v5713 = vld [vmem:[#allocation8 + $0x324] sm:$0xf]
    %v5714 = vld [vmem:[#allocation8 + $0x328] sm:$0xf]
    %v5715 = vld [vmem:[#allocation8 + $0x32c] sm:$0xf]
    %v5716 = vld [vmem:[#allocation8 + $0x330] sm:$0xf]
    %v5717 = vld [vmem:[#allocation8 + $0x334] sm:$0xf]
    %v5718 = vld [vmem:[#allocation8 + $0x338] sm:$0xf]
    %v5719 = vld [vmem:[#allocation8 + $0x33c] sm:$0xf]
    %v5720 = vld [vmem:[#allocation8 + $0x340] sm:$0xf]
    %v5721 = vld [vmem:[#allocation8 + $0x344] sm:$0xf]
    %v5722 = vld [vmem:[#allocation8 + $0x348] sm:$0xf]
    %v5723 = vld [vmem:[#allocation8 + $0x34c] sm:$0xf]
    %v5724 = vld [vmem:[#allocation8 + $0x350] sm:$0xf]
    %v5725 = vld [vmem:[#allocation8 + $0x354] sm:$0xf]
    %v5726 = vld [vmem:[#allocation8 + $0x358] sm:$0xf]
    %v5727 = vld [vmem:[#allocation8 + $0x35c] sm:$0xf]
    %v5728 = vld [vmem:[#allocation8 + $0x360] sm:$0xf]
    %v5729 = vld [vmem:[#allocation8 + $0x364] sm:$0xf]
    %v5730 = vld [vmem:[#allocation8 + $0x368] sm:$0xf]
    %v5731 = vld [vmem:[#allocation8 + $0x36c] sm:$0xf]
    %v5732 = vld [vmem:[#allocation8 + $0x370] sm:$0xf]
    %v5733 = vld [vmem:[#allocation8 + $0x374] sm:$0xf]
    %v5734 = vld [vmem:[#allocation8 + $0x378] sm:$0xf]
    %v5735 = vld [vmem:[#allocation8 + $0x37c] sm:$0xf]
    %v5752 = vunpack.c.l.b16 %v5720
    %v5753 = vunpack.c.l.b16 %v5721
    %v5754 = vunpack.c.l.b16 %v5722
    %v5755 = vunpack.c.l.b16 %v5723
    %v5756 = vunpack.c.l.b16 %v5724
    %v5757 = vunpack.c.l.b16 %v5725
    %v5758 = vunpack.c.l.b16 %v5726
    %v5759 = vunpack.c.l.b16 %v5727
    %v5760 = vunpack.c.l.b16 %v5728
    %v5761 = vunpack.c.l.b16 %v5729
    %v5762 = vunpack.c.l.b16 %v5730
    %v5763 = vunpack.c.l.b16 %v5731
    %v5764 = vunpack.c.l.b16 %v5732
    %v5765 = vunpack.c.l.b16 %v5733
    %v5766 = vunpack.c.l.b16 %v5734
    %v5767 = vunpack.c.l.b16 %v5735
    %v5768 = vpack.c.b16 %v5753, %v5752
    %v5769 = vpack.c.b16 %v5755, %v5754
    %v5770 = vpack.c.b16 %v5757, %v5756
    %v5771 = vpack.c.b16 %v5759, %v5758
    %v5772 = vpack.c.b16 %v5761, %v5760
    %v5773 = vpack.c.b16 %v5763, %v5762
    %v5774 = vpack.c.b16 %v5765, %v5764
    %v5775 = vpack.c.b16 %v5767, %v5766
    %5784 = vmatprep.subr.bf16.mxu0 0
    %5785 = vmatpush1.bf16.msra.mxu0 %v5768
    %5786 = vmatprep.subr.bf16.mxu0 0
    %5787 = vmatpush1.bf16.msra.mxu0 %v5769
    %5788 = vmatprep.subr.bf16.mxu0 0
    %5789 = vmatpush1.bf16.msra.mxu0 %v5770
    %5790 = vmatprep.subr.bf16.mxu0 0
    %5791 = vmatpush1.bf16.msra.mxu0 %v5771
    %5792 = vmatprep.subr.bf16.mxu0 0
    %5793 = vmatpush1.bf16.msra.mxu0 %v5772
    %5794 = vmatprep.subr.bf16.mxu0 0
    %5795 = vmatpush1.bf16.msra.mxu0 %v5773
    %5796 = vmatprep.subr.bf16.mxu0 0
    %5797 = vmatpush1.bf16.msra.mxu0 %v5774
    %5798 = vmatprep.subr.bf16.mxu0 0
    %5799 = vmatpush1.bf16.msra.mxu0 %v5775
    %5800 = vmatprep.subr.bf16.mxu0 0
    %5801 = vmatpush1.bf16.msra.mxu0 0
    %5802 = vmatprep.subr.bf16.mxu0 0
    %5803 = vmatpush1.bf16.msra.mxu0 0
    %5804 = vmatprep.subr.bf16.mxu0 0
    %5805 = vmatpush1.bf16.msra.mxu0 0
    %5806 = vmatprep.subr.bf16.mxu0 0
    %5807 = vmatpush1.bf16.msra.mxu0 0
    %5808 = vmatprep.subr.bf16.mxu0 0
    %5809 = vmatpush1.bf16.msra.mxu0 0
    %5810 = vmatprep.subr.bf16.mxu0 0
    %5811 = vmatpush1.bf16.msra.mxu0 0
    %5812 = vmatprep.subr.bf16.mxu0 0
    %5813 = vmatpush1.bf16.msra.mxu0 0
    %5814 = vmatprep.subr.bf16.mxu0 0
    %5815 = vmatpush1.bf16.msra.mxu0 0
    %5816 = vmatprep.mubr.bf16.mxu0 0
    %5817 = vmatmul.mubr.bf16.gmra.mrb[0].mxu0 %v3607
    %v5818 = vpop.f32.mrb[0].mxu0
    %v5819 = vadd.f32 0.0, %v5818
    %v5820 = vpop.f32.mrb[0].mxu0
    %v5821 = vpop.f32.mrb[0].mxu0
    %v5822 = vadd.f32 0.0, %v5821
    %v5823 = vpop.f32.mrb[0].mxu0
    %5824 = vmatprep.mubr.bf16.mxu0 0
    %5825 = vmatmul.mubr.bf16.gmra.mrb[0].mxu0 %v3608
    %v5826 = vpop.f32.mrb[0].mxu0
    %v5827 = vadd.f32 0.0, %v5826
    %v5828 = vpop.f32.mrb[0].mxu0
    %v5829 = vpop.f32.mrb[0].mxu0
    %v5830 = vadd.f32 0.0, %v5829
    %v5831 = vpop.f32.mrb[0].mxu0
    %5832 = vmatprep.mubr.bf16.mxu0 0
    %5833 = vmatmul.mubr.bf16.gmra.mrb[0].mxu0 %v3609
    %v5834 = vpop.f32.mrb[0].mxu0
    %v5835 = vadd.f32 0.0, %v5834
    %v5836 = vpop.f32.mrb[0].mxu0
    %v5837 = vpop.f32.mrb[0].mxu0
    %v5838 = vadd.f32 0.0, %v5837
    %v5839 = vpop.f32.mrb[0].mxu0
    %5840 = vmatprep.mubr.bf16.mxu0 0
    %5841 = vmatmul.mubr.bf16.gmra.mrb[0].mxu0 %v3610
    %v5842 = vpop.f32.mrb[0].mxu0
    %v5843 = vadd.f32 0.0, %v5842
    %v5844 = vpop.f32.mrb[0].mxu0
    %v5845 = vpop.f32.mrb[0].mxu0
    %v5846 = vadd.f32 0.0, %v5845
    %v5847 = vpop.f32.mrb[0].mxu0
    %5848 = vmatprep.mubr.bf16.mxu0 0
    %5849 = vmatmul.mubr.bf16.gmra.mrb[0].mxu0 %v3611
    %v5850 = vpop.f32.mrb[0].mxu0
    %v5851 = vadd.f32 0.0, %v5850
    %v5852 = vpop.f32.mrb[0].mxu0
    %v5853 = vpop.f32.mrb[0].mxu0
    %v5854 = vadd.f32 0.0, %v5853
    %v5855 = vpop.f32.mrb[0].mxu0
    %5856 = vmatprep.mubr.bf16.mxu0 0
    %5857 = vmatmul.mubr.bf16.gmra.mrb[0].mxu0 %v3612
    %v5858 = vpop.f32.mrb[0].mxu0
    %v5859 = vadd.f32 0.0, %v5858
    %v5860 = vpop.f32.mrb[0].mxu0
    %v5861 = vpop.f32.mrb[0].mxu0
    %v5862 = vadd.f32 0.0, %v5861
    %v5863 = vpop.f32.mrb[0].mxu0
    %5864 = vmatprep.mubr.bf16.mxu0 0
    %5865 = vmatmul.mubr.bf16.gmra.mrb[0].mxu0 %v3613
    %v5866 = vpop.f32.mrb[0].mxu0
    %v5867 = vadd.f32 0.0, %v5866
    %v5868 = vpop.f32.mrb[0].mxu0
    %v5869 = vpop.f32.mrb[0].mxu0
    %v5870 = vadd.f32 0.0, %v5869
    %v5871 = vpop.f32.mrb[0].mxu0
    %5872 = vmatprep.mubr.bf16.mxu0 0
    %5873 = vmatmul.mubr.bf16.gmra.mrb[0].mxu0 %v3614
    %v5874 = vpop.f32.mrb[0].mxu0
    %v5875 = vadd.f32 0.0, %v5874
    %v5876 = vpop.f32.mrb[0].mxu0
    %v5877 = vpop.f32.mrb[0].mxu0
    %v5878 = vadd.f32 0.0, %v5877
    %v5879 = vpop.f32.mrb[0].mxu0
    %5880 = vdwg.mxu0
    %v5897 = vunpack.c.l.b16 %v5704
    %v5898 = vunpack.c.l.b16 %v5705
    %v5899 = vunpack.c.l.b16 %v5706
    %v5900 = vunpack.c.l.b16 %v5707
    %v5901 = vunpack.c.l.b16 %v5708
    %v5902 = vunpack.c.l.b16 %v5709
    %v5903 = vunpack.c.l.b16 %v5710
    %v5904 = vunpack.c.l.b16 %v5711
    %v5905 = vunpack.c.l.b16 %v5712
    %v5906 = vunpack.c.l.b16 %v5713
    %v5907 = vunpack.c.l.b16 %v5714
    %v5908 = vunpack.c.l.b16 %v5715
    %v5909 = vunpack.c.l.b16 %v5716
    %v5910 = vunpack.c.l.b16 %v5717
    %v5911 = vunpack.c.l.b16 %v5718
    %v5912 = vunpack.c.l.b16 %v5719
    %v5913 = vpack.c.b16 %v5898, %v5897
    %v5914 = vpack.c.b16 %v5900, %v5899
    %v5915 = vpack.c.b16 %v5902, %v5901
    %v5916 = vpack.c.b16 %v5904, %v5903
    %v5917 = vpack.c.b16 %v5906, %v5905
    %v5918 = vpack.c.b16 %v5908, %v5907
    %v5919 = vpack.c.b16 %v5910, %v5909
    %v5920 = vpack.c.b16 %v5912, %v5911
    %5929 = vmatprep.subr.bf16.mxu0 0
    %5930 = vmatpush1.bf16.msra.mxu0 %v5913
    %5931 = vmatprep.subr.bf16.mxu0 0
    %5932 = vmatpush1.bf16.msra.mxu0 %v5914
    %5933 = vmatprep.subr.bf16.mxu0 0
    %5934 = vmatpush1.bf16.msra.mxu0 %v5915
    %5935 = vmatprep.subr.bf16.mxu0 0
    %5936 = vmatpush1.bf16.msra.mxu0 %v5916
    %5937 = vmatprep.subr.bf16.mxu0 0
    %5938 = vmatpush1.bf16.msra.mxu0 %v5917
    %5939 = vmatprep.subr.bf16.mxu0 0
    %5940 = vmatpush1.bf16.msra.mxu0 %v5918
    %5941 = vmatprep.subr.bf16.mxu0 0
    %5942 = vmatpush1.bf16.msra.mxu0 %v5919
    %5943 = vmatprep.subr.bf16.mxu0 0
    %5944 = vmatpush1.bf16.msra.mxu0 %v5920
    %5945 = vmatprep.subr.bf16.mxu0 0
    %5946 = vmatpush1.bf16.msra.mxu0 0
    %5947 = vmatprep.subr.bf16.mxu0 0
    %5948 = vmatpush1.bf16.msra.mxu0 0
    %5949 = vmatprep.subr.bf16.mxu0 0
    %5950 = vmatpush1.bf16.msra.mxu0 0
    %5951 = vmatprep.subr.bf16.mxu0 0
    %5952 = vmatpush1.bf16.msra.mxu0 0
    %5953 = vmatprep.subr.bf16.mxu0 0
    %5954 = vmatpush1.bf16.msra.mxu0 0
    %5955 = vmatprep.subr.bf16.mxu0 0
    %5956 = vmatpush1.bf16.msra.mxu0 0
    %5957 = vmatprep.subr.bf16.mxu0 0
    %5958 = vmatpush1.bf16.msra.mxu0 0
    %5959 = vmatprep.subr.bf16.mxu0 0
    %5960 = vmatpush1.bf16.msra.mxu0 0
    %5961 = vmatprep.mubr.bf16.mxu0 0
    %5962 = vmatmul.mubr.bf16.gmra.mrb[0].mxu0 %v3591
    %v5963 = vpop.f32.mrb[0].mxu0
    %v5964 = vadd.f32 %v5819, %v5963
    %v5965 = vpop.f32.mrb[0].mxu0
    %v5966 = vpop.f32.mrb[0].mxu0
    %v5967 = vadd.f32 %v5822, %v5966
    %v5968 = vpop.f32.mrb[0].mxu0
    %5969 = vmatprep.mubr.bf16.mxu0 0
    %5970 = vmatmul.mubr.bf16.gmra.mrb[0].mxu0 %v3592
    %v5971 = vpop.f32.mrb[0].mxu0
    %v5972 = vadd.f32 %v5827, %v5971
    %v5973 = vpop.f32.mrb[0].mxu0
    %v5974 = vpop.f32.mrb[0].mxu0
    %v5975 = vadd.f32 %v5830, %v5974
    %v5976 = vpop.f32.mrb[0].mxu0
    %5977 = vmatprep.mubr.bf16.mxu0 0
    %5978 = vmatmul.mubr.bf16.gmra.mrb[0].mxu0 %v3593
    %v5979 = vpop.f32.mrb[0].mxu0
    %v5980 = vadd.f32 %v5835, %v5979
    %v5981 = vpop.f32.mrb[0].mxu0
    %v5982 = vpop.f32.mrb[0].mxu0
    %v5983 = vadd.f32 %v5838, %v5982
    %v5984 = vpop.f32.mrb[0].mxu0
    %5985 = vmatprep.mubr.bf16.mxu0 0
    %5986 = vmatmul.mubr.bf16.gmra.mrb[0].mxu0 %v3594
    %v5987 = vpop.f32.mrb[0].mxu0
    %v5988 = vadd.f32 %v5843, %v5987
    %v5989 = vpop.f32.mrb[0].mxu0
    %v5990 = vpop.f32.mrb[0].mxu0
    %v5991 = vadd.f32 %v5846, %v5990
    %v5992 = vpop.f32.mrb[0].mxu0
    %5993 = vmatprep.mubr.bf16.mxu0 0
    %5994 = vmatmul.mubr.bf16.gmra.mrb[0].mxu0 %v3595
    %v5995 = vpop.f32.mrb[0].mxu0
    %v5996 = vadd.f32 %v5851, %v5995
    %v5997 = vpop.f32.mrb[0].mxu0
    %v5998 = vpop.f32.mrb[0].mxu0
    %v5999 = vadd.f32 %v5854, %v5998
    %v6000 = vpop.f32.mrb[0].mxu0
    %6001 = vmatprep.mubr.bf16.mxu0 0
    %6002 = vmatmul.mubr.bf16.gmra.mrb[0].mxu0 %v3596
    %v6003 = vpop.f32.mrb[0].mxu0
    %v6004 = vadd.f32 %v5859, %v6003
    %v6005 = vpop.f32.mrb[0].mxu0
    %v6006 = vpop.f32.mrb[0].mxu0
    %v6007 = vadd.f32 %v5862, %v6006
    %v6008 = vpop.f32.mrb[0].mxu0
    %6009 = vmatprep.mubr.bf16.mxu0 0
    %6010 = vmatmul.mubr.bf16.gmra.mrb[0].mxu0 %v3597
    %v6011 = vpop.f32.mrb[0].mxu0
    %v6012 = vadd.f32 %v5867, %v6011
    %v6013 = vpop.f32.mrb[0].mxu0
    %v6014 = vpop.f32.mrb[0].mxu0
    %v6015 = vadd.f32 %v5870, %v6014
    %v6016 = vpop.f32.mrb[0].mxu0
    %6017 = vmatprep.mubr.bf16.mxu0 0
    %6018 = vmatmul.mubr.bf16.gmra.mrb[0].mxu0 %v3598
    %v6019 = vpop.f32.mrb[0].mxu0
    %v6020 = vadd.f32 %v5875, %v6019
    %v6021 = vpop.f32.mrb[0].mxu0
    %v6022 = vpop.f32.mrb[0].mxu0
    %v6023 = vadd.f32 %v5878, %v6022
    %v6024 = vpop.f32.mrb[0].mxu0
    %6025 = vdwg.mxu0
    %v6026 = vld [vmem:[#allocation8 + $0x380] sm:$0xf]
    %v6027 = vld [vmem:[#allocation8 + $0x384] sm:$0xf]
    %v6028 = vld [vmem:[#allocation8 + $0x388] sm:$0xf]
    %v6029 = vld [vmem:[#allocation8 + $0x38c] sm:$0xf]
    %v6030 = vld [vmem:[#allocation8 + $0x390] sm:$0xf]
    %v6031 = vld [vmem:[#allocation8 + $0x394] sm:$0xf]
    %v6032 = vld [vmem:[#allocation8 + $0x398] sm:$0xf]
    %v6033 = vld [vmem:[#allocation8 + $0x39c] sm:$0xf]
    %v6034 = vld [vmem:[#allocation8 + $0x3a0] sm:$0xf]
    %v6035 = vld [vmem:[#allocation8 + $0x3a4] sm:$0xf]
    %v6036 = vld [vmem:[#allocation8 + $0x3a8] sm:$0xf]
    %v6037 = vld [vmem:[#allocation8 + $0x3ac] sm:$0xf]
    %v6038 = vld [vmem:[#allocation8 + $0x3b0] sm:$0xf]
    %v6039 = vld [vmem:[#allocation8 + $0x3b4] sm:$0xf]
    %v6040 = vld [vmem:[#allocation8 + $0x3b8] sm:$0xf]
    %v6041 = vld [vmem:[#allocation8 + $0x3bc] sm:$0xf]
    %v6058 = vunpack.c.l.b16 %v6026
    %v6059 = vunpack.c.l.b16 %v6027
    %v6060 = vunpack.c.l.b16 %v6028
    %v6061 = vunpack.c.l.b16 %v6029
    %v6062 = vunpack.c.l.b16 %v6030
    %v6063 = vunpack.c.l.b16 %v6031
    %v6064 = vunpack.c.l.b16 %v6032
    %v6065 = vunpack.c.l.b16 %v6033
    %v6066 = vunpack.c.l.b16 %v6034
    %v6067 = vunpack.c.l.b16 %v6035
    %v6068 = vunpack.c.l.b16 %v6036
    %v6069 = vunpack.c.l.b16 %v6037
    %v6070 = vunpack.c.l.b16 %v6038
    %v6071 = vunpack.c.l.b16 %v6039
    %v6072 = vunpack.c.l.b16 %v6040
    %v6073 = vunpack.c.l.b16 %v6041
    %v6074 = vpack.c.b16 %v6059, %v6058
    %v6075 = vpack.c.b16 %v6061, %v6060
    %v6076 = vpack.c.b16 %v6063, %v6062
    %v6077 = vpack.c.b16 %v6065, %v6064
    %v6078 = vpack.c.b16 %v6067, %v6066
    %v6079 = vpack.c.b16 %v6069, %v6068
    %v6080 = vpack.c.b16 %v6071, %v6070
    %v6081 = vpack.c.b16 %v6073, %v6072
    %6090 = vmatprep.subr.bf16.mxu0 0
    %6091 = vmatpush1.bf16.msra.mxu0 %v6074
    %6092 = vmatprep.subr.bf16.mxu0 0
    %6093 = vmatpush1.bf16.msra.mxu0 %v6075
    %6094 = vmatprep.subr.bf16.mxu0 0
    %6095 = vmatpush1.bf16.msra.mxu0 %v6076
    %6096 = vmatprep.subr.bf16.mxu0 0
    %6097 = vmatpush1.bf16.msra.mxu0 %v6077
    %6098 = vmatprep.subr.bf16.mxu0 0
    %6099 = vmatpush1.bf16.msra.mxu0 %v6078
    %6100 = vmatprep.subr.bf16.mxu0 0
    %6101 = vmatpush1.bf16.msra.mxu0 %v6079
    %6102 = vmatprep.subr.bf16.mxu0 0
    %6103 = vmatpush1.bf16.msra.mxu0 %v6080
    %6104 = vmatprep.subr.bf16.mxu0 0
    %6105 = vmatpush1.bf16.msra.mxu0 %v6081
    %6106 = vmatprep.subr.bf16.mxu0 0
    %6107 = vmatpush1.bf16.msra.mxu0 0
    %6108 = vmatprep.subr.bf16.mxu0 0
    %6109 = vmatpush1.bf16.msra.mxu0 0
    %6110 = vmatprep.subr.bf16.mxu0 0
    %6111 = vmatpush1.bf16.msra.mxu0 0
    %6112 = vmatprep.subr.bf16.mxu0 0
    %6113 = vmatpush1.bf16.msra.mxu0 0
    %6114 = vmatprep.subr.bf16.mxu0 0
    %6115 = vmatpush1.bf16.msra.mxu0 0
    %6116 = vmatprep.subr.bf16.mxu0 0
    %6117 = vmatpush1.bf16.msra.mxu0 0
    %6118 = vmatprep.subr.bf16.mxu0 0
    %6119 = vmatpush1.bf16.msra.mxu0 0
    %6120 = vmatprep.subr.bf16.mxu0 0
    %6121 = vmatpush1.bf16.msra.mxu0 0
    %6122 = vmatprep.mubr.bf16.mxu0 0
    %6123 = vmatmul.mubr.bf16.gmra.mrb[0].mxu0 %v3495
    %v6124 = vpop.f32.mrb[0].mxu0
    %v6125 = vadd.f32 0.0, %v6124
    %v6126 = vpop.f32.mrb[0].mxu0
    %v6127 = vpop.f32.mrb[0].mxu0
    %v6128 = vadd.f32 0.0, %v6127
    %v6129 = vpop.f32.mrb[0].mxu0
    %6130 = vmatprep.mubr.bf16.mxu0 0
    %6131 = vmatmul.mubr.bf16.gmra.mrb[0].mxu0 %v3496
    %v6132 = vpop.f32.mrb[0].mxu0
    %v6133 = vadd.f32 0.0, %v6132
    %v6134 = vpop.f32.mrb[0].mxu0
    %v6135 = vpop.f32.mrb[0].mxu0
    %v6136 = vadd.f32 0.0, %v6135
    %v6137 = vpop.f32.mrb[0].mxu0
    %6138 = vmatprep.mubr.bf16.mxu0 0
    %6139 = vmatmul.mubr.bf16.gmra.mrb[0].mxu0 %v3497
    %v6140 = vpop.f32.mrb[0].mxu0
    %v6141 = vadd.f32 0.0, %v6140
    %v6142 = vpop.f32.mrb[0].mxu0
    %v6143 = vpop.f32.mrb[0].mxu0
    %v6144 = vadd.f32 0.0, %v6143
    %v6145 = vpop.f32.mrb[0].mxu0
    %6146 = vmatprep.mubr.bf16.mxu0 0
    %6147 = vmatmul.mubr.bf16.gmra.mrb[0].mxu0 %v3617
    %v6148 = vpop.f32.mrb[0].mxu0
    %v6149 = vadd.f32 0.0, %v6148
    %v6150 = vpop.f32.mrb[0].mxu0
    %v6151 = vpop.f32.mrb[0].mxu0
    %v6152 = vadd.f32 0.0, %v6151
    %v6153 = vpop.f32.mrb[0].mxu0
    %6154 = vmatprep.mubr.bf16.mxu0 0
    %6155 = vmatmul.mubr.bf16.gmra.mrb[0].mxu0 %v3499
    %v6156 = vpop.f32.mrb[0].mxu0
    %v6157 = vadd.f32 0.0, %v6156
    %v6158 = vpop.f32.mrb[0].mxu0
    %v6159 = vpop.f32.mrb[0].mxu0
    %v6160 = vadd.f32 0.0, %v6159
    %v6161 = vpop.f32.mrb[0].mxu0
    %6162 = vmatprep.mubr.bf16.mxu0 0
    %6163 = vmatmul.mubr.bf16.gmra.mrb[0].mxu0 %v3500
    %v6164 = vpop.f32.mrb[0].mxu0
    %v6165 = vadd.f32 0.0, %v6164
    %v6166 = vpop.f32.mrb[0].mxu0
    %v6167 = vpop.f32.mrb[0].mxu0
    %v6168 = vadd.f32 0.0, %v6167
    %v6169 = vpop.f32.mrb[0].mxu0
    %6170 = vmatprep.mubr.bf16.mxu0 0
    %6171 = vmatmul.mubr.bf16.gmra.mrb[0].mxu0 %v3501
    %v6172 = vpop.f32.mrb[0].mxu0
    %v6173 = vadd.f32 0.0, %v6172
    %v6174 = vpop.f32.mrb[0].mxu0
    %v6175 = vpop.f32.mrb[0].mxu0
    %v6176 = vadd.f32 0.0, %v6175
    %v6177 = vpop.f32.mrb[0].mxu0
    %6178 = vmatprep.mubr.bf16.mxu0 0
    %6179 = vmatmul.mubr.bf16.gmra.mrb[0].mxu0 %v3618
    %v6180 = vpop.f32.mrb[0].mxu0
    %v6181 = vadd.f32 0.0, %v6180
    %v6182 = vpop.f32.mrb[0].mxu0
    %v6183 = vpop.f32.mrb[0].mxu0
    %v6184 = vadd.f32 0.0, %v6183
    %v6185 = vpop.f32.mrb[0].mxu0
    %6186 = vdwg.mxu0
    %v6187 = vadd.f32 %v5964, %v6125
    %v6188 = vadd.f32 %v5967, %v6128
    %v6189 = vadd.f32 %v5972, %v6133
    %v6190 = vadd.f32 %v5975, %v6136
    %v6191 = vadd.f32 %v5980, %v6141
    %v6192 = vadd.f32 %v5983, %v6144
    %v6193 = vadd.f32 %v5988, %v6149
    %v6194 = vadd.f32 %v5991, %v6152
    %v6195 = vadd.f32 %v5996, %v6157
    %v6196 = vadd.f32 %v5999, %v6160
    %v6197 = vadd.f32 %v6004, %v6165
    %v6198 = vadd.f32 %v6007, %v6168
    %v6199 = vadd.f32 %v6012, %v6173
    %v6200 = vadd.f32 %v6015, %v6176
    %v6201 = vadd.f32 %v6020, %v6181
    %v6202 = vadd.f32 %v6023, %v6184
    %v6203 = vld [vmem:[#allocation8 + $0x3c0] sm:$0xf]
    %v6204 = vld [vmem:[#allocation8 + $0x3c4] sm:$0xf]
    %v6205 = vld [vmem:[#allocation8 + $0x3c8] sm:$0xf]
    %v6206 = vld [vmem:[#allocation8 + $0x3cc] sm:$0xf]
    %v6207 = vld [vmem:[#allocation8 + $0x3d0] sm:$0xf]
    %v6208 = vld [vmem:[#allocation8 + $0x3d4] sm:$0xf]
    %v6209 = vld [vmem:[#allocation8 + $0x3d8] sm:$0xf]
    %v6210 = vld [vmem:[#allocation8 + $0x3dc] sm:$0xf]
    %v6211 = vld [vmem:[#allocation8 + $0x3e0] sm:$0xf]
    %v6212 = vld [vmem:[#allocation8 + $0x3e4] sm:$0xf]
    %v6213 = vld [vmem:[#allocation8 + $0x3e8] sm:$0xf]
    %v6214 = vld [vmem:[#allocation8 + $0x3ec] sm:$0xf]
    %v6215 = vld [vmem:[#allocation8 + $0x3f0] sm:$0xf]
    %v6216 = vld [vmem:[#allocation8 + $0x3f4] sm:$0xf]
    %v6217 = vld [vmem:[#allocation8 + $0x3f8] sm:$0xf]
    %v6218 = vld [vmem:[#allocation8 + $0x3fc] sm:$0xf]
    %v6235 = vunpack.c.l.b16 %v6203
    %v6236 = vunpack.c.l.b16 %v6204
    %v6237 = vunpack.c.l.b16 %v6205
    %v6238 = vunpack.c.l.b16 %v6206
    %v6239 = vunpack.c.l.b16 %v6207
    %v6240 = vunpack.c.l.b16 %v6208
    %v6241 = vunpack.c.l.b16 %v6209
    %v6242 = vunpack.c.l.b16 %v6210
    %v6243 = vunpack.c.l.b16 %v6211
    %v6244 = vunpack.c.l.b16 %v6212
    %v6245 = vunpack.c.l.b16 %v6213
    %v6246 = vunpack.c.l.b16 %v6214
    %v6247 = vunpack.c.l.b16 %v6215
    %v6248 = vunpack.c.l.b16 %v6216
    %v6249 = vunpack.c.l.b16 %v6217
    %v6250 = vunpack.c.l.b16 %v6218
    %v6251 = vpack.c.b16 %v6236, %v6235
    %v6252 = vpack.c.b16 %v6238, %v6237
    %v6253 = vpack.c.b16 %v6240, %v6239
    %v6254 = vpack.c.b16 %v6242, %v6241
    %v6255 = vpack.c.b16 %v6244, %v6243
    %v6256 = vpack.c.b16 %v6246, %v6245
    %v6257 = vpack.c.b16 %v6248, %v6247
    %v6258 = vpack.c.b16 %v6250, %v6249
    %6267 = vmatprep.subr.bf16.mxu0 0
    %6268 = vmatpush1.bf16.msra.mxu0 %v6251
    %6269 = vmatprep.subr.bf16.mxu0 0
    %6270 = vmatpush1.bf16.msra.mxu0 %v6252
    %6271 = vmatprep.subr.bf16.mxu0 0
    %6272 = vmatpush1.bf16.msra.mxu0 %v6253
    %6273 = vmatprep.subr.bf16.mxu0 0
    %6274 = vmatpush1.bf16.msra.mxu0 %v6254
    %6275 = vmatprep.subr.bf16.mxu0 0
    %6276 = vmatpush1.bf16.msra.mxu0 %v6255
    %6277 = vmatprep.subr.bf16.mxu0 0
    %6278 = vmatpush1.bf16.msra.mxu0 %v6256
    %6279 = vmatprep.subr.bf16.mxu0 0
    %6280 = vmatpush1.bf16.msra.mxu0 %v6257
    %6281 = vmatprep.subr.bf16.mxu0 0
    %6282 = vmatpush1.bf16.msra.mxu0 %v6258
    %6283 = vmatprep.subr.bf16.mxu0 0
    %6284 = vmatpush1.bf16.msra.mxu0 0
    %6285 = vmatprep.subr.bf16.mxu0 0
    %6286 = vmatpush1.bf16.msra.mxu0 0
    %6287 = vmatprep.subr.bf16.mxu0 0
    %6288 = vmatpush1.bf16.msra.mxu0 0
    %6289 = vmatprep.subr.bf16.mxu0 0
    %6290 = vmatpush1.bf16.msra.mxu0 0
    %6291 = vmatprep.subr.bf16.mxu0 0
    %6292 = vmatpush1.bf16.msra.mxu0 0
    %6293 = vmatprep.subr.bf16.mxu0 0
    %6294 = vmatpush1.bf16.msra.mxu0 0
    %6295 = vmatprep.subr.bf16.mxu0 0
    %6296 = vmatpush1.bf16.msra.mxu0 0
    %6297 = vmatprep.subr.bf16.mxu0 0
    %6298 = vmatpush1.bf16.msra.mxu0 0
    %6299 = vmatprep.mubr.bf16.mxu0 0
    %6300 = vmatmul.mubr.bf16.gmra.mrb[0].mxu0 %v3564
    %v6301 = vpop.f32.mrb[0].mxu0
    %v6302 = vadd.f32 0.0, %v6301
    %v6303 = vpop.f32.mrb[0].mxu0
    %v6304 = vpop.f32.mrb[0].mxu0
    %v6305 = vadd.f32 0.0, %v6304
    %v6306 = vpop.f32.mrb[0].mxu0
    %6307 = vmatprep.mubr.bf16.mxu0 0
    %6308 = vmatmul.mubr.bf16.gmra.mrb[0].mxu0 %v3565
    %v6309 = vpop.f32.mrb[0].mxu0
    %v6310 = vadd.f32 0.0, %v6309
    %v6311 = vpop.f32.mrb[0].mxu0
    %v6312 = vpop.f32.mrb[0].mxu0
    %v6313 = vadd.f32 0.0, %v6312
    %v6314 = vpop.f32.mrb[0].mxu0
    %6315 = vmatprep.mubr.bf16.mxu0 0
    %6316 = vmatmul.mubr.bf16.gmra.mrb[0].mxu0 %v3566
    %v6317 = vpop.f32.mrb[0].mxu0
    %v6318 = vadd.f32 0.0, %v6317
    %v6319 = vpop.f32.mrb[0].mxu0
    %v6320 = vpop.f32.mrb[0].mxu0
    %v6321 = vadd.f32 0.0, %v6320
    %v6322 = vpop.f32.mrb[0].mxu0
    %6323 = vmatprep.mubr.bf16.mxu0 0
    %6324 = vmatmul.mubr.bf16.gmra.mrb[0].mxu0 %v3619
    %v6325 = vpop.f32.mrb[0].mxu0
    %v6326 = vadd.f32 0.0, %v6325
    %v6327 = vpop.f32.mrb[0].mxu0
    %v6328 = vpop.f32.mrb[0].mxu0
    %v6329 = vadd.f32 0.0, %v6328
    %v6330 = vpop.f32.mrb[0].mxu0
    %6331 = vmatprep.mubr.bf16.mxu0 0
    %6332 = vmatmul.mubr.bf16.gmra.mrb[0].mxu0 %v3568
    %v6333 = vpop.f32.mrb[0].mxu0
    %v6334 = vadd.f32 0.0, %v6333
    %v6335 = vpop.f32.mrb[0].mxu0
    %v6336 = vpop.f32.mrb[0].mxu0
    %v6337 = vadd.f32 0.0, %v6336
    %v6338 = vpop.f32.mrb[0].mxu0
    %6339 = vmatprep.mubr.bf16.mxu0 0
    %6340 = vmatmul.mubr.bf16.gmra.mrb[0].mxu0 %v3569
    %v6341 = vpop.f32.mrb[0].mxu0
    %v6342 = vadd.f32 0.0, %v6341
    %v6343 = vpop.f32.mrb[0].mxu0
    %v6344 = vpop.f32.mrb[0].mxu0
    %v6345 = vadd.f32 0.0, %v6344
    %v6346 = vpop.f32.mrb[0].mxu0
    %6347 = vmatprep.mubr.bf16.mxu0 0
    %6348 = vmatmul.mubr.bf16.gmra.mrb[0].mxu0 %v3570
    %v6349 = vpop.f32.mrb[0].mxu0
    %v6350 = vadd.f32 0.0, %v6349
    %v6351 = vpop.f32.mrb[0].mxu0
    %v6352 = vpop.f32.mrb[0].mxu0
    %v6353 = vadd.f32 0.0, %v6352
    %v6354 = vpop.f32.mrb[0].mxu0
    %6355 = vmatprep.mubr.bf16.mxu0 0
    %6356 = vmatmul.mubr.bf16.gmra.mrb[0].mxu0 %v3620
    %v6357 = vpop.f32.mrb[0].mxu0
    %v6358 = vadd.f32 0.0, %v6357
    %v6359 = vpop.f32.mrb[0].mxu0
    %v6360 = vpop.f32.mrb[0].mxu0
    %v6361 = vadd.f32 0.0, %v6360
    %v6362 = vpop.f32.mrb[0].mxu0
    %6363 = vdwg.mxu0
    %v6364 = vadd.f32 %v6187, %v6302
    %v6365 = vadd.f32 %v6188, %v6305
    %v6366 = vadd.f32 %v6189, %v6310
    %v6367 = vadd.f32 %v6190, %v6313
    %v6368 = vadd.f32 %v6191, %v6318
    %v6369 = vadd.f32 %v6192, %v6321
    %v6370 = vadd.f32 %v6193, %v6326
    %v6371 = vadd.f32 %v6194, %v6329
    %v6372 = vadd.f32 %v6195, %v6334
    %v6373 = vadd.f32 %v6196, %v6337
    %v6374 = vadd.f32 %v6197, %v6342
    %v6375 = vadd.f32 %v6198, %v6345
    %v6376 = vadd.f32 %v6199, %v6350
    %v6377 = vadd.f32 %v6200, %v6353
    %v6378 = vadd.f32 %v6201, %v6358
    %v6379 = vadd.f32 %v6202, %v6361
    %v6380 = vadd.f32 %v6364, %v4302
    %v6381 = vadd.f32 %v6365, %v4302
    %v6382 = vadd.f32 %v6366, %v4302
    %v6383 = vadd.f32 %v6367, %v4302
    %v6384 = vadd.f32 %v6368, %v4302
    %v6385 = vadd.f32 %v6369, %v4302
    %v6386 = vadd.f32 %v6370, %v4302
    %v6387 = vadd.f32 %v6371, %v4302
    %v6388 = vadd.f32 %v6372, %v4302
    %v6389 = vadd.f32 %v6373, %v4302
    %v6390 = vadd.f32 %v6374, %v4302
    %v6391 = vadd.f32 %v6375, %v4302
    %v6392 = vadd.f32 %v6376, %v4302
    %v6393 = vadd.f32 %v6377, %v4302
    %v6394 = vadd.f32 %v6378, %v4302
    %v6395 = vadd.f32 %v6379, %v4302
    %v6428 = vcombine.low %v4304, %v4996
    %v6429 = vcombine.high %v4304, %v4996
    %v6430 = vcombine.low %v4305, %v4997
    %v6431 = vcombine.high %v4305, %v4997
    %v6432 = vcombine.low %v4306, %v4998
    %v6433 = vcombine.high %v4306, %v4998
    %v6434 = vcombine.low %v4307, %v4999
    %v6435 = vcombine.high %v4307, %v4999
    %v6436 = vcombine.low %v4308, %v5000
    %v6437 = vcombine.high %v4308, %v5000
    %v6438 = vcombine.low %v4309, %v5001
    %v6439 = vcombine.high %v4309, %v5001
    %v6440 = vcombine.low %v4310, %v5002
    %v6441 = vcombine.high %v4310, %v5002
    %v6442 = vcombine.low %v4311, %v5003
    %v6443 = vcombine.high %v4311, %v5003
    %v6444 = vcombine.low %v4312, %v5004
    %v6445 = vcombine.high %v4312, %v5004
    %v6446 = vcombine.low %v4313, %v5005
    %v6447 = vcombine.high %v4313, %v5005
    %v6448 = vcombine.low %v4314, %v5006
    %v6449 = vcombine.high %v4314, %v5006
    %v6450 = vcombine.low %v4315, %v5007
    %v6451 = vcombine.high %v4315, %v5007
    %v6452 = vcombine.low %v4316, %v5008
    %v6453 = vcombine.high %v4316, %v5008
    %v6454 = vcombine.low %v4317, %v5009
    %v6455 = vcombine.high %v4317, %v5009
    %v6456 = vcombine.low %v4318, %v5010
    %v6457 = vcombine.high %v4318, %v5010
    %v6458 = vcombine.low %v4319, %v5011
    %v6459 = vcombine.high %v4319, %v5011
    %v6493 = vunpack.c.l.s4 1935823168
    %v6494 = vunpack.c.0.s8 %v6493
    %v6495 = vlaneseq
    %v6496 = vshrl.u32 %v6495, 7
    %v6497 = vsub.s32 %v6494, %v6496
    %v6498 = vrot.slane %v6428, %v6497
    %v6500 = vunpack.c.l.s4 1935823168
    %v6501 = vunpack.c.0.s8 %v6500
    %v6502 = vlaneseq
    %v6503 = vshrl.u32 %v6502, 7
    %v6504 = vsub.s32 %v6501, %v6503
    %v6505 = vrot.slane %v6429, %v6504
    %v6507 = vunpack.c.l.s4 1935823168
    %v6508 = vunpack.c.0.s8 %v6507
    %v6509 = vlaneseq
    %v6510 = vshrl.u32 %v6509, 7
    %v6511 = vsub.s32 %v6508, %v6510
    %v6512 = vrot.slane %v6430, %v6511
    %v6514 = vunpack.c.l.s4 1935823168
    %v6515 = vunpack.c.0.s8 %v6514
    %v6516 = vlaneseq
    %v6517 = vshrl.u32 %v6516, 7
    %v6518 = vsub.s32 %v6515, %v6517
    %v6519 = vrot.slane %v6431, %v6518
    %v6521 = vunpack.c.l.s4 1935823168
    %v6522 = vunpack.c.0.s8 %v6521
    %v6523 = vlaneseq
    %v6524 = vshrl.u32 %v6523, 7
    %v6525 = vsub.s32 %v6522, %v6524
    %v6526 = vrot.slane %v6432, %v6525
    %v6528 = vunpack.c.l.s4 1935823168
    %v6529 = vunpack.c.0.s8 %v6528
    %v6530 = vlaneseq
    %v6531 = vshrl.u32 %v6530, 7
    %v6532 = vsub.s32 %v6529, %v6531
    %v6533 = vrot.slane %v6433, %v6532
    %v6535 = vunpack.c.l.s4 1935823168
    %v6536 = vunpack.c.0.s8 %v6535
    %v6537 = vlaneseq
    %v6538 = vshrl.u32 %v6537, 7
    %v6539 = vsub.s32 %v6536, %v6538
    %v6540 = vrot.slane %v6434, %v6539
    %v6542 = vunpack.c.l.s4 1935823168
    %v6543 = vunpack.c.0.s8 %v6542
    %v6544 = vlaneseq
    %v6545 = vshrl.u32 %v6544, 7
    %v6546 = vsub.s32 %v6543, %v6545
    %v6547 = vrot.slane %v6435, %v6546
    %v6549 = vunpack.c.l.s4 1935823168
    %v6550 = vunpack.c.0.s8 %v6549
    %v6551 = vlaneseq
    %v6552 = vshrl.u32 %v6551, 7
    %v6553 = vsub.s32 %v6550, %v6552
    %v6554 = vrot.slane %v6436, %v6553
    %v6556 = vunpack.c.l.s4 1935823168
    %v6557 = vunpack.c.0.s8 %v6556
    %v6558 = vlaneseq
    %v6559 = vshrl.u32 %v6558, 7
    %v6560 = vsub.s32 %v6557, %v6559
    %v6561 = vrot.slane %v6437, %v6560
    %v6563 = vunpack.c.l.s4 1935823168
    %v6564 = vunpack.c.0.s8 %v6563
    %v6565 = vlaneseq
    %v6566 = vshrl.u32 %v6565, 7
    %v6567 = vsub.s32 %v6564, %v6566
    %v6568 = vrot.slane %v6438, %v6567
    %v6570 = vunpack.c.l.s4 1935823168
    %v6571 = vunpack.c.0.s8 %v6570
    %v6572 = vlaneseq
    %v6573 = vshrl.u32 %v6572, 7
    %v6574 = vsub.s32 %v6571, %v6573
    %v6575 = vrot.slane %v6439, %v6574
    %v6577 = vunpack.c.l.s4 1935823168
    %v6578 = vunpack.c.0.s8 %v6577
    %v6579 = vlaneseq
    %v6580 = vshrl.u32 %v6579, 7
    %v6581 = vsub.s32 %v6578, %v6580
    %v6582 = vrot.slane %v6440, %v6581
    %v6584 = vunpack.c.l.s4 1935823168
    %v6585 = vunpack.c.0.s8 %v6584
    %v6586 = vlaneseq
    %v6587 = vshrl.u32 %v6586, 7
    %v6588 = vsub.s32 %v6585, %v6587
    %v6589 = vrot.slane %v6441, %v6588
    %v6591 = vunpack.c.l.s4 1935823168
    %v6592 = vunpack.c.0.s8 %v6591
    %v6593 = vlaneseq
    %v6594 = vshrl.u32 %v6593, 7
    %v6595 = vsub.s32 %v6592, %v6594
    %v6596 = vrot.slane %v6442, %v6595
    %v6598 = vunpack.c.l.s4 1935823168
    %v6599 = vunpack.c.0.s8 %v6598
    %v6600 = vlaneseq
    %v6601 = vshrl.u32 %v6600, 7
    %v6602 = vsub.s32 %v6599, %v6601
    %v6603 = vrot.slane %v6443, %v6602
    %v6605 = vunpack.c.l.s4 1935823168
    %v6606 = vunpack.c.0.s8 %v6605
    %v6607 = vlaneseq
    %v6608 = vshrl.u32 %v6607, 7
    %v6609 = vsub.s32 %v6606, %v6608
    %v6610 = vrot.slane %v6444, %v6609
    %v6612 = vunpack.c.l.s4 1935823168
    %v6613 = vunpack.c.0.s8 %v6612
    %v6614 = vlaneseq
    %v6615 = vshrl.u32 %v6614, 7
    %v6616 = vsub.s32 %v6613, %v6615
    %v6617 = vrot.slane %v6445, %v6616
    %v6619 = vunpack.c.l.s4 1935823168
    %v6620 = vunpack.c.0.s8 %v6619
    %v6621 = vlaneseq
    %v6622 = vshrl.u32 %v6621, 7
    %v6623 = vsub.s32 %v6620, %v6622
    %v6624 = vrot.slane %v6446, %v6623
    %v6626 = vunpack.c.l.s4 1935823168
    %v6627 = vunpack.c.0.s8 %v6626
    %v6628 = vlaneseq
    %v6629 = vshrl.u32 %v6628, 7
    %v6630 = vsub.s32 %v6627, %v6629
    %v6631 = vrot.slane %v6447, %v6630
    %v6633 = vunpack.c.l.s4 1935823168
    %v6634 = vunpack.c.0.s8 %v6633
    %v6635 = vlaneseq
    %v6636 = vshrl.u32 %v6635, 7
    %v6637 = vsub.s32 %v6634, %v6636
    %v6638 = vrot.slane %v6448, %v6637
    %v6640 = vunpack.c.l.s4 1935823168
    %v6641 = vunpack.c.0.s8 %v6640
    %v6642 = vlaneseq
    %v6643 = vshrl.u32 %v6642, 7
    %v6644 = vsub.s32 %v6641, %v6643
    %v6645 = vrot.slane %v6449, %v6644
    %v6647 = vunpack.c.l.s4 1935823168
    %v6648 = vunpack.c.0.s8 %v6647
    %v6649 = vlaneseq
    %v6650 = vshrl.u32 %v6649, 7
    %v6651 = vsub.s32 %v6648, %v6650
    %v6652 = vrot.slane %v6450, %v6651
    %v6654 = vunpack.c.l.s4 1935823168
    %v6655 = vunpack.c.0.s8 %v6654
    %v6656 = vlaneseq
    %v6657 = vshrl.u32 %v6656, 7
    %v6658 = vsub.s32 %v6655, %v6657
    %v6659 = vrot.slane %v6451, %v6658
    %v6661 = vunpack.c.l.s4 1935823168
    %v6662 = vunpack.c.0.s8 %v6661
    %v6663 = vlaneseq
    %v6664 = vshrl.u32 %v6663, 7
    %v6665 = vsub.s32 %v6662, %v6664
    %v6666 = vrot.slane %v6452, %v6665
    %v6668 = vunpack.c.l.s4 1935823168
    %v6669 = vunpack.c.0.s8 %v6668
    %v6670 = vlaneseq
    %v6671 = vshrl.u32 %v6670, 7
    %v6672 = vsub.s32 %v6669, %v6671
    %v6673 = vrot.slane %v6453, %v6672
    %v6675 = vunpack.c.l.s4 1935823168
    %v6676 = vunpack.c.0.s8 %v6675
    %v6677 = vlaneseq
    %v6678 = vshrl.u32 %v6677, 7
    %v6679 = vsub.s32 %v6676, %v6678
    %v6680 = vrot.slane %v6454, %v6679
    %v6682 = vunpack.c.l.s4 1935823168
    %v6683 = vunpack.c.0.s8 %v6682
    %v6684 = vlaneseq
    %v6685 = vshrl.u32 %v6684, 7
    %v6686 = vsub.s32 %v6683, %v6685
    %v6687 = vrot.slane %v6455, %v6686
    %v6689 = vunpack.c.l.s4 1935823168
    %v6690 = vunpack.c.0.s8 %v6689
    %v6691 = vlaneseq
    %v6692 = vshrl.u32 %v6691, 7
    %v6693 = vsub.s32 %v6690, %v6692
    %v6694 = vrot.slane %v6456, %v6693
    %v6696 = vunpack.c.l.s4 1935823168
    %v6697 = vunpack.c.0.s8 %v6696
    %v6698 = vlaneseq
    %v6699 = vshrl.u32 %v6698, 7
    %v6700 = vsub.s32 %v6697, %v6699
    %v6701 = vrot.slane %v6457, %v6700
    %v6703 = vunpack.c.l.s4 1935823168
    %v6704 = vunpack.c.0.s8 %v6703
    %v6705 = vlaneseq
    %v6706 = vshrl.u32 %v6705, 7
    %v6707 = vsub.s32 %v6704, %v6706
    %v6708 = vrot.slane %v6458, %v6707
    %v6710 = vunpack.c.l.s4 1935823168
    %v6711 = vunpack.c.0.s8 %v6710
    %v6712 = vlaneseq
    %v6713 = vshrl.u32 %v6712, 7
    %v6714 = vsub.s32 %v6711, %v6713
    %v6715 = vrot.slane %v6459, %v6714
    %v6748 = vcombine.low %v5688, %v6380
    %v6749 = vcombine.high %v5688, %v6380
    %v6750 = vcombine.low %v5689, %v6381
    %v6751 = vcombine.high %v5689, %v6381
    %v6752 = vcombine.low %v5690, %v6382
    %v6753 = vcombine.high %v5690, %v6382
    %v6754 = vcombine.low %v5691, %v6383
    %v6755 = vcombine.high %v5691, %v6383
    %v6756 = vcombine.low %v5692, %v6384
    %v6757 = vcombine.high %v5692, %v6384
    %v6758 = vcombine.low %v5693, %v6385
    %v6759 = vcombine.high %v5693, %v6385
    %v6760 = vcombine.low %v5694, %v6386
    %v6761 = vcombine.high %v5694, %v6386
    %v6762 = vcombine.low %v5695, %v6387
    %v6763 = vcombine.high %v5695, %v6387
    %v6764 = vcombine.low %v5696, %v6388
    %v6765 = vcombine.high %v5696, %v6388
    %v6766 = vcombine.low %v5697, %v6389
    %v6767 = vcombine.high %v5697, %v6389
    %v6768 = vcombine.low %v5698, %v6390
    %v6769 = vcombine.high %v5698, %v6390
    %v6770 = vcombine.low %v5699, %v6391
    %v6771 = vcombine.high %v5699, %v6391
    %v6772 = vcombine.low %v5700, %v6392
    %v6773 = vcombine.high %v5700, %v6392
    %v6774 = vcombine.low %v5701, %v6393
    %v6775 = vcombine.high %v5701, %v6393
    %v6776 = vcombine.low %v5702, %v6394
    %v6777 = vcombine.high %v5702, %v6394
    %v6778 = vcombine.low %v5703, %v6395
    %v6779 = vcombine.high %v5703, %v6395
    %v6813 = vunpack.c.l.s4 1935823168
    %v6814 = vunpack.c.0.s8 %v6813
    %v6815 = vlaneseq
    %v6816 = vshrl.u32 %v6815, 7
    %v6817 = vsub.s32 %v6814, %v6816
    %v6818 = vrot.slane %v6748, %v6817
    %v6820 = vunpack.c.l.s4 1935823168
    %v6821 = vunpack.c.0.s8 %v6820
    %v6822 = vlaneseq
    %v6823 = vshrl.u32 %v6822, 7
    %v6824 = vsub.s32 %v6821, %v6823
    %v6825 = vrot.slane %v6749, %v6824
    %v6827 = vunpack.c.l.s4 1935823168
    %v6828 = vunpack.c.0.s8 %v6827
    %v6829 = vlaneseq
    %v6830 = vshrl.u32 %v6829, 7
    %v6831 = vsub.s32 %v6828, %v6830
    %v6832 = vrot.slane %v6750, %v6831
    %v6834 = vunpack.c.l.s4 1935823168
    %v6835 = vunpack.c.0.s8 %v6834
    %v6836 = vlaneseq
    %v6837 = vshrl.u32 %v6836, 7
    %v6838 = vsub.s32 %v6835, %v6837
    %v6839 = vrot.slane %v6751, %v6838
    %v6841 = vunpack.c.l.s4 1935823168
    %v6842 = vunpack.c.0.s8 %v6841
    %v6843 = vlaneseq
    %v6844 = vshrl.u32 %v6843, 7
    %v6845 = vsub.s32 %v6842, %v6844
    %v6846 = vrot.slane %v6752, %v6845
    %v6848 = vunpack.c.l.s4 1935823168
    %v6849 = vunpack.c.0.s8 %v6848
    %v6850 = vlaneseq
    %v6851 = vshrl.u32 %v6850, 7
    %v6852 = vsub.s32 %v6849, %v6851
    %v6853 = vrot.slane %v6753, %v6852
    %v6855 = vunpack.c.l.s4 1935823168
    %v6856 = vunpack.c.0.s8 %v6855
    %v6857 = vlaneseq
    %v6858 = vshrl.u32 %v6857, 7
    %v6859 = vsub.s32 %v6856, %v6858
    %v6860 = vrot.slane %v6754, %v6859
    %v6862 = vunpack.c.l.s4 1935823168
    %v6863 = vunpack.c.0.s8 %v6862
    %v6864 = vlaneseq
    %v6865 = vshrl.u32 %v6864, 7
    %v6866 = vsub.s32 %v6863, %v6865
    %v6867 = vrot.slane %v6755, %v6866
    %v6869 = vunpack.c.l.s4 1935823168
    %v6870 = vunpack.c.0.s8 %v6869
    %v6871 = vlaneseq
    %v6872 = vshrl.u32 %v6871, 7
    %v6873 = vsub.s32 %v6870, %v6872
    %v6874 = vrot.slane %v6756, %v6873
    %v6876 = vunpack.c.l.s4 1935823168
    %v6877 = vunpack.c.0.s8 %v6876
    %v6878 = vlaneseq
    %v6879 = vshrl.u32 %v6878, 7
    %v6880 = vsub.s32 %v6877, %v6879
    %v6881 = vrot.slane %v6757, %v6880
    %v6883 = vunpack.c.l.s4 1935823168
    %v6884 = vunpack.c.0.s8 %v6883
    %v6885 = vlaneseq
    %v6886 = vshrl.u32 %v6885, 7
    %v6887 = vsub.s32 %v6884, %v6886
    %v6888 = vrot.slane %v6758, %v6887
    %v6890 = vunpack.c.l.s4 1935823168
    %v6891 = vunpack.c.0.s8 %v6890
    %v6892 = vlaneseq
    %v6893 = vshrl.u32 %v6892, 7
    %v6894 = vsub.s32 %v6891, %v6893
    %v6895 = vrot.slane %v6759, %v6894
    %v6897 = vunpack.c.l.s4 1935823168
    %v6898 = vunpack.c.0.s8 %v6897
    %v6899 = vlaneseq
    %v6900 = vshrl.u32 %v6899, 7
    %v6901 = vsub.s32 %v6898, %v6900
    %v6902 = vrot.slane %v6760, %v6901
    %v6904 = vunpack.c.l.s4 1935823168
    %v6905 = vunpack.c.0.s8 %v6904
    %v6906 = vlaneseq
    %v6907 = vshrl.u32 %v6906, 7
    %v6908 = vsub.s32 %v6905, %v6907
    %v6909 = vrot.slane %v6761, %v6908
    %v6911 = vunpack.c.l.s4 1935823168
    %v6912 = vunpack.c.0.s8 %v6911
    %v6913 = vlaneseq
    %v6914 = vshrl.u32 %v6913, 7
    %v6915 = vsub.s32 %v6912, %v6914
    %v6916 = vrot.slane %v6762, %v6915
    %v6918 = vunpack.c.l.s4 1935823168
    %v6919 = vunpack.c.0.s8 %v6918
    %v6920 = vlaneseq
    %v6921 = vshrl.u32 %v6920, 7
    %v6922 = vsub.s32 %v6919, %v6921
    %v6923 = vrot.slane %v6763, %v6922
    %v6925 = vunpack.c.l.s4 1935823168
    %v6926 = vunpack.c.0.s8 %v6925
    %v6927 = vlaneseq
    %v6928 = vshrl.u32 %v6927, 7
    %v6929 = vsub.s32 %v6926, %v6928
    %v6930 = vrot.slane %v6764, %v6929
    %v6932 = vunpack.c.l.s4 1935823168
    %v6933 = vunpack.c.0.s8 %v6932
    %v6934 = vlaneseq
    %v6935 = vshrl.u32 %v6934, 7
    %v6936 = vsub.s32 %v6933, %v6935
    %v6937 = vrot.slane %v6765, %v6936
    %v6939 = vunpack.c.l.s4 1935823168
    %v6940 = vunpack.c.0.s8 %v6939
    %v6941 = vlaneseq
    %v6942 = vshrl.u32 %v6941, 7
    %v6943 = vsub.s32 %v6940, %v6942
    %v6944 = vrot.slane %v6766, %v6943
    %v6946 = vunpack.c.l.s4 1935823168
    %v6947 = vunpack.c.0.s8 %v6946
    %v6948 = vlaneseq
    %v6949 = vshrl.u32 %v6948, 7
    %v6950 = vsub.s32 %v6947, %v6949
    %v6951 = vrot.slane %v6767, %v6950
    %v6953 = vunpack.c.l.s4 1935823168
    %v6954 = vunpack.c.0.s8 %v6953
    %v6955 = vlaneseq
    %v6956 = vshrl.u32 %v6955, 7
    %v6957 = vsub.s32 %v6954, %v6956
    %v6958 = vrot.slane %v6768, %v6957
    %v6960 = vunpack.c.l.s4 1935823168
    %v6961 = vunpack.c.0.s8 %v6960
    %v6962 = vlaneseq
    %v6963 = vshrl.u32 %v6962, 7
    %v6964 = vsub.s32 %v6961, %v6963
    %v6965 = vrot.slane %v6769, %v6964
    %v6967 = vunpack.c.l.s4 1935823168
    %v6968 = vunpack.c.0.s8 %v6967
    %v6969 = vlaneseq
    %v6970 = vshrl.u32 %v6969, 7
    %v6971 = vsub.s32 %v6968, %v6970
    %v6972 = vrot.slane %v6770, %v6971
    %v6974 = vunpack.c.l.s4 1935823168
    %v6975 = vunpack.c.0.s8 %v6974
    %v6976 = vlaneseq
    %v6977 = vshrl.u32 %v6976, 7
    %v6978 = vsub.s32 %v6975, %v6977
    %v6979 = vrot.slane %v6771, %v6978
    %v6981 = vunpack.c.l.s4 1935823168
    %v6982 = vunpack.c.0.s8 %v6981
    %v6983 = vlaneseq
    %v6984 = vshrl.u32 %v6983, 7
    %v6985 = vsub.s32 %v6982, %v6984
    %v6986 = vrot.slane %v6772, %v6985
    %v6988 = vunpack.c.l.s4 1935823168
    %v6989 = vunpack.c.0.s8 %v6988
    %v6990 = vlaneseq
    %v6991 = vshrl.u32 %v6990, 7
    %v6992 = vsub.s32 %v6989, %v6991
    %v6993 = vrot.slane %v6773, %v6992
    %v6995 = vunpack.c.l.s4 1935823168
    %v6996 = vunpack.c.0.s8 %v6995
    %v6997 = vlaneseq
    %v6998 = vshrl.u32 %v6997, 7
    %v6999 = vsub.s32 %v6996, %v6998
    %v7000 = vrot.slane %v6774, %v6999
    %v7002 = vunpack.c.l.s4 1935823168
    %v7003 = vunpack.c.0.s8 %v7002
    %v7004 = vlaneseq
    %v7005 = vshrl.u32 %v7004, 7
    %v7006 = vsub.s32 %v7003, %v7005
    %v7007 = vrot.slane %v6775, %v7006
    %v7009 = vunpack.c.l.s4 1935823168
    %v7010 = vunpack.c.0.s8 %v7009
    %v7011 = vlaneseq
    %v7012 = vshrl.u32 %v7011, 7
    %v7013 = vsub.s32 %v7010, %v7012
    %v7014 = vrot.slane %v6776, %v7013
    %v7016 = vunpack.c.l.s4 1935823168
    %v7017 = vunpack.c.0.s8 %v7016
    %v7018 = vlaneseq
    %v7019 = vshrl.u32 %v7018, 7
    %v7020 = vsub.s32 %v7017, %v7019
    %v7021 = vrot.slane %v6777, %v7020
    %v7023 = vunpack.c.l.s4 1935823168
    %v7024 = vunpack.c.0.s8 %v7023
    %v7025 = vlaneseq
    %v7026 = vshrl.u32 %v7025, 7
    %v7027 = vsub.s32 %v7024, %v7026
    %v7028 = vrot.slane %v6778, %v7027
    %v7030 = vunpack.c.l.s4 1935823168
    %v7031 = vunpack.c.0.s8 %v7030
    %v7032 = vlaneseq
    %v7033 = vshrl.u32 %v7032, 7
    %v7034 = vsub.s32 %v7031, %v7033
    %v7035 = vrot.slane %v6779, %v7034
    %v7036 = vld [vmem:[%s11] sm:$0x1]
    %v7037 = vld [vmem:[%s12] sm:$0x1]
    %v7038 = vadd.f32 %v6498, %v6505
    %v7039 = vadd.f32 %v7038, %v6818
    %v7040 = vadd.f32 %v7039, %v6825
    %v7041 = vadd.f32 %v7040, %v6512
    %v7042 = vadd.f32 %v7041, %v6519
    %v7043 = vadd.f32 %v7042, %v6832
    %v7044 = vadd.f32 %v7043, %v6839
    %v7045 = vadd.f32 %v7044, %v6526
    %v7046 = vadd.f32 %v7045, %v6533
    %v7047 = vadd.f32 %v7046, %v6846
    %v7048 = vadd.f32 %v7047, %v6853
    %v7049 = vadd.f32 %v7048, %v6540
    %v7050 = vadd.f32 %v7049, %v6547
    %v7051 = vadd.f32 %v7050, %v6860
    %v7052 = vadd.f32 %v7051, %v6867
    %v7053 = vadd.f32 %v7052, %v6554
    %v7054 = vadd.f32 %v7053, %v6561
    %v7055 = vadd.f32 %v7054, %v6874
    %v7056 = vadd.f32 %v7055, %v6881
    %v7057 = vadd.f32 %v7056, %v6568
    %v7058 = vadd.f32 %v7057, %v6575
    %v7059 = vadd.f32 %v7058, %v6888
    %v7060 = vadd.f32 %v7059, %v6895
    %v7061 = vadd.f32 %v7060, %v6582
    %v7062 = vadd.f32 %v7061, %v6589
    %v7063 = vadd.f32 %v7062, %v6902
    %v7064 = vadd.f32 %v7063, %v6909
    %v7065 = vadd.f32 %v7064, %v6596
    %v7066 = vadd.f32 %v7065, %v6603
    %v7067 = vadd.f32 %v7066, %v6916
    %v7068 = vadd.f32 %v7067, %v6923
    %v7069 = vadd.f32 %v7068, %v6610
    %v7070 = vadd.f32 %v7069, %v6617
    %v7071 = vadd.f32 %v7070, %v6930
    %v7072 = vadd.f32 %v7071, %v6937
    %v7073 = vadd.f32 %v7072, %v6624
    %v7074 = vadd.f32 %v7073, %v6631
    %v7075 = vadd.f32 %v7074, %v6944
    %v7076 = vadd.f32 %v7075, %v6951
    %v7077 = vadd.f32 %v7076, %v6638
    %v7078 = vadd.f32 %v7077, %v6645
    %v7079 = vadd.f32 %v7078, %v6958
    %v7080 = vadd.f32 %v7079, %v6965
    %v7081 = vadd.f32 %v7080, %v6652
    %v7082 = vadd.f32 %v7081, %v6659
    %v7083 = vadd.f32 %v7082, %v6972
    %v7084 = vadd.f32 %v7083, %v6979
    %v7085 = vadd.f32 %v7084, %v6666
    %v7086 = vadd.f32 %v7085, %v6673
    %v7087 = vadd.f32 %v7086, %v6986
    %v7088 = vadd.f32 %v7087, %v6993
    %v7089 = vadd.f32 %v7088, %v6680
    %v7090 = vadd.f32 %v7089, %v6687
    %v7091 = vadd.f32 %v7090, %v7000
    %v7092 = vadd.f32 %v7091, %v7007
    %v7093 = vadd.f32 %v7092, %v6694
    %v7094 = vadd.f32 %v7093, %v6701
    %v7095 = vadd.f32 %v7094, %v7014
    %v7096 = vadd.f32 %v7095, %v7021
    %v7097 = vadd.f32 %v7096, %v6708
    %v7098 = vadd.f32 %v7097, %v6715
    %v7099 = vadd.f32 %v7098, %v7028
    %v7100 = vadd.f32 %v7099, %v7035
    %v7101 = vrot.slane %v7100, 4
    %v7102 = vadd.f32 %v7100, %v7101
    %v7103 = vrot.slane %v7102, 2
    %v7104 = vadd.f32 %v7102, %v7103
    %v7105 = vrot.slane %v7104, 1
    %v7106 = vadd.f32 %v7104, %v7105
    %v7107 = vmul.f32 %v7106, 0.001953125
    %v7108 = vsub.f32 %v6498, %v7107
    %v7109 = vsub.f32 %v6505, %v7107
    %v7110 = vsub.f32 %v6818, %v7107
    %v7111 = vsub.f32 %v6825, %v7107
    %v7112 = vsub.f32 %v6512, %v7107
    %v7113 = vsub.f32 %v6519, %v7107
    %v7114 = vsub.f32 %v6832, %v7107
    %v7115 = vsub.f32 %v6839, %v7107
    %v7116 = vsub.f32 %v6526, %v7107
    %v7117 = vsub.f32 %v6533, %v7107
    %v7118 = vsub.f32 %v6846, %v7107
    %v7119 = vsub.f32 %v6853, %v7107
    %v7120 = vsub.f32 %v6540, %v7107
    %v7121 = vsub.f32 %v6547, %v7107
    %v7122 = vsub.f32 %v6860, %v7107
    %v7123 = vsub.f32 %v6867, %v7107
    %v7124 = vsub.f32 %v6554, %v7107
    %v7125 = vsub.f32 %v6561, %v7107
    %v7126 = vsub.f32 %v6874, %v7107
    %v7127 = vsub.f32 %v6881, %v7107
    %v7128 = vsub.f32 %v6568, %v7107
    %v7129 = vsub.f32 %v6575, %v7107
    %v7130 = vsub.f32 %v6888, %v7107
    %v7131 = vsub.f32 %v6895, %v7107
    %v7132 = vsub.f32 %v6582, %v7107
    %v7133 = vsub.f32 %v6589, %v7107
    %v7134 = vsub.f32 %v6902, %v7107
    %v7135 = vsub.f32 %v6909, %v7107
    %v7136 = vsub.f32 %v6596, %v7107
    %v7137 = vsub.f32 %v6603, %v7107
    %v7138 = vsub.f32 %v6916, %v7107
    %v7139 = vsub.f32 %v6923, %v7107
    %v7140 = vsub.f32 %v6610, %v7107
    %v7141 = vsub.f32 %v6617, %v7107
    %v7142 = vsub.f32 %v6930, %v7107
    %v7143 = vsub.f32 %v6937, %v7107
    %v7144 = vsub.f32 %v6624, %v7107
    %v7145 = vsub.f32 %v6631, %v7107
    %v7146 = vsub.f32 %v6944, %v7107
    %v7147 = vsub.f32 %v6951, %v7107
    %v7148 = vsub.f32 %v6638, %v7107
    %v7149 = vsub.f32 %v6645, %v7107
    %v7150 = vsub.f32 %v6958, %v7107
    %v7151 = vsub.f32 %v6965, %v7107
    %v7152 = vsub.f32 %v6652, %v7107
    %v7153 = vsub.f32 %v6659, %v7107
    %v7154 = vsub.f32 %v6972, %v7107
    %v7155 = vsub.f32 %v6979, %v7107
    %v7156 = vsub.f32 %v6666, %v7107
    %v7157 = vsub.f32 %v6673, %v7107
    %v7158 = vsub.f32 %v6986, %v7107
    %v7159 = vsub.f32 %v6993, %v7107
    %v7160 = vsub.f32 %v6680, %v7107
    %v7161 = vsub.f32 %v6687, %v7107
    %v7162 = vsub.f32 %v7000, %v7107
    %v7163 = vsub.f32 %v7007, %v7107
    %v7164 = vsub.f32 %v6694, %v7107
    %v7165 = vsub.f32 %v6701, %v7107
    %v7166 = vsub.f32 %v7014, %v7107
    %v7167 = vsub.f32 %v7021, %v7107
    %v7168 = vsub.f32 %v6708, %v7107
    %v7169 = vsub.f32 %v6715, %v7107
    %v7170 = vsub.f32 %v7028, %v7107
    %v7171 = vsub.f32 %v7035, %v7107
    %v7172 = vmul.f32 %v7108, %v7108
    %v7173 = vmul.f32 %v7109, %v7109
    %v7174 = vmul.f32 %v7110, %v7110
    %v7175 = vmul.f32 %v7111, %v7111
    %v7176 = vmul.f32 %v7112, %v7112
    %v7177 = vmul.f32 %v7113, %v7113
    %v7178 = vmul.f32 %v7114, %v7114
    %v7179 = vmul.f32 %v7115, %v7115
    %v7180 = vmul.f32 %v7116, %v7116
    %v7181 = vmul.f32 %v7117, %v7117
    %v7182 = vmul.f32 %v7118, %v7118
    %v7183 = vmul.f32 %v7119, %v7119
    %v7184 = vmul.f32 %v7120, %v7120
    %v7185 = vmul.f32 %v7121, %v7121
    %v7186 = vmul.f32 %v7122, %v7122
    %v7187 = vmul.f32 %v7123, %v7123
    %v7188 = vmul.f32 %v7124, %v7124
    %v7189 = vmul.f32 %v7125, %v7125
    %v7190 = vmul.f32 %v7126, %v7126
    %v7191 = vmul.f32 %v7127, %v7127
    %v7192 = vmul.f32 %v7128, %v7128
    %v7193 = vmul.f32 %v7129, %v7129
    %v7194 = vmul.f32 %v7130, %v7130
    %v7195 = vmul.f32 %v7131, %v7131
    %v7196 = vmul.f32 %v7132, %v7132
    %v7197 = vmul.f32 %v7133, %v7133
    %v7198 = vmul.f32 %v7134, %v7134
    %v7199 = vmul.f32 %v7135, %v7135
    %v7200 = vmul.f32 %v7136, %v7136
    %v7201 = vmul.f32 %v7137, %v7137
    %v7202 = vmul.f32 %v7138, %v7138
    %v7203 = vmul.f32 %v7139, %v7139
    %v7204 = vmul.f32 %v7140, %v7140
    %v7205 = vmul.f32 %v7141, %v7141
    %v7206 = vmul.f32 %v7142, %v7142
    %v7207 = vmul.f32 %v7143, %v7143
    %v7208 = vmul.f32 %v7144, %v7144
    %v7209 = vmul.f32 %v7145, %v7145
    %v7210 = vmul.f32 %v7146, %v7146
    %v7211 = vmul.f32 %v7147, %v7147
    %v7212 = vmul.f32 %v7148, %v7148
    %v7213 = vmul.f32 %v7149, %v7149
    %v7214 = vmul.f32 %v7150, %v7150
    %v7215 = vmul.f32 %v7151, %v7151
    %v7216 = vmul.f32 %v7152, %v7152
    %v7217 = vmul.f32 %v7153, %v7153
    %v7218 = vmul.f32 %v7154, %v7154
    %v7219 = vmul.f32 %v7155, %v7155
    %v7220 = vmul.f32 %v7156, %v7156
    %v7221 = vmul.f32 %v7157, %v7157
    %v7222 = vmul.f32 %v7158, %v7158
    %v7223 = vmul.f32 %v7159, %v7159
    %v7224 = vmul.f32 %v7160, %v7160
    %v7225 = vmul.f32 %v7161, %v7161
    %v7226 = vmul.f32 %v7162, %v7162
    %v7227 = vmul.f32 %v7163, %v7163
    %v7228 = vmul.f32 %v7164, %v7164
    %v7229 = vmul.f32 %v7165, %v7165
    %v7230 = vmul.f32 %v7166, %v7166
    %v7231 = vmul.f32 %v7167, %v7167
    %v7232 = vmul.f32 %v7168, %v7168
    %v7233 = vmul.f32 %v7169, %v7169
    %v7234 = vmul.f32 %v7170, %v7170
    %v7235 = vmul.f32 %v7171, %v7171
    %v7236 = vadd.f32 %v7172, %v7173
    %v7237 = vadd.f32 %v7236, %v7174
    %v7238 = vadd.f32 %v7237, %v7175
    %v7239 = vadd.f32 %v7238, %v7176
    %v7240 = vadd.f32 %v7239, %v7177
    %v7241 = vadd.f32 %v7240, %v7178
    %v7242 = vadd.f32 %v7241, %v7179
    %v7243 = vadd.f32 %v7242, %v7180
    %v7244 = vadd.f32 %v7243, %v7181
    %v7245 = vadd.f32 %v7244, %v7182
    %v7246 = vadd.f32 %v7245, %v7183
    %v7247 = vadd.f32 %v7246, %v7184
    %v7248 = vadd.f32 %v7247, %v7185
    %v7249 = vadd.f32 %v7248, %v7186
    %v7250 = vadd.f32 %v7249, %v7187
    %v7251 = vadd.f32 %v7250, %v7188
    %v7252 = vadd.f32 %v7251, %v7189
    %v7253 = vadd.f32 %v7252, %v7190
    %v7254 = vadd.f32 %v7253, %v7191
    %v7255 = vadd.f32 %v7254, %v7192
    %v7256 = vadd.f32 %v7255, %v7193
    %v7257 = vadd.f32 %v7256, %v7194
    %v7258 = vadd.f32 %v7257, %v7195
    %v7259 = vadd.f32 %v7258, %v7196
    %v7260 = vadd.f32 %v7259, %v7197
    %v7261 = vadd.f32 %v7260, %v7198
    %v7262 = vadd.f32 %v7261, %v7199
    %v7263 = vadd.f32 %v7262, %v7200
    %v7264 = vadd.f32 %v7263, %v7201
    %v7265 = vadd.f32 %v7264, %v7202
    %v7266 = vadd.f32 %v7265, %v7203
    %v7267 = vadd.f32 %v7266, %v7204
    %v7268 = vadd.f32 %v7267, %v7205
    %v7269 = vadd.f32 %v7268, %v7206
    %v7270 = vadd.f32 %v7269, %v7207
    %v7271 = vadd.f32 %v7270, %v7208
    %v7272 = vadd.f32 %v7271, %v7209
    %v7273 = vadd.f32 %v7272, %v7210
    %v7274 = vadd.f32 %v7273, %v7211
    %v7275 = vadd.f32 %v7274, %v7212
    %v7276 = vadd.f32 %v7275, %v7213
    %v7277 = vadd.f32 %v7276, %v7214
    %v7278 = vadd.f32 %v7277, %v7215
    %v7279 = vadd.f32 %v7278, %v7216
    %v7280 = vadd.f32 %v7279, %v7217
    %v7281 = vadd.f32 %v7280, %v7218
    %v7282 = vadd.f32 %v7281, %v7219
    %v7283 = vadd.f32 %v7282, %v7220
    %v7284 = vadd.f32 %v7283, %v7221
    %v7285 = vadd.f32 %v7284, %v7222
    %v7286 = vadd.f32 %v7285, %v7223
    %v7287 = vadd.f32 %v7286, %v7224
    %v7288 = vadd.f32 %v7287, %v7225
    %v7289 = vadd.f32 %v7288, %v7226
    %v7290 = vadd.f32 %v7289, %v7227
    %v7291 = vadd.f32 %v7290, %v7228
    %v7292 = vadd.f32 %v7291, %v7229
    %v7293 = vadd.f32 %v7292, %v7230
    %v7294 = vadd.f32 %v7293, %v7231
    %v7295 = vadd.f32 %v7294, %v7232
    %v7296 = vadd.f32 %v7295, %v7233
    %v7297 = vadd.f32 %v7296, %v7234
    %v7298 = vadd.f32 %v7297, %v7235
    %v7299 = vrot.slane %v7298, 4
    %v7300 = vadd.f32 %v7298, %v7299
    %v7301 = vrot.slane %v7300, 2
    %v7302 = vadd.f32 %v7300, %v7301
    %v7303 = vrot.slane %v7302, 1
    %v7304 = vadd.f32 %v7302, %v7303
    %v7305 = vmul.f32 %v7304, 0.001953125
    %v7306 = vadd.f32 %v7305, 0.8
    %v7307 = vrsqrt.pop %v7306
    %v7308 = vmul.f32 %v7036, %v7307
    %v7310 = vlaneseq
    %v7311 = vshrl.u32 %v7310, 7
    %v7312 = vsub.s32 0, %v7311
    %v7313 = vrot.slane %v7308, %v7312
    %v7315 = vmul.f32 %v7108, %v7313
    %v7316 = vmul.f32 %v7109, %v7313
    %v7317 = vmul.f32 %v7110, %v7313
    %v7318 = vmul.f32 %v7111, %v7313
    %v7319 = vmul.f32 %v7112, %v7313
    %v7320 = vmul.f32 %v7113, %v7313
    %v7321 = vmul.f32 %v7114, %v7313
    %v7322 = vmul.f32 %v7115, %v7313
    %v7323 = vmul.f32 %v7116, %v7313
    %v7324 = vmul.f32 %v7117, %v7313
    %v7325 = vmul.f32 %v7118, %v7313
    %v7326 = vmul.f32 %v7119, %v7313
    %v7327 = vmul.f32 %v7120, %v7313
    %v7328 = vmul.f32 %v7121, %v7313
    %v7329 = vmul.f32 %v7122, %v7313
    %v7330 = vmul.f32 %v7123, %v7313
    %v7331 = vmul.f32 %v7124, %v7313
    %v7332 = vmul.f32 %v7125, %v7313
    %v7333 = vmul.f32 %v7126, %v7313
    %v7334 = vmul.f32 %v7127, %v7313
    %v7335 = vmul.f32 %v7128, %v7313
    %v7336 = vmul.f32 %v7129, %v7313
    %v7337 = vmul.f32 %v7130, %v7313
    %v7338 = vmul.f32 %v7131, %v7313
    %v7339 = vmul.f32 %v7132, %v7313
    %v7340 = vmul.f32 %v7133, %v7313
    %v7341 = vmul.f32 %v7134, %v7313
    %v7342 = vmul.f32 %v7135, %v7313
    %v7343 = vmul.f32 %v7136, %v7313
    %v7344 = vmul.f32 %v7137, %v7313
    %v7345 = vmul.f32 %v7138, %v7313
    %v7346 = vmul.f32 %v7139, %v7313
    %v7347 = vmul.f32 %v7140, %v7313
    %v7348 = vmul.f32 %v7141, %v7313
    %v7349 = vmul.f32 %v7142, %v7313
    %v7350 = vmul.f32 %v7143, %v7313
    %v7351 = vmul.f32 %v7144, %v7313
    %v7352 = vmul.f32 %v7145, %v7313
    %v7353 = vmul.f32 %v7146, %v7313
    %v7354 = vmul.f32 %v7147, %v7313
    %v7355 = vmul.f32 %v7148, %v7313
    %v7356 = vmul.f32 %v7149, %v7313
    %v7357 = vmul.f32 %v7150, %v7313
    %v7358 = vmul.f32 %v7151, %v7313
    %v7359 = vmul.f32 %v7152, %v7313
    %v7360 = vmul.f32 %v7153, %v7313
    %v7361 = vmul.f32 %v7154, %v7313
    %v7362 = vmul.f32 %v7155, %v7313
    %v7363 = vmul.f32 %v7156, %v7313
    %v7364 = vmul.f32 %v7157, %v7313
    %v7365 = vmul.f32 %v7158, %v7313
    %v7366 = vmul.f32 %v7159, %v7313
    %v7367 = vmul.f32 %v7160, %v7313
    %v7368 = vmul.f32 %v7161, %v7313
    %v7369 = vmul.f32 %v7162, %v7313
    %v7370 = vmul.f32 %v7163, %v7313
    %v7371 = vmul.f32 %v7164, %v7313
    %v7372 = vmul.f32 %v7165, %v7313
    %v7373 = vmul.f32 %v7166, %v7313
    %v7374 = vmul.f32 %v7167, %v7313
    %v7375 = vmul.f32 %v7168, %v7313
    %v7376 = vmul.f32 %v7169, %v7313
    %v7377 = vmul.f32 %v7170, %v7313
    %v7378 = vmul.f32 %v7171, %v7313
    %v7380 = vlaneseq
    %v7381 = vshrl.u32 %v7380, 7
    %v7382 = vsub.s32 0, %v7381
    %v7383 = vrot.slane %v7037, %v7382
    %v7385 = vadd.f32 %v7315, %v7383
    %v7386 = vadd.f32 %v7316, %v7383
    %v7387 = vadd.f32 %v7317, %v7383
    %v7388 = vadd.f32 %v7318, %v7383
    %v7389 = vadd.f32 %v7319, %v7383
    %v7390 = vadd.f32 %v7320, %v7383
    %v7391 = vadd.f32 %v7321, %v7383
    %v7392 = vadd.f32 %v7322, %v7383
    %v7393 = vadd.f32 %v7323, %v7383
    %v7394 = vadd.f32 %v7324, %v7383
    %v7395 = vadd.f32 %v7325, %v7383
    %v7396 = vadd.f32 %v7326, %v7383
    %v7397 = vadd.f32 %v7327, %v7383
    %v7398 = vadd.f32 %v7328, %v7383
    %v7399 = vadd.f32 %v7329, %v7383
    %v7400 = vadd.f32 %v7330, %v7383
    %v7401 = vadd.f32 %v7331, %v7383
    %v7402 = vadd.f32 %v7332, %v7383
    %v7403 = vadd.f32 %v7333, %v7383
    %v7404 = vadd.f32 %v7334, %v7383
    %v7405 = vadd.f32 %v7335, %v7383
    %v7406 = vadd.f32 %v7336, %v7383
    %v7407 = vadd.f32 %v7337, %v7383
    %v7408 = vadd.f32 %v7338, %v7383
    %v7409 = vadd.f32 %v7339, %v7383
    %v7410 = vadd.f32 %v7340, %v7383
    %v7411 = vadd.f32 %v7341, %v7383
    %v7412 = vadd.f32 %v7342, %v7383
    %v7413 = vadd.f32 %v7343, %v7383
    %v7414 = vadd.f32 %v7344, %v7383
    %v7415 = vadd.f32 %v7345, %v7383
    %v7416 = vadd.f32 %v7346, %v7383
    %v7417 = vadd.f32 %v7347, %v7383
    %v7418 = vadd.f32 %v7348, %v7383
    %v7419 = vadd.f32 %v7349, %v7383
    %v7420 = vadd.f32 %v7350, %v7383
    %v7421 = vadd.f32 %v7351, %v7383
    %v7422 = vadd.f32 %v7352, %v7383
    %v7423 = vadd.f32 %v7353, %v7383
    %v7424 = vadd.f32 %v7354, %v7383
    %v7425 = vadd.f32 %v7355, %v7383
    %v7426 = vadd.f32 %v7356, %v7383
    %v7427 = vadd.f32 %v7357, %v7383
    %v7428 = vadd.f32 %v7358, %v7383
    %v7429 = vadd.f32 %v7359, %v7383
    %v7430 = vadd.f32 %v7360, %v7383
    %v7431 = vadd.f32 %v7361, %v7383
    %v7432 = vadd.f32 %v7362, %v7383
    %v7433 = vadd.f32 %v7363, %v7383
    %v7434 = vadd.f32 %v7364, %v7383
    %v7435 = vadd.f32 %v7365, %v7383
    %v7436 = vadd.f32 %v7366, %v7383
    %v7437 = vadd.f32 %v7367, %v7383
    %v7438 = vadd.f32 %v7368, %v7383
    %v7439 = vadd.f32 %v7369, %v7383
    %v7440 = vadd.f32 %v7370, %v7383
    %v7441 = vadd.f32 %v7371, %v7383
    %v7442 = vadd.f32 %v7372, %v7383
    %v7443 = vadd.f32 %v7373, %v7383
    %v7444 = vadd.f32 %v7374, %v7383
    %v7445 = vadd.f32 %v7375, %v7383
    %v7446 = vadd.f32 %v7376, %v7383
    %v7447 = vadd.f32 %v7377, %v7383
    %v7448 = vadd.f32 %v7378, %v7383
    %vm7449 = vcmp.gt.f32.partialorder %v7385, 0.0
    %vm7450 = vcmp.gt.f32.partialorder %v7386, 0.0
    %vm7451 = vcmp.gt.f32.partialorder %v7387, 0.0
    %vm7452 = vcmp.gt.f32.partialorder %v7388, 0.0
    %vm7453 = vcmp.gt.f32.partialorder %v7389, 0.0
    %vm7454 = vcmp.gt.f32.partialorder %v7390, 0.0
    %vm7455 = vcmp.gt.f32.partialorder %v7391, 0.0
    %vm7456 = vcmp.gt.f32.partialorder %v7392, 0.0
    %vm7457 = vcmp.gt.f32.partialorder %v7393, 0.0
    %vm7458 = vcmp.gt.f32.partialorder %v7394, 0.0
    %vm7459 = vcmp.gt.f32.partialorder %v7395, 0.0
    %vm7460 = vcmp.gt.f32.partialorder %v7396, 0.0
    %vm7461 = vcmp.gt.f32.partialorder %v7397, 0.0
    %vm7462 = vcmp.gt.f32.partialorder %v7398, 0.0
    %vm7463 = vcmp.gt.f32.partialorder %v7399, 0.0
    %vm7464 = vcmp.gt.f32.partialorder %v7400, 0.0
    %vm7465 = vcmp.gt.f32.partialorder %v7401, 0.0
    %vm7466 = vcmp.gt.f32.partialorder %v7402, 0.0
    %vm7467 = vcmp.gt.f32.partialorder %v7403, 0.0
    %vm7468 = vcmp.gt.f32.partialorder %v7404, 0.0
    %vm7469 = vcmp.gt.f32.partialorder %v7405, 0.0
    %vm7470 = vcmp.gt.f32.partialorder %v7406, 0.0
    %vm7471 = vcmp.gt.f32.partialorder %v7407, 0.0
    %vm7472 = vcmp.gt.f32.partialorder %v7408, 0.0
    %vm7473 = vcmp.gt.f32.partialorder %v7409, 0.0
    %vm7474 = vcmp.gt.f32.partialorder %v7410, 0.0
    %vm7475 = vcmp.gt.f32.partialorder %v7411, 0.0
    %vm7476 = vcmp.gt.f32.partialorder %v7412, 0.0
    %vm7477 = vcmp.gt.f32.partialorder %v7413, 0.0
    %vm7478 = vcmp.gt.f32.partialorder %v7414, 0.0
    %vm7479 = vcmp.gt.f32.partialorder %v7415, 0.0
    %vm7480 = vcmp.gt.f32.partialorder %v7416, 0.0
    %vm7481 = vcmp.gt.f32.partialorder %v7417, 0.0
    %vm7482 = vcmp.gt.f32.partialorder %v7418, 0.0
    %vm7483 = vcmp.gt.f32.partialorder %v7419, 0.0
    %vm7484 = vcmp.gt.f32.partialorder %v7420, 0.0
    %vm7485 = vcmp.gt.f32.partialorder %v7421, 0.0
    %vm7486 = vcmp.gt.f32.partialorder %v7422, 0.0
    %vm7487 = vcmp.gt.f32.partialorder %v7423, 0.0
    %vm7488 = vcmp.gt.f32.partialorder %v7424, 0.0
    %vm7489 = vcmp.gt.f32.partialorder %v7425, 0.0
    %vm7490 = vcmp.gt.f32.partialorder %v7426, 0.0
    %vm7491 = vcmp.gt.f32.partialorder %v7427, 0.0
    %vm7492 = vcmp.gt.f32.partialorder %v7428, 0.0
    %vm7493 = vcmp.gt.f32.partialorder %v7429, 0.0
    %vm7494 = vcmp.gt.f32.partialorder %v7430, 0.0
    %vm7495 = vcmp.gt.f32.partialorder %v7431, 0.0
    %vm7496 = vcmp.gt.f32.partialorder %v7432, 0.0
    %vm7497 = vcmp.gt.f32.partialorder %v7433, 0.0
    %vm7498 = vcmp.gt.f32.partialorder %v7434, 0.0
    %vm7499 = vcmp.gt.f32.partialorder %v7435, 0.0
    %vm7500 = vcmp.gt.f32.partialorder %v7436, 0.0
    %vm7501 = vcmp.gt.f32.partialorder %v7437, 0.0
    %vm7502 = vcmp.gt.f32.partialorder %v7438, 0.0
    %vm7503 = vcmp.gt.f32.partialorder %v7439, 0.0
    %vm7504 = vcmp.gt.f32.partialorder %v7440, 0.0
    %vm7505 = vcmp.gt.f32.partialorder %v7441, 0.0
    %vm7506 = vcmp.gt.f32.partialorder %v7442, 0.0
    %vm7507 = vcmp.gt.f32.partialorder %v7443, 0.0
    %vm7508 = vcmp.gt.f32.partialorder %v7444, 0.0
    %vm7509 = vcmp.gt.f32.partialorder %v7445, 0.0
    %vm7510 = vcmp.gt.f32.partialorder %v7446, 0.0
    %vm7511 = vcmp.gt.f32.partialorder %v7447, 0.0
    %vm7512 = vcmp.gt.f32.partialorder %v7448, 0.0
    %v7513 = vmul.f32 %v7385, 0.2
    %v7514 = vmul.f32 %v7386, 0.2
    %v7515 = vmul.f32 %v7387, 0.2
    %v7516 = vmul.f32 %v7388, 0.2
    %v7517 = vmul.f32 %v7389, 0.2
    %v7518 = vmul.f32 %v7390, 0.2
    %v7519 = vmul.f32 %v7391, 0.2
    %v7520 = vmul.f32 %v7392, 0.2
    %v7521 = vmul.f32 %v7393, 0.2
    %v7522 = vmul.f32 %v7394, 0.2
    %v7523 = vmul.f32 %v7395, 0.2
    %v7524 = vmul.f32 %v7396, 0.2
    %v7525 = vmul.f32 %v7397, 0.2
    %v7526 = vmul.f32 %v7398, 0.2
    %v7527 = vmul.f32 %v7399, 0.2
    %v7528 = vmul.f32 %v7400, 0.2
    %v7529 = vmul.f32 %v7401, 0.2
    %v7530 = vmul.f32 %v7402, 0.2
    %v7531 = vmul.f32 %v7403, 0.2
    %v7532 = vmul.f32 %v7404, 0.2
    %v7533 = vmul.f32 %v7405, 0.2
    %v7534 = vmul.f32 %v7406, 0.2
    %v7535 = vmul.f32 %v7407, 0.2
    %v7536 = vmul.f32 %v7408, 0.2
    %v7537 = vmul.f32 %v7409, 0.2
    %v7538 = vmul.f32 %v7410, 0.2
    %v7539 = vmul.f32 %v7411, 0.2
    %v7540 = vmul.f32 %v7412, 0.2
    %v7541 = vmul.f32 %v7413, 0.2
    %v7542 = vmul.f32 %v7414, 0.2
    %v7543 = vmul.f32 %v7415, 0.2
    %v7544 = vmul.f32 %v7416, 0.2
    %v7545 = vmul.f32 %v7417, 0.2
    %v7546 = vmul.f32 %v7418, 0.2
    %v7547 = vmul.f32 %v7419, 0.2
    %v7548 = vmul.f32 %v7420, 0.2
    %v7549 = vmul.f32 %v7421, 0.2
    %v7550 = vmul.f32 %v7422, 0.2
    %v7551 = vmul.f32 %v7423, 0.2
    %v7552 = vmul.f32 %v7424, 0.2
    %v7553 = vmul.f32 %v7425, 0.2
    %v7554 = vmul.f32 %v7426, 0.2
    %v7555 = vmul.f32 %v7427, 0.2
    %v7556 = vmul.f32 %v7428, 0.2
    %v7557 = vmul.f32 %v7429, 0.2
    %v7558 = vmul.f32 %v7430, 0.2
    %v7559 = vmul.f32 %v7431, 0.2
    %v7560 = vmul.f32 %v7432, 0.2
    %v7561 = vmul.f32 %v7433, 0.2
    %v7562 = vmul.f32 %v7434, 0.2
    %v7563 = vmul.f32 %v7435, 0.2
    %v7564 = vmul.f32 %v7436, 0.2
    %v7565 = vmul.f32 %v7437, 0.2
    %v7566 = vmul.f32 %v7438, 0.2
    %v7567 = vmul.f32 %v7439, 0.2
    %v7568 = vmul.f32 %v7440, 0.2
    %v7569 = vmul.f32 %v7441, 0.2
    %v7570 = vmul.f32 %v7442, 0.2
    %v7571 = vmul.f32 %v7443, 0.2
    %v7572 = vmul.f32 %v7444, 0.2
    %v7573 = vmul.f32 %v7445, 0.2
    %v7574 = vmul.f32 %v7446, 0.2
    %v7575 = vmul.f32 %v7447, 0.2
    %v7576 = vmul.f32 %v7448, 0.2
    %v7577 = vsel %vm7449, %v7385, %v7513
    %v7578 = vsel %vm7450, %v7386, %v7514
    %v7579 = vsel %vm7451, %v7387, %v7515
    %v7580 = vsel %vm7452, %v7388, %v7516
    %v7581 = vsel %vm7453, %v7389, %v7517
    %v7582 = vsel %vm7454, %v7390, %v7518
    %v7583 = vsel %vm7455, %v7391, %v7519
    %v7584 = vsel %vm7456, %v7392, %v7520
    %v7585 = vsel %vm7457, %v7393, %v7521
    %v7586 = vsel %vm7458, %v7394, %v7522
    %v7587 = vsel %vm7459, %v7395, %v7523
    %v7588 = vsel %vm7460, %v7396, %v7524
    %v7589 = vsel %vm7461, %v7397, %v7525
    %v7590 = vsel %vm7462, %v7398, %v7526
    %v7591 = vsel %vm7463, %v7399, %v7527
    %v7592 = vsel %vm7464, %v7400, %v7528
    %v7593 = vsel %vm7465, %v7401, %v7529
    %v7594 = vsel %vm7466, %v7402, %v7530
    %v7595 = vsel %vm7467, %v7403, %v7531
    %v7596 = vsel %vm7468, %v7404, %v7532
    %v7597 = vsel %vm7469, %v7405, %v7533
    %v7598 = vsel %vm7470, %v7406, %v7534
    %v7599 = vsel %vm7471, %v7407, %v7535
    %v7600 = vsel %vm7472, %v7408, %v7536
    %v7601 = vsel %vm7473, %v7409, %v7537
    %v7602 = vsel %vm7474, %v7410, %v7538
    %v7603 = vsel %vm7475, %v7411, %v7539
    %v7604 = vsel %vm7476, %v7412, %v7540
    %v7605 = vsel %vm7477, %v7413, %v7541
    %v7606 = vsel %vm7478, %v7414, %v7542
    %v7607 = vsel %vm7479, %v7415, %v7543
    %v7608 = vsel %vm7480, %v7416, %v7544
    %v7609 = vsel %vm7481, %v7417, %v7545
    %v7610 = vsel %vm7482, %v7418, %v7546
    %v7611 = vsel %vm7483, %v7419, %v7547
    %v7612 = vsel %vm7484, %v7420, %v7548
    %v7613 = vsel %vm7485, %v7421, %v7549
    %v7614 = vsel %vm7486, %v7422, %v7550
    %v7615 = vsel %vm7487, %v7423, %v7551
    %v7616 = vsel %vm7488, %v7424, %v7552
    %v7617 = vsel %vm7489, %v7425, %v7553
    %v7618 = vsel %vm7490, %v7426, %v7554
    %v7619 = vsel %vm7491, %v7427, %v7555
    %v7620 = vsel %vm7492, %v7428, %v7556
    %v7621 = vsel %vm7493, %v7429, %v7557
    %v7622 = vsel %vm7494, %v7430, %v7558
    %v7623 = vsel %vm7495, %v7431, %v7559
    %v7624 = vsel %vm7496, %v7432, %v7560
    %v7625 = vsel %vm7497, %v7433, %v7561
    %v7626 = vsel %vm7498, %v7434, %v7562
    %v7627 = vsel %vm7499, %v7435, %v7563
    %v7628 = vsel %vm7500, %v7436, %v7564
    %v7629 = vsel %vm7501, %v7437, %v7565
    %v7630 = vsel %vm7502, %v7438, %v7566
    %v7631 = vsel %vm7503, %v7439, %v7567
    %v7632 = vsel %vm7504, %v7440, %v7568
    %v7633 = vsel %vm7505, %v7441, %v7569
    %v7634 = vsel %vm7506, %v7442, %v7570
    %v7635 = vsel %vm7507, %v7443, %v7571
    %v7636 = vsel %vm7508, %v7444, %v7572
    %v7637 = vsel %vm7509, %v7445, %v7573
    %v7638 = vsel %vm7510, %v7446, %v7574
    %v7639 = vsel %vm7511, %v7447, %v7575
    %v7640 = vsel %vm7512, %v7448, %v7576
    %v7705 = vsel %vm728, %v891, %v891
    %v7706 = vrot.slane %v7577, 7
    %v7707 = vrot.slane %v7578, 7
    %v7708 = vsel %vm728, %v7706, %v7707
    %v7709 = vrot.slane %v7579, 7
    %v7710 = vrot.slane %v7580, 7
    %v7711 = vsel %vm728, %v7709, %v7710
    %v7712 = vrot.slane %v7581, 7
    %v7713 = vrot.slane %v7582, 7
    %v7714 = vsel %vm728, %v7712, %v7713
    %v7715 = vrot.slane %v7583, 7
    %v7716 = vrot.slane %v7584, 7
    %v7717 = vsel %vm728, %v7715, %v7716
    %v7718 = vrot.slane %v7585, 7
    %v7719 = vrot.slane %v7586, 7
    %v7720 = vsel %vm728, %v7718, %v7719
    %v7721 = vrot.slane %v7587, 7
    %v7722 = vrot.slane %v7588, 7
    %v7723 = vsel %vm728, %v7721, %v7722
    %v7724 = vrot.slane %v7589, 7
    %v7725 = vrot.slane %v7590, 7
    %v7726 = vsel %vm728, %v7724, %v7725
    %v7727 = vrot.slane %v7591, 7
    %v7728 = vrot.slane %v7592, 7
    %v7729 = vsel %vm728, %v7727, %v7728
    %v7730 = vrot.slane %v7593, 7
    %v7731 = vrot.slane %v7594, 7
    %v7732 = vsel %vm728, %v7730, %v7731
    %v7733 = vrot.slane %v7595, 7
    %v7734 = vrot.slane %v7596, 7
    %v7735 = vsel %vm728, %v7733, %v7734
    %v7736 = vrot.slane %v7597, 7
    %v7737 = vrot.slane %v7598, 7
    %v7738 = vsel %vm728, %v7736, %v7737
    %v7739 = vrot.slane %v7599, 7
    %v7740 = vrot.slane %v7600, 7
    %v7741 = vsel %vm728, %v7739, %v7740
    %v7742 = vrot.slane %v7601, 7
    %v7743 = vrot.slane %v7602, 7
    %v7744 = vsel %vm728, %v7742, %v7743
    %v7745 = vrot.slane %v7603, 7
    %v7746 = vrot.slane %v7604, 7
    %v7747 = vsel %vm728, %v7745, %v7746
    %v7748 = vrot.slane %v7605, 7
    %v7749 = vrot.slane %v7606, 7
    %v7750 = vsel %vm728, %v7748, %v7749
    %v7751 = vrot.slane %v7607, 7
    %v7752 = vrot.slane %v7608, 7
    %v7753 = vsel %vm728, %v7751, %v7752
    %v7754 = vrot.slane %v7609, 7
    %v7755 = vrot.slane %v7610, 7
    %v7756 = vsel %vm728, %v7754, %v7755
    %v7757 = vrot.slane %v7611, 7
    %v7758 = vrot.slane %v7612, 7
    %v7759 = vsel %vm728, %v7757, %v7758
    %v7760 = vrot.slane %v7613, 7
    %v7761 = vrot.slane %v7614, 7
    %v7762 = vsel %vm728, %v7760, %v7761
    %v7763 = vrot.slane %v7615, 7
    %v7764 = vrot.slane %v7616, 7
    %v7765 = vsel %vm728, %v7763, %v7764
    %v7766 = vrot.slane %v7617, 7
    %v7767 = vrot.slane %v7618, 7
    %v7768 = vsel %vm728, %v7766, %v7767
    %v7769 = vrot.slane %v7619, 7
    %v7770 = vrot.slane %v7620, 7
    %v7771 = vsel %vm728, %v7769, %v7770
    %v7772 = vrot.slane %v7621, 7
    %v7773 = vrot.slane %v7622, 7
    %v7774 = vsel %vm728, %v7772, %v7773
    %v7775 = vrot.slane %v7623, 7
    %v7776 = vrot.slane %v7624, 7
    %v7777 = vsel %vm728, %v7775, %v7776
    %v7778 = vrot.slane %v7625, 7
    %v7779 = vrot.slane %v7626, 7
    %v7780 = vsel %vm728, %v7778, %v7779
    %v7781 = vrot.slane %v7627, 7
    %v7782 = vrot.slane %v7628, 7
    %v7783 = vsel %vm728, %v7781, %v7782
    %v7784 = vrot.slane %v7629, 7
    %v7785 = vrot.slane %v7630, 7
    %v7786 = vsel %vm728, %v7784, %v7785
    %v7787 = vrot.slane %v7631, 7
    %v7788 = vrot.slane %v7632, 7
    %v7789 = vsel %vm728, %v7787, %v7788
    %v7790 = vrot.slane %v7633, 7
    %v7791 = vrot.slane %v7634, 7
    %v7792 = vsel %vm728, %v7790, %v7791
    %v7793 = vrot.slane %v7635, 7
    %v7794 = vrot.slane %v7636, 7
    %v7795 = vsel %vm728, %v7793, %v7794
    %v7796 = vrot.slane %v7637, 7
    %v7797 = vrot.slane %v7638, 7
    %v7798 = vsel %vm728, %v7796, %v7797
    %v7799 = vrot.slane %v7639, 7
    %v7800 = vrot.slane %v7640, 7
    %v7801 = vsel %vm728, %v7799, %v7800
    %v7899 = vsel %vm728, 0.0, %v7706
    %v7900 = vsel %vm728, 0.0, %v7709
    %v7901 = vsel %vm728, 0.0, %v7712
    %v7902 = vsel %vm728, 0.0, %v7715
    %v7903 = vsel %vm728, 0.0, %v7718
    %v7904 = vsel %vm728, 0.0, %v7721
    %v7905 = vsel %vm728, 0.0, %v7724
    %v7906 = vsel %vm728, 0.0, %v7727
    %v7907 = vsel %vm728, 0.0, %v7730
    %v7908 = vsel %vm728, 0.0, %v7733
    %v7909 = vsel %vm728, 0.0, %v7736
    %v7910 = vsel %vm728, 0.0, %v7739
    %v7911 = vsel %vm728, 0.0, %v7742
    %v7912 = vsel %vm728, 0.0, %v7745
    %v7913 = vsel %vm728, 0.0, %v7748
    %v7914 = vsel %vm728, 0.0, %v7751
    %v7915 = vsel %vm728, 0.0, %v7754
    %v7916 = vsel %vm728, 0.0, %v7757
    %v7917 = vsel %vm728, 0.0, %v7760
    %v7918 = vsel %vm728, 0.0, %v7763
    %v7919 = vsel %vm728, 0.0, %v7766
    %v7920 = vsel %vm728, 0.0, %v7769
    %v7921 = vsel %vm728, 0.0, %v7772
    %v7922 = vsel %vm728, 0.0, %v7775
    %v7923 = vsel %vm728, 0.0, %v7778
    %v7924 = vsel %vm728, 0.0, %v7781
    %v7925 = vsel %vm728, 0.0, %v7784
    %v7926 = vsel %vm728, 0.0, %v7787
    %v7927 = vsel %vm728, 0.0, %v7790
    %v7928 = vsel %vm728, 0.0, %v7793
    %v7929 = vsel %vm728, 0.0, %v7796
    %v7930 = vsel %vm728, 0.0, %v7799
    %v7931 = vsel %vm728, %v7707, 0.0
    %v7932 = vsel %vm728, %v7710, 0.0
    %v7933 = vsel %vm728, %v7713, 0.0
    %v7934 = vsel %vm728, %v7716, 0.0
    %v7935 = vsel %vm728, %v7719, 0.0
    %v7936 = vsel %vm728, %v7722, 0.0
    %v7937 = vsel %vm728, %v7725, 0.0
    %v7938 = vsel %vm728, %v7728, 0.0
    %v7939 = vsel %vm728, %v7731, 0.0
    %v7940 = vsel %vm728, %v7734, 0.0
    %v7941 = vsel %vm728, %v7737, 0.0
    %v7942 = vsel %vm728, %v7740, 0.0
    %v7943 = vsel %vm728, %v7743, 0.0
    %v7944 = vsel %vm728, %v7746, 0.0
    %v7945 = vsel %vm728, %v7749, 0.0
    %v7946 = vsel %vm728, %v7752, 0.0
    %v7947 = vsel %vm728, %v7755, 0.0
    %v7948 = vsel %vm728, %v7758, 0.0
    %v7949 = vsel %vm728, %v7761, 0.0
    %v7950 = vsel %vm728, %v7764, 0.0
    %v7951 = vsel %vm728, %v7767, 0.0
    %v7952 = vsel %vm728, %v7770, 0.0
    %v7953 = vsel %vm728, %v7773, 0.0
    %v7954 = vsel %vm728, %v7776, 0.0
    %v7955 = vsel %vm728, %v7779, 0.0
    %v7956 = vsel %vm728, %v7782, 0.0
    %v7957 = vsel %vm728, %v7785, 0.0
    %v7958 = vsel %vm728, %v7788, 0.0
    %v7959 = vsel %vm728, %v7791, 0.0
    %v7960 = vsel %vm728, %v7794, 0.0
    %v7961 = vsel %vm728, %v7797, 0.0
    %v7962 = vsel %vm728, %v7800, 0.0
    %v7963 = vpack.c.bf16 %v7705, %v909
    %v7964 = vpack.c.bf16 %v7708, %v7899
    %v7965 = vpack.c.bf16 %v7711, %v7900
    %v7966 = vpack.c.bf16 %v7714, %v7901
    %v7967 = vpack.c.bf16 %v7717, %v7902
    %v7968 = vpack.c.bf16 %v7720, %v7903
    %v7969 = vpack.c.bf16 %v7723, %v7904
    %v7970 = vpack.c.bf16 %v7726, %v7905
    %v7971 = vpack.c.bf16 %v7729, %v7906
    %v7972 = vpack.c.bf16 %v7732, %v7907
    %v7973 = vpack.c.bf16 %v7735, %v7908
    %v7974 = vpack.c.bf16 %v7738, %v7909
    %v7975 = vpack.c.bf16 %v7741, %v7910
    %v7976 = vpack.c.bf16 %v7744, %v7911
    %v7977 = vpack.c.bf16 %v7747, %v7912
    %v7978 = vpack.c.bf16 %v7750, %v7913
    %v7979 = vpack.c.bf16 %v7756, %v7915
    %v7980 = vpack.c.bf16 %v7759, %v7916
    %v7981 = vpack.c.bf16 %v7762, %v7917
    %v7982 = vpack.c.bf16 %v7765, %v7918
    %v7983 = vpack.c.bf16 %v7768, %v7919
    %v7984 = vpack.c.bf16 %v7771, %v7920
    %v7985 = vpack.c.bf16 %v7774, %v7921
    %v7986 = vpack.c.bf16 %v7777, %v7922
    %v7987 = vpack.c.bf16 %v7780, %v7923
    %v7988 = vpack.c.bf16 %v7783, %v7924
    %v7989 = vpack.c.bf16 %v7786, %v7925
    %v7990 = vpack.c.bf16 %v7789, %v7926
    %v7991 = vpack.c.bf16 %v7792, %v7927
    %v7992 = vpack.c.bf16 %v7795, %v7928
    %v7993 = vpack.c.bf16 %v7798, %v7929
    %v8054 = vrot.slane %v7705, 1
    %v8055 = vsel %vm3433, %v3434, %v8054
    %v8056 = vsel %vm3433, %v8054, %v3435
    %v8057 = vrot.slane %v7899, 1
    %v8058 = vrot.slane %v7708, 1
    %v8059 = vsel %vm3433, %v8057, %v8058
    %v8060 = vrot.slane %v7931, 1
    %v8061 = vsel %vm3433, %v8058, %v8060
    %v8062 = vrot.slane %v7900, 1
    %v8063 = vrot.slane %v7711, 1
    %v8064 = vsel %vm3433, %v8062, %v8063
    %v8065 = vrot.slane %v7932, 1
    %v8066 = vsel %vm3433, %v8063, %v8065
    %v8067 = vrot.slane %v7901, 1
    %v8068 = vrot.slane %v7714, 1
    %v8069 = vsel %vm3433, %v8067, %v8068
    %v8070 = vrot.slane %v7933, 1
    %v8071 = vsel %vm3433, %v8068, %v8070
    %v8072 = vrot.slane %v7902, 1
    %v8073 = vrot.slane %v7717, 1
    %v8074 = vsel %vm3433, %v8072, %v8073
    %v8075 = vrot.slane %v7934, 1
    %v8076 = vsel %vm3433, %v8073, %v8075
    %v8077 = vrot.slane %v7903, 1
    %v8078 = vrot.slane %v7720, 1
    %v8079 = vsel %vm3433, %v8077, %v8078
    %v8080 = vrot.slane %v7935, 1
    %v8081 = vsel %vm3433, %v8078, %v8080
    %v8082 = vrot.slane %v7904, 1
    %v8083 = vrot.slane %v7723, 1
    %v8084 = vsel %vm3433, %v8082, %v8083
    %v8085 = vrot.slane %v7936, 1
    %v8086 = vsel %vm3433, %v8083, %v8085
    %v8087 = vrot.slane %v7905, 1
    %v8088 = vrot.slane %v7726, 1
    %v8089 = vsel %vm3433, %v8087, %v8088
    %v8090 = vrot.slane %v7937, 1
    %v8091 = vsel %vm3433, %v8088, %v8090
    %v8092 = vrot.slane %v7906, 1
    %v8093 = vrot.slane %v7729, 1
    %v8094 = vsel %vm3433, %v8092, %v8093
    %v8095 = vrot.slane %v7938, 1
    %v8096 = vsel %vm3433, %v8093, %v8095
    %v8097 = vrot.slane %v7907, 1
    %v8098 = vrot.slane %v7732, 1
    %v8099 = vsel %vm3433, %v8097, %v8098
    %v8100 = vrot.slane %v7939, 1
    %v8101 = vsel %vm3433, %v8098, %v8100
    %v8102 = vrot.slane %v7908, 1
    %v8103 = vrot.slane %v7735, 1
    %v8104 = vsel %vm3433, %v8102, %v8103
    %v8105 = vrot.slane %v7940, 1
    %v8106 = vsel %vm3433, %v8103, %v8105
    %v8107 = vrot.slane %v7909, 1
    %v8108 = vrot.slane %v7738, 1
    %v8109 = vsel %vm3433, %v8107, %v8108
    %v8110 = vrot.slane %v7941, 1
    %v8111 = vsel %vm3433, %v8108, %v8110
    %v8112 = vrot.slane %v7910, 1
    %v8113 = vrot.slane %v7741, 1
    %v8114 = vsel %vm3433, %v8112, %v8113
    %v8115 = vrot.slane %v7942, 1
    %v8116 = vsel %vm3433, %v8113, %v8115
    %v8117 = vrot.slane %v7911, 1
    %v8118 = vrot.slane %v7744, 1
    %v8119 = vsel %vm3433, %v8117, %v8118
    %v8120 = vrot.slane %v7943, 1
    %v8121 = vsel %vm3433, %v8118, %v8120
    %v8122 = vrot.slane %v7912, 1
    %v8123 = vrot.slane %v7747, 1
    %v8124 = vsel %vm3433, %v8122, %v8123
    %v8125 = vrot.slane %v7944, 1
    %v8126 = vsel %vm3433, %v8123, %v8125
    %v8127 = vrot.slane %v7913, 1
    %v8128 = vrot.slane %v7750, 1
    %v8129 = vsel %vm3433, %v8127, %v8128
    %v8130 = vrot.slane %v7945, 1
    %v8131 = vsel %vm3433, %v8128, %v8130
    %v8132 = vrot.slane %v7915, 1
    %v8133 = vrot.slane %v7756, 1
    %v8134 = vsel %vm3433, %v8132, %v8133
    %v8135 = vrot.slane %v7947, 1
    %v8136 = vsel %vm3433, %v8133, %v8135
    %v8137 = vrot.slane %v7916, 1
    %v8138 = vrot.slane %v7759, 1
    %v8139 = vsel %vm3433, %v8137, %v8138
    %v8140 = vrot.slane %v7948, 1
    %v8141 = vsel %vm3433, %v8138, %v8140
    %v8142 = vrot.slane %v7917, 1
    %v8143 = vrot.slane %v7762, 1
    %v8144 = vsel %vm3433, %v8142, %v8143
    %v8145 = vrot.slane %v7949, 1
    %v8146 = vsel %vm3433, %v8143, %v8145
    %v8147 = vrot.slane %v7918, 1
    %v8148 = vrot.slane %v7765, 1
    %v8149 = vsel %vm3433, %v8147, %v8148
    %v8150 = vrot.slane %v7950, 1
    %v8151 = vsel %vm3433, %v8148, %v8150
    %v8152 = vrot.slane %v7919, 1
    %v8153 = vrot.slane %v7768, 1
    %v8154 = vsel %vm3433, %v8152, %v8153
    %v8155 = vrot.slane %v7951, 1
    %v8156 = vsel %vm3433, %v8153, %v8155
    %v8157 = vrot.slane %v7920, 1
    %v8158 = vrot.slane %v7771, 1
    %v8159 = vsel %vm3433, %v8157, %v8158
    %v8160 = vrot.slane %v7952, 1
    %v8161 = vsel %vm3433, %v8158, %v8160
    %v8162 = vrot.slane %v7921, 1
    %v8163 = vrot.slane %v7774, 1
    %v8164 = vsel %vm3433, %v8162, %v8163
    %v8165 = vrot.slane %v7953, 1
    %v8166 = vsel %vm3433, %v8163, %v8165
    %v8167 = vrot.slane %v7922, 1
    %v8168 = vrot.slane %v7777, 1
    %v8169 = vsel %vm3433, %v8167, %v8168
    %v8170 = vrot.slane %v7954, 1
    %v8171 = vsel %vm3433, %v8168, %v8170
    %v8172 = vrot.slane %v7923, 1
    %v8173 = vrot.slane %v7780, 1
    %v8174 = vsel %vm3433, %v8172, %v8173
    %v8175 = vrot.slane %v7955, 1
    %v8176 = vsel %vm3433, %v8173, %v8175
    %v8177 = vrot.slane %v7924, 1
    %v8178 = vrot.slane %v7783, 1
    %v8179 = vsel %vm3433, %v8177, %v8178
    %v8180 = vrot.slane %v7956, 1
    %v8181 = vsel %vm3433, %v8178, %v8180
    %v8182 = vrot.slane %v7925, 1
    %v8183 = vrot.slane %v7786, 1
    %v8184 = vsel %vm3433, %v8182, %v8183
    %v8185 = vrot.slane %v7957, 1
    %v8186 = vsel %vm3433, %v8183, %v8185
    %v8187 = vrot.slane %v7926, 1
    %v8188 = vrot.slane %v7789, 1
    %v8189 = vsel %vm3433, %v8187, %v8188
    %v8190 = vrot.slane %v7958, 1
    %v8191 = vsel %vm3433, %v8188, %v8190
    %v8192 = vrot.slane %v7927, 1
    %v8193 = vrot.slane %v7792, 1
    %v8194 = vsel %vm3433, %v8192, %v8193
    %v8195 = vrot.slane %v7959, 1
    %v8196 = vsel %vm3433, %v8193, %v8195
    %v8197 = vrot.slane %v7928, 1
    %v8198 = vrot.slane %v7795, 1
    %v8199 = vsel %vm3433, %v8197, %v8198
    %v8200 = vrot.slane %v7960, 1
    %v8201 = vsel %vm3433, %v8198, %v8200
    %v8202 = vrot.slane %v7929, 1
    %v8203 = vrot.slane %v7798, 1
    %v8204 = vsel %vm3433, %v8202, %v8203
    %v8205 = vrot.slane %v7961, 1
    %v8206 = vsel %vm3433, %v8203, %v8205
    %v8269 = vpack.c.bf16 %v8056, %v8055
    %v8270 = vpack.c.bf16 %v8061, %v8059
    %v8271 = vpack.c.bf16 %v8066, %v8064
    %v8272 = vpack.c.bf16 %v8071, %v8069
    %v8273 = vpack.c.bf16 %v8076, %v8074
    %v8274 = vpack.c.bf16 %v8081, %v8079
    %v8275 = vpack.c.bf16 %v8086, %v8084
    %v8276 = vpack.c.bf16 %v8091, %v8089
    %v8277 = vpack.c.bf16 %v8096, %v8094
    %v8278 = vpack.c.bf16 %v8101, %v8099
    %v8279 = vpack.c.bf16 %v8106, %v8104
    %v8280 = vpack.c.bf16 %v8111, %v8109
    %v8281 = vpack.c.bf16 %v8116, %v8114
    %v8282 = vpack.c.bf16 %v8121, %v8119
    %v8283 = vpack.c.bf16 %v8126, %v8124
    %v8284 = vpack.c.bf16 %v8131, %v8129
    %v8285 = vpack.c.bf16 %v8136, %v8134
    %v8286 = vpack.c.bf16 %v8141, %v8139
    %v8287 = vpack.c.bf16 %v8146, %v8144
    %v8288 = vpack.c.bf16 %v8151, %v8149
    %v8289 = vpack.c.bf16 %v8156, %v8154
    %v8290 = vpack.c.bf16 %v8161, %v8159
    %v8291 = vpack.c.bf16 %v8166, %v8164
    %v8292 = vpack.c.bf16 %v8171, %v8169
    %v8293 = vpack.c.bf16 %v8176, %v8174
    %v8294 = vpack.c.bf16 %v8181, %v8179
    %v8295 = vpack.c.bf16 %v8186, %v8184
    %v8296 = vpack.c.bf16 %v8191, %v8189
    %v8297 = vpack.c.bf16 %v8196, %v8194
    %v8298 = vpack.c.bf16 %v8201, %v8199
    %v8299 = vpack.c.bf16 %v8206, %v8204
    %v8300 = vrot.slane %v7705, 2
    %v8301 = vsel %vm3502, %v3503, %v8300
    %v8302 = vsel %vm3502, %v8300, %v3504
    %v8303 = vrot.slane %v7899, 2
    %v8304 = vrot.slane %v7708, 2
    %v8305 = vsel %vm3502, %v8303, %v8304
    %v8306 = vrot.slane %v7931, 2
    %v8307 = vsel %vm3502, %v8304, %v8306
    %v8308 = vrot.slane %v7900, 2
    %v8309 = vrot.slane %v7711, 2
    %v8310 = vsel %vm3502, %v8308, %v8309
    %v8311 = vrot.slane %v7932, 2
    %v8312 = vsel %vm3502, %v8309, %v8311
    %v8313 = vrot.slane %v7901, 2
    %v8314 = vrot.slane %v7714, 2
    %v8315 = vsel %vm3502, %v8313, %v8314
    %v8316 = vrot.slane %v7933, 2
    %v8317 = vsel %vm3502, %v8314, %v8316
    %v8318 = vrot.slane %v7902, 2
    %v8319 = vrot.slane %v7717, 2
    %v8320 = vsel %vm3502, %v8318, %v8319
    %v8321 = vrot.slane %v7934, 2
    %v8322 = vsel %vm3502, %v8319, %v8321
    %v8323 = vrot.slane %v7903, 2
    %v8324 = vrot.slane %v7720, 2
    %v8325 = vsel %vm3502, %v8323, %v8324
    %v8326 = vrot.slane %v7935, 2
    %v8327 = vsel %vm3502, %v8324, %v8326
    %v8328 = vrot.slane %v7904, 2
    %v8329 = vrot.slane %v7723, 2
    %v8330 = vsel %vm3502, %v8328, %v8329
    %v8331 = vrot.slane %v7936, 2
    %v8332 = vsel %vm3502, %v8329, %v8331
    %v8333 = vrot.slane %v7905, 2
    %v8334 = vrot.slane %v7726, 2
    %v8335 = vsel %vm3502, %v8333, %v8334
    %v8336 = vrot.slane %v7937, 2
    %v8337 = vsel %vm3502, %v8334, %v8336
    %v8338 = vrot.slane %v7906, 2
    %v8339 = vrot.slane %v7729, 2
    %v8340 = vsel %vm3502, %v8338, %v8339
    %v8341 = vrot.slane %v7938, 2
    %v8342 = vsel %vm3502, %v8339, %v8341
    %v8343 = vrot.slane %v7907, 2
    %v8344 = vrot.slane %v7732, 2
    %v8345 = vsel %vm3502, %v8343, %v8344
    %v8346 = vrot.slane %v7939, 2
    %v8347 = vsel %vm3502, %v8344, %v8346
    %v8348 = vrot.slane %v7908, 2
    %v8349 = vrot.slane %v7735, 2
    %v8350 = vsel %vm3502, %v8348, %v8349
    %v8351 = vrot.slane %v7940, 2
    %v8352 = vsel %vm3502, %v8349, %v8351
    %v8353 = vrot.slane %v7909, 2
    %v8354 = vrot.slane %v7738, 2
    %v8355 = vsel %vm3502, %v8353, %v8354
    %v8356 = vrot.slane %v7941, 2
    %v8357 = vsel %vm3502, %v8354, %v8356
    %v8358 = vrot.slane %v7910, 2
    %v8359 = vrot.slane %v7741, 2
    %v8360 = vsel %vm3502, %v8358, %v8359
    %v8361 = vrot.slane %v7942, 2
    %v8362 = vsel %vm3502, %v8359, %v8361
    %v8363 = vrot.slane %v7911, 2
    %v8364 = vrot.slane %v7744, 2
    %v8365 = vsel %vm3502, %v8363, %v8364
    %v8366 = vrot.slane %v7943, 2
    %v8367 = vsel %vm3502, %v8364, %v8366
    %v8368 = vrot.slane %v7912, 2
    %v8369 = vrot.slane %v7747, 2
    %v8370 = vsel %vm3502, %v8368, %v8369
    %v8371 = vrot.slane %v7944, 2
    %v8372 = vsel %vm3502, %v8369, %v8371
    %v8373 = vrot.slane %v7913, 2
    %v8374 = vrot.slane %v7750, 2
    %v8375 = vsel %vm3502, %v8373, %v8374
    %v8376 = vrot.slane %v7945, 2
    %v8377 = vsel %vm3502, %v8374, %v8376
    %v8378 = vrot.slane %v7915, 2
    %v8379 = vrot.slane %v7756, 2
    %v8380 = vsel %vm3502, %v8378, %v8379
    %v8381 = vrot.slane %v7947, 2
    %v8382 = vsel %vm3502, %v8379, %v8381
    %v8383 = vrot.slane %v7916, 2
    %v8384 = vrot.slane %v7759, 2
    %v8385 = vsel %vm3502, %v8383, %v8384
    %v8386 = vrot.slane %v7948, 2
    %v8387 = vsel %vm3502, %v8384, %v8386
    %v8388 = vrot.slane %v7917, 2
    %v8389 = vrot.slane %v7762, 2
    %v8390 = vsel %vm3502, %v8388, %v8389
    %v8391 = vrot.slane %v7949, 2
    %v8392 = vsel %vm3502, %v8389, %v8391
    %v8393 = vrot.slane %v7918, 2
    %v8394 = vrot.slane %v7765, 2
    %v8395 = vsel %vm3502, %v8393, %v8394
    %v8396 = vrot.slane %v7950, 2
    %v8397 = vsel %vm3502, %v8394, %v8396
    %v8398 = vrot.slane %v7919, 2
    %v8399 = vrot.slane %v7768, 2
    %v8400 = vsel %vm3502, %v8398, %v8399
    %v8401 = vrot.slane %v7951, 2
    %v8402 = vsel %vm3502, %v8399, %v8401
    %v8403 = vrot.slane %v7920, 2
    %v8404 = vrot.slane %v7771, 2
    %v8405 = vsel %vm3502, %v8403, %v8404
    %v8406 = vrot.slane %v7952, 2
    %v8407 = vsel %vm3502, %v8404, %v8406
    %v8408 = vrot.slane %v7921, 2
    %v8409 = vrot.slane %v7774, 2
    %v8410 = vsel %vm3502, %v8408, %v8409
    %v8411 = vrot.slane %v7953, 2
    %v8412 = vsel %vm3502, %v8409, %v8411
    %v8413 = vrot.slane %v7922, 2
    %v8414 = vrot.slane %v7777, 2
    %v8415 = vsel %vm3502, %v8413, %v8414
    %v8416 = vrot.slane %v7954, 2
    %v8417 = vsel %vm3502, %v8414, %v8416
    %v8418 = vrot.slane %v7923, 2
    %v8419 = vrot.slane %v7780, 2
    %v8420 = vsel %vm3502, %v8418, %v8419
    %v8421 = vrot.slane %v7955, 2
    %v8422 = vsel %vm3502, %v8419, %v8421
    %v8423 = vrot.slane %v7924, 2
    %v8424 = vrot.slane %v7783, 2
    %v8425 = vsel %vm3502, %v8423, %v8424
    %v8426 = vrot.slane %v7956, 2
    %v8427 = vsel %vm3502, %v8424, %v8426
    %v8428 = vrot.slane %v7925, 2
    %v8429 = vrot.slane %v7786, 2
    %v8430 = vsel %vm3502, %v8428, %v8429
    %v8431 = vrot.slane %v7957, 2
    %v8432 = vsel %vm3502, %v8429, %v8431
    %v8433 = vrot.slane %v7926, 2
    %v8434 = vrot.slane %v7789, 2
    %v8435 = vsel %vm3502, %v8433, %v8434
    %v8436 = vrot.slane %v7958, 2
    %v8437 = vsel %vm3502, %v8434, %v8436
    %v8438 = vrot.slane %v7927, 2
    %v8439 = vrot.slane %v7792, 2
    %v8440 = vsel %vm3502, %v8438, %v8439
    %v8441 = vrot.slane %v7959, 2
    %v8442 = vsel %vm3502, %v8439, %v8441
    %v8443 = vrot.slane %v7928, 2
    %v8444 = vrot.slane %v7795, 2
    %v8445 = vsel %vm3502, %v8443, %v8444
    %v8446 = vrot.slane %v7960, 2
    %v8447 = vsel %vm3502, %v8444, %v8446
    %v8448 = vrot.slane %v7929, 2
    %v8449 = vrot.slane %v7798, 2
    %v8450 = vsel %vm3502, %v8448, %v8449
    %v8451 = vrot.slane %v7961, 2
    %v8452 = vsel %vm3502, %v8449, %v8451
    %v8515 = vpack.c.bf16 %v8302, %v8301
    %v8516 = vpack.c.bf16 %v8307, %v8305
    %v8517 = vpack.c.bf16 %v8312, %v8310
    %v8518 = vpack.c.bf16 %v8317, %v8315
    %v8519 = vpack.c.bf16 %v8322, %v8320
    %v8520 = vpack.c.bf16 %v8327, %v8325
    %v8521 = vpack.c.bf16 %v8332, %v8330
    %v8522 = vpack.c.bf16 %v8337, %v8335
    %v8523 = vpack.c.bf16 %v8342, %v8340
    %v8524 = vpack.c.bf16 %v8347, %v8345
    %v8525 = vpack.c.bf16 %v8352, %v8350
    %v8526 = vpack.c.bf16 %v8357, %v8355
    %v8527 = vpack.c.bf16 %v8362, %v8360
    %v8528 = vpack.c.bf16 %v8367, %v8365
    %v8529 = vpack.c.bf16 %v8372, %v8370
    %v8530 = vpack.c.bf16 %v8377, %v8375
    %v8531 = vpack.c.bf16 %v8382, %v8380
    %v8532 = vpack.c.bf16 %v8387, %v8385
    %v8533 = vpack.c.bf16 %v8392, %v8390
    %v8534 = vpack.c.bf16 %v8397, %v8395
    %v8535 = vpack.c.bf16 %v8402, %v8400
    %v8536 = vpack.c.bf16 %v8407, %v8405
    %v8537 = vpack.c.bf16 %v8412, %v8410
    %v8538 = vpack.c.bf16 %v8417, %v8415
    %v8539 = vpack.c.bf16 %v8422, %v8420
    %v8540 = vpack.c.bf16 %v8427, %v8425
    %v8541 = vpack.c.bf16 %v8432, %v8430
    %v8542 = vpack.c.bf16 %v8437, %v8435
    %v8543 = vpack.c.bf16 %v8442, %v8440
    %v8544 = vpack.c.bf16 %v8447, %v8445
    %v8545 = vpack.c.bf16 %v8452, %v8450
    %v8546 = vpack.c.bf16 %v7753, %v7914
    %v8547 = vpack.c.bf16 %v7801, %v7930
    %v8552 = vrot.slane %v7914, 1
    %v8553 = vrot.slane %v7753, 1
    %v8554 = vsel %vm3433, %v8552, %v8553
    %v8555 = vrot.slane %v7946, 1
    %v8556 = vsel %vm3433, %v8553, %v8555
    %v8557 = vrot.slane %v7930, 1
    %v8558 = vrot.slane %v7801, 1
    %v8559 = vsel %vm3433, %v8557, %v8558
    %v8560 = vrot.slane %v7962, 1
    %v8561 = vsel %vm3433, %v8558, %v8560
    %v8566 = vpack.c.bf16 %v8556, %v8554
    %v8567 = vpack.c.bf16 %v8561, %v8559
    %v8568 = vrot.slane %v7914, 2
    %v8569 = vrot.slane %v7753, 2
    %v8570 = vsel %vm3502, %v8568, %v8569
    %v8571 = vrot.slane %v7946, 2
    %v8572 = vsel %vm3502, %v8569, %v8571
    %v8573 = vrot.slane %v7930, 2
    %v8574 = vrot.slane %v7801, 2
    %v8575 = vsel %vm3502, %v8573, %v8574
    %v8576 = vrot.slane %v7962, 2
    %v8577 = vsel %vm3502, %v8574, %v8576
    %v8582 = vpack.c.bf16 %v8572, %v8570
    %v8583 = vpack.c.bf16 %v8577, %v8575
    %v8584 = vld [vmem:[#allocation10] sm:$0xff]
    %v8585 = vpack.c.bf16 %v8584, %v8584
    %s8586 = scalar_lea.vmem [#allocation10], 8
    %v8587 = vld [vmem:[%s8586] sm:$0xff]
    %v8588 = vpack.c.bf16 %v8587, %v8587
    %8589 = vmatprep.subr.bf16.mxu0 0
    %8590 = vmatpush1.bf16.xpose.msra.mxu0 %v8269
    %8591 = vmatprep.subr.bf16.mxu0 0
    %8592 = vmatpush1.bf16.xpose.msra.mxu0 %v8270
    %8593 = vmatprep.subr.bf16.mxu0 0
    %8594 = vmatpush1.bf16.xpose.msra.mxu0 %v8271
    %8595 = vmatprep.subr.bf16.mxu0 0
    %8596 = vmatpush1.bf16.xpose.msra.mxu0 %v8272
    %8597 = vmatprep.subr.bf16.mxu0 0
    %8598 = vmatpush1.bf16.xpose.msra.mxu0 %v8273
    %8599 = vmatprep.subr.bf16.mxu0 0
    %8600 = vmatpush1.bf16.xpose.msra.mxu0 %v8274
    %8601 = vmatprep.subr.bf16.mxu0 0
    %8602 = vmatpush1.bf16.xpose.msra.mxu0 %v8275
    %8603 = vmatprep.subr.bf16.mxu0 0
    %8604 = vmatpush1.bf16.xpose.msra.mxu0 %v8276
    %8605 = vmatprep.subr.bf16.mxu0 0
    %8606 = vmatpush1.bf16.xpose.msra.mxu0 %v8277
    %8607 = vmatprep.subr.bf16.mxu0 0
    %8608 = vmatpush1.bf16.xpose.msra.mxu0 %v8278
    %8609 = vmatprep.subr.bf16.mxu0 0
    %8610 = vmatpush1.bf16.xpose.msra.mxu0 %v8279
    %8611 = vmatprep.subr.bf16.mxu0 0
    %8612 = vmatpush1.bf16.xpose.msra.mxu0 %v8280
    %8613 = vmatprep.subr.bf16.mxu0 0
    %8614 = vmatpush1.bf16.xpose.msra.mxu0 %v8281
    %8615 = vmatprep.subr.bf16.mxu0 0
    %8616 = vmatpush1.bf16.xpose.msra.mxu0 %v8282
    %8617 = vmatprep.subr.bf16.mxu0 0
    %8618 = vmatpush1.bf16.xpose.msra.mxu0 %v8283
    %8619 = vmatprep.subr.bf16.mxu0 0
    %8620 = vmatpush1.bf16.xpose.msra.mxu0 %v8284
    %8621 = vmatprep.mubr.bf16.mxu0 0
    %8622 = vmatmul.mubr.bf16.gmra.mrb[0].mxu0 %v8588
    %v8623 = vpop.f32.mrb[0].mxu0
    %v8624 = vadd.f32 0.0, %v8623
    %v8625 = vpop.f32.mrb[0].mxu0
    %v8626 = vadd.f32 0.0, %v8625
    %v8627 = vpop.f32.mrb[0].mxu0
    %v8628 = vpop.f32.mrb[0].mxu0
    %8629 = vdwg.mxu0
    %8630 = vmatprep.subr.bf16.mxu0 0
    %8631 = vmatpush1.bf16.xpose.msra.mxu0 %v8269
    %8632 = vmatprep.subr.bf16.mxu0 0
    %8633 = vmatpush1.bf16.xpose.msra.mxu0 %v8285
    %8634 = vmatprep.subr.bf16.mxu0 0
    %8635 = vmatpush1.bf16.xpose.msra.mxu0 %v8286
    %8636 = vmatprep.subr.bf16.mxu0 0
    %8637 = vmatpush1.bf16.xpose.msra.mxu0 %v8287
    %8638 = vmatprep.subr.bf16.mxu0 0
    %8639 = vmatpush1.bf16.xpose.msra.mxu0 %v8288
    %8640 = vmatprep.subr.bf16.mxu0 0
    %8641 = vmatpush1.bf16.xpose.msra.mxu0 %v8289
    %8642 = vmatprep.subr.bf16.mxu0 0
    %8643 = vmatpush1.bf16.xpose.msra.mxu0 %v8290
    %8644 = vmatprep.subr.bf16.mxu0 0
    %8645 = vmatpush1.bf16.xpose.msra.mxu0 %v8291
    %8646 = vmatprep.subr.bf16.mxu0 0
    %8647 = vmatpush1.bf16.xpose.msra.mxu0 %v8292
    %8648 = vmatprep.subr.bf16.mxu0 0
    %8649 = vmatpush1.bf16.xpose.msra.mxu0 %v8293
    %8650 = vmatprep.subr.bf16.mxu0 0
    %8651 = vmatpush1.bf16.xpose.msra.mxu0 %v8294
    %8652 = vmatprep.subr.bf16.mxu0 0
    %8653 = vmatpush1.bf16.xpose.msra.mxu0 %v8295
    %8654 = vmatprep.subr.bf16.mxu0 0
    %8655 = vmatpush1.bf16.xpose.msra.mxu0 %v8296
    %8656 = vmatprep.subr.bf16.mxu0 0
    %8657 = vmatpush1.bf16.xpose.msra.mxu0 %v8297
    %8658 = vmatprep.subr.bf16.mxu0 0
    %8659 = vmatpush1.bf16.xpose.msra.mxu0 %v8298
    %8660 = vmatprep.subr.bf16.mxu0 0
    %8661 = vmatpush1.bf16.xpose.msra.mxu0 %v8299
    %8662 = vmatprep.mubr.bf16.mxu0 0
    %8663 = vmatmul.mubr.bf16.gmra.mrb[0].mxu0 %v8588
    %v8664 = vpop.f32.mrb[0].mxu0
    %v8665 = vadd.f32 0.0, %v8664
    %v8666 = vpop.f32.mrb[0].mxu0
    %v8667 = vadd.f32 0.0, %v8666
    %v8668 = vpop.f32.mrb[0].mxu0
    %v8669 = vpop.f32.mrb[0].mxu0
    %8670 = vdwg.mxu0
    %8671 = vmatprep.subr.bf16.mxu0 0
    %8672 = vmatpush1.bf16.xpose.msra.mxu0 %v7963
    %8673 = vmatprep.subr.bf16.mxu0 0
    %8674 = vmatpush1.bf16.xpose.msra.mxu0 %v7964
    %8675 = vmatprep.subr.bf16.mxu0 0
    %8676 = vmatpush1.bf16.xpose.msra.mxu0 %v7965
    %8677 = vmatprep.subr.bf16.mxu0 0
    %8678 = vmatpush1.bf16.xpose.msra.mxu0 %v7966
    %8679 = vmatprep.subr.bf16.mxu0 0
    %8680 = vmatpush1.bf16.xpose.msra.mxu0 %v7967
    %8681 = vmatprep.subr.bf16.mxu0 0
    %8682 = vmatpush1.bf16.xpose.msra.mxu0 %v7968
    %8683 = vmatprep.subr.bf16.mxu0 0
    %8684 = vmatpush1.bf16.xpose.msra.mxu0 %v7969
    %8685 = vmatprep.subr.bf16.mxu0 0
    %8686 = vmatpush1.bf16.xpose.msra.mxu0 %v7970
    %8687 = vmatprep.subr.bf16.mxu0 0
    %8688 = vmatpush1.bf16.xpose.msra.mxu0 %v7971
    %8689 = vmatprep.subr.bf16.mxu0 0
    %8690 = vmatpush1.bf16.xpose.msra.mxu0 %v7972
    %8691 = vmatprep.subr.bf16.mxu0 0
    %8692 = vmatpush1.bf16.xpose.msra.mxu0 %v7973
    %8693 = vmatprep.subr.bf16.mxu0 0
    %8694 = vmatpush1.bf16.xpose.msra.mxu0 %v7974
    %8695 = vmatprep.subr.bf16.mxu0 0
    %8696 = vmatpush1.bf16.xpose.msra.mxu0 %v7975
    %8697 = vmatprep.subr.bf16.mxu0 0
    %8698 = vmatpush1.bf16.xpose.msra.mxu0 %v7976
    %8699 = vmatprep.subr.bf16.mxu0 0
    %8700 = vmatpush1.bf16.xpose.msra.mxu0 %v7977
    %8701 = vmatprep.subr.bf16.mxu0 0
    %8702 = vmatpush1.bf16.xpose.msra.mxu0 %v7978
    %8703 = vmatprep.mubr.bf16.mxu0 0
    %8704 = vmatmul.mubr.bf16.gmra.mrb[0].mxu0 %v8585
    %v8705 = vpop.f32.mrb[0].mxu0
    %v8706 = vadd.f32 %v8624, %v8705
    %v8707 = vpop.f32.mrb[0].mxu0
    %v8708 = vadd.f32 %v8626, %v8707
    %v8709 = vpop.f32.mrb[0].mxu0
    %v8710 = vpop.f32.mrb[0].mxu0
    %8711 = vdwg.mxu0
    %8712 = vmatprep.subr.bf16.mxu0 0
    %8713 = vmatpush1.bf16.xpose.msra.mxu0 %v7963
    %8714 = vmatprep.subr.bf16.mxu0 0
    %8715 = vmatpush1.bf16.xpose.msra.mxu0 %v7979
    %8716 = vmatprep.subr.bf16.mxu0 0
    %8717 = vmatpush1.bf16.xpose.msra.mxu0 %v7980
    %8718 = vmatprep.subr.bf16.mxu0 0
    %8719 = vmatpush1.bf16.xpose.msra.mxu0 %v7981
    %8720 = vmatprep.subr.bf16.mxu0 0
    %8721 = vmatpush1.bf16.xpose.msra.mxu0 %v7982
    %8722 = vmatprep.subr.bf16.mxu0 0
    %8723 = vmatpush1.bf16.xpose.msra.mxu0 %v7983
    %8724 = vmatprep.subr.bf16.mxu0 0
    %8725 = vmatpush1.bf16.xpose.msra.mxu0 %v7984
    %8726 = vmatprep.subr.bf16.mxu0 0
    %8727 = vmatpush1.bf16.xpose.msra.mxu0 %v7985
    %8728 = vmatprep.subr.bf16.mxu0 0
    %8729 = vmatpush1.bf16.xpose.msra.mxu0 %v7986
    %8730 = vmatprep.subr.bf16.mxu0 0
    %8731 = vmatpush1.bf16.xpose.msra.mxu0 %v7987
    %8732 = vmatprep.subr.bf16.mxu0 0
    %8733 = vmatpush1.bf16.xpose.msra.mxu0 %v7988
    %8734 = vmatprep.subr.bf16.mxu0 0
    %8735 = vmatpush1.bf16.xpose.msra.mxu0 %v7989
    %8736 = vmatprep.subr.bf16.mxu0 0
    %8737 = vmatpush1.bf16.xpose.msra.mxu0 %v7990
    %8738 = vmatprep.subr.bf16.mxu0 0
    %8739 = vmatpush1.bf16.xpose.msra.mxu0 %v7991
    %8740 = vmatprep.subr.bf16.mxu0 0
    %8741 = vmatpush1.bf16.xpose.msra.mxu0 %v7992
    %8742 = vmatprep.subr.bf16.mxu0 0
    %8743 = vmatpush1.bf16.xpose.msra.mxu0 %v7993
    %8744 = vmatprep.mubr.bf16.mxu0 0
    %8745 = vmatmul.mubr.bf16.gmra.mrb[0].mxu0 %v8585
    %v8746 = vpop.f32.mrb[0].mxu0
    %v8747 = vadd.f32 %v8665, %v8746
    %v8748 = vpop.f32.mrb[0].mxu0
    %v8749 = vadd.f32 %v8667, %v8748
    %v8750 = vpop.f32.mrb[0].mxu0
    %v8751 = vpop.f32.mrb[0].mxu0
    %8752 = vdwg.mxu0
    %s8753 = scalar_lea.vmem [#allocation10], 16
    %v8754 = vld [vmem:[%s8753] sm:$0xff]
    %v8755 = vpack.c.bf16 %v8754, %v8754
    %8756 = vmatprep.subr.bf16.mxu0 0
    %8757 = vmatpush1.bf16.xpose.msra.mxu0 %v8515
    %8758 = vmatprep.subr.bf16.mxu0 0
    %8759 = vmatpush1.bf16.xpose.msra.mxu0 %v8516
    %8760 = vmatprep.subr.bf16.mxu0 0
    %8761 = vmatpush1.bf16.xpose.msra.mxu0 %v8517
    %8762 = vmatprep.subr.bf16.mxu0 0
    %8763 = vmatpush1.bf16.xpose.msra.mxu0 %v8518
    %8764 = vmatprep.subr.bf16.mxu0 0
    %8765 = vmatpush1.bf16.xpose.msra.mxu0 %v8519
    %8766 = vmatprep.subr.bf16.mxu0 0
    %8767 = vmatpush1.bf16.xpose.msra.mxu0 %v8520
    %8768 = vmatprep.subr.bf16.mxu0 0
    %8769 = vmatpush1.bf16.xpose.msra.mxu0 %v8521
    %8770 = vmatprep.subr.bf16.mxu0 0
    %8771 = vmatpush1.bf16.xpose.msra.mxu0 %v8522
    %8772 = vmatprep.subr.bf16.mxu0 0
    %8773 = vmatpush1.bf16.xpose.msra.mxu0 %v8523
    %8774 = vmatprep.subr.bf16.mxu0 0
    %8775 = vmatpush1.bf16.xpose.msra.mxu0 %v8524
    %8776 = vmatprep.subr.bf16.mxu0 0
    %8777 = vmatpush1.bf16.xpose.msra.mxu0 %v8525
    %8778 = vmatprep.subr.bf16.mxu0 0
    %8779 = vmatpush1.bf16.xpose.msra.mxu0 %v8526
    %8780 = vmatprep.subr.bf16.mxu0 0
    %8781 = vmatpush1.bf16.xpose.msra.mxu0 %v8527
    %8782 = vmatprep.subr.bf16.mxu0 0
    %8783 = vmatpush1.bf16.xpose.msra.mxu0 %v8528
    %8784 = vmatprep.subr.bf16.mxu0 0
    %8785 = vmatpush1.bf16.xpose.msra.mxu0 %v8529
    %8786 = vmatprep.subr.bf16.mxu0 0
    %8787 = vmatpush1.bf16.xpose.msra.mxu0 %v8530
    %8788 = vmatprep.mubr.bf16.mxu0 0
    %8789 = vmatmul.mubr.bf16.gmra.mrb[0].mxu0 %v8755
    %v8790 = vpop.f32.mrb[0].mxu0
    %v8791 = vadd.f32 0.0, %v8790
    %v8792 = vpop.f32.mrb[0].mxu0
    %v8793 = vadd.f32 0.0, %v8792
    %v8794 = vpop.f32.mrb[0].mxu0
    %v8795 = vpop.f32.mrb[0].mxu0
    %8796 = vdwg.mxu0
    %8797 = vmatprep.subr.bf16.mxu0 0
    %8798 = vmatpush1.bf16.xpose.msra.mxu0 %v8515
    %8799 = vmatprep.subr.bf16.mxu0 0
    %8800 = vmatpush1.bf16.xpose.msra.mxu0 %v8531
    %8801 = vmatprep.subr.bf16.mxu0 0
    %8802 = vmatpush1.bf16.xpose.msra.mxu0 %v8532
    %8803 = vmatprep.subr.bf16.mxu0 0
    %8804 = vmatpush1.bf16.xpose.msra.mxu0 %v8533
    %8805 = vmatprep.subr.bf16.mxu0 0
    %8806 = vmatpush1.bf16.xpose.msra.mxu0 %v8534
    %8807 = vmatprep.subr.bf16.mxu0 0
    %8808 = vmatpush1.bf16.xpose.msra.mxu0 %v8535
    %8809 = vmatprep.subr.bf16.mxu0 0
    %8810 = vmatpush1.bf16.xpose.msra.mxu0 %v8536
    %8811 = vmatprep.subr.bf16.mxu0 0
    %8812 = vmatpush1.bf16.xpose.msra.mxu0 %v8537
    %8813 = vmatprep.subr.bf16.mxu0 0
    %8814 = vmatpush1.bf16.xpose.msra.mxu0 %v8538
    %8815 = vmatprep.subr.bf16.mxu0 0
    %8816 = vmatpush1.bf16.xpose.msra.mxu0 %v8539
    %8817 = vmatprep.subr.bf16.mxu0 0
    %8818 = vmatpush1.bf16.xpose.msra.mxu0 %v8540
    %8819 = vmatprep.subr.bf16.mxu0 0
    %8820 = vmatpush1.bf16.xpose.msra.mxu0 %v8541
    %8821 = vmatprep.subr.bf16.mxu0 0
    %8822 = vmatpush1.bf16.xpose.msra.mxu0 %v8542
    %8823 = vmatprep.subr.bf16.mxu0 0
    %8824 = vmatpush1.bf16.xpose.msra.mxu0 %v8543
    %8825 = vmatprep.subr.bf16.mxu0 0
    %8826 = vmatpush1.bf16.xpose.msra.mxu0 %v8544
    %8827 = vmatprep.subr.bf16.mxu0 0
    %8828 = vmatpush1.bf16.xpose.msra.mxu0 %v8545
    %8829 = vmatprep.mubr.bf16.mxu0 0
    %8830 = vmatmul.mubr.bf16.gmra.mrb[0].mxu0 %v8755
    %v8831 = vpop.f32.mrb[0].mxu0
    %v8832 = vadd.f32 0.0, %v8831
    %v8833 = vpop.f32.mrb[0].mxu0
    %v8834 = vadd.f32 0.0, %v8833
    %v8835 = vpop.f32.mrb[0].mxu0
    %v8836 = vpop.f32.mrb[0].mxu0
    %8837 = vdwg.mxu0
    %v8838 = vadd.f32 %v8706, %v8791
    %v8839 = vadd.f32 %v8708, %v8793
    %v8840 = vadd.f32 %v8747, %v8832
    %v8841 = vadd.f32 %v8749, %v8834
    %s8842 = scalar_lea.vmem [#allocation10], 24
    %v8843 = vld [vmem:[%s8842] sm:$0xff]
    %v8844 = vpack.c.bf16 %v8843, %v8843
    %8845 = vmatprep.subr.bf16.mxu0 0
    %8846 = vmatpush1.bf16.xpose.msra.mxu0 %v7964
    %8847 = vmatprep.subr.bf16.mxu0 0
    %8848 = vmatpush1.bf16.xpose.msra.mxu0 %v7965
    %8849 = vmatprep.subr.bf16.mxu0 0
    %8850 = vmatpush1.bf16.xpose.msra.mxu0 %v7966
    %8851 = vmatprep.subr.bf16.mxu0 0
    %8852 = vmatpush1.bf16.xpose.msra.mxu0 %v7967
    %8853 = vmatprep.subr.bf16.mxu0 0
    %8854 = vmatpush1.bf16.xpose.msra.mxu0 %v7968
    %8855 = vmatprep.subr.bf16.mxu0 0
    %8856 = vmatpush1.bf16.xpose.msra.mxu0 %v7969
    %8857 = vmatprep.subr.bf16.mxu0 0
    %8858 = vmatpush1.bf16.xpose.msra.mxu0 %v7970
    %8859 = vmatprep.subr.bf16.mxu0 0
    %8860 = vmatpush1.bf16.xpose.msra.mxu0 %v7971
    %8861 = vmatprep.subr.bf16.mxu0 0
    %8862 = vmatpush1.bf16.xpose.msra.mxu0 %v7972
    %8863 = vmatprep.subr.bf16.mxu0 0
    %8864 = vmatpush1.bf16.xpose.msra.mxu0 %v7973
    %8865 = vmatprep.subr.bf16.mxu0 0
    %8866 = vmatpush1.bf16.xpose.msra.mxu0 %v7974
    %8867 = vmatprep.subr.bf16.mxu0 0
    %8868 = vmatpush1.bf16.xpose.msra.mxu0 %v7975
    %8869 = vmatprep.subr.bf16.mxu0 0
    %8870 = vmatpush1.bf16.xpose.msra.mxu0 %v7976
    %8871 = vmatprep.subr.bf16.mxu0 0
    %8872 = vmatpush1.bf16.xpose.msra.mxu0 %v7977
    %8873 = vmatprep.subr.bf16.mxu0 0
    %8874 = vmatpush1.bf16.xpose.msra.mxu0 %v7978
    %8875 = vmatprep.subr.bf16.mxu0 0
    %8876 = vmatpush1.bf16.xpose.msra.mxu0 %v8546
    %8877 = vmatprep.mubr.bf16.mxu0 0
    %8878 = vmatmul.mubr.bf16.gmra.mrb[0].mxu0 %v8844
    %v8879 = vpop.f32.mrb[0].mxu0
    %v8880 = vadd.f32 0.0, %v8879
    %v8881 = vpop.f32.mrb[0].mxu0
    %v8882 = vadd.f32 0.0, %v8881
    %v8883 = vpop.f32.mrb[0].mxu0
    %v8884 = vpop.f32.mrb[0].mxu0
    %8885 = vdwg.mxu0
    %8886 = vmatprep.subr.bf16.mxu0 0
    %8887 = vmatpush1.bf16.xpose.msra.mxu0 %v7979
    %8888 = vmatprep.subr.bf16.mxu0 0
    %8889 = vmatpush1.bf16.xpose.msra.mxu0 %v7980
    %8890 = vmatprep.subr.bf16.mxu0 0
    %8891 = vmatpush1.bf16.xpose.msra.mxu0 %v7981
    %8892 = vmatprep.subr.bf16.mxu0 0
    %8893 = vmatpush1.bf16.xpose.msra.mxu0 %v7982
    %8894 = vmatprep.subr.bf16.mxu0 0
    %8895 = vmatpush1.bf16.xpose.msra.mxu0 %v7983
    %8896 = vmatprep.subr.bf16.mxu0 0
    %8897 = vmatpush1.bf16.xpose.msra.mxu0 %v7984
    %8898 = vmatprep.subr.bf16.mxu0 0
    %8899 = vmatpush1.bf16.xpose.msra.mxu0 %v7985
    %8900 = vmatprep.subr.bf16.mxu0 0
    %8901 = vmatpush1.bf16.xpose.msra.mxu0 %v7986
    %8902 = vmatprep.subr.bf16.mxu0 0
    %8903 = vmatpush1.bf16.xpose.msra.mxu0 %v7987
    %8904 = vmatprep.subr.bf16.mxu0 0
    %8905 = vmatpush1.bf16.xpose.msra.mxu0 %v7988
    %8906 = vmatprep.subr.bf16.mxu0 0
    %8907 = vmatpush1.bf16.xpose.msra.mxu0 %v7989
    %8908 = vmatprep.subr.bf16.mxu0 0
    %8909 = vmatpush1.bf16.xpose.msra.mxu0 %v7990
    %8910 = vmatprep.subr.bf16.mxu0 0
    %8911 = vmatpush1.bf16.xpose.msra.mxu0 %v7991
    %8912 = vmatprep.subr.bf16.mxu0 0
    %8913 = vmatpush1.bf16.xpose.msra.mxu0 %v7992
    %8914 = vmatprep.subr.bf16.mxu0 0
    %8915 = vmatpush1.bf16.xpose.msra.mxu0 %v7993
    %8916 = vmatprep.subr.bf16.mxu0 0
    %8917 = vmatpush1.bf16.xpose.msra.mxu0 %v8547
    %8918 = vmatprep.mubr.bf16.mxu0 0
    %8919 = vmatmul.mubr.bf16.gmra.mrb[0].mxu0 %v8844
    %v8920 = vpop.f32.mrb[0].mxu0
    %v8921 = vadd.f32 0.0, %v8920
    %v8922 = vpop.f32.mrb[0].mxu0
    %v8923 = vadd.f32 0.0, %v8922
    %v8924 = vpop.f32.mrb[0].mxu0
    %v8925 = vpop.f32.mrb[0].mxu0
    %8926 = vdwg.mxu0
    %v8927 = vadd.f32 %v8838, %v8880
    %v8928 = vadd.f32 %v8839, %v8882
    %v8929 = vadd.f32 %v8840, %v8921
    %v8930 = vadd.f32 %v8841, %v8923
    %s8931 = scalar_lea.vmem [#allocation10], 32
    %v8932 = vld [vmem:[%s8931] sm:$0xff]
    %v8933 = vpack.c.bf16 %v8932, %v8932
    %8934 = vmatprep.subr.bf16.mxu0 0
    %8935 = vmatpush1.bf16.xpose.msra.mxu0 %v8270
    %8936 = vmatprep.subr.bf16.mxu0 0
    %8937 = vmatpush1.bf16.xpose.msra.mxu0 %v8271
    %8938 = vmatprep.subr.bf16.mxu0 0
    %8939 = vmatpush1.bf16.xpose.msra.mxu0 %v8272
    %8940 = vmatprep.subr.bf16.mxu0 0
    %8941 = vmatpush1.bf16.xpose.msra.mxu0 %v8273
    %8942 = vmatprep.subr.bf16.mxu0 0
    %8943 = vmatpush1.bf16.xpose.msra.mxu0 %v8274
    %8944 = vmatprep.subr.bf16.mxu0 0
    %8945 = vmatpush1.bf16.xpose.msra.mxu0 %v8275
    %8946 = vmatprep.subr.bf16.mxu0 0
    %8947 = vmatpush1.bf16.xpose.msra.mxu0 %v8276
    %8948 = vmatprep.subr.bf16.mxu0 0
    %8949 = vmatpush1.bf16.xpose.msra.mxu0 %v8277
    %8950 = vmatprep.subr.bf16.mxu0 0
    %8951 = vmatpush1.bf16.xpose.msra.mxu0 %v8278
    %8952 = vmatprep.subr.bf16.mxu0 0
    %8953 = vmatpush1.bf16.xpose.msra.mxu0 %v8279
    %8954 = vmatprep.subr.bf16.mxu0 0
    %8955 = vmatpush1.bf16.xpose.msra.mxu0 %v8280
    %8956 = vmatprep.subr.bf16.mxu0 0
    %8957 = vmatpush1.bf16.xpose.msra.mxu0 %v8281
    %8958 = vmatprep.subr.bf16.mxu0 0
    %8959 = vmatpush1.bf16.xpose.msra.mxu0 %v8282
    %8960 = vmatprep.subr.bf16.mxu0 0
    %8961 = vmatpush1.bf16.xpose.msra.mxu0 %v8283
    %8962 = vmatprep.subr.bf16.mxu0 0
    %8963 = vmatpush1.bf16.xpose.msra.mxu0 %v8284
    %8964 = vmatprep.subr.bf16.mxu0 0
    %8965 = vmatpush1.bf16.xpose.msra.mxu0 %v8566
    %8966 = vmatprep.mubr.bf16.mxu0 0
    %8967 = vmatmul.mubr.bf16.gmra.mrb[0].mxu0 %v8933
    %v8968 = vpop.f32.mrb[0].mxu0
    %v8969 = vadd.f32 0.0, %v8968
    %v8970 = vpop.f32.mrb[0].mxu0
    %v8971 = vadd.f32 0.0, %v8970
    %v8972 = vpop.f32.mrb[0].mxu0
    %v8973 = vpop.f32.mrb[0].mxu0
    %8974 = vdwg.mxu0
    %8975 = vmatprep.subr.bf16.mxu0 0
    %8976 = vmatpush1.bf16.xpose.msra.mxu0 %v8285
    %8977 = vmatprep.subr.bf16.mxu0 0
    %8978 = vmatpush1.bf16.xpose.msra.mxu0 %v8286
    %8979 = vmatprep.subr.bf16.mxu0 0
    %8980 = vmatpush1.bf16.xpose.msra.mxu0 %v8287
    %8981 = vmatprep.subr.bf16.mxu0 0
    %8982 = vmatpush1.bf16.xpose.msra.mxu0 %v8288
    %8983 = vmatprep.subr.bf16.mxu0 0
    %8984 = vmatpush1.bf16.xpose.msra.mxu0 %v8289
    %8985 = vmatprep.subr.bf16.mxu0 0
    %8986 = vmatpush1.bf16.xpose.msra.mxu0 %v8290
    %8987 = vmatprep.subr.bf16.mxu0 0
    %8988 = vmatpush1.bf16.xpose.msra.mxu0 %v8291
    %8989 = vmatprep.subr.bf16.mxu0 0
    %8990 = vmatpush1.bf16.xpose.msra.mxu0 %v8292
    %8991 = vmatprep.subr.bf16.mxu0 0
    %8992 = vmatpush1.bf16.xpose.msra.mxu0 %v8293
    %8993 = vmatprep.subr.bf16.mxu0 0
    %8994 = vmatpush1.bf16.xpose.msra.mxu0 %v8294
    %8995 = vmatprep.subr.bf16.mxu0 0
    %8996 = vmatpush1.bf16.xpose.msra.mxu0 %v8295
    %8997 = vmatprep.subr.bf16.mxu0 0
    %8998 = vmatpush1.bf16.xpose.msra.mxu0 %v8296
    %8999 = vmatprep.subr.bf16.mxu0 0
    %9000 = vmatpush1.bf16.xpose.msra.mxu0 %v8297
    %9001 = vmatprep.subr.bf16.mxu0 0
    %9002 = vmatpush1.bf16.xpose.msra.mxu0 %v8298
    %9003 = vmatprep.subr.bf16.mxu0 0
    %9004 = vmatpush1.bf16.xpose.msra.mxu0 %v8299
    %9005 = vmatprep.subr.bf16.mxu0 0
    %9006 = vmatpush1.bf16.xpose.msra.mxu0 %v8567
    %9007 = vmatprep.mubr.bf16.mxu0 0
    %9008 = vmatmul.mubr.bf16.gmra.mrb[0].mxu0 %v8933
    %v9009 = vpop.f32.mrb[0].mxu0
    %v9010 = vadd.f32 0.0, %v9009
    %v9011 = vpop.f32.mrb[0].mxu0
    %v9012 = vadd.f32 0.0, %v9011
    %v9013 = vpop.f32.mrb[0].mxu0
    %v9014 = vpop.f32.mrb[0].mxu0
    %9015 = vdwg.mxu0
    %v9016 = vadd.f32 %v8927, %v8969
    %v9017 = vadd.f32 %v8928, %v8971
    %v9018 = vadd.f32 %v8929, %v9010
    %v9019 = vadd.f32 %v8930, %v9012
    %s9020 = scalar_lea.vmem [#allocation10], 40
    %v9021 = vld [vmem:[%s9020] sm:$0xff]
    %v9022 = vpack.c.bf16 %v9021, %v9021
    %9023 = vmatprep.subr.bf16.mxu0 0
    %9024 = vmatpush1.bf16.xpose.msra.mxu0 %v8516
    %9025 = vmatprep.subr.bf16.mxu0 0
    %9026 = vmatpush1.bf16.xpose.msra.mxu0 %v8517
    %9027 = vmatprep.subr.bf16.mxu0 0
    %9028 = vmatpush1.bf16.xpose.msra.mxu0 %v8518
    %9029 = vmatprep.subr.bf16.mxu0 0
    %9030 = vmatpush1.bf16.xpose.msra.mxu0 %v8519
    %9031 = vmatprep.subr.bf16.mxu0 0
    %9032 = vmatpush1.bf16.xpose.msra.mxu0 %v8520
    %9033 = vmatprep.subr.bf16.mxu0 0
    %9034 = vmatpush1.bf16.xpose.msra.mxu0 %v8521
    %9035 = vmatprep.subr.bf16.mxu0 0
    %9036 = vmatpush1.bf16.xpose.msra.mxu0 %v8522
    %9037 = vmatprep.subr.bf16.mxu0 0
    %9038 = vmatpush1.bf16.xpose.msra.mxu0 %v8523
    %9039 = vmatprep.subr.bf16.mxu0 0
    %9040 = vmatpush1.bf16.xpose.msra.mxu0 %v8524
    %9041 = vmatprep.subr.bf16.mxu0 0
    %9042 = vmatpush1.bf16.xpose.msra.mxu0 %v8525
    %9043 = vmatprep.subr.bf16.mxu0 0
    %9044 = vmatpush1.bf16.xpose.msra.mxu0 %v8526
    %9045 = vmatprep.subr.bf16.mxu0 0
    %9046 = vmatpush1.bf16.xpose.msra.mxu0 %v8527
    %9047 = vmatprep.subr.bf16.mxu0 0
    %9048 = vmatpush1.bf16.xpose.msra.mxu0 %v8528
    %9049 = vmatprep.subr.bf16.mxu0 0
    %9050 = vmatpush1.bf16.xpose.msra.mxu0 %v8529
    %9051 = vmatprep.subr.bf16.mxu0 0
    %9052 = vmatpush1.bf16.xpose.msra.mxu0 %v8530
    %9053 = vmatprep.subr.bf16.mxu0 0
    %9054 = vmatpush1.bf16.xpose.msra.mxu0 %v8582
    %9055 = vmatprep.mubr.bf16.mxu0 0
    %9056 = vmatmul.mubr.bf16.gmra.mrb[0].mxu0 %v9022
    %v9057 = vpop.f32.mrb[0].mxu0
    %v9058 = vadd.f32 0.0, %v9057
    %v9059 = vpop.f32.mrb[0].mxu0
    %v9060 = vadd.f32 0.0, %v9059
    %v9061 = vpop.f32.mrb[0].mxu0
    %v9062 = vpop.f32.mrb[0].mxu0
    %9063 = vdwg.mxu0
    %9064 = vmatprep.subr.bf16.mxu0 0
    %9065 = vmatpush1.bf16.xpose.msra.mxu0 %v8531
    %9066 = vmatprep.subr.bf16.mxu0 0
    %9067 = vmatpush1.bf16.xpose.msra.mxu0 %v8532
    %9068 = vmatprep.subr.bf16.mxu0 0
    %9069 = vmatpush1.bf16.xpose.msra.mxu0 %v8533
    %9070 = vmatprep.subr.bf16.mxu0 0
    %9071 = vmatpush1.bf16.xpose.msra.mxu0 %v8534
    %9072 = vmatprep.subr.bf16.mxu0 0
    %9073 = vmatpush1.bf16.xpose.msra.mxu0 %v8535
    %9074 = vmatprep.subr.bf16.mxu0 0
    %9075 = vmatpush1.bf16.xpose.msra.mxu0 %v8536
    %9076 = vmatprep.subr.bf16.mxu0 0
    %9077 = vmatpush1.bf16.xpose.msra.mxu0 %v8537
    %9078 = vmatprep.subr.bf16.mxu0 0
    %9079 = vmatpush1.bf16.xpose.msra.mxu0 %v8538
    %9080 = vmatprep.subr.bf16.mxu0 0
    %9081 = vmatpush1.bf16.xpose.msra.mxu0 %v8539
    %9082 = vmatprep.subr.bf16.mxu0 0
    %9083 = vmatpush1.bf16.xpose.msra.mxu0 %v8540
    %9084 = vmatprep.subr.bf16.mxu0 0
    %9085 = vmatpush1.bf16.xpose.msra.mxu0 %v8541
    %9086 = vmatprep.subr.bf16.mxu0 0
    %9087 = vmatpush1.bf16.xpose.msra.mxu0 %v8542
    %9088 = vmatprep.subr.bf16.mxu0 0
    %9089 = vmatpush1.bf16.xpose.msra.mxu0 %v8543
    %9090 = vmatprep.subr.bf16.mxu0 0
    %9091 = vmatpush1.bf16.xpose.msra.mxu0 %v8544
    %9092 = vmatprep.subr.bf16.mxu0 0
    %9093 = vmatpush1.bf16.xpose.msra.mxu0 %v8545
    %9094 = vmatprep.subr.bf16.mxu0 0
    %9095 = vmatpush1.bf16.xpose.msra.mxu0 %v8583
    %9096 = vmatprep.mubr.bf16.mxu0 0
    %9097 = vmatmul.mubr.bf16.gmra.mrb[0].mxu0 %v9022
    %v9098 = vpop.f32.mrb[0].mxu0
    %v9099 = vadd.f32 0.0, %v9098
    %v9100 = vpop.f32.mrb[0].mxu0
    %v9101 = vadd.f32 0.0, %v9100
    %v9102 = vpop.f32.mrb[0].mxu0
    %v9103 = vpop.f32.mrb[0].mxu0
    %9104 = vdwg.mxu0
    %v9105 = vadd.f32 %v9016, %v9058
    %v9106 = vadd.f32 %v9017, %v9060
    %v9107 = vadd.f32 %v9018, %v9099
    %v9108 = vadd.f32 %v9019, %v9101
    %s9109 = scalar_lea.vmem [#allocation10], 48
    %v9110 = vld [vmem:[%s9109] sm:$0xff]
    %v9111 = vpack.c.bf16 %v9110, %v9110
    %9112 = vmatprep.subr.bf16.mxu0 0
    %9113 = vmatpush1.bf16.xpose.msra.mxu0 %v7965
    %9114 = vmatprep.subr.bf16.mxu0 0
    %9115 = vmatpush1.bf16.xpose.msra.mxu0 %v7966
    %9116 = vmatprep.subr.bf16.mxu0 0
    %9117 = vmatpush1.bf16.xpose.msra.mxu0 %v7967
    %9118 = vmatprep.subr.bf16.mxu0 0
    %9119 = vmatpush1.bf16.xpose.msra.mxu0 %v7968
    %9120 = vmatprep.subr.bf16.mxu0 0
    %9121 = vmatpush1.bf16.xpose.msra.mxu0 %v7969
    %9122 = vmatprep.subr.bf16.mxu0 0
    %9123 = vmatpush1.bf16.xpose.msra.mxu0 %v7970
    %9124 = vmatprep.subr.bf16.mxu0 0
    %9125 = vmatpush1.bf16.xpose.msra.mxu0 %v7971
    %9126 = vmatprep.subr.bf16.mxu0 0
    %9127 = vmatpush1.bf16.xpose.msra.mxu0 %v7972
    %9128 = vmatprep.subr.bf16.mxu0 0
    %9129 = vmatpush1.bf16.xpose.msra.mxu0 %v7973
    %9130 = vmatprep.subr.bf16.mxu0 0
    %9131 = vmatpush1.bf16.xpose.msra.mxu0 %v7974
    %9132 = vmatprep.subr.bf16.mxu0 0
    %9133 = vmatpush1.bf16.xpose.msra.mxu0 %v7975
    %9134 = vmatprep.subr.bf16.mxu0 0
    %9135 = vmatpush1.bf16.xpose.msra.mxu0 %v7976
    %9136 = vmatprep.subr.bf16.mxu0 0
    %9137 = vmatpush1.bf16.xpose.msra.mxu0 %v7977
    %9138 = vmatprep.subr.bf16.mxu0 0
    %9139 = vmatpush1.bf16.xpose.msra.mxu0 %v7978
    %9140 = vmatprep.subr.bf16.mxu0 0
    %9141 = vmatpush1.bf16.xpose.msra.mxu0 %v8546
    %9142 = vmatprep.subr.bf16.mxu0 0
    %9143 = vmatpush1.bf16.xpose.msra.mxu0 %v7963
    %9144 = vmatprep.mubr.bf16.mxu0 0
    %9145 = vmatmul.mubr.bf16.gmra.mrb[0].mxu0 %v9111
    %v9146 = vpop.f32.mrb[0].mxu0
    %v9147 = vadd.f32 0.0, %v9146
    %v9148 = vpop.f32.mrb[0].mxu0
    %v9149 = vadd.f32 0.0, %v9148
    %v9150 = vpop.f32.mrb[0].mxu0
    %v9151 = vpop.f32.mrb[0].mxu0
    %9152 = vdwg.mxu0
    %9153 = vmatprep.subr.bf16.mxu0 0
    %9154 = vmatpush1.bf16.xpose.msra.mxu0 %v7980
    %9155 = vmatprep.subr.bf16.mxu0 0
    %9156 = vmatpush1.bf16.xpose.msra.mxu0 %v7981
    %9157 = vmatprep.subr.bf16.mxu0 0
    %9158 = vmatpush1.bf16.xpose.msra.mxu0 %v7982
    %9159 = vmatprep.subr.bf16.mxu0 0
    %9160 = vmatpush1.bf16.xpose.msra.mxu0 %v7983
    %9161 = vmatprep.subr.bf16.mxu0 0
    %9162 = vmatpush1.bf16.xpose.msra.mxu0 %v7984
    %9163 = vmatprep.subr.bf16.mxu0 0
    %9164 = vmatpush1.bf16.xpose.msra.mxu0 %v7985
    %9165 = vmatprep.subr.bf16.mxu0 0
    %9166 = vmatpush1.bf16.xpose.msra.mxu0 %v7986
    %9167 = vmatprep.subr.bf16.mxu0 0
    %9168 = vmatpush1.bf16.xpose.msra.mxu0 %v7987
    %9169 = vmatprep.subr.bf16.mxu0 0
    %9170 = vmatpush1.bf16.xpose.msra.mxu0 %v7988
    %9171 = vmatprep.subr.bf16.mxu0 0
    %9172 = vmatpush1.bf16.xpose.msra.mxu0 %v7989
    %9173 = vmatprep.subr.bf16.mxu0 0
    %9174 = vmatpush1.bf16.xpose.msra.mxu0 %v7990
    %9175 = vmatprep.subr.bf16.mxu0 0
    %9176 = vmatpush1.bf16.xpose.msra.mxu0 %v7991
    %9177 = vmatprep.subr.bf16.mxu0 0
    %9178 = vmatpush1.bf16.xpose.msra.mxu0 %v7992
    %9179 = vmatprep.subr.bf16.mxu0 0
    %9180 = vmatpush1.bf16.xpose.msra.mxu0 %v7993
    %9181 = vmatprep.subr.bf16.mxu0 0
    %9182 = vmatpush1.bf16.xpose.msra.mxu0 %v8547
    %9183 = vmatprep.subr.bf16.mxu0 0
    %9184 = vmatpush1.bf16.xpose.msra.mxu0 %v7963
    %9185 = vmatprep.mubr.bf16.mxu0 0
    %9186 = vmatmul.mubr.bf16.gmra.mrb[0].mxu0 %v9111
    %v9187 = vpop.f32.mrb[0].mxu0
    %v9188 = vadd.f32 0.0, %v9187
    %v9189 = vpop.f32.mrb[0].mxu0
    %v9190 = vadd.f32 0.0, %v9189
    %v9191 = vpop.f32.mrb[0].mxu0
    %v9192 = vpop.f32.mrb[0].mxu0
    %9193 = vdwg.mxu0
    %v9194 = vadd.f32 %v9105, %v9147
    %v9195 = vadd.f32 %v9106, %v9149
    %v9196 = vadd.f32 %v9107, %v9188
    %v9197 = vadd.f32 %v9108, %v9190
    %s9198 = scalar_lea.vmem [#allocation10], 56
    %v9199 = vld [vmem:[%s9198] sm:$0xff]
    %v9200 = vpack.c.bf16 %v9199, %v9199
    %9201 = vmatprep.subr.bf16.mxu0 0
    %9202 = vmatpush1.bf16.xpose.msra.mxu0 %v8271
    %9203 = vmatprep.subr.bf16.mxu0 0
    %9204 = vmatpush1.bf16.xpose.msra.mxu0 %v8272
    %9205 = vmatprep.subr.bf16.mxu0 0
    %9206 = vmatpush1.bf16.xpose.msra.mxu0 %v8273
    %9207 = vmatprep.subr.bf16.mxu0 0
    %9208 = vmatpush1.bf16.xpose.msra.mxu0 %v8274
    %9209 = vmatprep.subr.bf16.mxu0 0
    %9210 = vmatpush1.bf16.xpose.msra.mxu0 %v8275
    %9211 = vmatprep.subr.bf16.mxu0 0
    %9212 = vmatpush1.bf16.xpose.msra.mxu0 %v8276
    %9213 = vmatprep.subr.bf16.mxu0 0
    %9214 = vmatpush1.bf16.xpose.msra.mxu0 %v8277
    %9215 = vmatprep.subr.bf16.mxu0 0
    %9216 = vmatpush1.bf16.xpose.msra.mxu0 %v8278
    %9217 = vmatprep.subr.bf16.mxu0 0
    %9218 = vmatpush1.bf16.xpose.msra.mxu0 %v8279
    %9219 = vmatprep.subr.bf16.mxu0 0
    %9220 = vmatpush1.bf16.xpose.msra.mxu0 %v8280
    %9221 = vmatprep.subr.bf16.mxu0 0
    %9222 = vmatpush1.bf16.xpose.msra.mxu0 %v8281
    %9223 = vmatprep.subr.bf16.mxu0 0
    %9224 = vmatpush1.bf16.xpose.msra.mxu0 %v8282
    %9225 = vmatprep.subr.bf16.mxu0 0
    %9226 = vmatpush1.bf16.xpose.msra.mxu0 %v8283
    %9227 = vmatprep.subr.bf16.mxu0 0
    %9228 = vmatpush1.bf16.xpose.msra.mxu0 %v8284
    %9229 = vmatprep.subr.bf16.mxu0 0
    %9230 = vmatpush1.bf16.xpose.msra.mxu0 %v8566
    %9231 = vmatprep.subr.bf16.mxu0 0
    %9232 = vmatpush1.bf16.xpose.msra.mxu0 %v8269
    %9233 = vmatprep.mubr.bf16.mxu0 0
    %9234 = vmatmul.mubr.bf16.gmra.mrb[0].mxu0 %v9200
    %v9235 = vpop.f32.mrb[0].mxu0
    %v9236 = vadd.f32 0.0, %v9235
    %v9237 = vpop.f32.mrb[0].mxu0
    %v9238 = vadd.f32 0.0, %v9237
    %v9239 = vpop.f32.mrb[0].mxu0
    %v9240 = vpop.f32.mrb[0].mxu0
    %9241 = vdwg.mxu0
    %9242 = vmatprep.subr.bf16.mxu0 0
    %9243 = vmatpush1.bf16.xpose.msra.mxu0 %v8286
    %9244 = vmatprep.subr.bf16.mxu0 0
    %9245 = vmatpush1.bf16.xpose.msra.mxu0 %v8287
    %9246 = vmatprep.subr.bf16.mxu0 0
    %9247 = vmatpush1.bf16.xpose.msra.mxu0 %v8288
    %9248 = vmatprep.subr.bf16.mxu0 0
    %9249 = vmatpush1.bf16.xpose.msra.mxu0 %v8289
    %9250 = vmatprep.subr.bf16.mxu0 0
    %9251 = vmatpush1.bf16.xpose.msra.mxu0 %v8290
    %9252 = vmatprep.subr.bf16.mxu0 0
    %9253 = vmatpush1.bf16.xpose.msra.mxu0 %v8291
    %9254 = vmatprep.subr.bf16.mxu0 0
    %9255 = vmatpush1.bf16.xpose.msra.mxu0 %v8292
    %9256 = vmatprep.subr.bf16.mxu0 0
    %9257 = vmatpush1.bf16.xpose.msra.mxu0 %v8293
    %9258 = vmatprep.subr.bf16.mxu0 0
    %9259 = vmatpush1.bf16.xpose.msra.mxu0 %v8294
    %9260 = vmatprep.subr.bf16.mxu0 0
    %9261 = vmatpush1.bf16.xpose.msra.mxu0 %v8295
    %9262 = vmatprep.subr.bf16.mxu0 0
    %9263 = vmatpush1.bf16.xpose.msra.mxu0 %v8296
    %9264 = vmatprep.subr.bf16.mxu0 0
    %9265 = vmatpush1.bf16.xpose.msra.mxu0 %v8297
    %9266 = vmatprep.subr.bf16.mxu0 0
    %9267 = vmatpush1.bf16.xpose.msra.mxu0 %v8298
    %9268 = vmatprep.subr.bf16.mxu0 0
    %9269 = vmatpush1.bf16.xpose.msra.mxu0 %v8299
    %9270 = vmatprep.subr.bf16.mxu0 0
    %9271 = vmatpush1.bf16.xpose.msra.mxu0 %v8567
    %9272 = vmatprep.subr.bf16.mxu0 0
    %9273 = vmatpush1.bf16.xpose.msra.mxu0 %v8269
    %9274 = vmatprep.mubr.bf16.mxu0 0
    %9275 = vmatmul.mubr.bf16.gmra.mrb[0].mxu0 %v9200
    %v9276 = vpop.f32.mrb[0].mxu0
    %v9277 = vadd.f32 0.0, %v9276
    %v9278 = vpop.f32.mrb[0].mxu0
    %v9279 = vadd.f32 0.0, %v9278
    %v9280 = vpop.f32.mrb[0].mxu0
    %v9281 = vpop.f32.mrb[0].mxu0
    %9282 = vdwg.mxu0
    %v9283 = vadd.f32 %v9194, %v9236
    %v9284 = vadd.f32 %v9195, %v9238
    %v9285 = vadd.f32 %v9196, %v9277
    %v9286 = vadd.f32 %v9197, %v9279
    %s9287 = scalar_lea.vmem [#allocation10], 64
    %v9288 = vld [vmem:[%s9287] sm:$0xff]
    %v9289 = vpack.c.bf16 %v9288, %v9288
    %9290 = vmatprep.subr.bf16.mxu0 0
    %9291 = vmatpush1.bf16.xpose.msra.mxu0 %v8517
    %9292 = vmatprep.subr.bf16.mxu0 0
    %9293 = vmatpush1.bf16.xpose.msra.mxu0 %v8518
    %9294 = vmatprep.subr.bf16.mxu0 0
    %9295 = vmatpush1.bf16.xpose.msra.mxu0 %v8519
    %9296 = vmatprep.subr.bf16.mxu0 0
    %9297 = vmatpush1.bf16.xpose.msra.mxu0 %v8520
    %9298 = vmatprep.subr.bf16.mxu0 0
    %9299 = vmatpush1.bf16.xpose.msra.mxu0 %v8521
    %9300 = vmatprep.subr.bf16.mxu0 0
    %9301 = vmatpush1.bf16.xpose.msra.mxu0 %v8522
    %9302 = vmatprep.subr.bf16.mxu0 0
    %9303 = vmatpush1.bf16.xpose.msra.mxu0 %v8523
    %9304 = vmatprep.subr.bf16.mxu0 0
    %9305 = vmatpush1.bf16.xpose.msra.mxu0 %v8524
    %9306 = vmatprep.subr.bf16.mxu0 0
    %9307 = vmatpush1.bf16.xpose.msra.mxu0 %v8525
    %9308 = vmatprep.subr.bf16.mxu0 0
    %9309 = vmatpush1.bf16.xpose.msra.mxu0 %v8526
    %9310 = vmatprep.subr.bf16.mxu0 0
    %9311 = vmatpush1.bf16.xpose.msra.mxu0 %v8527
    %9312 = vmatprep.subr.bf16.mxu0 0
    %9313 = vmatpush1.bf16.xpose.msra.mxu0 %v8528
    %9314 = vmatprep.subr.bf16.mxu0 0
    %9315 = vmatpush1.bf16.xpose.msra.mxu0 %v8529
    %9316 = vmatprep.subr.bf16.mxu0 0
    %9317 = vmatpush1.bf16.xpose.msra.mxu0 %v8530
    %9318 = vmatprep.subr.bf16.mxu0 0
    %9319 = vmatpush1.bf16.xpose.msra.mxu0 %v8582
    %9320 = vmatprep.subr.bf16.mxu0 0
    %9321 = vmatpush1.bf16.xpose.msra.mxu0 %v8515
    %9322 = vmatprep.mubr.bf16.mxu0 0
    %9323 = vmatmul.mubr.bf16.gmra.mrb[0].mxu0 %v9289
    %v9324 = vpop.f32.mrb[0].mxu0
    %v9325 = vadd.f32 0.0, %v9324
    %v9326 = vpop.f32.mrb[0].mxu0
    %v9327 = vadd.f32 0.0, %v9326
    %v9328 = vpop.f32.mrb[0].mxu0
    %v9329 = vpop.f32.mrb[0].mxu0
    %9330 = vdwg.mxu0
    %9331 = vmatprep.subr.bf16.mxu0 0
    %9332 = vmatpush1.bf16.xpose.msra.mxu0 %v8532
    %9333 = vmatprep.subr.bf16.mxu0 0
    %9334 = vmatpush1.bf16.xpose.msra.mxu0 %v8533
    %9335 = vmatprep.subr.bf16.mxu0 0
    %9336 = vmatpush1.bf16.xpose.msra.mxu0 %v8534
    %9337 = vmatprep.subr.bf16.mxu0 0
    %9338 = vmatpush1.bf16.xpose.msra.mxu0 %v8535
    %9339 = vmatprep.subr.bf16.mxu0 0
    %9340 = vmatpush1.bf16.xpose.msra.mxu0 %v8536
    %9341 = vmatprep.subr.bf16.mxu0 0
    %9342 = vmatpush1.bf16.xpose.msra.mxu0 %v8537
    %9343 = vmatprep.subr.bf16.mxu0 0
    %9344 = vmatpush1.bf16.xpose.msra.mxu0 %v8538
    %9345 = vmatprep.subr.bf16.mxu0 0
    %9346 = vmatpush1.bf16.xpose.msra.mxu0 %v8539
    %9347 = vmatprep.subr.bf16.mxu0 0
    %9348 = vmatpush1.bf16.xpose.msra.mxu0 %v8540
    %9349 = vmatprep.subr.bf16.mxu0 0
    %9350 = vmatpush1.bf16.xpose.msra.mxu0 %v8541
    %9351 = vmatprep.subr.bf16.mxu0 0
    %9352 = vmatpush1.bf16.xpose.msra.mxu0 %v8542
    %9353 = vmatprep.subr.bf16.mxu0 0
    %9354 = vmatpush1.bf16.xpose.msra.mxu0 %v8543
    %9355 = vmatprep.subr.bf16.mxu0 0
    %9356 = vmatpush1.bf16.xpose.msra.mxu0 %v8544
    %9357 = vmatprep.subr.bf16.mxu0 0
    %9358 = vmatpush1.bf16.xpose.msra.mxu0 %v8545
    %9359 = vmatprep.subr.bf16.mxu0 0
    %9360 = vmatpush1.bf16.xpose.msra.mxu0 %v8583
    %9361 = vmatprep.subr.bf16.mxu0 0
    %9362 = vmatpush1.bf16.xpose.msra.mxu0 %v8515
    %9363 = vmatprep.mubr.bf16.mxu0 0
    %9364 = vmatmul.mubr.bf16.gmra.mrb[0].mxu0 %v9289
    %v9365 = vpop.f32.mrb[0].mxu0
    %v9366 = vadd.f32 0.0, %v9365
    %v9367 = vpop.f32.mrb[0].mxu0
    %v9368 = vadd.f32 0.0, %v9367
    %v9369 = vpop.f32.mrb[0].mxu0
    %v9370 = vpop.f32.mrb[0].mxu0
    %9371 = vdwg.mxu0
    %v9372 = vadd.f32 %v9283, %v9325
    %v9373 = vadd.f32 %v9284, %v9327
    %v9374 = vadd.f32 %v9285, %v9366
    %v9375 = vadd.f32 %v9286, %v9368
    %v9376 = vld [vmem:[%s14] sm:$0xff]
    %9378 = vset.pattern.permute.xlu0 0
    %9379 = vperm.xlu0 %9378, %v9376
    %v9380 = vpop.permute.xlu0 %9379
    %v9382 = vadd.f32 %v9372, %v9380
    %v9383 = vadd.f32 %v9373, %v9380
    %v9384 = vadd.f32 %v9374, %v9380
    %v9385 = vadd.f32 %v9375, %v9380
    %9386 = vst [vmem:[#allocation11] sm:$0xff] %v9382
    %9387 = vst [vmem:[#allocation11 + $0x8] sm:$0xff] %v9383
    %9388 = vst [vmem:[#allocation11 + $0x10] sm:$0xff] %v9384
    %9389 = vst [vmem:[#allocation11 + $0x18] sm:$0xff] %v9385
    // Predicated region
    $region82: #{tpu_custom_call.1} parent=1 // pred_check
      _
    $region83: #{tpu_custom_call.1} parent=1 // pred_check_branch
      %9391 = sbr.rel (0) target = $region85
    $region84: #{tpu_custom_call.1} parent=1 // pred_region
      %s9393 = ssub.s32 512, 512
      %9394 = vsyncadd [#allocation4], %s9393
      %s9396 = sshll.u32 [#allocation11], 4
      %s9397 = int_to_ptr.vmem [resolvable:$true] %s9396
      %9399 = dma.vmem_to_hbm [thread:$0]  %s9397, 512, %s15, [#allocation4]
    $region85: #{tpu_custom_call.1} parent=1 // pred_fallthru
      _
    // Predicated region
    $region86: #{tpu_custom_call.1} parent=1 // pred_check
      _
    $region87: #{tpu_custom_call.1} parent=1 // pred_check_branch
      %9401 = sbr.rel (0) target = $region89
    $region88: #{tpu_custom_call.1} parent=1 // pred_region
      %9402 = dma.done [#allocation4], 512
    $region89: #{tpu_custom_call.1} parent=1 // pred_fallthru
      _
    %9403 = vsyncpa [#allocation3], 1
    %9404 = vsyncpa [#allocation6], 1
    %9405 = vsyncpa [#allocation9], 1
    %9406 = vsyncpa [#allocation4], 1

</llo_original>
